<compile_context>
chip_gen: v7x
topology: tpu7x:2x2x1
jax: 0.10.0
libtpu: 0.0.40
codegen_flags: <defaults>
</compile_context>

<pallas_src>
import jax
import jax.numpy as jnp
from jax import lax
from jax.experimental import pallas as pl
from jax.experimental.pallas import tpu as pltpu


def _round_up(x, m):
    return (x + m - 1) // m * m


# ---------------- fused Pallas kernel ----------------

def spgat_fused_kernel(nbr_ref, h_ref, ht_ref, wz_ref, ws_ref, out_ref,
                       zs_ref, srow_ref):
    """Fused projection + per-edge attention + softmax aggregation.

    nbr_ref : (tp, K)        int32  neighbor (source-node) ids for this tile
    h_ref   : (Nw_pad, Din)  f32    source-node features (whole array, resident)
    ht_ref  : (Din, Nw_pad)  f32    h transposed (for the score-row matmul)
    wz_ref  : (Din, Dp)      f32    [W_fc^T | 0-pad] projection weight
    ws_ref  : (8, Din)       f32    (W_fc^T a_src)^T replicated on 8 sublanes
    out_ref : (tp, Dp)       f32    aggregated passage features (cols >= d_out = 0)
    zs_ref  : (Nw_pad, Dp)   bf16   VMEM scratch: projected z (bf16 MXU operand)
    srow_ref: (8, Nw_pad)    f32    VMEM scratch: leaky_relu'd per-source scores
    """
    nw = zs_ref.shape[0]

    @pl.when(pl.program_id(0) == 0)
    def _():
        # One-off projection + score row; tiny f32 matmuls keep the scores exact.
        z = jnp.dot(h_ref[...], wz_ref[...], preferred_element_type=jnp.float32)
        zs_ref[...] = z.astype(jnp.bfloat16)
        s = jnp.dot(ws_ref[...], ht_ref[...], preferred_element_type=jnp.float32)
        srow_ref[...] = jnp.where(s >= 0.0, s, 0.01 * s)        # F.leaky_relu

    idx = nbr_ref[...]                                          # (tp, K)
    tp, k_slots = idx.shape
    lane = lax.broadcasted_iota(jnp.int32, (tp, nw), 1)
    s_bcast = jnp.broadcast_to(srow_ref[0:1, :], (tp, nw))      # hoisted broadcast

    # Pass 1: gather the per-slot edge scores (exactly one lane matches per row).
    # VPU compare/select + XLU lane reduce; only (tp,1) values stay live.
    e = []
    for k in range(k_slots):
        sel = jnp.where(idx[:, k:k + 1] == lane, s_bcast, 0.0)
        e.append(jnp.sum(sel, axis=1, keepdims=True))           # (tp, 1)

    # Softmax over the K mailbox slots on (tp, 1) vectors only.
    m = e[0]
    for k in range(1, k_slots):
        m = jnp.maximum(m, e[k])
    p = [jnp.exp(ek - m) for ek in e]
    denom = p[0]
    for k in range(1, k_slots):
        denom = denom + p[k]
    inv = pl.reciprocal(denom, approx=True)                     # EUP slot

    # Pass 2: alpha-weighted one-hot aggregation matrix, built on the VPU.
    agg = jnp.zeros((tp, nw), jnp.float32)
    for k in range(k_slots):
        agg = agg + jnp.where(idx[:, k:k + 1] == lane, p[k] * inv, 0.0)

    # ONE bf16 MXU matmul replaces the K per-slot gather matmuls.
    out_ref[...] = jnp.dot(agg.astype(jnp.bfloat16), zs_ref[...],
                           preferred_element_type=jnp.float32)


# ---------------- wrapper ----------------

def sp_gat_forward(h, nbr_idx, params, *, tp=256):
    """SPGATLayer.forward restricted to the passage (pnode_id) outputs."""
    nw, in_dim = h.shape
    p_nodes, k_slots = nbr_idx.shape
    d_out = params["w_fc"].shape[0]
    dp = _round_up(d_out, 128)                       # lane-dense padded width

    # Projection weight padded to 128 lanes (extra columns zero -> output cols
    # >= d_out are exactly zero and get sliced off).
    w_fc_t = params["w_fc"].T.astype(jnp.float32)                    # (Din, Dout)
    a_src = params["w_attn"][0, :d_out].astype(jnp.float32)          # src half only
    wz = jnp.zeros((in_dim, dp), jnp.float32).at[:, :d_out].set(w_fc_t)
    # Per-source attention score weight, row form, replicated on 8 sublanes.
    ws = jnp.broadcast_to((w_fc_t @ a_src)[None, :], (8, in_dim)).astype(jnp.float32)

    # Pad node counts so every block divides exactly (no tail masking; padded
    # passage rows are sliced off, padded source rows are never referenced).
    nw_pad = _round_up(nw, 128)
    tp = min(tp, _round_up(p_nodes, 8))
    p_pad = _round_up(p_nodes, tp)

    h_p = jnp.zeros((nw_pad, in_dim), jnp.float32).at[:nw].set(h.astype(jnp.float32))
    ht_p = h_p.T
    nbr_p = jnp.zeros((p_pad, k_slots), jnp.int32).at[:p_nodes].set(
        nbr_idx.astype(jnp.int32))

    out = pl.pallas_call(
        spgat_fused_kernel,
        out_shape=jax.ShapeDtypeStruct((p_pad, dp), jnp.float32),
        grid_spec=pltpu.PrefetchScalarGridSpec(
            num_scalar_prefetch=0,
            grid=(p_pad // tp,),
            in_specs=[
                pl.BlockSpec((tp, k_slots), lambda i: (i, 0)),     # neighbor tile
                pl.BlockSpec((nw_pad, in_dim), lambda i: (0, 0)),  # h   (resident)
                pl.BlockSpec((in_dim, nw_pad), lambda i: (0, 0)),  # h^T (resident)
                pl.BlockSpec((in_dim, dp), lambda i: (0, 0)),      # W_fc^T padded
                pl.BlockSpec((8, in_dim), lambda i: (0, 0)),       # score weight
            ],
            out_specs=pl.BlockSpec((tp, dp), lambda i: (i, 0)),
            scratch_shapes=[pltpu.VMEM((nw_pad, dp), jnp.bfloat16),
                            pltpu.VMEM((8, nw_pad), jnp.float32)]),
        # scratch filled at step 0 is reused by later steps -> sequential grid
        compiler_params=pltpu.CompilerParams(
            dimension_semantics=("arbitrary",)),
    )(nbr_p, h_p, ht_p, wz, ws)
    return out[:p_nodes, :d_out]


# ---------------- main ----------------

if __name__ == "__main__":
    key = jax.random.PRNGKey(0)
    nw, p_nodes, k_nbr = 384, 512, 8            # source nodes, passage nodes, nbrs
    in_dim, out_dim, feat_embed = 64, 32, 16

    k1, k2, k3, k4 = jax.random.split(key, 4)
    h = jax.random.normal(k1, (nw, in_dim), jnp.float32)
    nbr_idx = jax.random.randint(k2, (p_nodes, k_nbr), 0, nw)

    # deterministic parameter init (PyTorch Linear weight layout: (out, in))
    w_fc = 0.1 * jax.random.normal(k3, (out_dim, in_dim), jnp.float32)
    w_attn = 0.1 * jax.random.normal(k4, (1, 2 * out_dim), jnp.float32)
    params = {"w_fc": w_fc, "w_attn": w_attn}

    out = sp_gat_forward(h, nbr_idx, params)
    out = jax.block_until_ready(out)

    # pure-JAX reference (matching the PyTorch module's computation)
    z_ref = h @ w_fc.T                                   # z = fc(h)
    s_ref = z_ref @ w_attn[0, :out_dim]                  # attn_fc(cat(z_src, 0))
    e_ref = jnp.where(s_ref >= 0, s_ref, 0.01 * s_ref)   # F.leaky_relu
    e_nbr = e_ref[nbr_idx]                               # mailbox['e']  (P, K)
    alpha = jax.nn.softmax(e_nbr, axis=1)
    z_nbr = z_ref[nbr_idx]                               # mailbox['z']  (P, K, D)
    ref = jnp.einsum("pk,pkd->pd", alpha, z_nbr)

    assert out.shape == (p_nodes, out_dim)
    assert jnp.allclose(out, ref, atol=1e-2, rtol=1e-2), float(
        jnp.max(jnp.abs(out - ref)))

    print("KERNEL_OK")
</pallas_src>

<mosaic_0001>
module attributes {stable_mosaic.version = 11 : i64} {
  func.func @spgat_fused_kernel(%arg0: i32, %arg1: memref<256x8xi32, #tpu.memory_space<vmem>>, %arg2: memref<384x64xf32, #tpu.memory_space<vmem>>, %arg3: memref<64x384xf32, #tpu.memory_space<vmem>>, %arg4: memref<64x128xf32, #tpu.memory_space<vmem>>, %arg5: memref<8x64xf32, #tpu.memory_space<vmem>>, %arg6: memref<256x128xf32, #tpu.memory_space<vmem>>, %arg7: memref<384x128xbf16, #tpu.memory_space<vmem>>, %arg8: memref<8x384xf32, #tpu.memory_space<vmem>>) attributes {dimension_semantics = [#tpu.dimension_semantics<arbitrary>], iteration_bounds = array<i64: 2>, scalar_prefetch = 0 : i64, scratch_operands = 2 : i64, tpu.core_type = #tpu.core_type<tc>, window_params = [{transform_indices = @transform_0, window_bounds = array<i64: 256, 8>}, {pipeline_mode = #tpu.pipeline_mode<synchronous>, transform_indices = @transform_1, window_bounds = array<i64: 384, 64>}, {pipeline_mode = #tpu.pipeline_mode<synchronous>, transform_indices = @transform_2, window_bounds = array<i64: 64, 384>}, {pipeline_mode = #tpu.pipeline_mode<synchronous>, transform_indices = @transform_3, window_bounds = array<i64: 64, 128>}, {pipeline_mode = #tpu.pipeline_mode<synchronous>, transform_indices = @transform_4, window_bounds = array<i64: 8, 64>}, {transform_indices = @transform_5, window_bounds = array<i64: 256, 128>}]} {
    %c0_i32 = arith.constant 0 : i32
    %0 = arith.cmpi eq, %arg0, %c0_i32 : i32
    %1 = arith.extui %0 : i1 to i32
    %c0_i32_0 = arith.constant 0 : i32
    %2 = arith.cmpi ne, %1, %c0_i32_0 : i32
    scf.if %2 {
      %c0_33 = arith.constant 0 : index
      %c0_34 = arith.constant 0 : index
      %172 = vector.load %arg2[%c0_33, %c0_34] : memref<384x64xf32, #tpu.memory_space<vmem>>, vector<384x64xf32>
      %c0_35 = arith.constant 0 : index
      %c0_36 = arith.constant 0 : index
      %173 = vector.load %arg4[%c0_35, %c0_36] : memref<64x128xf32, #tpu.memory_space<vmem>>, vector<64x128xf32>
      %cst_37 = arith.constant dense<0.000000e+00> : vector<384x128xf32>
      %174 = tpu.matmul %172, %173, %cst_37 {dimension_numbers = #tpu.dot_dimension_numbers<[1], [0], [0], [1], [0, 0, 1, 1], [], []>} : vector<384x64xf32>, vector<64x128xf32>, vector<384x128xf32> -> vector<384x128xf32>
      %175 = arith.truncf %174 : vector<384x128xf32> to vector<384x128xbf16>
      %c0_38 = arith.constant 0 : index
      %c0_39 = arith.constant 0 : index
      %176 = vector.load %arg7[%c0_38, %c0_39] : memref<384x128xbf16, #tpu.memory_space<vmem>>, vector<384x128xbf16>
      tpu.vector_store %arg7[%c0_38, %c0_39], %175 {strides = array<i32>} : memref<384x128xbf16, #tpu.memory_space<vmem>>, vector<384x128xbf16>,
      %c0_40 = arith.constant 0 : index
      %c0_41 = arith.constant 0 : index
      %177 = vector.load %arg5[%c0_40, %c0_41] : memref<8x64xf32, #tpu.memory_space<vmem>>, vector<8x64xf32>
      %c0_42 = arith.constant 0 : index
      %c0_43 = arith.constant 0 : index
      %178 = vector.load %arg3[%c0_42, %c0_43] : memref<64x384xf32, #tpu.memory_space<vmem>>, vector<64x384xf32>
      %cst_44 = arith.constant dense<0.000000e+00> : vector<8x384xf32>
      %179 = tpu.matmul %177, %178, %cst_44 {dimension_numbers = #tpu.dot_dimension_numbers<[1], [0], [0], [1], [0, 0, 1, 1], [], []>} : vector<8x64xf32>, vector<64x384xf32>, vector<8x384xf32> -> vector<8x384xf32>
      %cst_45 = arith.constant 0.000000e+00 : f32
      %180 = vector.broadcast %cst_45 : f32 to vector<8x384xf32>
      %181 = arith.cmpf oge, %179, %180 : vector<8x384xf32>
      %cst_46 = arith.constant 0.00999999977 : f32
      %182 = vector.broadcast %cst_46 : f32 to vector<8x384xf32>
      %183 = arith.mulf %182, %179 : vector<8x384xf32>
      %184 = arith.select %181, %179, %183 : vector<8x384xi1>, vector<8x384xf32>
      %c0_47 = arith.constant 0 : index
      %c0_48 = arith.constant 0 : index
      %185 = vector.load %arg8[%c0_47, %c0_48] : memref<8x384xf32, #tpu.memory_space<vmem>>, vector<8x384xf32>
      tpu.vector_store %arg8[%c0_47, %c0_48], %184 {strides = array<i32>} : memref<8x384xf32, #tpu.memory_space<vmem>>, vector<8x384xf32>,
    } else {
    }
    %c0 = arith.constant 0 : index
    %c0_1 = arith.constant 0 : index
    %3 = vector.load %arg1[%c0, %c0_1] : memref<256x8xi32, #tpu.memory_space<vmem>>, vector<256x8xi32>
    %4 = tpu.iota {dimensions = array<i32: 1>} : vector<256x384xi32>
    %c0_2 = arith.constant 0 : index
    %c0_3 = arith.constant 0 : index
    %5 = vector.load %arg8[%c0_2, %c0_3] : memref<8x384xf32, #tpu.memory_space<vmem>>, vector<1x384xf32>
    %6 = vector.shape_cast %5 : vector<1x384xf32> to vector<1x384xf32>
    %7 = vector.broadcast %6 : vector<1x384xf32> to vector<256x384xf32>
    %8 = vector.extract_strided_slice %3 {offsets = [0, 0], sizes = [256, 1], strides = [1, 1]} : vector<256x8xi32> to vector<256x1xi32>
    %9 = vector.broadcast %8 : vector<256x1xi32> to vector<256x384xi32>
    %10 = arith.cmpi eq, %9, %4 : vector<256x384xi32>
    %cst = arith.constant 0.000000e+00 : f32
    %11 = vector.broadcast %cst : f32 to vector<256x384xf32>
    %12 = arith.select %10, %7, %11 : vector<256x384xi1>, vector<256x384xf32>
    %cst_4 = arith.constant dense<0.000000e+00> : vector<256xf32>
    %13 = vector.multi_reduction <add>, %12, %cst_4 [1] : vector<256x384xf32> to vector<256xf32>
    %14 = vector.shape_cast %13 : vector<256xf32> to vector<256x1xf32>
    %15 = vector.extract_strided_slice %3 {offsets = [0, 1], sizes = [256, 1], strides = [1, 1]} : vector<256x8xi32> to vector<256x1xi32>
    %16 = vector.broadcast %15 : vector<256x1xi32> to vector<256x384xi32>
    %17 = arith.cmpi eq, %16, %4 : vector<256x384xi32>
    %cst_5 = arith.constant 0.000000e+00 : f32
    %18 = vector.broadcast %cst_5 : f32 to vector<256x384xf32>
    %19 = arith.select %17, %7, %18 : vector<256x384xi1>, vector<256x384xf32>
    %cst_6 = arith.constant dense<0.000000e+00> : vector<256xf32>
    %20 = vector.multi_reduction <add>, %19, %cst_6 [1] : vector<256x384xf32> to vector<256xf32>
    %21 = vector.shape_cast %20 : vector<256xf32> to vector<256x1xf32>
    %22 = vector.extract_strided_slice %3 {offsets = [0, 2], sizes = [256, 1], strides = [1, 1]} : vector<256x8xi32> to vector<256x1xi32>
    %23 = vector.broadcast %22 : vector<256x1xi32> to vector<256x384xi32>
    %24 = arith.cmpi eq, %23, %4 : vector<256x384xi32>
    %cst_7 = arith.constant 0.000000e+00 : f32
    %25 = vector.broadcast %cst_7 : f32 to vector<256x384xf32>
    %26 = arith.select %24, %7, %25 : vector<256x384xi1>, vector<256x384xf32>
    %cst_8 = arith.constant dense<0.000000e+00> : vector<256xf32>
    %27 = vector.multi_reduction <add>, %26, %cst_8 [1] : vector<256x384xf32> to vector<256xf32>
    %28 = vector.shape_cast %27 : vector<256xf32> to vector<256x1xf32>
    %29 = vector.extract_strided_slice %3 {offsets = [0, 3], sizes = [256, 1], strides = [1, 1]} : vector<256x8xi32> to vector<256x1xi32>
    %30 = vector.broadcast %29 : vector<256x1xi32> to vector<256x384xi32>
    %31 = arith.cmpi eq, %30, %4 : vector<256x384xi32>
    %cst_9 = arith.constant 0.000000e+00 : f32
    %32 = vector.broadcast %cst_9 : f32 to vector<256x384xf32>
    %33 = arith.select %31, %7, %32 : vector<256x384xi1>, vector<256x384xf32>
    %cst_10 = arith.constant dense<0.000000e+00> : vector<256xf32>
    %34 = vector.multi_reduction <add>, %33, %cst_10 [1] : vector<256x384xf32> to vector<256xf32>
    %35 = vector.shape_cast %34 : vector<256xf32> to vector<256x1xf32>
    %36 = vector.extract_strided_slice %3 {offsets = [0, 4], sizes = [256, 1], strides = [1, 1]} : vector<256x8xi32> to vector<256x1xi32>
    %37 = vector.broadcast %36 : vector<256x1xi32> to vector<256x384xi32>
    %38 = arith.cmpi eq, %37, %4 : vector<256x384xi32>
    %cst_11 = arith.constant 0.000000e+00 : f32
    %39 = vector.broadcast %cst_11 : f32 to vector<256x384xf32>
    %40 = arith.select %38, %7, %39 : vector<256x384xi1>, vector<256x384xf32>
    %cst_12 = arith.constant dense<0.000000e+00> : vector<256xf32>
    %41 = vector.multi_reduction <add>, %40, %cst_12 [1] : vector<256x384xf32> to vector<256xf32>
    %42 = vector.shape_cast %41 : vector<256xf32> to vector<256x1xf32>
    %43 = vector.extract_strided_slice %3 {offsets = [0, 5], sizes = [256, 1], strides = [1, 1]} : vector<256x8xi32> to vector<256x1xi32>
    %44 = vector.broadcast %43 : vector<256x1xi32> to vector<256x384xi32>
    %45 = arith.cmpi eq, %44, %4 : vector<256x384xi32>
    %cst_13 = arith.constant 0.000000e+00 : f32
    %46 = vector.broadcast %cst_13 : f32 to vector<256x384xf32>
    %47 = arith.select %45, %7, %46 : vector<256x384xi1>, vector<256x384xf32>
    %cst_14 = arith.constant dense<0.000000e+00> : vector<256xf32>
    %48 = vector.multi_reduction <add>, %47, %cst_14 [1] : vector<256x384xf32> to vector<256xf32>
    %49 = vector.shape_cast %48 : vector<256xf32> to vector<256x1xf32>
    %50 = vector.extract_strided_slice %3 {offsets = [0, 6], sizes = [256, 1], strides = [1, 1]} : vector<256x8xi32> to vector<256x1xi32>
    %51 = vector.broadcast %50 : vector<256x1xi32> to vector<256x384xi32>
    %52 = arith.cmpi eq, %51, %4 : vector<256x384xi32>
    %cst_15 = arith.constant 0.000000e+00 : f32
    %53 = vector.broadcast %cst_15 : f32 to vector<256x384xf32>
    %54 = arith.select %52, %7, %53 : vector<256x384xi1>, vector<256x384xf32>
    %cst_16 = arith.constant dense<0.000000e+00> : vector<256xf32>
    %55 = vector.multi_reduction <add>, %54, %cst_16 [1] : vector<256x384xf32> to vector<256xf32>
    %56 = vector.shape_cast %55 : vector<256xf32> to vector<256x1xf32>
    %57 = vector.extract_strided_slice %3 {offsets = [0, 7], sizes = [256, 1], strides = [1, 1]} : vector<256x8xi32> to vector<256x1xi32>
    %58 = vector.broadcast %57 : vector<256x1xi32> to vector<256x384xi32>
    %59 = arith.cmpi eq, %58, %4 : vector<256x384xi32>
    %cst_17 = arith.constant 0.000000e+00 : f32
    %60 = vector.broadcast %cst_17 : f32 to vector<256x384xf32>
    %61 = arith.select %59, %7, %60 : vector<256x384xi1>, vector<256x384xf32>
    %cst_18 = arith.constant dense<0.000000e+00> : vector<256xf32>
    %62 = vector.multi_reduction <add>, %61, %cst_18 [1] : vector<256x384xf32> to vector<256xf32>
    %63 = vector.shape_cast %62 : vector<256xf32> to vector<256x1xf32>
    %64 = arith.maximumf %14, %21 : vector<256x1xf32>
    %65 = arith.maximumf %64, %28 : vector<256x1xf32>
    %66 = arith.maximumf %65, %35 : vector<256x1xf32>
    %67 = arith.maximumf %66, %42 : vector<256x1xf32>
    %68 = arith.maximumf %67, %49 : vector<256x1xf32>
    %69 = arith.maximumf %68, %56 : vector<256x1xf32>
    %70 = arith.maximumf %69, %63 : vector<256x1xf32>
    %71 = arith.subf %14, %70 : vector<256x1xf32>
    %72 = math.exp %71 : vector<256x1xf32>
    %73 = arith.subf %21, %70 : vector<256x1xf32>
    %74 = math.exp %73 : vector<256x1xf32>
    %75 = arith.subf %28, %70 : vector<256x1xf32>
    %76 = math.exp %75 : vector<256x1xf32>
    %77 = arith.subf %35, %70 : vector<256x1xf32>
    %78 = math.exp %77 : vector<256x1xf32>
    %79 = arith.subf %42, %70 : vector<256x1xf32>
    %80 = math.exp %79 : vector<256x1xf32>
    %81 = arith.subf %49, %70 : vector<256x1xf32>
    %82 = math.exp %81 : vector<256x1xf32>
    %83 = arith.subf %56, %70 : vector<256x1xf32>
    %84 = math.exp %83 : vector<256x1xf32>
    %85 = arith.subf %63, %70 : vector<256x1xf32>
    %86 = math.exp %85 : vector<256x1xf32>
    %87 = arith.addf %72, %74 : vector<256x1xf32>
    %88 = arith.addf %87, %76 : vector<256x1xf32>
    %89 = arith.addf %88, %78 : vector<256x1xf32>
    %90 = arith.addf %89, %80 : vector<256x1xf32>
    %91 = arith.addf %90, %82 : vector<256x1xf32>
    %92 = arith.addf %91, %84 : vector<256x1xf32>
    %93 = arith.addf %92, %86 : vector<256x1xf32>
    %94 = tpu.reciprocal %93 {approx = true} : vector<256x1xf32> -> vector<256x1xf32>
    %cst_19 = arith.constant 0.000000e+00 : f32
    %95 = vector.broadcast %cst_19 : f32 to vector<256x384xf32>
    %96 = vector.extract_strided_slice %3 {offsets = [0, 0], sizes = [256, 1], strides = [1, 1]} : vector<256x8xi32> to vector<256x1xi32>
    %97 = vector.broadcast %96 : vector<256x1xi32> to vector<256x384xi32>
    %98 = arith.cmpi eq, %97, %4 : vector<256x384xi32>
    %99 = arith.mulf %72, %94 : vector<256x1xf32>
    %cst_20 = arith.constant 0.000000e+00 : f32
    %100 = vector.shape_cast %99 : vector<256x1xf32> to vector<256x1xf32>
    %101 = vector.broadcast %100 : vector<256x1xf32> to vector<256x384xf32>
    %102 = vector.broadcast %cst_20 : f32 to vector<256x384xf32>
    %103 = arith.select %98, %101, %102 : vector<256x384xi1>, vector<256x384xf32>
    %104 = arith.addf %95, %103 : vector<256x384xf32>
    %105 = vector.extract_strided_slice %3 {offsets = [0, 1], sizes = [256, 1], strides = [1, 1]} : vector<256x8xi32> to vector<256x1xi32>
    %106 = vector.broadcast %105 : vector<256x1xi32> to vector<256x384xi32>
    %107 = arith.cmpi eq, %106, %4 : vector<256x384xi32>
    %108 = arith.mulf %74, %94 : vector<256x1xf32>
    %cst_21 = arith.constant 0.000000e+00 : f32
    %109 = vector.shape_cast %108 : vector<256x1xf32> to vector<256x1xf32>
    %110 = vector.broadcast %109 : vector<256x1xf32> to vector<256x384xf32>
    %111 = vector.broadcast %cst_21 : f32 to vector<256x384xf32>
    %112 = arith.select %107, %110, %111 : vector<256x384xi1>, vector<256x384xf32>
    %113 = arith.addf %104, %112 : vector<256x384xf32>
    %114 = vector.extract_strided_slice %3 {offsets = [0, 2], sizes = [256, 1], strides = [1, 1]} : vector<256x8xi32> to vector<256x1xi32>
    %115 = vector.broadcast %114 : vector<256x1xi32> to vector<256x384xi32>
    %116 = arith.cmpi eq, %115, %4 : vector<256x384xi32>
    %117 = arith.mulf %76, %94 : vector<256x1xf32>
    %cst_22 = arith.constant 0.000000e+00 : f32
    %118 = vector.shape_cast %117 : vector<256x1xf32> to vector<256x1xf32>
    %119 = vector.broadcast %118 : vector<256x1xf32> to vector<256x384xf32>
    %120 = vector.broadcast %cst_22 : f32 to vector<256x384xf32>
    %121 = arith.select %116, %119, %120 : vector<256x384xi1>, vector<256x384xf32>
    %122 = arith.addf %113, %121 : vector<256x384xf32>
    %123 = vector.extract_strided_slice %3 {offsets = [0, 3], sizes = [256, 1], strides = [1, 1]} : vector<256x8xi32> to vector<256x1xi32>
    %124 = vector.broadcast %123 : vector<256x1xi32> to vector<256x384xi32>
    %125 = arith.cmpi eq, %124, %4 : vector<256x384xi32>
    %126 = arith.mulf %78, %94 : vector<256x1xf32>
    %cst_23 = arith.constant 0.000000e+00 : f32
    %127 = vector.shape_cast %126 : vector<256x1xf32> to vector<256x1xf32>
    %128 = vector.broadcast %127 : vector<256x1xf32> to vector<256x384xf32>
    %129 = vector.broadcast %cst_23 : f32 to vector<256x384xf32>
    %130 = arith.select %125, %128, %129 : vector<256x384xi1>, vector<256x384xf32>
    %131 = arith.addf %122, %130 : vector<256x384xf32>
    %132 = vector.extract_strided_slice %3 {offsets = [0, 4], sizes = [256, 1], strides = [1, 1]} : vector<256x8xi32> to vector<256x1xi32>
    %133 = vector.broadcast %132 : vector<256x1xi32> to vector<256x384xi32>
    %134 = arith.cmpi eq, %133, %4 : vector<256x384xi32>
    %135 = arith.mulf %80, %94 : vector<256x1xf32>
    %cst_24 = arith.constant 0.000000e+00 : f32
    %136 = vector.shape_cast %135 : vector<256x1xf32> to vector<256x1xf32>
    %137 = vector.broadcast %136 : vector<256x1xf32> to vector<256x384xf32>
    %138 = vector.broadcast %cst_24 : f32 to vector<256x384xf32>
    %139 = arith.select %134, %137, %138 : vector<256x384xi1>, vector<256x384xf32>
    %140 = arith.addf %131, %139 : vector<256x384xf32>
    %141 = vector.extract_strided_slice %3 {offsets = [0, 5], sizes = [256, 1], strides = [1, 1]} : vector<256x8xi32> to vector<256x1xi32>
    %142 = vector.broadcast %141 : vector<256x1xi32> to vector<256x384xi32>
    %143 = arith.cmpi eq, %142, %4 : vector<256x384xi32>
    %144 = arith.mulf %82, %94 : vector<256x1xf32>
    %cst_25 = arith.constant 0.000000e+00 : f32
    %145 = vector.shape_cast %144 : vector<256x1xf32> to vector<256x1xf32>
    %146 = vector.broadcast %145 : vector<256x1xf32> to vector<256x384xf32>
    %147 = vector.broadcast %cst_25 : f32 to vector<256x384xf32>
    %148 = arith.select %143, %146, %147 : vector<256x384xi1>, vector<256x384xf32>
    %149 = arith.addf %140, %148 : vector<256x384xf32>
    %150 = vector.extract_strided_slice %3 {offsets = [0, 6], sizes = [256, 1], strides = [1, 1]} : vector<256x8xi32> to vector<256x1xi32>
    %151 = vector.broadcast %150 : vector<256x1xi32> to vector<256x384xi32>
    %152 = arith.cmpi eq, %151, %4 : vector<256x384xi32>
    %153 = arith.mulf %84, %94 : vector<256x1xf32>
    %cst_26 = arith.constant 0.000000e+00 : f32
    %154 = vector.shape_cast %153 : vector<256x1xf32> to vector<256x1xf32>
    %155 = vector.broadcast %154 : vector<256x1xf32> to vector<256x384xf32>
    %156 = vector.broadcast %cst_26 : f32 to vector<256x384xf32>
    %157 = arith.select %152, %155, %156 : vector<256x384xi1>, vector<256x384xf32>
    %158 = arith.addf %149, %157 : vector<256x384xf32>
    %159 = vector.extract_strided_slice %3 {offsets = [0, 7], sizes = [256, 1], strides = [1, 1]} : vector<256x8xi32> to vector<256x1xi32>
    %160 = vector.broadcast %159 : vector<256x1xi32> to vector<256x384xi32>
    %161 = arith.cmpi eq, %160, %4 : vector<256x384xi32>
    %162 = arith.mulf %86, %94 : vector<256x1xf32>
    %cst_27 = arith.constant 0.000000e+00 : f32
    %163 = vector.shape_cast %162 : vector<256x1xf32> to vector<256x1xf32>
    %164 = vector.broadcast %163 : vector<256x1xf32> to vector<256x384xf32>
    %165 = vector.broadcast %cst_27 : f32 to vector<256x384xf32>
    %166 = arith.select %161, %164, %165 : vector<256x384xi1>, vector<256x384xf32>
    %167 = arith.addf %158, %166 : vector<256x384xf32>
    %168 = arith.truncf %167 : vector<256x384xf32> to vector<256x384xbf16>
    %c0_28 = arith.constant 0 : index
    %c0_29 = arith.constant 0 : index
    %169 = vector.load %arg7[%c0_28, %c0_29] : memref<384x128xbf16, #tpu.memory_space<vmem>>, vector<384x128xbf16>
    %cst_30 = arith.constant dense<0.000000e+00> : vector<256x128xf32>
    %170 = tpu.matmul %168, %169, %cst_30 {dimension_numbers = #tpu.dot_dimension_numbers<[1], [0], [0], [1], [0, 0, 1, 1], [], []>} : vector<256x384xbf16>, vector<384x128xbf16>, vector<256x128xf32> -> vector<256x128xf32>
    %c0_31 = arith.constant 0 : index
    %c0_32 = arith.constant 0 : index
    %171 = vector.load %arg6[%c0_31, %c0_32] : memref<256x128xf32, #tpu.memory_space<vmem>>, vector<256x128xf32>
    tpu.vector_store %arg6[%c0_31, %c0_32], %170 {strides = array<i32>} : memref<256x128xf32, #tpu.memory_space<vmem>>, vector<256x128xf32>,
    return
  }
  func.func @transform_0(%arg0: i32) -> (i32, i32) {
    %c0_i32 = arith.constant 0 : i32
    %c0_i32_0 = arith.constant 0 : i32
    return %arg0, %c0_i32 : i32, i32
  }
  func.func @transform_1(%arg0: i32) -> (i32, i32) {
    %c0_i32 = arith.constant 0 : i32
    %c0_i32_0 = arith.constant 0 : i32
    %c0_i32_1 = arith.constant 0 : i32
    return %c0_i32, %c0_i32_0 : i32, i32
  }
  func.func @transform_2(%arg0: i32) -> (i32, i32) {
    %c0_i32 = arith.constant 0 : i32
    %c0_i32_0 = arith.constant 0 : i32
    %c0_i32_1 = arith.constant 0 : i32
    return %c0_i32, %c0_i32_0 : i32, i32
  }
  func.func @transform_3(%arg0: i32) -> (i32, i32) {
    %c0_i32 = arith.constant 0 : i32
    %c0_i32_0 = arith.constant 0 : i32
    %c0_i32_1 = arith.constant 0 : i32
    return %c0_i32, %c0_i32_0 : i32, i32
  }
  func.func @transform_4(%arg0: i32) -> (i32, i32) {
    %c0_i32 = arith.constant 0 : i32
    %c0_i32_0 = arith.constant 0 : i32
    %c0_i32_1 = arith.constant 0 : i32
    return %c0_i32, %c0_i32_0 : i32, i32
  }
  func.func @transform_5(%arg0: i32) -> (i32, i32) {
    %c0_i32 = arith.constant 0 : i32
    %c0_i32_0 = arith.constant 0 : i32
    return %arg0, %c0_i32 : i32, i32
  }
}

</mosaic_0001>

<llo_original>
// kernel: tpu_custom_call.1
$region0: #{tpu_custom_call.1}
  #allocation0 [shape = 'u32[]', space=smem, size = 0x4, offset = 0x4, fixed_abs, tag = 'smem constant byte address 0x4 - core index']
  #allocation1 [shape = 'u32[144,128]{1,0:T(1,128)}', space=vmem, size = 0x12000, scoped, tag = 'internal scratch']
  #allocation2 [shape = 'bf16[384,128]{1,0:T(16,128)(2,1)}', space=vmem, size = 0x18000, scoped, tag = 'scratch operand']
  #allocation3 [shape = 'f32[8,384]{1,0:T(8,128)}', space=vmem, size = 0x3000, scoped, tag = 'scratch operand']
  %s0 = inlined_call_operand.vmem [shape: s32[512,8], index: 0, kind: input, shape index: {}]
  %s1 = inlined_call_operand.vmem [shape: f32[384,64], index: 1, kind: input, shape index: {}]
  %s2 = inlined_call_operand.vmem [shape: f32[64,384], index: 2, kind: input, shape index: {}]
  %s3 = inlined_call_operand.vmem [shape: f32[64,128], index: 3, kind: input, shape index: {}]
  %s4 = inlined_call_operand.vmem [shape: f32[8,64], index: 4, kind: input, shape index: {}]
  %s5 = inlined_call_operand.hbm [shape: f32[512,128], index: 5, kind: output, shape index: {}]
  %s6 = sld [smem:[#allocation0]]
  $region57: #{tpu_custom_call.1} parent=0
    _
  %s8 = ssub.s32 1, %s6
  %s9 = scalar_select 0, %s8, %s6
  $region1: #{tpu_custom_call.1} parent=0
    #allocation4 [shape = 'u8[262144]{0}', space=vmem, size = 0x40000, scoped, tag = 'output window, operand 0']
    #allocation5 [shape = 's32[2]{0}', space=sflag, size = 0x8, scoped, tag = 'scoped memory for tpu_custom_call.1']
    %10 = vsyncpa [#allocation5], 0
    %s11 = scalar_lea.sflag [#allocation5], 1
    %12 = vsyncpa %s11, 0
    loop: start=0, step=1, limit=4
    $region2: #{tpu_custom_call.1} parent=1 // loop_pre_header
      _
    $region3: #{tpu_custom_call.1} parent=1 // loop_header
      %s14 = sphi 0, %s18
      %p15 = scmp.ge.s32.totalorder %s14, 4
      %s24 = sphi 0, %s26
      %s27 = sphi 0, %s24
      %s28 = sphi 0, %s27
      %s44 = sphi 0, %s28
      %s48 = sphi 0, %s48
      %s50 = sphi 0, %s48
      %s51 = sphi 0, %s50
      %s65 = sphi 0, %s51
      %s69 = sphi 0, %s69
      %s71 = sphi 0, %s69
      %s72 = sphi 0, %s71
      %s86 = sphi 0, %s72
      %s90 = sphi 0, %s90
      %s92 = sphi 0, %s90
      %s93 = sphi 0, %s92
      %s107 = sphi 0, %s93
      %s111 = sphi 0, %s111
      %s113 = sphi 0, %s111
      %s114 = sphi 0, %s113
      %s128 = sphi 0, %s114
      %s134 = sphi 0, %s136
      %s137 = sphi 0, %s134
      %s138 = sphi 0, %s137
      %s154 = sphi 0, %s138
    $region4: #{tpu_custom_call.1} parent=1 // loop_header_branch
      %17 = sbr.rel (%p15) target = $region8
    $region5: #{tpu_custom_call.1} parent=1 // loop_body
      %s19 = ssub.s32 %s14, 1
      %s20 = ssub.s32 %s14, 2
      %s21 = sadd.s32 %s14, 1
      %s22 = ssub.s32 %s14, %s21
      %p23 = scmp.eq.s32.totalorder %s22, 0
      %s25 = sadd.s32 %s24, 1
      %s26 = scalar_select %p23, %s24, %s25
      %p29 = pneg %p23
      %p30 = scmp.eq.s32.totalorder %s14, 1
      %p31 = por %p29, %p30
      %p32 = scmp.ne.s32.totalorder %s24, %s27
      %p33 = scmp.eq.s32.totalorder %s14, 0
      %p34 = por %p32, %p33
      %p35 = scmp.ne.s32.totalorder %s24, %s27
      %p36 = scmp.eq.s32.totalorder %s19, 1
      %p37 = por %p35, %p36
      %p38 = scmp.ne.s32.totalorder %s27, %s28
      %p39 = scmp.eq.s32.totalorder %s19, 0
      %p40 = por %p38, %p39
      %p41 = scmp.ne.s32.totalorder %s27, %s28
      %p42 = scmp.eq.s32.totalorder %s20, 1
      %p43 = por %p41, %p42
      %p45 = scmp.ne.s32.totalorder %s28, %s44
      %p46 = scmp.eq.s32.totalorder %s20, 0
      %p47 = por %p45, %p46
      %s49 = sadd.s32 %s48, 1
      %p52 = scmp.eq.s32.totalorder %s14, 1
      %p53 = scmp.ne.s32.totalorder %s48, %s50
      %p54 = scmp.eq.s32.totalorder %s14, 0
      %p55 = por %p53, %p54
      %p56 = scmp.ne.s32.totalorder %s48, %s50
      %p57 = scmp.eq.s32.totalorder %s19, 1
      %p58 = por %p56, %p57
      %p59 = scmp.ne.s32.totalorder %s50, %s51
      %p60 = scmp.eq.s32.totalorder %s19, 0
      %p61 = por %p59, %p60
      %p62 = scmp.ne.s32.totalorder %s50, %s51
      %p63 = scmp.eq.s32.totalorder %s20, 1
      %p64 = por %p62, %p63
      %p66 = scmp.ne.s32.totalorder %s51, %s65
      %p67 = scmp.eq.s32.totalorder %s20, 0
      %p68 = por %p66, %p67
      %s70 = sadd.s32 %s69, 1
      %p73 = scmp.eq.s32.totalorder %s14, 1
      %p74 = scmp.ne.s32.totalorder %s69, %s71
      %p75 = scmp.eq.s32.totalorder %s14, 0
      %p76 = por %p74, %p75
      %p77 = scmp.ne.s32.totalorder %s69, %s71
      %p78 = scmp.eq.s32.totalorder %s19, 1
      %p79 = por %p77, %p78
      %p80 = scmp.ne.s32.totalorder %s71, %s72
      %p81 = scmp.eq.s32.totalorder %s19, 0
      %p82 = por %p80, %p81
      %p83 = scmp.ne.s32.totalorder %s71, %s72
      %p84 = scmp.eq.s32.totalorder %s20, 1
      %p85 = por %p83, %p84
      %p87 = scmp.ne.s32.totalorder %s72, %s86
      %p88 = scmp.eq.s32.totalorder %s20, 0
      %p89 = por %p87, %p88
      %s91 = sadd.s32 %s90, 1
      %p94 = scmp.eq.s32.totalorder %s14, 1
      %p95 = scmp.ne.s32.totalorder %s90, %s92
      %p96 = scmp.eq.s32.totalorder %s14, 0
      %p97 = por %p95, %p96
      %p98 = scmp.ne.s32.totalorder %s90, %s92
      %p99 = scmp.eq.s32.totalorder %s19, 1
      %p100 = por %p98, %p99
      %p101 = scmp.ne.s32.totalorder %s92, %s93
      %p102 = scmp.eq.s32.totalorder %s19, 0
      %p103 = por %p101, %p102
      %p104 = scmp.ne.s32.totalorder %s92, %s93
      %p105 = scmp.eq.s32.totalorder %s20, 1
      %p106 = por %p104, %p105
      %p108 = scmp.ne.s32.totalorder %s93, %s107
      %p109 = scmp.eq.s32.totalorder %s20, 0
      %p110 = por %p108, %p109
      %s112 = sadd.s32 %s111, 1
      %p115 = scmp.eq.s32.totalorder %s14, 1
      %p116 = scmp.ne.s32.totalorder %s111, %s113
      %p117 = scmp.eq.s32.totalorder %s14, 0
      %p118 = por %p116, %p117
      %p119 = scmp.ne.s32.totalorder %s111, %s113
      %p120 = scmp.eq.s32.totalorder %s19, 1
      %p121 = por %p119, %p120
      %p122 = scmp.ne.s32.totalorder %s113, %s114
      %p123 = scmp.eq.s32.totalorder %s19, 0
      %p124 = por %p122, %p123
      %p125 = scmp.ne.s32.totalorder %s113, %s114
      %p126 = scmp.eq.s32.totalorder %s20, 1
      %p127 = por %p125, %p126
      %p129 = scmp.ne.s32.totalorder %s114, %s128
      %p130 = scmp.eq.s32.totalorder %s20, 0
      %p131 = por %p129, %p130
      %s132 = ssub.s32 %s14, %s21
      %p133 = scmp.eq.s32.totalorder %s132, 0
      %s135 = sadd.s32 %s134, 1
      %s136 = scalar_select %p133, %s134, %s135
      %p139 = pneg %p133
      %p140 = scmp.eq.s32.totalorder %s14, 1
      %p141 = por %p139, %p140
      %p142 = scmp.ne.s32.totalorder %s134, %s137
      %p143 = scmp.eq.s32.totalorder %s14, 0
      %p144 = por %p142, %p143
      %p145 = scmp.ne.s32.totalorder %s134, %s137
      %p146 = scmp.eq.s32.totalorder %s19, 1
      %p147 = por %p145, %p146
      %p148 = scmp.ne.s32.totalorder %s137, %s138
      %p149 = scmp.eq.s32.totalorder %s19, 0
      %p150 = por %p148, %p149
      %p151 = scmp.ne.s32.totalorder %s137, %s138
      %p152 = scmp.eq.s32.totalorder %s20, 1
      %p153 = por %p151, %p152
      %p155 = scmp.ne.s32.totalorder %s138, %s154
      %p156 = scmp.eq.s32.totalorder %s20, 0
      %p157 = por %p155, %p156
      %p158 = scmp.le.s32.totalorder 1, %s14
      %p159 = scmp.lt.s32.totalorder %s14, 3
      %p160 = pnand %p158, %p159
      %p161 = pneg %p160
      // Predicated region
      $region9: #{tpu_custom_call.1} parent=5 // pred_check
        _
      $region10: #{tpu_custom_call.1} parent=5 // pred_check_branch
        %163 = sbr.rel (%p160) target = $region12
      $region11: #{tpu_custom_call.1} parent=5 // pred_region
        %s164 = ssub.s32 %s14, 1
        // Predicated region
        $region13: #{tpu_custom_call.1} parent=11 // pred_check
          %p165 = pneg %p61
        $region14: #{tpu_custom_call.1} parent=11 // pred_check_branch
          %167 = sbr.rel (%p165) target = $region16
        $region15: #{tpu_custom_call.1} parent=11 // pred_region
          _
        $region16: #{tpu_custom_call.1} parent=11 // pred_fallthru
          _
        // Predicated region
        $region17: #{tpu_custom_call.1} parent=11 // pred_check
          %p168 = pneg %p82
        $region18: #{tpu_custom_call.1} parent=11 // pred_check_branch
          %170 = sbr.rel (%p168) target = $region20
        $region19: #{tpu_custom_call.1} parent=11 // pred_region
          _
        $region20: #{tpu_custom_call.1} parent=11 // pred_fallthru
          _
        // Predicated region
        $region21: #{tpu_custom_call.1} parent=11 // pred_check
          %p171 = pneg %p103
        $region22: #{tpu_custom_call.1} parent=11 // pred_check_branch
          %173 = sbr.rel (%p171) target = $region24
        $region23: #{tpu_custom_call.1} parent=11 // pred_region
          _
        $region24: #{tpu_custom_call.1} parent=11 // pred_fallthru
          _
        // Predicated region
        $region25: #{tpu_custom_call.1} parent=11 // pred_check
          %p174 = pneg %p124
        $region26: #{tpu_custom_call.1} parent=11 // pred_check_branch
          %176 = sbr.rel (%p174) target = $region28
        $region27: #{tpu_custom_call.1} parent=11 // pred_region
          _
        $region28: #{tpu_custom_call.1} parent=11 // pred_fallthru
          _
      $region12: #{tpu_custom_call.1} parent=5 // pred_fallthru
        _
      %p177 = scmp.lt.s32.totalorder %s14, 2
      // Predicated region
      $region29: #{tpu_custom_call.1} parent=5 // pred_check
        %p178 = pneg %p177
      $region30: #{tpu_custom_call.1} parent=5 // pred_check_branch
        %180 = sbr.rel (%p178) target = $region32
      $region31: #{tpu_custom_call.1} parent=5 // pred_region
        // Predicated region
        $region33: #{tpu_custom_call.1} parent=31 // pred_check
          %p181 = pneg %p34
        $region34: #{tpu_custom_call.1} parent=31 // pred_check_branch
          %183 = sbr.rel (%p181) target = $region36
        $region35: #{tpu_custom_call.1} parent=31 // pred_region
          %s184 = smul.u32 32, %s14
          %p185 = scmp.lt.s32.totalorder %s184, 63
          %s186 = scalar_select %p185, %s184, 63
          %s187 = smul.addr %s186, 8
          %s188 = scalar_lea.vmem %s0, %s187
          %s189 = smul.u32 32, %s14
        $region36: #{tpu_custom_call.1} parent=31 // pred_fallthru
          _
      $region32: #{tpu_custom_call.1} parent=5 // pred_fallthru
        _
      %p190 = scmp.le.s32.totalorder 1, %s14
      %p191 = scmp.lt.s32.totalorder %s14, 3
      %p192 = pnand %p190, %p191
      %p193 = pneg %p192
      // Predicated region
      $region37: #{tpu_custom_call.1} parent=5 // pred_check
        _
      $region38: #{tpu_custom_call.1} parent=5 // pred_check_branch
        %195 = sbr.rel (%p192) target = $region40
      $region39: #{tpu_custom_call.1} parent=5 // pred_region
        %s196 = ssub.s32 %s14, 1
        %s197 = smul.u32 32, %s19
        %p198 = scmp.lt.s32.totalorder %s197, 63
        %s199 = scalar_select %p198, %s197, 63
        %s200 = smul.addr %s199, 8
        %s201 = scalar_lea.vmem %s0, %s200
        %p202 = pneg %p40
        %p203 = pneg %p37
        %p204 = pneg %p61
        %p205 = pneg %p58
        %p206 = pneg %p82
        %p207 = pneg %p79
        %p208 = pneg %p103
        %p209 = pneg %p100
        %p210 = pneg %p124
        %p211 = pneg %p121
        %p212 = pneg %p150
        %p213 = pneg %p147
        %s214 = sand.u32 %s137, 1
        %s215 = scalar_lea.sflag [#allocation5], %s214
        %s216 = sand.u32 %s137, 1
        %s217 = smul.addr %s216, 256
        %s218 = scalar_lea.vmem [#allocation4], %s217
        %s219 = smul.u32 32, %s19
        %p220 = scmp.lt.s32.totalorder %s219, 63
        %s221 = scalar_select %p220, %s219, 63
        %s222 = smul.addr %s221, 8
        %s223 = scalar_lea.vmem %s0, %s222
        %s224 = smul.u32 32, %s19
        %s225 = smul.u32 32, %s19
        %p227 = scmp.eq.s32.totalorder %s19, 0
        // Predicated region
        $region41: #{tpu_custom_call.1} parent=39 // pred_check
          %p228 = pneg %p227
        $region42: #{tpu_custom_call.1} parent=39 // pred_check_branch
          %230 = sbr.rel (%p228) target = $region44
        $region43: #{tpu_custom_call.1} parent=39 // pred_region
          %v231 = vld [vmem:[%s1] sm:$0xff]
          %v232 = vld [vmem:[%s1 + $0x8] sm:$0xff]
          %v233 = vld [vmem:[%s1 + $0x10] sm:$0xff]
          %v234 = vld [vmem:[%s1 + $0x18] sm:$0xff]
          %v235 = vld [vmem:[%s1 + $0x20] sm:$0xff]
          %v236 = vld [vmem:[%s1 + $0x28] sm:$0xff]
          %v237 = vld [vmem:[%s1 + $0x30] sm:$0xff]
          %v238 = vld [vmem:[%s1 + $0x38] sm:$0xff]
          %v239 = vld [vmem:[%s1 + $0x40] sm:$0xff]
          %v240 = vld [vmem:[%s1 + $0x48] sm:$0xff]
          %v241 = vld [vmem:[%s1 + $0x50] sm:$0xff]
          %v242 = vld [vmem:[%s1 + $0x58] sm:$0xff]
          %v243 = vld [vmem:[%s1 + $0x60] sm:$0xff]
          %v244 = vld [vmem:[%s1 + $0x68] sm:$0xff]
          %v245 = vld [vmem:[%s1 + $0x70] sm:$0xff]
          %v246 = vld [vmem:[%s1 + $0x78] sm:$0xff]
          %v247 = vld [vmem:[%s1 + $0x80] sm:$0xff]
          %v248 = vld [vmem:[%s1 + $0x88] sm:$0xff]
          %v249 = vld [vmem:[%s1 + $0x90] sm:$0xff]
          %v250 = vld [vmem:[%s1 + $0x98] sm:$0xff]
          %v251 = vld [vmem:[%s1 + $0xa0] sm:$0xff]
          %v252 = vld [vmem:[%s1 + $0xa8] sm:$0xff]
          %v253 = vld [vmem:[%s1 + $0xb0] sm:$0xff]
          %v254 = vld [vmem:[%s1 + $0xb8] sm:$0xff]
          %v255 = vld [vmem:[%s1 + $0xc0] sm:$0xff]
          %v256 = vld [vmem:[%s1 + $0xc8] sm:$0xff]
          %v257 = vld [vmem:[%s1 + $0xd0] sm:$0xff]
          %v258 = vld [vmem:[%s1 + $0xd8] sm:$0xff]
          %v259 = vld [vmem:[%s1 + $0xe0] sm:$0xff]
          %v260 = vld [vmem:[%s1 + $0xe8] sm:$0xff]
          %v261 = vld [vmem:[%s1 + $0xf0] sm:$0xff]
          %v262 = vld [vmem:[%s1 + $0xf8] sm:$0xff]
          %v263 = vld [vmem:[%s1 + $0x100] sm:$0xff]
          %v264 = vld [vmem:[%s1 + $0x108] sm:$0xff]
          %v265 = vld [vmem:[%s1 + $0x110] sm:$0xff]
          %v266 = vld [vmem:[%s1 + $0x118] sm:$0xff]
          %v267 = vld [vmem:[%s1 + $0x120] sm:$0xff]
          %v268 = vld [vmem:[%s1 + $0x128] sm:$0xff]
          %v269 = vld [vmem:[%s1 + $0x130] sm:$0xff]
          %v270 = vld [vmem:[%s1 + $0x138] sm:$0xff]
          %v271 = vld [vmem:[%s1 + $0x140] sm:$0xff]
          %v272 = vld [vmem:[%s1 + $0x148] sm:$0xff]
          %v273 = vld [vmem:[%s1 + $0x150] sm:$0xff]
          %v274 = vld [vmem:[%s1 + $0x158] sm:$0xff]
          %v275 = vld [vmem:[%s1 + $0x160] sm:$0xff]
          %v276 = vld [vmem:[%s1 + $0x168] sm:$0xff]
          %v277 = vld [vmem:[%s1 + $0x170] sm:$0xff]
          %v278 = vld [vmem:[%s1 + $0x178] sm:$0xff]
          %v279 = vld [vmem:[%s3] sm:$0xff]
          %v280 = vld [vmem:[%s3 + $0x8] sm:$0xff]
          %v281 = vld [vmem:[%s3 + $0x10] sm:$0xff]
          %v282 = vld [vmem:[%s3 + $0x18] sm:$0xff]
          %v283 = vld [vmem:[%s3 + $0x20] sm:$0xff]
          %v284 = vld [vmem:[%s3 + $0x28] sm:$0xff]
          %v285 = vld [vmem:[%s3 + $0x30] sm:$0xff]
          %v286 = vld [vmem:[%s3 + $0x38] sm:$0xff]
          %vm287 = vcmask 523264
          %v289 = vsel %vm287, %v231, 0
          %v292 = vsel %vm287, %v232, 0
          %v295 = vsel %vm287, %v233, 0
          %v298 = vsel %vm287, %v234, 0
          %v301 = vsel %vm287, %v235, 0
          %v304 = vsel %vm287, %v236, 0
          %v307 = vsel %vm287, %v237, 0
          %v310 = vsel %vm287, %v238, 0
          %v313 = vsel %vm287, %v239, 0
          %v316 = vsel %vm287, %v240, 0
          %v319 = vsel %vm287, %v241, 0
          %v322 = vsel %vm287, %v242, 0
          %v325 = vsel %vm287, %v243, 0
          %v328 = vsel %vm287, %v244, 0
          %v331 = vsel %vm287, %v245, 0
          %v334 = vsel %vm287, %v246, 0
          %v337 = vsel %vm287, %v247, 0
          %v340 = vsel %vm287, %v248, 0
          %v343 = vsel %vm287, %v249, 0
          %v346 = vsel %vm287, %v250, 0
          %v349 = vsel %vm287, %v251, 0
          %v352 = vsel %vm287, %v252, 0
          %v355 = vsel %vm287, %v253, 0
          %v358 = vsel %vm287, %v254, 0
          %v361 = vsel %vm287, %v255, 0
          %v364 = vsel %vm287, %v256, 0
          %v367 = vsel %vm287, %v257, 0
          %v370 = vsel %vm287, %v258, 0
          %v373 = vsel %vm287, %v259, 0
          %v376 = vsel %vm287, %v260, 0
          %v379 = vsel %vm287, %v261, 0
          %v382 = vsel %vm287, %v262, 0
          %v385 = vsel %vm287, %v263, 0
          %v388 = vsel %vm287, %v264, 0
          %v391 = vsel %vm287, %v265, 0
          %v394 = vsel %vm287, %v266, 0
          %v397 = vsel %vm287, %v267, 0
          %v400 = vsel %vm287, %v268, 0
          %v403 = vsel %vm287, %v269, 0
          %v406 = vsel %vm287, %v270, 0
          %v409 = vsel %vm287, %v271, 0
          %v412 = vsel %vm287, %v272, 0
          %v415 = vsel %vm287, %v273, 0
          %v418 = vsel %vm287, %v274, 0
          %v421 = vsel %vm287, %v275, 0
          %v424 = vsel %vm287, %v276, 0
          %v427 = vsel %vm287, %v277, 0
          %v430 = vsel %vm287, %v278, 0
          %432 = vmatprep.subr.mxu0 0.0
          %433 = vmatpush1.msra.mxu0 %v279
          %434 = vmatprep.subr.mxu0 0.0
          %435 = vmatpush1.msra.mxu0 %v280
          %436 = vmatprep.subr.mxu0 0.0
          %437 = vmatpush1.msra.mxu0 %v281
          %438 = vmatprep.subr.mxu0 0.0
          %439 = vmatpush1.msra.mxu0 %v282
          %440 = vmatprep.subr.mxu0 0.0
          %441 = vmatpush1.msra.mxu0 %v283
          %442 = vmatprep.subr.mxu0 0.0
          %443 = vmatpush1.msra.mxu0 %v284
          %444 = vmatprep.subr.mxu0 0.0
          %445 = vmatpush1.msra.mxu0 %v285
          %446 = vmatprep.subr.mxu0 0.0
          %447 = vmatpush1.msra.mxu0 %v286
          %448 = vmatprep.subr.mxu0 0.0
          %449 = vmatpush1.msra.mxu0 0.0
          %450 = vmatprep.subr.mxu0 0.0
          %451 = vmatpush1.msra.mxu0 0.0
          %452 = vmatprep.subr.mxu0 0.0
          %453 = vmatpush1.msra.mxu0 0.0
          %454 = vmatprep.subr.mxu0 0.0
          %455 = vmatpush1.msra.mxu0 0.0
          %456 = vmatprep.subr.mxu0 0.0
          %457 = vmatpush1.msra.mxu0 0.0
          %458 = vmatprep.subr.mxu0 0.0
          %459 = vmatpush1.msra.mxu0 0.0
          %460 = vmatprep.subr.mxu0 0.0
          %461 = vmatpush1.msra.mxu0 0.0
          %462 = vmatprep.subr.mxu0 0.0
          %463 = vmatpush1.msra.mxu0 0.0
          %464 = vmatprep.subr.mxu0 0.0
          %465 = vmatpush1.msra.mxu0 0.0
          %466 = vmatprep.subr.mxu0 0.0
          %467 = vmatpush1.msra.mxu0 0.0
          %468 = vmatprep.subr.mxu0 0.0
          %469 = vmatpush1.msra.mxu0 0.0
          %470 = vmatprep.subr.mxu0 0.0
          %471 = vmatpush1.msra.mxu0 0.0
          %472 = vmatprep.subr.mxu0 0.0
          %473 = vmatpush1.msra.mxu0 0.0
          %474 = vmatprep.subr.mxu0 0.0
          %475 = vmatpush1.msra.mxu0 0.0
          %476 = vmatprep.subr.mxu0 0.0
          %477 = vmatpush1.msra.mxu0 0.0
          %478 = vmatprep.subr.mxu0 0.0
          %479 = vmatpush1.msra.mxu0 0.0
          %480 = vmatprep.subr.mxu0 0.0
          %481 = vmatpush1.msra.mxu0 0.0
          %482 = vmatprep.subr.mxu0 0.0
          %483 = vmatpush1.msra.mxu0 0.0
          %484 = vmatprep.subr.mxu0 0.0
          %485 = vmatpush1.msra.mxu0 0.0
          %486 = vmatprep.subr.mxu0 0.0
          %487 = vmatpush1.msra.mxu0 0.0
          %488 = vmatprep.subr.mxu0 0.0
          %489 = vmatpush1.msra.mxu0 0.0
          %490 = vmatprep.subr.mxu0 0.0
          %491 = vmatpush1.msra.mxu0 0.0
          %492 = vmatprep.subr.mxu0 0.0
          %493 = vmatpush1.msra.mxu0 0.0
          %494 = vmatprep.subr.mxu0 0.0
          %495 = vmatpush1.msra.mxu0 0.0
          %496 = vmatprep.mubr.f32.mxu0 0.0
          %497 = vmatmul.mubr.f32.gmra.mrb[0].mxu0 %v289
          %v498 = vpop.f32.mrb[0].mxu0
          %v499 = vadd.f32 0.0, %v498
          %v500 = vpop.f32.mrb[0].mxu0
          %501 = vmatprep.mubr.f32.mxu0 0.0
          %502 = vmatmul.mubr.f32.gmra.mrb[0].mxu0 %v292
          %v503 = vpop.f32.mrb[0].mxu0
          %v504 = vadd.f32 0.0, %v503
          %v505 = vpop.f32.mrb[0].mxu0
          %506 = vmatprep.mubr.f32.mxu0 0.0
          %507 = vmatmul.mubr.f32.gmra.mrb[0].mxu0 %v295
          %v508 = vpop.f32.mrb[0].mxu0
          %v509 = vadd.f32 0.0, %v508
          %v510 = vpop.f32.mrb[0].mxu0
          %511 = vmatprep.mubr.f32.mxu0 0.0
          %512 = vmatmul.mubr.f32.gmra.mrb[0].mxu0 %v298
          %v513 = vpop.f32.mrb[0].mxu0
          %v514 = vadd.f32 0.0, %v513
          %v515 = vpop.f32.mrb[0].mxu0
          %516 = vmatprep.mubr.f32.mxu0 0.0
          %517 = vmatmul.mubr.f32.gmra.mrb[0].mxu0 %v301
          %v518 = vpop.f32.mrb[0].mxu0
          %v519 = vadd.f32 0.0, %v518
          %v520 = vpop.f32.mrb[0].mxu0
          %521 = vmatprep.mubr.f32.mxu0 0.0
          %522 = vmatmul.mubr.f32.gmra.mrb[0].mxu0 %v304
          %v523 = vpop.f32.mrb[0].mxu0
          %v524 = vadd.f32 0.0, %v523
          %v525 = vpop.f32.mrb[0].mxu0
          %526 = vmatprep.mubr.f32.mxu0 0.0
          %527 = vmatmul.mubr.f32.gmra.mrb[0].mxu0 %v307
          %v528 = vpop.f32.mrb[0].mxu0
          %v529 = vadd.f32 0.0, %v528
          %v530 = vpop.f32.mrb[0].mxu0
          %531 = vmatprep.mubr.f32.mxu0 0.0
          %532 = vmatmul.mubr.f32.gmra.mrb[0].mxu0 %v310
          %v533 = vpop.f32.mrb[0].mxu0
          %v534 = vadd.f32 0.0, %v533
          %v535 = vpop.f32.mrb[0].mxu0
          %536 = vmatprep.mubr.f32.mxu0 0.0
          %537 = vmatmul.mubr.f32.gmra.mrb[0].mxu0 %v313
          %v538 = vpop.f32.mrb[0].mxu0
          %v539 = vadd.f32 0.0, %v538
          %v540 = vpop.f32.mrb[0].mxu0
          %541 = vmatprep.mubr.f32.mxu0 0.0
          %542 = vmatmul.mubr.f32.gmra.mrb[0].mxu0 %v316
          %v543 = vpop.f32.mrb[0].mxu0
          %v544 = vadd.f32 0.0, %v543
          %v545 = vpop.f32.mrb[0].mxu0
          %546 = vmatprep.mubr.f32.mxu0 0.0
          %547 = vmatmul.mubr.f32.gmra.mrb[0].mxu0 %v319
          %v548 = vpop.f32.mrb[0].mxu0
          %v549 = vadd.f32 0.0, %v548
          %v550 = vpop.f32.mrb[0].mxu0
          %551 = vmatprep.mubr.f32.mxu0 0.0
          %552 = vmatmul.mubr.f32.gmra.mrb[0].mxu0 %v322
          %v553 = vpop.f32.mrb[0].mxu0
          %v554 = vadd.f32 0.0, %v553
          %v555 = vpop.f32.mrb[0].mxu0
          %556 = vmatprep.mubr.f32.mxu0 0.0
          %557 = vmatmul.mubr.f32.gmra.mrb[0].mxu0 %v325
          %v558 = vpop.f32.mrb[0].mxu0
          %v559 = vadd.f32 0.0, %v558
          %v560 = vpop.f32.mrb[0].mxu0
          %561 = vmatprep.mubr.f32.mxu0 0.0
          %562 = vmatmul.mubr.f32.gmra.mrb[0].mxu0 %v328
          %v563 = vpop.f32.mrb[0].mxu0
          %v564 = vadd.f32 0.0, %v563
          %v565 = vpop.f32.mrb[0].mxu0
          %566 = vmatprep.mubr.f32.mxu0 0.0
          %567 = vmatmul.mubr.f32.gmra.mrb[0].mxu0 %v331
          %v568 = vpop.f32.mrb[0].mxu0
          %v569 = vadd.f32 0.0, %v568
          %v570 = vpop.f32.mrb[0].mxu0
          %571 = vmatprep.mubr.f32.mxu0 0.0
          %572 = vmatmul.mubr.f32.gmra.mrb[0].mxu0 %v334
          %v573 = vpop.f32.mrb[0].mxu0
          %v574 = vadd.f32 0.0, %v573
          %v575 = vpop.f32.mrb[0].mxu0
          %576 = vmatprep.mubr.f32.mxu0 0.0
          %577 = vmatmul.mubr.f32.gmra.mrb[0].mxu0 %v337
          %v578 = vpop.f32.mrb[0].mxu0
          %v579 = vadd.f32 0.0, %v578
          %v580 = vpop.f32.mrb[0].mxu0
          %581 = vmatprep.mubr.f32.mxu0 0.0
          %582 = vmatmul.mubr.f32.gmra.mrb[0].mxu0 %v340
          %v583 = vpop.f32.mrb[0].mxu0
          %v584 = vadd.f32 0.0, %v583
          %v585 = vpop.f32.mrb[0].mxu0
          %586 = vmatprep.mubr.f32.mxu0 0.0
          %587 = vmatmul.mubr.f32.gmra.mrb[0].mxu0 %v343
          %v588 = vpop.f32.mrb[0].mxu0
          %v589 = vadd.f32 0.0, %v588
          %v590 = vpop.f32.mrb[0].mxu0
          %591 = vmatprep.mubr.f32.mxu0 0.0
          %592 = vmatmul.mubr.f32.gmra.mrb[0].mxu0 %v346
          %v593 = vpop.f32.mrb[0].mxu0
          %v594 = vadd.f32 0.0, %v593
          %v595 = vpop.f32.mrb[0].mxu0
          %596 = vmatprep.mubr.f32.mxu0 0.0
          %597 = vmatmul.mubr.f32.gmra.mrb[0].mxu0 %v349
          %v598 = vpop.f32.mrb[0].mxu0
          %v599 = vadd.f32 0.0, %v598
          %v600 = vpop.f32.mrb[0].mxu0
          %601 = vmatprep.mubr.f32.mxu0 0.0
          %602 = vmatmul.mubr.f32.gmra.mrb[0].mxu0 %v352
          %v603 = vpop.f32.mrb[0].mxu0
          %v604 = vadd.f32 0.0, %v603
          %v605 = vpop.f32.mrb[0].mxu0
          %606 = vmatprep.mubr.f32.mxu0 0.0
          %607 = vmatmul.mubr.f32.gmra.mrb[0].mxu0 %v355
          %v608 = vpop.f32.mrb[0].mxu0
          %v609 = vadd.f32 0.0, %v608
          %v610 = vpop.f32.mrb[0].mxu0
          %611 = vmatprep.mubr.f32.mxu0 0.0
          %612 = vmatmul.mubr.f32.gmra.mrb[0].mxu0 %v358
          %v613 = vpop.f32.mrb[0].mxu0
          %v614 = vadd.f32 0.0, %v613
          %v615 = vpop.f32.mrb[0].mxu0
          %616 = vmatprep.mubr.f32.mxu0 0.0
          %617 = vmatmul.mubr.f32.gmra.mrb[0].mxu0 %v361
          %v618 = vpop.f32.mrb[0].mxu0
          %v619 = vadd.f32 0.0, %v618
          %v620 = vpop.f32.mrb[0].mxu0
          %621 = vmatprep.mubr.f32.mxu0 0.0
          %622 = vmatmul.mubr.f32.gmra.mrb[0].mxu0 %v364
          %v623 = vpop.f32.mrb[0].mxu0
          %v624 = vadd.f32 0.0, %v623
          %v625 = vpop.f32.mrb[0].mxu0
          %626 = vmatprep.mubr.f32.mxu0 0.0
          %627 = vmatmul.mubr.f32.gmra.mrb[0].mxu0 %v367
          %v628 = vpop.f32.mrb[0].mxu0
          %v629 = vadd.f32 0.0, %v628
          %v630 = vpop.f32.mrb[0].mxu0
          %631 = vmatprep.mubr.f32.mxu0 0.0
          %632 = vmatmul.mubr.f32.gmra.mrb[0].mxu0 %v370
          %v633 = vpop.f32.mrb[0].mxu0
          %v634 = vadd.f32 0.0, %v633
          %v635 = vpop.f32.mrb[0].mxu0
          %636 = vmatprep.mubr.f32.mxu0 0.0
          %637 = vmatmul.mubr.f32.gmra.mrb[0].mxu0 %v373
          %v638 = vpop.f32.mrb[0].mxu0
          %v639 = vadd.f32 0.0, %v638
          %v640 = vpop.f32.mrb[0].mxu0
          %641 = vmatprep.mubr.f32.mxu0 0.0
          %642 = vmatmul.mubr.f32.gmra.mrb[0].mxu0 %v376
          %v643 = vpop.f32.mrb[0].mxu0
          %v644 = vadd.f32 0.0, %v643
          %v645 = vpop.f32.mrb[0].mxu0
          %646 = vmatprep.mubr.f32.mxu0 0.0
          %647 = vmatmul.mubr.f32.gmra.mrb[0].mxu0 %v379
          %v648 = vpop.f32.mrb[0].mxu0
          %v649 = vadd.f32 0.0, %v648
          %v650 = vpop.f32.mrb[0].mxu0
          %651 = vmatprep.mubr.f32.mxu0 0.0
          %652 = vmatmul.mubr.f32.gmra.mrb[0].mxu0 %v382
          %v653 = vpop.f32.mrb[0].mxu0
          %v654 = vadd.f32 0.0, %v653
          %v655 = vpop.f32.mrb[0].mxu0
          %656 = vmatprep.mubr.f32.mxu0 0.0
          %657 = vmatmul.mubr.f32.gmra.mrb[0].mxu0 %v385
          %v658 = vpop.f32.mrb[0].mxu0
          %v659 = vadd.f32 0.0, %v658
          %v660 = vpop.f32.mrb[0].mxu0
          %661 = vmatprep.mubr.f32.mxu0 0.0
          %662 = vmatmul.mubr.f32.gmra.mrb[0].mxu0 %v388
          %v663 = vpop.f32.mrb[0].mxu0
          %v664 = vadd.f32 0.0, %v663
          %v665 = vpop.f32.mrb[0].mxu0
          %666 = vmatprep.mubr.f32.mxu0 0.0
          %667 = vmatmul.mubr.f32.gmra.mrb[0].mxu0 %v391
          %v668 = vpop.f32.mrb[0].mxu0
          %v669 = vadd.f32 0.0, %v668
          %v670 = vpop.f32.mrb[0].mxu0
          %671 = vmatprep.mubr.f32.mxu0 0.0
          %672 = vmatmul.mubr.f32.gmra.mrb[0].mxu0 %v394
          %v673 = vpop.f32.mrb[0].mxu0
          %v674 = vadd.f32 0.0, %v673
          %v675 = vpop.f32.mrb[0].mxu0
          %676 = vmatprep.mubr.f32.mxu0 0.0
          %677 = vmatmul.mubr.f32.gmra.mrb[0].mxu0 %v397
          %v678 = vpop.f32.mrb[0].mxu0
          %v679 = vadd.f32 0.0, %v678
          %v680 = vpop.f32.mrb[0].mxu0
          %681 = vmatprep.mubr.f32.mxu0 0.0
          %682 = vmatmul.mubr.f32.gmra.mrb[0].mxu0 %v400
          %v683 = vpop.f32.mrb[0].mxu0
          %v684 = vadd.f32 0.0, %v683
          %v685 = vpop.f32.mrb[0].mxu0
          %686 = vmatprep.mubr.f32.mxu0 0.0
          %687 = vmatmul.mubr.f32.gmra.mrb[0].mxu0 %v403
          %v688 = vpop.f32.mrb[0].mxu0
          %v689 = vadd.f32 0.0, %v688
          %v690 = vpop.f32.mrb[0].mxu0
          %691 = vmatprep.mubr.f32.mxu0 0.0
          %692 = vmatmul.mubr.f32.gmra.mrb[0].mxu0 %v406
          %v693 = vpop.f32.mrb[0].mxu0
          %v694 = vadd.f32 0.0, %v693
          %v695 = vpop.f32.mrb[0].mxu0
          %696 = vmatprep.mubr.f32.mxu0 0.0
          %697 = vmatmul.mubr.f32.gmra.mrb[0].mxu0 %v409
          %v698 = vpop.f32.mrb[0].mxu0
          %v699 = vadd.f32 0.0, %v698
          %v700 = vpop.f32.mrb[0].mxu0
          %701 = vmatprep.mubr.f32.mxu0 0.0
          %702 = vmatmul.mubr.f32.gmra.mrb[0].mxu0 %v412
          %v703 = vpop.f32.mrb[0].mxu0
          %v704 = vadd.f32 0.0, %v703
          %v705 = vpop.f32.mrb[0].mxu0
          %706 = vmatprep.mubr.f32.mxu0 0.0
          %707 = vmatmul.mubr.f32.gmra.mrb[0].mxu0 %v415
          %v708 = vpop.f32.mrb[0].mxu0
          %v709 = vadd.f32 0.0, %v708
          %v710 = vpop.f32.mrb[0].mxu0
          %711 = vmatprep.mubr.f32.mxu0 0.0
          %712 = vmatmul.mubr.f32.gmra.mrb[0].mxu0 %v418
          %v713 = vpop.f32.mrb[0].mxu0
          %v714 = vadd.f32 0.0, %v713
          %v715 = vpop.f32.mrb[0].mxu0
          %716 = vmatprep.mubr.f32.mxu0 0.0
          %717 = vmatmul.mubr.f32.gmra.mrb[0].mxu0 %v421
          %v718 = vpop.f32.mrb[0].mxu0
          %v719 = vadd.f32 0.0, %v718
          %v720 = vpop.f32.mrb[0].mxu0
          %721 = vmatprep.mubr.f32.mxu0 0.0
          %722 = vmatmul.mubr.f32.gmra.mrb[0].mxu0 %v424
          %v723 = vpop.f32.mrb[0].mxu0
          %v724 = vadd.f32 0.0, %v723
          %v725 = vpop.f32.mrb[0].mxu0
          %726 = vmatprep.mubr.f32.mxu0 0.0
          %727 = vmatmul.mubr.f32.gmra.mrb[0].mxu0 %v427
          %v728 = vpop.f32.mrb[0].mxu0
          %v729 = vadd.f32 0.0, %v728
          %v730 = vpop.f32.mrb[0].mxu0
          %731 = vmatprep.mubr.f32.mxu0 0.0
          %732 = vmatmul.mubr.f32.gmra.mrb[0].mxu0 %v430
          %v733 = vpop.f32.mrb[0].mxu0
          %v734 = vadd.f32 0.0, %v733
          %v735 = vpop.f32.mrb[0].mxu0
          %736 = vdwg.mxu0
          %v737 = vpack.c.bf16 %v504, %v499
          %v738 = vpack.c.bf16 %v514, %v509
          %v739 = vpack.c.bf16 %v524, %v519
          %v740 = vpack.c.bf16 %v534, %v529
          %v741 = vpack.c.bf16 %v544, %v539
          %v742 = vpack.c.bf16 %v554, %v549
          %v743 = vpack.c.bf16 %v564, %v559
          %v744 = vpack.c.bf16 %v574, %v569
          %v745 = vpack.c.bf16 %v584, %v579
          %v746 = vpack.c.bf16 %v594, %v589
          %v747 = vpack.c.bf16 %v604, %v599
          %v748 = vpack.c.bf16 %v614, %v609
          %v749 = vpack.c.bf16 %v624, %v619
          %v750 = vpack.c.bf16 %v634, %v629
          %v751 = vpack.c.bf16 %v644, %v639
          %v752 = vpack.c.bf16 %v654, %v649
          %v753 = vpack.c.bf16 %v664, %v659
          %v754 = vpack.c.bf16 %v674, %v669
          %v755 = vpack.c.bf16 %v684, %v679
          %v756 = vpack.c.bf16 %v694, %v689
          %v757 = vpack.c.bf16 %v704, %v699
          %v758 = vpack.c.bf16 %v714, %v709
          %v759 = vpack.c.bf16 %v724, %v719
          %v760 = vpack.c.bf16 %v734, %v729
          %761 = vst [vmem:[#allocation2] sm:$0xff] %v737
          %762 = vst [vmem:[#allocation2 + $0x8] sm:$0xff] %v738
          %763 = vst [vmem:[#allocation2 + $0x10] sm:$0xff] %v739
          %764 = vst [vmem:[#allocation2 + $0x18] sm:$0xff] %v740
          %765 = vst [vmem:[#allocation2 + $0x20] sm:$0xff] %v741
          %766 = vst [vmem:[#allocation2 + $0x28] sm:$0xff] %v742
          %767 = vst [vmem:[#allocation2 + $0x30] sm:$0xff] %v743
          %768 = vst [vmem:[#allocation2 + $0x38] sm:$0xff] %v744
          %769 = vst [vmem:[#allocation2 + $0x40] sm:$0xff] %v745
          %770 = vst [vmem:[#allocation2 + $0x48] sm:$0xff] %v746
          %771 = vst [vmem:[#allocation2 + $0x50] sm:$0xff] %v747
          %772 = vst [vmem:[#allocation2 + $0x58] sm:$0xff] %v748
          %773 = vst [vmem:[#allocation2 + $0x60] sm:$0xff] %v749
          %774 = vst [vmem:[#allocation2 + $0x68] sm:$0xff] %v750
          %775 = vst [vmem:[#allocation2 + $0x70] sm:$0xff] %v751
          %776 = vst [vmem:[#allocation2 + $0x78] sm:$0xff] %v752
          %777 = vst [vmem:[#allocation2 + $0x80] sm:$0xff] %v753
          %778 = vst [vmem:[#allocation2 + $0x88] sm:$0xff] %v754
          %779 = vst [vmem:[#allocation2 + $0x90] sm:$0xff] %v755
          %780 = vst [vmem:[#allocation2 + $0x98] sm:$0xff] %v756
          %781 = vst [vmem:[#allocation2 + $0xa0] sm:$0xff] %v757
          %782 = vst [vmem:[#allocation2 + $0xa8] sm:$0xff] %v758
          %783 = vst [vmem:[#allocation2 + $0xb0] sm:$0xff] %v759
          %784 = vst [vmem:[#allocation2 + $0xb8] sm:$0xff] %v760
          %v785 = vld [vmem:[%s4] sm:$0xff]
          %v786 = vld [vmem:[%s2] sm:$0xff]
          %v787 = vld [vmem:[%s2 + $0x8] sm:$0xff]
          %v788 = vld [vmem:[%s2 + $0x10] sm:$0xff]
          %v789 = vld [vmem:[%s2 + $0x18] sm:$0xff]
          %v790 = vld [vmem:[%s2 + $0x20] sm:$0xff]
          %v791 = vld [vmem:[%s2 + $0x28] sm:$0xff]
          %v792 = vld [vmem:[%s2 + $0x30] sm:$0xff]
          %v793 = vld [vmem:[%s2 + $0x38] sm:$0xff]
          %v794 = vld [vmem:[%s2 + $0x40] sm:$0xff]
          %v795 = vld [vmem:[%s2 + $0x48] sm:$0xff]
          %v796 = vld [vmem:[%s2 + $0x50] sm:$0xff]
          %v797 = vld [vmem:[%s2 + $0x58] sm:$0xff]
          %v798 = vld [vmem:[%s2 + $0x60] sm:$0xff]
          %v799 = vld [vmem:[%s2 + $0x68] sm:$0xff]
          %v800 = vld [vmem:[%s2 + $0x70] sm:$0xff]
          %v801 = vld [vmem:[%s2 + $0x78] sm:$0xff]
          %v802 = vld [vmem:[%s2 + $0x80] sm:$0xff]
          %v803 = vld [vmem:[%s2 + $0x88] sm:$0xff]
          %v804 = vld [vmem:[%s2 + $0x90] sm:$0xff]
          %v805 = vld [vmem:[%s2 + $0x98] sm:$0xff]
          %v806 = vld [vmem:[%s2 + $0xa0] sm:$0xff]
          %v807 = vld [vmem:[%s2 + $0xa8] sm:$0xff]
          %v808 = vld [vmem:[%s2 + $0xb0] sm:$0xff]
          %v809 = vld [vmem:[%s2 + $0xb8] sm:$0xff]
          %v811 = vsel %vm287, %v785, 0
          %813 = vmatprep.subr.mxu0 %v787
          %814 = vmatpush1.msra.mxu0 %v786
          %815 = vmatprep.subr.mxu0 %v790
          %816 = vmatpush1.msra.mxu0 %v789
          %817 = vmatprep.subr.mxu0 %v793
          %818 = vmatpush1.msra.mxu0 %v792
          %819 = vmatprep.subr.mxu0 %v796
          %820 = vmatpush1.msra.mxu0 %v795
          %821 = vmatprep.subr.mxu0 %v799
          %822 = vmatpush1.msra.mxu0 %v798
          %823 = vmatprep.subr.mxu0 %v802
          %824 = vmatpush1.msra.mxu0 %v801
          %825 = vmatprep.subr.mxu0 %v805
          %826 = vmatpush1.msra.mxu0 %v804
          %827 = vmatprep.subr.mxu0 %v808
          %828 = vmatpush1.msra.mxu0 %v807
          %829 = vmatprep.subr.mxu0 0.0
          %830 = vmatpush1.msra.mxu0 0.0
          %831 = vmatprep.subr.mxu0 0.0
          %832 = vmatpush1.msra.mxu0 0.0
          %833 = vmatprep.subr.mxu0 0.0
          %834 = vmatpush1.msra.mxu0 0.0
          %835 = vmatprep.subr.mxu0 0.0
          %836 = vmatpush1.msra.mxu0 0.0
          %837 = vmatprep.subr.mxu0 0.0
          %838 = vmatpush1.msra.mxu0 0.0
          %839 = vmatprep.subr.mxu0 0.0
          %840 = vmatpush1.msra.mxu0 0.0
          %841 = vmatprep.subr.mxu0 0.0
          %842 = vmatpush1.msra.mxu0 0.0
          %843 = vmatprep.subr.mxu0 0.0
          %844 = vmatpush1.msra.mxu0 0.0
          %845 = vmatprep.subr.mxu0 0.0
          %846 = vmatpush1.msra.mxu0 0.0
          %847 = vmatprep.subr.mxu0 0.0
          %848 = vmatpush1.msra.mxu0 0.0
          %849 = vmatprep.subr.mxu0 0.0
          %850 = vmatpush1.msra.mxu0 0.0
          %851 = vmatprep.subr.mxu0 0.0
          %852 = vmatpush1.msra.mxu0 0.0
          %853 = vmatprep.subr.mxu0 0.0
          %854 = vmatpush1.msra.mxu0 0.0
          %855 = vmatprep.subr.mxu0 0.0
          %856 = vmatpush1.msra.mxu0 0.0
          %857 = vmatprep.subr.mxu0 0.0
          %858 = vmatpush1.msra.mxu0 0.0
          %859 = vmatprep.subr.mxu0 0.0
          %860 = vmatpush1.msra.mxu0 0.0
          %861 = vmatprep.subr.mxu0 0.0
          %862 = vmatpush1.msra.mxu0 0.0
          %863 = vmatprep.subr.mxu0 0.0
          %864 = vmatpush1.msra.mxu0 0.0
          %865 = vmatprep.subr.mxu0 0.0
          %866 = vmatpush1.msra.mxu0 0.0
          %867 = vmatprep.subr.mxu0 0.0
          %868 = vmatpush1.msra.mxu0 0.0
          %869 = vmatprep.subr.mxu0 0.0
          %870 = vmatpush1.msra.mxu0 0.0
          %871 = vmatprep.subr.mxu0 0.0
          %872 = vmatpush1.msra.mxu0 0.0
          %873 = vmatprep.subr.mxu0 0.0
          %874 = vmatpush1.msra.mxu0 0.0
          %875 = vmatprep.subr.mxu0 0.0
          %876 = vmatpush1.msra.mxu0 0.0
          %877 = vmatprep.mubr.f32.mxu0 0.0
          %878 = vmatmul.mubr.f32.gmra.mrb[0].mxu0 %v811
          %v879 = vpop.f32.mrb[0].mxu0
          %v880 = vadd.f32 0.0, %v879
          %v881 = vpop.f32.mrb[0].mxu0
          %v882 = vadd.f32 0.0, %v881
          %883 = vdwg.mxu0
          %884 = vmatprep.subr.mxu0 0.0
          %885 = vmatpush1.msra.mxu0 %v788
          %886 = vmatprep.subr.mxu0 0.0
          %887 = vmatpush1.msra.mxu0 %v791
          %888 = vmatprep.subr.mxu0 0.0
          %889 = vmatpush1.msra.mxu0 %v794
          %890 = vmatprep.subr.mxu0 0.0
          %891 = vmatpush1.msra.mxu0 %v797
          %892 = vmatprep.subr.mxu0 0.0
          %893 = vmatpush1.msra.mxu0 %v800
          %894 = vmatprep.subr.mxu0 0.0
          %895 = vmatpush1.msra.mxu0 %v803
          %896 = vmatprep.subr.mxu0 0.0
          %897 = vmatpush1.msra.mxu0 %v806
          %898 = vmatprep.subr.mxu0 0.0
          %899 = vmatpush1.msra.mxu0 %v809
          %900 = vmatprep.subr.mxu0 0.0
          %901 = vmatpush1.msra.mxu0 0.0
          %902 = vmatprep.subr.mxu0 0.0
          %903 = vmatpush1.msra.mxu0 0.0
          %904 = vmatprep.subr.mxu0 0.0
          %905 = vmatpush1.msra.mxu0 0.0
          %906 = vmatprep.subr.mxu0 0.0
          %907 = vmatpush1.msra.mxu0 0.0
          %908 = vmatprep.subr.mxu0 0.0
          %909 = vmatpush1.msra.mxu0 0.0
          %910 = vmatprep.subr.mxu0 0.0
          %911 = vmatpush1.msra.mxu0 0.0
          %912 = vmatprep.subr.mxu0 0.0
          %913 = vmatpush1.msra.mxu0 0.0
          %914 = vmatprep.subr.mxu0 0.0
          %915 = vmatpush1.msra.mxu0 0.0
          %916 = vmatprep.subr.mxu0 0.0
          %917 = vmatpush1.msra.mxu0 0.0
          %918 = vmatprep.subr.mxu0 0.0
          %919 = vmatpush1.msra.mxu0 0.0
          %920 = vmatprep.subr.mxu0 0.0
          %921 = vmatpush1.msra.mxu0 0.0
          %922 = vmatprep.subr.mxu0 0.0
          %923 = vmatpush1.msra.mxu0 0.0
          %924 = vmatprep.subr.mxu0 0.0
          %925 = vmatpush1.msra.mxu0 0.0
          %926 = vmatprep.subr.mxu0 0.0
          %927 = vmatpush1.msra.mxu0 0.0
          %928 = vmatprep.subr.mxu0 0.0
          %929 = vmatpush1.msra.mxu0 0.0
          %930 = vmatprep.subr.mxu0 0.0
          %931 = vmatpush1.msra.mxu0 0.0
          %932 = vmatprep.subr.mxu0 0.0
          %933 = vmatpush1.msra.mxu0 0.0
          %934 = vmatprep.subr.mxu0 0.0
          %935 = vmatpush1.msra.mxu0 0.0
          %936 = vmatprep.subr.mxu0 0.0
          %937 = vmatpush1.msra.mxu0 0.0
          %938 = vmatprep.subr.mxu0 0.0
          %939 = vmatpush1.msra.mxu0 0.0
          %940 = vmatprep.subr.mxu0 0.0
          %941 = vmatpush1.msra.mxu0 0.0
          %942 = vmatprep.subr.mxu0 0.0
          %943 = vmatpush1.msra.mxu0 0.0
          %944 = vmatprep.subr.mxu0 0.0
          %945 = vmatpush1.msra.mxu0 0.0
          %946 = vmatprep.subr.mxu0 0.0
          %947 = vmatpush1.msra.mxu0 0.0
          %948 = vmatprep.mubr.f32.mxu0 0.0
          %949 = vmatmul.mubr.f32.gmra.mrb[0].mxu0 %v811
          %v950 = vpop.f32.mrb[0].mxu0
          %v951 = vadd.f32 0.0, %v950
          %v952 = vpop.f32.mrb[0].mxu0
          %953 = vdwg.mxu0
          %vm954 = vcmp.ge.f32.partialorder %v880, 0.0
          %vm955 = vcmp.ge.f32.partialorder %v882, 0.0
          %vm956 = vcmp.ge.f32.partialorder %v951, 0.0
          %v957 = vmul.f32 %v880, 0.01
          %v958 = vmul.f32 %v882, 0.01
          %v959 = vmul.f32 %v951, 0.01
          %v960 = vsel %vm954, %v880, %v957
          %v961 = vsel %vm955, %v882, %v958
          %v962 = vsel %vm956, %v951, %v959
          %963 = vst [vmem:[#allocation3] sm:$0xff] %v960
          %964 = vst [vmem:[#allocation3 + $0x8] sm:$0xff] %v961
          %965 = vst [vmem:[#allocation3 + $0x10] sm:$0xff] %v962
        $region44: #{tpu_custom_call.1} parent=39 // pred_fallthru
          _
        %v966 = vld [vmem:[%s223] sm:$0xff]
        %v967 = vld [vmem:[%s223 + $0x8] sm:$0xff]
        %v968 = vld [vmem:[%s223 + $0x10] sm:$0xff]
        %v969 = vld [vmem:[%s223 + $0x18] sm:$0xff]
        %v970 = vld [vmem:[%s223 + $0x20] sm:$0xff]
        %v971 = vld [vmem:[%s223 + $0x28] sm:$0xff]
        %v972 = vld [vmem:[%s223 + $0x30] sm:$0xff]
        %v973 = vld [vmem:[%s223 + $0x38] sm:$0xff]
        %v974 = vld [vmem:[%s223 + $0x40] sm:$0xff]
        %v975 = vld [vmem:[%s223 + $0x48] sm:$0xff]
        %v976 = vld [vmem:[%s223 + $0x50] sm:$0xff]
        %v977 = vld [vmem:[%s223 + $0x58] sm:$0xff]
        %v978 = vld [vmem:[%s223 + $0x60] sm:$0xff]
        %v979 = vld [vmem:[%s223 + $0x68] sm:$0xff]
        %v980 = vld [vmem:[%s223 + $0x70] sm:$0xff]
        %v981 = vld [vmem:[%s223 + $0x78] sm:$0xff]
        %v982 = vld [vmem:[%s223 + $0x80] sm:$0xff]
        %v983 = vld [vmem:[%s223 + $0x88] sm:$0xff]
        %v984 = vld [vmem:[%s223 + $0x90] sm:$0xff]
        %v985 = vld [vmem:[%s223 + $0x98] sm:$0xff]
        %v986 = vld [vmem:[%s223 + $0xa0] sm:$0xff]
        %v987 = vld [vmem:[%s223 + $0xa8] sm:$0xff]
        %v988 = vld [vmem:[%s223 + $0xb0] sm:$0xff]
        %v989 = vld [vmem:[%s223 + $0xb8] sm:$0xff]
        %v990 = vld [vmem:[%s223 + $0xc0] sm:$0xff]
        %v991 = vld [vmem:[%s223 + $0xc8] sm:$0xff]
        %v992 = vld [vmem:[%s223 + $0xd0] sm:$0xff]
        %v993 = vld [vmem:[%s223 + $0xd8] sm:$0xff]
        %v994 = vld [vmem:[%s223 + $0xe0] sm:$0xff]
        %v995 = vld [vmem:[%s223 + $0xe8] sm:$0xff]
        %v996 = vld [vmem:[%s223 + $0xf0] sm:$0xff]
        %v997 = vld [vmem:[%s223 + $0xf8] sm:$0xff]
        %v998 = vlaneseq
        %v999 = vand.u32 %v998, 127
        %v1000 = vadd.s32 %v999, 128
        %v1001 = vadd.s32 %v999, 256
        %v1002 = vld [vmem:[#allocation3] ss:$8 sm:$0x7]
        %v1004 = vlaneseq
        %v1005 = vshrl.u32 %v1004, 7
        %v1006 = vsub.s32 0, %v1005
        %v1007 = vrot.slane %v1002, %v1006
        %v1008 = vlaneseq
        %v1009 = vshrl.u32 %v1008, 7
        %v1010 = vsub.s32 1, %v1009
        %v1011 = vrot.slane %v1002, %v1010
        %v1012 = vlaneseq
        %v1013 = vshrl.u32 %v1012, 7
        %v1014 = vsub.s32 2, %v1013
        %v1015 = vrot.slane %v1002, %v1014
        %1019 = vset.pattern.permute.xlu0 0
        %1020 = vperm.xlu0 %1019, %v966
        %v1021 = vpop.permute.xlu0 %1020
        %1022 = vset.pattern.permute.xlu0 0
        %1023 = vperm.xlu0 %1022, %v967
        %v1024 = vpop.permute.xlu0 %1023
        %1025 = vset.pattern.permute.xlu0 0
        %1026 = vperm.xlu0 %1025, %v968
        %v1027 = vpop.permute.xlu0 %1026
        %1028 = vset.pattern.permute.xlu0 0
        %1029 = vperm.xlu0 %1028, %v969
        %v1030 = vpop.permute.xlu0 %1029
        %1031 = vset.pattern.permute.xlu0 0
        %1032 = vperm.xlu0 %1031, %v970
        %v1033 = vpop.permute.xlu0 %1032
        %1034 = vset.pattern.permute.xlu0 0
        %1035 = vperm.xlu0 %1034, %v971
        %v1036 = vpop.permute.xlu0 %1035
        %1037 = vset.pattern.permute.xlu0 0
        %1038 = vperm.xlu0 %1037, %v972
        %v1039 = vpop.permute.xlu0 %1038
        %1040 = vset.pattern.permute.xlu0 0
        %1041 = vperm.xlu0 %1040, %v973
        %v1042 = vpop.permute.xlu0 %1041
        %1043 = vset.pattern.permute.xlu0 0
        %1044 = vperm.xlu0 %1043, %v974
        %v1045 = vpop.permute.xlu0 %1044
        %1046 = vset.pattern.permute.xlu0 0
        %1047 = vperm.xlu0 %1046, %v975
        %v1048 = vpop.permute.xlu0 %1047
        %1049 = vset.pattern.permute.xlu0 0
        %1050 = vperm.xlu0 %1049, %v976
        %v1051 = vpop.permute.xlu0 %1050
        %1052 = vset.pattern.permute.xlu0 0
        %1053 = vperm.xlu0 %1052, %v977
        %v1054 = vpop.permute.xlu0 %1053
        %1055 = vset.pattern.permute.xlu0 0
        %1056 = vperm.xlu0 %1055, %v978
        %v1057 = vpop.permute.xlu0 %1056
        %1058 = vset.pattern.permute.xlu0 0
        %1059 = vperm.xlu0 %1058, %v979
        %v1060 = vpop.permute.xlu0 %1059
        %1061 = vset.pattern.permute.xlu0 0
        %1062 = vperm.xlu0 %1061, %v980
        %v1063 = vpop.permute.xlu0 %1062
        %1064 = vset.pattern.permute.xlu0 0
        %1065 = vperm.xlu0 %1064, %v981
        %v1066 = vpop.permute.xlu0 %1065
        %1067 = vset.pattern.permute.xlu0 0
        %1068 = vperm.xlu0 %1067, %v982
        %v1069 = vpop.permute.xlu0 %1068
        %1070 = vset.pattern.permute.xlu0 0
        %1071 = vperm.xlu0 %1070, %v983
        %v1072 = vpop.permute.xlu0 %1071
        %1073 = vset.pattern.permute.xlu0 0
        %1074 = vperm.xlu0 %1073, %v984
        %v1075 = vpop.permute.xlu0 %1074
        %1076 = vset.pattern.permute.xlu0 0
        %1077 = vperm.xlu0 %1076, %v985
        %v1078 = vpop.permute.xlu0 %1077
        %1079 = vset.pattern.permute.xlu0 0
        %1080 = vperm.xlu0 %1079, %v986
        %v1081 = vpop.permute.xlu0 %1080
        %1082 = vset.pattern.permute.xlu0 0
        %1083 = vperm.xlu0 %1082, %v987
        %v1084 = vpop.permute.xlu0 %1083
        %1085 = vset.pattern.permute.xlu0 0
        %1086 = vperm.xlu0 %1085, %v988
        %v1087 = vpop.permute.xlu0 %1086
        %1088 = vset.pattern.permute.xlu0 0
        %1089 = vperm.xlu0 %1088, %v989
        %v1090 = vpop.permute.xlu0 %1089
        %1091 = vset.pattern.permute.xlu0 0
        %1092 = vperm.xlu0 %1091, %v990
        %v1093 = vpop.permute.xlu0 %1092
        %1094 = vset.pattern.permute.xlu0 0
        %1095 = vperm.xlu0 %1094, %v991
        %v1096 = vpop.permute.xlu0 %1095
        %1097 = vset.pattern.permute.xlu0 0
        %1098 = vperm.xlu0 %1097, %v992
        %v1099 = vpop.permute.xlu0 %1098
        %1100 = vset.pattern.permute.xlu0 0
        %1101 = vperm.xlu0 %1100, %v993
        %v1102 = vpop.permute.xlu0 %1101
        %1103 = vset.pattern.permute.xlu0 0
        %1104 = vperm.xlu0 %1103, %v994
        %v1105 = vpop.permute.xlu0 %1104
        %1106 = vset.pattern.permute.xlu0 0
        %1107 = vperm.xlu0 %1106, %v995
        %v1108 = vpop.permute.xlu0 %1107
        %1109 = vset.pattern.permute.xlu0 0
        %1110 = vperm.xlu0 %1109, %v996
        %v1111 = vpop.permute.xlu0 %1110
        %1112 = vset.pattern.permute.xlu0 0
        %1113 = vperm.xlu0 %1112, %v997
        %v1114 = vpop.permute.xlu0 %1113
        %vm1115 = vcmp.eq.s32.totalorder %v1021, %v999
        %vm1116 = vcmp.eq.s32.totalorder %v1021, %v1000
        %vm1117 = vcmp.eq.s32.totalorder %v1021, %v1001
        %vm1118 = vcmp.eq.s32.totalorder %v1024, %v999
        %vm1119 = vcmp.eq.s32.totalorder %v1024, %v1000
        %vm1120 = vcmp.eq.s32.totalorder %v1024, %v1001
        %vm1121 = vcmp.eq.s32.totalorder %v1027, %v999
        %vm1122 = vcmp.eq.s32.totalorder %v1027, %v1000
        %vm1123 = vcmp.eq.s32.totalorder %v1027, %v1001
        %vm1124 = vcmp.eq.s32.totalorder %v1030, %v999
        %vm1125 = vcmp.eq.s32.totalorder %v1030, %v1000
        %vm1126 = vcmp.eq.s32.totalorder %v1030, %v1001
        %vm1127 = vcmp.eq.s32.totalorder %v1033, %v999
        %vm1128 = vcmp.eq.s32.totalorder %v1033, %v1000
        %vm1129 = vcmp.eq.s32.totalorder %v1033, %v1001
        %vm1130 = vcmp.eq.s32.totalorder %v1036, %v999
        %vm1131 = vcmp.eq.s32.totalorder %v1036, %v1000
        %vm1132 = vcmp.eq.s32.totalorder %v1036, %v1001
        %vm1133 = vcmp.eq.s32.totalorder %v1039, %v999
        %vm1134 = vcmp.eq.s32.totalorder %v1039, %v1000
        %vm1135 = vcmp.eq.s32.totalorder %v1039, %v1001
        %vm1136 = vcmp.eq.s32.totalorder %v1042, %v999
        %vm1137 = vcmp.eq.s32.totalorder %v1042, %v1000
        %vm1138 = vcmp.eq.s32.totalorder %v1042, %v1001
        %vm1139 = vcmp.eq.s32.totalorder %v1045, %v999
        %vm1140 = vcmp.eq.s32.totalorder %v1045, %v1000
        %vm1141 = vcmp.eq.s32.totalorder %v1045, %v1001
        %vm1142 = vcmp.eq.s32.totalorder %v1048, %v999
        %vm1143 = vcmp.eq.s32.totalorder %v1048, %v1000
        %vm1144 = vcmp.eq.s32.totalorder %v1048, %v1001
        %vm1145 = vcmp.eq.s32.totalorder %v1051, %v999
        %vm1146 = vcmp.eq.s32.totalorder %v1051, %v1000
        %vm1147 = vcmp.eq.s32.totalorder %v1051, %v1001
        %vm1148 = vcmp.eq.s32.totalorder %v1054, %v999
        %vm1149 = vcmp.eq.s32.totalorder %v1054, %v1000
        %vm1150 = vcmp.eq.s32.totalorder %v1054, %v1001
        %vm1151 = vcmp.eq.s32.totalorder %v1057, %v999
        %vm1152 = vcmp.eq.s32.totalorder %v1057, %v1000
        %vm1153 = vcmp.eq.s32.totalorder %v1057, %v1001
        %vm1154 = vcmp.eq.s32.totalorder %v1060, %v999
        %vm1155 = vcmp.eq.s32.totalorder %v1060, %v1000
        %vm1156 = vcmp.eq.s32.totalorder %v1060, %v1001
        %vm1157 = vcmp.eq.s32.totalorder %v1063, %v999
        %vm1158 = vcmp.eq.s32.totalorder %v1063, %v1000
        %vm1159 = vcmp.eq.s32.totalorder %v1063, %v1001
        %vm1160 = vcmp.eq.s32.totalorder %v1066, %v999
        %vm1161 = vcmp.eq.s32.totalorder %v1066, %v1000
        %vm1162 = vcmp.eq.s32.totalorder %v1066, %v1001
        %vm1163 = vcmp.eq.s32.totalorder %v1069, %v999
        %vm1164 = vcmp.eq.s32.totalorder %v1069, %v1000
        %vm1165 = vcmp.eq.s32.totalorder %v1069, %v1001
        %vm1166 = vcmp.eq.s32.totalorder %v1072, %v999
        %vm1167 = vcmp.eq.s32.totalorder %v1072, %v1000
        %vm1168 = vcmp.eq.s32.totalorder %v1072, %v1001
        %vm1169 = vcmp.eq.s32.totalorder %v1075, %v999
        %vm1170 = vcmp.eq.s32.totalorder %v1075, %v1000
        %vm1171 = vcmp.eq.s32.totalorder %v1075, %v1001
        %vm1172 = vcmp.eq.s32.totalorder %v1078, %v999
        %vm1173 = vcmp.eq.s32.totalorder %v1078, %v1000
        %vm1174 = vcmp.eq.s32.totalorder %v1078, %v1001
        %vm1175 = vcmp.eq.s32.totalorder %v1081, %v999
        %vm1176 = vcmp.eq.s32.totalorder %v1081, %v1000
        %vm1177 = vcmp.eq.s32.totalorder %v1081, %v1001
        %vm1178 = vcmp.eq.s32.totalorder %v1084, %v999
        %vm1179 = vcmp.eq.s32.totalorder %v1084, %v1000
        %vm1180 = vcmp.eq.s32.totalorder %v1084, %v1001
        %vm1181 = vcmp.eq.s32.totalorder %v1087, %v999
        %vm1182 = vcmp.eq.s32.totalorder %v1087, %v1000
        %vm1183 = vcmp.eq.s32.totalorder %v1087, %v1001
        %vm1184 = vcmp.eq.s32.totalorder %v1090, %v999
        %vm1185 = vcmp.eq.s32.totalorder %v1090, %v1000
        %vm1186 = vcmp.eq.s32.totalorder %v1090, %v1001
        %vm1187 = vcmp.eq.s32.totalorder %v1093, %v999
        %vm1188 = vcmp.eq.s32.totalorder %v1093, %v1000
        %vm1189 = vcmp.eq.s32.totalorder %v1093, %v1001
        %vm1190 = vcmp.eq.s32.totalorder %v1096, %v999
        %vm1191 = vcmp.eq.s32.totalorder %v1096, %v1000
        %vm1192 = vcmp.eq.s32.totalorder %v1096, %v1001
        %vm1193 = vcmp.eq.s32.totalorder %v1099, %v999
        %vm1194 = vcmp.eq.s32.totalorder %v1099, %v1000
        %vm1195 = vcmp.eq.s32.totalorder %v1099, %v1001
        %vm1196 = vcmp.eq.s32.totalorder %v1102, %v999
        %vm1197 = vcmp.eq.s32.totalorder %v1102, %v1000
        %vm1198 = vcmp.eq.s32.totalorder %v1102, %v1001
        %vm1199 = vcmp.eq.s32.totalorder %v1105, %v999
        %vm1200 = vcmp.eq.s32.totalorder %v1105, %v1000
        %vm1201 = vcmp.eq.s32.totalorder %v1105, %v1001
        %vm1202 = vcmp.eq.s32.totalorder %v1108, %v999
        %vm1203 = vcmp.eq.s32.totalorder %v1108, %v1000
        %vm1204 = vcmp.eq.s32.totalorder %v1108, %v1001
        %vm1205 = vcmp.eq.s32.totalorder %v1111, %v999
        %vm1206 = vcmp.eq.s32.totalorder %v1111, %v1000
        %vm1207 = vcmp.eq.s32.totalorder %v1111, %v1001
        %vm1208 = vcmp.eq.s32.totalorder %v1114, %v999
        %vm1209 = vcmp.eq.s32.totalorder %v1114, %v1000
        %vm1210 = vcmp.eq.s32.totalorder %v1114, %v1001
        %v1211 = vsel %vm1115, %v1007, 0.0
        %v1212 = vsel %vm1116, %v1011, 0.0
        %v1213 = vsel %vm1117, %v1015, 0.0
        %v1214 = vsel %vm1118, %v1007, 0.0
        %v1215 = vsel %vm1119, %v1011, 0.0
        %v1216 = vsel %vm1120, %v1015, 0.0
        %v1217 = vsel %vm1121, %v1007, 0.0
        %v1218 = vsel %vm1122, %v1011, 0.0
        %v1219 = vsel %vm1123, %v1015, 0.0
        %v1220 = vsel %vm1124, %v1007, 0.0
        %v1221 = vsel %vm1125, %v1011, 0.0
        %v1222 = vsel %vm1126, %v1015, 0.0
        %v1223 = vsel %vm1127, %v1007, 0.0
        %v1224 = vsel %vm1128, %v1011, 0.0
        %v1225 = vsel %vm1129, %v1015, 0.0
        %v1226 = vsel %vm1130, %v1007, 0.0
        %v1227 = vsel %vm1131, %v1011, 0.0
        %v1228 = vsel %vm1132, %v1015, 0.0
        %v1229 = vsel %vm1133, %v1007, 0.0
        %v1230 = vsel %vm1134, %v1011, 0.0
        %v1231 = vsel %vm1135, %v1015, 0.0
        %v1232 = vsel %vm1136, %v1007, 0.0
        %v1233 = vsel %vm1137, %v1011, 0.0
        %v1234 = vsel %vm1138, %v1015, 0.0
        %v1235 = vsel %vm1139, %v1007, 0.0
        %v1236 = vsel %vm1140, %v1011, 0.0
        %v1237 = vsel %vm1141, %v1015, 0.0
        %v1238 = vsel %vm1142, %v1007, 0.0
        %v1239 = vsel %vm1143, %v1011, 0.0
        %v1240 = vsel %vm1144, %v1015, 0.0
        %v1241 = vsel %vm1145, %v1007, 0.0
        %v1242 = vsel %vm1146, %v1011, 0.0
        %v1243 = vsel %vm1147, %v1015, 0.0
        %v1244 = vsel %vm1148, %v1007, 0.0
        %v1245 = vsel %vm1149, %v1011, 0.0
        %v1246 = vsel %vm1150, %v1015, 0.0
        %v1247 = vsel %vm1151, %v1007, 0.0
        %v1248 = vsel %vm1152, %v1011, 0.0
        %v1249 = vsel %vm1153, %v1015, 0.0
        %v1250 = vsel %vm1154, %v1007, 0.0
        %v1251 = vsel %vm1155, %v1011, 0.0
        %v1252 = vsel %vm1156, %v1015, 0.0
        %v1253 = vsel %vm1157, %v1007, 0.0
        %v1254 = vsel %vm1158, %v1011, 0.0
        %v1255 = vsel %vm1159, %v1015, 0.0
        %v1256 = vsel %vm1160, %v1007, 0.0
        %v1257 = vsel %vm1161, %v1011, 0.0
        %v1258 = vsel %vm1162, %v1015, 0.0
        %v1259 = vsel %vm1163, %v1007, 0.0
        %v1260 = vsel %vm1164, %v1011, 0.0
        %v1261 = vsel %vm1165, %v1015, 0.0
        %v1262 = vsel %vm1166, %v1007, 0.0
        %v1263 = vsel %vm1167, %v1011, 0.0
        %v1264 = vsel %vm1168, %v1015, 0.0
        %v1265 = vsel %vm1169, %v1007, 0.0
        %v1266 = vsel %vm1170, %v1011, 0.0
        %v1267 = vsel %vm1171, %v1015, 0.0
        %v1268 = vsel %vm1172, %v1007, 0.0
        %v1269 = vsel %vm1173, %v1011, 0.0
        %v1270 = vsel %vm1174, %v1015, 0.0
        %v1271 = vsel %vm1175, %v1007, 0.0
        %v1272 = vsel %vm1176, %v1011, 0.0
        %v1273 = vsel %vm1177, %v1015, 0.0
        %v1274 = vsel %vm1178, %v1007, 0.0
        %v1275 = vsel %vm1179, %v1011, 0.0
        %v1276 = vsel %vm1180, %v1015, 0.0
        %v1277 = vsel %vm1181, %v1007, 0.0
        %v1278 = vsel %vm1182, %v1011, 0.0
        %v1279 = vsel %vm1183, %v1015, 0.0
        %v1280 = vsel %vm1184, %v1007, 0.0
        %v1281 = vsel %vm1185, %v1011, 0.0
        %v1282 = vsel %vm1186, %v1015, 0.0
        %v1283 = vsel %vm1187, %v1007, 0.0
        %v1284 = vsel %vm1188, %v1011, 0.0
        %v1285 = vsel %vm1189, %v1015, 0.0
        %v1286 = vsel %vm1190, %v1007, 0.0
        %v1287 = vsel %vm1191, %v1011, 0.0
        %v1288 = vsel %vm1192, %v1015, 0.0
        %v1289 = vsel %vm1193, %v1007, 0.0
        %v1290 = vsel %vm1194, %v1011, 0.0
        %v1291 = vsel %vm1195, %v1015, 0.0
        %v1292 = vsel %vm1196, %v1007, 0.0
        %v1293 = vsel %vm1197, %v1011, 0.0
        %v1294 = vsel %vm1198, %v1015, 0.0
        %v1295 = vsel %vm1199, %v1007, 0.0
        %v1296 = vsel %vm1200, %v1011, 0.0
        %v1297 = vsel %vm1201, %v1015, 0.0
        %v1298 = vsel %vm1202, %v1007, 0.0
        %v1299 = vsel %vm1203, %v1011, 0.0
        %v1300 = vsel %vm1204, %v1015, 0.0
        %v1301 = vsel %vm1205, %v1007, 0.0
        %v1302 = vsel %vm1206, %v1011, 0.0
        %v1303 = vsel %vm1207, %v1015, 0.0
        %v1304 = vsel %vm1208, %v1007, 0.0
        %v1305 = vsel %vm1209, %v1011, 0.0
        %v1306 = vsel %vm1210, %v1015, 0.0
        %v1307 = vadd.f32 %v1211, %v1212
        %v1308 = vadd.f32 %v1307, %v1213
        %1309 = vadd.xlane.f32.xlu0 %v1308
        %v1310 = vpop.xlane.xlu0 %1309
        %v1311 = vadd.f32 %v1214, %v1215
        %v1312 = vadd.f32 %v1311, %v1216
        %1313 = vadd.xlane.f32.xlu0 %v1312
        %v1314 = vpop.xlane.xlu0 %1313
        %v1315 = vadd.f32 %v1217, %v1218
        %v1316 = vadd.f32 %v1315, %v1219
        %1317 = vadd.xlane.f32.xlu0 %v1316
        %v1318 = vpop.xlane.xlu0 %1317
        %v1319 = vadd.f32 %v1220, %v1221
        %v1320 = vadd.f32 %v1319, %v1222
        %1321 = vadd.xlane.f32.xlu0 %v1320
        %v1322 = vpop.xlane.xlu0 %1321
        %v1323 = vadd.f32 %v1223, %v1224
        %v1324 = vadd.f32 %v1323, %v1225
        %1325 = vadd.xlane.f32.xlu0 %v1324
        %v1326 = vpop.xlane.xlu0 %1325
        %v1327 = vadd.f32 %v1226, %v1227
        %v1328 = vadd.f32 %v1327, %v1228
        %1329 = vadd.xlane.f32.xlu0 %v1328
        %v1330 = vpop.xlane.xlu0 %1329
        %v1331 = vadd.f32 %v1229, %v1230
        %v1332 = vadd.f32 %v1331, %v1231
        %1333 = vadd.xlane.f32.xlu0 %v1332
        %v1334 = vpop.xlane.xlu0 %1333
        %v1335 = vadd.f32 %v1232, %v1233
        %v1336 = vadd.f32 %v1335, %v1234
        %1337 = vadd.xlane.f32.xlu0 %v1336
        %v1338 = vpop.xlane.xlu0 %1337
        %v1339 = vadd.f32 %v1235, %v1236
        %v1340 = vadd.f32 %v1339, %v1237
        %1341 = vadd.xlane.f32.xlu0 %v1340
        %v1342 = vpop.xlane.xlu0 %1341
        %v1343 = vadd.f32 %v1238, %v1239
        %v1344 = vadd.f32 %v1343, %v1240
        %1345 = vadd.xlane.f32.xlu0 %v1344
        %v1346 = vpop.xlane.xlu0 %1345
        %v1347 = vadd.f32 %v1241, %v1242
        %v1348 = vadd.f32 %v1347, %v1243
        %1349 = vadd.xlane.f32.xlu0 %v1348
        %v1350 = vpop.xlane.xlu0 %1349
        %v1351 = vadd.f32 %v1244, %v1245
        %v1352 = vadd.f32 %v1351, %v1246
        %1353 = vadd.xlane.f32.xlu0 %v1352
        %v1354 = vpop.xlane.xlu0 %1353
        %v1355 = vadd.f32 %v1247, %v1248
        %v1356 = vadd.f32 %v1355, %v1249
        %1357 = vadd.xlane.f32.xlu0 %v1356
        %v1358 = vpop.xlane.xlu0 %1357
        %v1359 = vadd.f32 %v1250, %v1251
        %v1360 = vadd.f32 %v1359, %v1252
        %1361 = vadd.xlane.f32.xlu0 %v1360
        %v1362 = vpop.xlane.xlu0 %1361
        %v1363 = vadd.f32 %v1253, %v1254
        %v1364 = vadd.f32 %v1363, %v1255
        %1365 = vadd.xlane.f32.xlu0 %v1364
        %v1366 = vpop.xlane.xlu0 %1365
        %v1367 = vadd.f32 %v1256, %v1257
        %v1368 = vadd.f32 %v1367, %v1258
        %1369 = vadd.xlane.f32.xlu0 %v1368
        %v1370 = vpop.xlane.xlu0 %1369
        %v1371 = vadd.f32 %v1259, %v1260
        %v1372 = vadd.f32 %v1371, %v1261
        %1373 = vadd.xlane.f32.xlu0 %v1372
        %v1374 = vpop.xlane.xlu0 %1373
        %v1375 = vadd.f32 %v1262, %v1263
        %v1376 = vadd.f32 %v1375, %v1264
        %1377 = vadd.xlane.f32.xlu0 %v1376
        %v1378 = vpop.xlane.xlu0 %1377
        %v1379 = vadd.f32 %v1265, %v1266
        %v1380 = vadd.f32 %v1379, %v1267
        %1381 = vadd.xlane.f32.xlu0 %v1380
        %v1382 = vpop.xlane.xlu0 %1381
        %v1383 = vadd.f32 %v1268, %v1269
        %v1384 = vadd.f32 %v1383, %v1270
        %1385 = vadd.xlane.f32.xlu0 %v1384
        %v1386 = vpop.xlane.xlu0 %1385
        %v1387 = vadd.f32 %v1271, %v1272
        %v1388 = vadd.f32 %v1387, %v1273
        %1389 = vadd.xlane.f32.xlu0 %v1388
        %v1390 = vpop.xlane.xlu0 %1389
        %v1391 = vadd.f32 %v1274, %v1275
        %v1392 = vadd.f32 %v1391, %v1276
        %1393 = vadd.xlane.f32.xlu0 %v1392
        %v1394 = vpop.xlane.xlu0 %1393
        %v1395 = vadd.f32 %v1277, %v1278
        %v1396 = vadd.f32 %v1395, %v1279
        %1397 = vadd.xlane.f32.xlu0 %v1396
        %v1398 = vpop.xlane.xlu0 %1397
        %v1399 = vadd.f32 %v1280, %v1281
        %v1400 = vadd.f32 %v1399, %v1282
        %1401 = vadd.xlane.f32.xlu0 %v1400
        %v1402 = vpop.xlane.xlu0 %1401
        %v1403 = vadd.f32 %v1283, %v1284
        %v1404 = vadd.f32 %v1403, %v1285
        %1405 = vadd.xlane.f32.xlu0 %v1404
        %v1406 = vpop.xlane.xlu0 %1405
        %v1407 = vadd.f32 %v1286, %v1287
        %v1408 = vadd.f32 %v1407, %v1288
        %1409 = vadd.xlane.f32.xlu0 %v1408
        %v1410 = vpop.xlane.xlu0 %1409
        %v1411 = vadd.f32 %v1289, %v1290
        %v1412 = vadd.f32 %v1411, %v1291
        %1413 = vadd.xlane.f32.xlu0 %v1412
        %v1414 = vpop.xlane.xlu0 %1413
        %v1415 = vadd.f32 %v1292, %v1293
        %v1416 = vadd.f32 %v1415, %v1294
        %1417 = vadd.xlane.f32.xlu0 %v1416
        %v1418 = vpop.xlane.xlu0 %1417
        %v1419 = vadd.f32 %v1295, %v1296
        %v1420 = vadd.f32 %v1419, %v1297
        %1421 = vadd.xlane.f32.xlu0 %v1420
        %v1422 = vpop.xlane.xlu0 %1421
        %v1423 = vadd.f32 %v1298, %v1299
        %v1424 = vadd.f32 %v1423, %v1300
        %1425 = vadd.xlane.f32.xlu0 %v1424
        %v1426 = vpop.xlane.xlu0 %1425
        %v1427 = vadd.f32 %v1301, %v1302
        %v1428 = vadd.f32 %v1427, %v1303
        %1429 = vadd.xlane.f32.xlu0 %v1428
        %v1430 = vpop.xlane.xlu0 %1429
        %v1431 = vadd.f32 %v1304, %v1305
        %v1432 = vadd.f32 %v1431, %v1306
        %1433 = vadd.xlane.f32.xlu0 %v1432
        %v1434 = vpop.xlane.xlu0 %1433
        %1435 = vset.pattern.permute.xlu0 1
        %1436 = vperm.xlu0 %1435, %v966
        %v1437 = vpop.permute.xlu0 %1436
        %1438 = vset.pattern.permute.xlu0 1
        %1439 = vperm.xlu0 %1438, %v967
        %v1440 = vpop.permute.xlu0 %1439
        %1441 = vset.pattern.permute.xlu0 1
        %1442 = vperm.xlu0 %1441, %v968
        %v1443 = vpop.permute.xlu0 %1442
        %1444 = vset.pattern.permute.xlu0 1
        %1445 = vperm.xlu0 %1444, %v969
        %v1446 = vpop.permute.xlu0 %1445
        %1447 = vset.pattern.permute.xlu0 1
        %1448 = vperm.xlu0 %1447, %v970
        %v1449 = vpop.permute.xlu0 %1448
        %1450 = vset.pattern.permute.xlu0 1
        %1451 = vperm.xlu0 %1450, %v971
        %v1452 = vpop.permute.xlu0 %1451
        %1453 = vset.pattern.permute.xlu0 1
        %1454 = vperm.xlu0 %1453, %v972
        %v1455 = vpop.permute.xlu0 %1454
        %1456 = vset.pattern.permute.xlu0 1
        %1457 = vperm.xlu0 %1456, %v973
        %v1458 = vpop.permute.xlu0 %1457
        %1459 = vset.pattern.permute.xlu0 1
        %1460 = vperm.xlu0 %1459, %v974
        %v1461 = vpop.permute.xlu0 %1460
        %1462 = vset.pattern.permute.xlu0 1
        %1463 = vperm.xlu0 %1462, %v975
        %v1464 = vpop.permute.xlu0 %1463
        %1465 = vset.pattern.permute.xlu0 1
        %1466 = vperm.xlu0 %1465, %v976
        %v1467 = vpop.permute.xlu0 %1466
        %1468 = vset.pattern.permute.xlu0 1
        %1469 = vperm.xlu0 %1468, %v977
        %v1470 = vpop.permute.xlu0 %1469
        %1471 = vset.pattern.permute.xlu0 1
        %1472 = vperm.xlu0 %1471, %v978
        %v1473 = vpop.permute.xlu0 %1472
        %1474 = vset.pattern.permute.xlu0 1
        %1475 = vperm.xlu0 %1474, %v979
        %v1476 = vpop.permute.xlu0 %1475
        %1477 = vset.pattern.permute.xlu0 1
        %1478 = vperm.xlu0 %1477, %v980
        %v1479 = vpop.permute.xlu0 %1478
        %1480 = vset.pattern.permute.xlu0 1
        %1481 = vperm.xlu0 %1480, %v981
        %v1482 = vpop.permute.xlu0 %1481
        %1483 = vset.pattern.permute.xlu0 1
        %1484 = vperm.xlu0 %1483, %v982
        %v1485 = vpop.permute.xlu0 %1484
        %1486 = vset.pattern.permute.xlu0 1
        %1487 = vperm.xlu0 %1486, %v983
        %v1488 = vpop.permute.xlu0 %1487
        %1489 = vset.pattern.permute.xlu0 1
        %1490 = vperm.xlu0 %1489, %v984
        %v1491 = vpop.permute.xlu0 %1490
        %1492 = vset.pattern.permute.xlu0 1
        %1493 = vperm.xlu0 %1492, %v985
        %v1494 = vpop.permute.xlu0 %1493
        %1495 = vset.pattern.permute.xlu0 1
        %1496 = vperm.xlu0 %1495, %v986
        %v1497 = vpop.permute.xlu0 %1496
        %1498 = vset.pattern.permute.xlu0 1
        %1499 = vperm.xlu0 %1498, %v987
        %v1500 = vpop.permute.xlu0 %1499
        %1501 = vset.pattern.permute.xlu0 1
        %1502 = vperm.xlu0 %1501, %v988
        %v1503 = vpop.permute.xlu0 %1502
        %1504 = vset.pattern.permute.xlu0 1
        %1505 = vperm.xlu0 %1504, %v989
        %v1506 = vpop.permute.xlu0 %1505
        %1507 = vset.pattern.permute.xlu0 1
        %1508 = vperm.xlu0 %1507, %v990
        %v1509 = vpop.permute.xlu0 %1508
        %1510 = vset.pattern.permute.xlu0 1
        %1511 = vperm.xlu0 %1510, %v991
        %v1512 = vpop.permute.xlu0 %1511
        %1513 = vset.pattern.permute.xlu0 1
        %1514 = vperm.xlu0 %1513, %v992
        %v1515 = vpop.permute.xlu0 %1514
        %1516 = vset.pattern.permute.xlu0 1
        %1517 = vperm.xlu0 %1516, %v993
        %v1518 = vpop.permute.xlu0 %1517
        %1519 = vset.pattern.permute.xlu0 1
        %1520 = vperm.xlu0 %1519, %v994
        %v1521 = vpop.permute.xlu0 %1520
        %1522 = vset.pattern.permute.xlu0 1
        %1523 = vperm.xlu0 %1522, %v995
        %v1524 = vpop.permute.xlu0 %1523
        %1525 = vset.pattern.permute.xlu0 1
        %1526 = vperm.xlu0 %1525, %v996
        %v1527 = vpop.permute.xlu0 %1526
        %1528 = vset.pattern.permute.xlu0 1
        %1529 = vperm.xlu0 %1528, %v997
        %v1530 = vpop.permute.xlu0 %1529
        %vm1531 = vcmp.eq.s32.totalorder %v1437, %v999
        %vm1532 = vcmp.eq.s32.totalorder %v1437, %v1000
        %vm1533 = vcmp.eq.s32.totalorder %v1437, %v1001
        %vm1534 = vcmp.eq.s32.totalorder %v1440, %v999
        %vm1535 = vcmp.eq.s32.totalorder %v1440, %v1000
        %vm1536 = vcmp.eq.s32.totalorder %v1440, %v1001
        %vm1537 = vcmp.eq.s32.totalorder %v1443, %v999
        %vm1538 = vcmp.eq.s32.totalorder %v1443, %v1000
        %vm1539 = vcmp.eq.s32.totalorder %v1443, %v1001
        %vm1540 = vcmp.eq.s32.totalorder %v1446, %v999
        %vm1541 = vcmp.eq.s32.totalorder %v1446, %v1000
        %vm1542 = vcmp.eq.s32.totalorder %v1446, %v1001
        %vm1543 = vcmp.eq.s32.totalorder %v1449, %v999
        %vm1544 = vcmp.eq.s32.totalorder %v1449, %v1000
        %vm1545 = vcmp.eq.s32.totalorder %v1449, %v1001
        %vm1546 = vcmp.eq.s32.totalorder %v1452, %v999
        %vm1547 = vcmp.eq.s32.totalorder %v1452, %v1000
        %vm1548 = vcmp.eq.s32.totalorder %v1452, %v1001
        %vm1549 = vcmp.eq.s32.totalorder %v1455, %v999
        %vm1550 = vcmp.eq.s32.totalorder %v1455, %v1000
        %vm1551 = vcmp.eq.s32.totalorder %v1455, %v1001
        %vm1552 = vcmp.eq.s32.totalorder %v1458, %v999
        %vm1553 = vcmp.eq.s32.totalorder %v1458, %v1000
        %vm1554 = vcmp.eq.s32.totalorder %v1458, %v1001
        %vm1555 = vcmp.eq.s32.totalorder %v1461, %v999
        %vm1556 = vcmp.eq.s32.totalorder %v1461, %v1000
        %vm1557 = vcmp.eq.s32.totalorder %v1461, %v1001
        %vm1558 = vcmp.eq.s32.totalorder %v1464, %v999
        %vm1559 = vcmp.eq.s32.totalorder %v1464, %v1000
        %vm1560 = vcmp.eq.s32.totalorder %v1464, %v1001
        %vm1561 = vcmp.eq.s32.totalorder %v1467, %v999
        %vm1562 = vcmp.eq.s32.totalorder %v1467, %v1000
        %vm1563 = vcmp.eq.s32.totalorder %v1467, %v1001
        %vm1564 = vcmp.eq.s32.totalorder %v1470, %v999
        %vm1565 = vcmp.eq.s32.totalorder %v1470, %v1000
        %vm1566 = vcmp.eq.s32.totalorder %v1470, %v1001
        %vm1567 = vcmp.eq.s32.totalorder %v1473, %v999
        %vm1568 = vcmp.eq.s32.totalorder %v1473, %v1000
        %vm1569 = vcmp.eq.s32.totalorder %v1473, %v1001
        %vm1570 = vcmp.eq.s32.totalorder %v1476, %v999
        %vm1571 = vcmp.eq.s32.totalorder %v1476, %v1000
        %vm1572 = vcmp.eq.s32.totalorder %v1476, %v1001
        %vm1573 = vcmp.eq.s32.totalorder %v1479, %v999
        %vm1574 = vcmp.eq.s32.totalorder %v1479, %v1000
        %vm1575 = vcmp.eq.s32.totalorder %v1479, %v1001
        %vm1576 = vcmp.eq.s32.totalorder %v1482, %v999
        %vm1577 = vcmp.eq.s32.totalorder %v1482, %v1000
        %vm1578 = vcmp.eq.s32.totalorder %v1482, %v1001
        %vm1579 = vcmp.eq.s32.totalorder %v1485, %v999
        %vm1580 = vcmp.eq.s32.totalorder %v1485, %v1000
        %vm1581 = vcmp.eq.s32.totalorder %v1485, %v1001
        %vm1582 = vcmp.eq.s32.totalorder %v1488, %v999
        %vm1583 = vcmp.eq.s32.totalorder %v1488, %v1000
        %vm1584 = vcmp.eq.s32.totalorder %v1488, %v1001
        %vm1585 = vcmp.eq.s32.totalorder %v1491, %v999
        %vm1586 = vcmp.eq.s32.totalorder %v1491, %v1000
        %vm1587 = vcmp.eq.s32.totalorder %v1491, %v1001
        %vm1588 = vcmp.eq.s32.totalorder %v1494, %v999
        %vm1589 = vcmp.eq.s32.totalorder %v1494, %v1000
        %vm1590 = vcmp.eq.s32.totalorder %v1494, %v1001
        %vm1591 = vcmp.eq.s32.totalorder %v1497, %v999
        %vm1592 = vcmp.eq.s32.totalorder %v1497, %v1000
        %vm1593 = vcmp.eq.s32.totalorder %v1497, %v1001
        %vm1594 = vcmp.eq.s32.totalorder %v1500, %v999
        %vm1595 = vcmp.eq.s32.totalorder %v1500, %v1000
        %vm1596 = vcmp.eq.s32.totalorder %v1500, %v1001
        %vm1597 = vcmp.eq.s32.totalorder %v1503, %v999
        %vm1598 = vcmp.eq.s32.totalorder %v1503, %v1000
        %vm1599 = vcmp.eq.s32.totalorder %v1503, %v1001
        %vm1600 = vcmp.eq.s32.totalorder %v1506, %v999
        %vm1601 = vcmp.eq.s32.totalorder %v1506, %v1000
        %vm1602 = vcmp.eq.s32.totalorder %v1506, %v1001
        %vm1603 = vcmp.eq.s32.totalorder %v1509, %v999
        %vm1604 = vcmp.eq.s32.totalorder %v1509, %v1000
        %vm1605 = vcmp.eq.s32.totalorder %v1509, %v1001
        %vm1606 = vcmp.eq.s32.totalorder %v1512, %v999
        %vm1607 = vcmp.eq.s32.totalorder %v1512, %v1000
        %vm1608 = vcmp.eq.s32.totalorder %v1512, %v1001
        %vm1609 = vcmp.eq.s32.totalorder %v1515, %v999
        %vm1610 = vcmp.eq.s32.totalorder %v1515, %v1000
        %vm1611 = vcmp.eq.s32.totalorder %v1515, %v1001
        %vm1612 = vcmp.eq.s32.totalorder %v1518, %v999
        %vm1613 = vcmp.eq.s32.totalorder %v1518, %v1000
        %vm1614 = vcmp.eq.s32.totalorder %v1518, %v1001
        %vm1615 = vcmp.eq.s32.totalorder %v1521, %v999
        %vm1616 = vcmp.eq.s32.totalorder %v1521, %v1000
        %vm1617 = vcmp.eq.s32.totalorder %v1521, %v1001
        %vm1618 = vcmp.eq.s32.totalorder %v1524, %v999
        %vm1619 = vcmp.eq.s32.totalorder %v1524, %v1000
        %vm1620 = vcmp.eq.s32.totalorder %v1524, %v1001
        %vm1621 = vcmp.eq.s32.totalorder %v1527, %v999
        %vm1622 = vcmp.eq.s32.totalorder %v1527, %v1000
        %vm1623 = vcmp.eq.s32.totalorder %v1527, %v1001
        %vm1624 = vcmp.eq.s32.totalorder %v1530, %v999
        %vm1625 = vcmp.eq.s32.totalorder %v1530, %v1000
        %vm1626 = vcmp.eq.s32.totalorder %v1530, %v1001
        %v1627 = vsel %vm1531, %v1007, 0.0
        %v1628 = vsel %vm1532, %v1011, 0.0
        %v1629 = vsel %vm1533, %v1015, 0.0
        %v1630 = vsel %vm1534, %v1007, 0.0
        %v1631 = vsel %vm1535, %v1011, 0.0
        %v1632 = vsel %vm1536, %v1015, 0.0
        %v1633 = vsel %vm1537, %v1007, 0.0
        %v1634 = vsel %vm1538, %v1011, 0.0
        %v1635 = vsel %vm1539, %v1015, 0.0
        %v1636 = vsel %vm1540, %v1007, 0.0
        %v1637 = vsel %vm1541, %v1011, 0.0
        %v1638 = vsel %vm1542, %v1015, 0.0
        %v1639 = vsel %vm1543, %v1007, 0.0
        %v1640 = vsel %vm1544, %v1011, 0.0
        %v1641 = vsel %vm1545, %v1015, 0.0
        %v1642 = vsel %vm1546, %v1007, 0.0
        %v1643 = vsel %vm1547, %v1011, 0.0
        %v1644 = vsel %vm1548, %v1015, 0.0
        %v1645 = vsel %vm1549, %v1007, 0.0
        %v1646 = vsel %vm1550, %v1011, 0.0
        %v1647 = vsel %vm1551, %v1015, 0.0
        %v1648 = vsel %vm1552, %v1007, 0.0
        %v1649 = vsel %vm1553, %v1011, 0.0
        %v1650 = vsel %vm1554, %v1015, 0.0
        %v1651 = vsel %vm1555, %v1007, 0.0
        %v1652 = vsel %vm1556, %v1011, 0.0
        %v1653 = vsel %vm1557, %v1015, 0.0
        %v1654 = vsel %vm1558, %v1007, 0.0
        %v1655 = vsel %vm1559, %v1011, 0.0
        %v1656 = vsel %vm1560, %v1015, 0.0
        %v1657 = vsel %vm1561, %v1007, 0.0
        %v1658 = vsel %vm1562, %v1011, 0.0
        %v1659 = vsel %vm1563, %v1015, 0.0
        %v1660 = vsel %vm1564, %v1007, 0.0
        %v1661 = vsel %vm1565, %v1011, 0.0
        %v1662 = vsel %vm1566, %v1015, 0.0
        %v1663 = vsel %vm1567, %v1007, 0.0
        %v1664 = vsel %vm1568, %v1011, 0.0
        %v1665 = vsel %vm1569, %v1015, 0.0
        %v1666 = vsel %vm1570, %v1007, 0.0
        %v1667 = vsel %vm1571, %v1011, 0.0
        %v1668 = vsel %vm1572, %v1015, 0.0
        %v1669 = vsel %vm1573, %v1007, 0.0
        %v1670 = vsel %vm1574, %v1011, 0.0
        %v1671 = vsel %vm1575, %v1015, 0.0
        %v1672 = vsel %vm1576, %v1007, 0.0
        %v1673 = vsel %vm1577, %v1011, 0.0
        %v1674 = vsel %vm1578, %v1015, 0.0
        %v1675 = vsel %vm1579, %v1007, 0.0
        %v1676 = vsel %vm1580, %v1011, 0.0
        %v1677 = vsel %vm1581, %v1015, 0.0
        %v1678 = vsel %vm1582, %v1007, 0.0
        %v1679 = vsel %vm1583, %v1011, 0.0
        %v1680 = vsel %vm1584, %v1015, 0.0
        %v1681 = vsel %vm1585, %v1007, 0.0
        %v1682 = vsel %vm1586, %v1011, 0.0
        %v1683 = vsel %vm1587, %v1015, 0.0
        %v1684 = vsel %vm1588, %v1007, 0.0
        %v1685 = vsel %vm1589, %v1011, 0.0
        %v1686 = vsel %vm1590, %v1015, 0.0
        %v1687 = vsel %vm1591, %v1007, 0.0
        %v1688 = vsel %vm1592, %v1011, 0.0
        %v1689 = vsel %vm1593, %v1015, 0.0
        %v1690 = vsel %vm1594, %v1007, 0.0
        %v1691 = vsel %vm1595, %v1011, 0.0
        %v1692 = vsel %vm1596, %v1015, 0.0
        %v1693 = vsel %vm1597, %v1007, 0.0
        %v1694 = vsel %vm1598, %v1011, 0.0
        %v1695 = vsel %vm1599, %v1015, 0.0
        %v1696 = vsel %vm1600, %v1007, 0.0
        %v1697 = vsel %vm1601, %v1011, 0.0
        %v1698 = vsel %vm1602, %v1015, 0.0
        %v1699 = vsel %vm1603, %v1007, 0.0
        %v1700 = vsel %vm1604, %v1011, 0.0
        %v1701 = vsel %vm1605, %v1015, 0.0
        %v1702 = vsel %vm1606, %v1007, 0.0
        %v1703 = vsel %vm1607, %v1011, 0.0
        %v1704 = vsel %vm1608, %v1015, 0.0
        %v1705 = vsel %vm1609, %v1007, 0.0
        %v1706 = vsel %vm1610, %v1011, 0.0
        %v1707 = vsel %vm1611, %v1015, 0.0
        %v1708 = vsel %vm1612, %v1007, 0.0
        %v1709 = vsel %vm1613, %v1011, 0.0
        %v1710 = vsel %vm1614, %v1015, 0.0
        %v1711 = vsel %vm1615, %v1007, 0.0
        %v1712 = vsel %vm1616, %v1011, 0.0
        %v1713 = vsel %vm1617, %v1015, 0.0
        %v1714 = vsel %vm1618, %v1007, 0.0
        %v1715 = vsel %vm1619, %v1011, 0.0
        %v1716 = vsel %vm1620, %v1015, 0.0
        %v1717 = vsel %vm1621, %v1007, 0.0
        %v1718 = vsel %vm1622, %v1011, 0.0
        %v1719 = vsel %vm1623, %v1015, 0.0
        %v1720 = vsel %vm1624, %v1007, 0.0
        %v1721 = vsel %vm1625, %v1011, 0.0
        %v1722 = vsel %vm1626, %v1015, 0.0
        %v1723 = vadd.f32 %v1627, %v1628
        %v1724 = vadd.f32 %v1723, %v1629
        %1725 = vadd.xlane.f32.xlu0 %v1724
        %v1726 = vpop.xlane.xlu0 %1725
        %v1727 = vadd.f32 %v1630, %v1631
        %v1728 = vadd.f32 %v1727, %v1632
        %1729 = vadd.xlane.f32.xlu0 %v1728
        %v1730 = vpop.xlane.xlu0 %1729
        %v1731 = vadd.f32 %v1633, %v1634
        %v1732 = vadd.f32 %v1731, %v1635
        %1733 = vadd.xlane.f32.xlu0 %v1732
        %v1734 = vpop.xlane.xlu0 %1733
        %v1735 = vadd.f32 %v1636, %v1637
        %v1736 = vadd.f32 %v1735, %v1638
        %1737 = vadd.xlane.f32.xlu0 %v1736
        %v1738 = vpop.xlane.xlu0 %1737
        %v1739 = vadd.f32 %v1639, %v1640
        %v1740 = vadd.f32 %v1739, %v1641
        %1741 = vadd.xlane.f32.xlu0 %v1740
        %v1742 = vpop.xlane.xlu0 %1741
        %v1743 = vadd.f32 %v1642, %v1643
        %v1744 = vadd.f32 %v1743, %v1644
        %1745 = vadd.xlane.f32.xlu0 %v1744
        %v1746 = vpop.xlane.xlu0 %1745
        %v1747 = vadd.f32 %v1645, %v1646
        %v1748 = vadd.f32 %v1747, %v1647
        %1749 = vadd.xlane.f32.xlu0 %v1748
        %v1750 = vpop.xlane.xlu0 %1749
        %v1751 = vadd.f32 %v1648, %v1649
        %v1752 = vadd.f32 %v1751, %v1650
        %1753 = vadd.xlane.f32.xlu0 %v1752
        %v1754 = vpop.xlane.xlu0 %1753
        %v1755 = vadd.f32 %v1651, %v1652
        %v1756 = vadd.f32 %v1755, %v1653
        %1757 = vadd.xlane.f32.xlu0 %v1756
        %v1758 = vpop.xlane.xlu0 %1757
        %v1759 = vadd.f32 %v1654, %v1655
        %v1760 = vadd.f32 %v1759, %v1656
        %1761 = vadd.xlane.f32.xlu0 %v1760
        %v1762 = vpop.xlane.xlu0 %1761
        %v1763 = vadd.f32 %v1657, %v1658
        %v1764 = vadd.f32 %v1763, %v1659
        %1765 = vadd.xlane.f32.xlu0 %v1764
        %v1766 = vpop.xlane.xlu0 %1765
        %v1767 = vadd.f32 %v1660, %v1661
        %v1768 = vadd.f32 %v1767, %v1662
        %1769 = vadd.xlane.f32.xlu0 %v1768
        %v1770 = vpop.xlane.xlu0 %1769
        %v1771 = vadd.f32 %v1663, %v1664
        %v1772 = vadd.f32 %v1771, %v1665
        %1773 = vadd.xlane.f32.xlu0 %v1772
        %v1774 = vpop.xlane.xlu0 %1773
        %v1775 = vadd.f32 %v1666, %v1667
        %v1776 = vadd.f32 %v1775, %v1668
        %1777 = vadd.xlane.f32.xlu0 %v1776
        %v1778 = vpop.xlane.xlu0 %1777
        %v1779 = vadd.f32 %v1669, %v1670
        %v1780 = vadd.f32 %v1779, %v1671
        %1781 = vadd.xlane.f32.xlu0 %v1780
        %v1782 = vpop.xlane.xlu0 %1781
        %v1783 = vadd.f32 %v1672, %v1673
        %v1784 = vadd.f32 %v1783, %v1674
        %1785 = vadd.xlane.f32.xlu0 %v1784
        %v1786 = vpop.xlane.xlu0 %1785
        %v1787 = vadd.f32 %v1675, %v1676
        %v1788 = vadd.f32 %v1787, %v1677
        %1789 = vadd.xlane.f32.xlu0 %v1788
        %v1790 = vpop.xlane.xlu0 %1789
        %v1791 = vadd.f32 %v1678, %v1679
        %v1792 = vadd.f32 %v1791, %v1680
        %1793 = vadd.xlane.f32.xlu0 %v1792
        %v1794 = vpop.xlane.xlu0 %1793
        %v1795 = vadd.f32 %v1681, %v1682
        %v1796 = vadd.f32 %v1795, %v1683
        %1797 = vadd.xlane.f32.xlu0 %v1796
        %v1798 = vpop.xlane.xlu0 %1797
        %v1799 = vadd.f32 %v1684, %v1685
        %v1800 = vadd.f32 %v1799, %v1686
        %1801 = vadd.xlane.f32.xlu0 %v1800
        %v1802 = vpop.xlane.xlu0 %1801
        %v1803 = vadd.f32 %v1687, %v1688
        %v1804 = vadd.f32 %v1803, %v1689
        %1805 = vadd.xlane.f32.xlu0 %v1804
        %v1806 = vpop.xlane.xlu0 %1805
        %v1807 = vadd.f32 %v1690, %v1691
        %v1808 = vadd.f32 %v1807, %v1692
        %1809 = vadd.xlane.f32.xlu0 %v1808
        %v1810 = vpop.xlane.xlu0 %1809
        %v1811 = vadd.f32 %v1693, %v1694
        %v1812 = vadd.f32 %v1811, %v1695
        %1813 = vadd.xlane.f32.xlu0 %v1812
        %v1814 = vpop.xlane.xlu0 %1813
        %v1815 = vadd.f32 %v1696, %v1697
        %v1816 = vadd.f32 %v1815, %v1698
        %1817 = vadd.xlane.f32.xlu0 %v1816
        %v1818 = vpop.xlane.xlu0 %1817
        %v1819 = vadd.f32 %v1699, %v1700
        %v1820 = vadd.f32 %v1819, %v1701
        %1821 = vadd.xlane.f32.xlu0 %v1820
        %v1822 = vpop.xlane.xlu0 %1821
        %v1823 = vadd.f32 %v1702, %v1703
        %v1824 = vadd.f32 %v1823, %v1704
        %1825 = vadd.xlane.f32.xlu0 %v1824
        %v1826 = vpop.xlane.xlu0 %1825
        %v1827 = vadd.f32 %v1705, %v1706
        %v1828 = vadd.f32 %v1827, %v1707
        %1829 = vadd.xlane.f32.xlu0 %v1828
        %v1830 = vpop.xlane.xlu0 %1829
        %v1831 = vadd.f32 %v1708, %v1709
        %v1832 = vadd.f32 %v1831, %v1710
        %1833 = vadd.xlane.f32.xlu0 %v1832
        %v1834 = vpop.xlane.xlu0 %1833
        %v1835 = vadd.f32 %v1711, %v1712
        %v1836 = vadd.f32 %v1835, %v1713
        %1837 = vadd.xlane.f32.xlu0 %v1836
        %v1838 = vpop.xlane.xlu0 %1837
        %v1839 = vadd.f32 %v1714, %v1715
        %v1840 = vadd.f32 %v1839, %v1716
        %1841 = vadd.xlane.f32.xlu0 %v1840
        %v1842 = vpop.xlane.xlu0 %1841
        %v1843 = vadd.f32 %v1717, %v1718
        %v1844 = vadd.f32 %v1843, %v1719
        %1845 = vadd.xlane.f32.xlu0 %v1844
        %v1846 = vpop.xlane.xlu0 %1845
        %v1847 = vadd.f32 %v1720, %v1721
        %v1848 = vadd.f32 %v1847, %v1722
        %1849 = vadd.xlane.f32.xlu0 %v1848
        %v1850 = vpop.xlane.xlu0 %1849
        %1851 = vset.pattern.permute.xlu0 2
        %1852 = vperm.xlu0 %1851, %v966
        %v1853 = vpop.permute.xlu0 %1852
        %1854 = vset.pattern.permute.xlu0 2
        %1855 = vperm.xlu0 %1854, %v967
        %v1856 = vpop.permute.xlu0 %1855
        %1857 = vset.pattern.permute.xlu0 2
        %1858 = vperm.xlu0 %1857, %v968
        %v1859 = vpop.permute.xlu0 %1858
        %1860 = vset.pattern.permute.xlu0 2
        %1861 = vperm.xlu0 %1860, %v969
        %v1862 = vpop.permute.xlu0 %1861
        %1863 = vset.pattern.permute.xlu0 2
        %1864 = vperm.xlu0 %1863, %v970
        %v1865 = vpop.permute.xlu0 %1864
        %1866 = vset.pattern.permute.xlu0 2
        %1867 = vperm.xlu0 %1866, %v971
        %v1868 = vpop.permute.xlu0 %1867
        %1869 = vset.pattern.permute.xlu0 2
        %1870 = vperm.xlu0 %1869, %v972
        %v1871 = vpop.permute.xlu0 %1870
        %1872 = vset.pattern.permute.xlu0 2
        %1873 = vperm.xlu0 %1872, %v973
        %v1874 = vpop.permute.xlu0 %1873
        %1875 = vset.pattern.permute.xlu0 2
        %1876 = vperm.xlu0 %1875, %v974
        %v1877 = vpop.permute.xlu0 %1876
        %1878 = vset.pattern.permute.xlu0 2
        %1879 = vperm.xlu0 %1878, %v975
        %v1880 = vpop.permute.xlu0 %1879
        %1881 = vset.pattern.permute.xlu0 2
        %1882 = vperm.xlu0 %1881, %v976
        %v1883 = vpop.permute.xlu0 %1882
        %1884 = vset.pattern.permute.xlu0 2
        %1885 = vperm.xlu0 %1884, %v977
        %v1886 = vpop.permute.xlu0 %1885
        %1887 = vset.pattern.permute.xlu0 2
        %1888 = vperm.xlu0 %1887, %v978
        %v1889 = vpop.permute.xlu0 %1888
        %1890 = vset.pattern.permute.xlu0 2
        %1891 = vperm.xlu0 %1890, %v979
        %v1892 = vpop.permute.xlu0 %1891
        %1893 = vset.pattern.permute.xlu0 2
        %1894 = vperm.xlu0 %1893, %v980
        %v1895 = vpop.permute.xlu0 %1894
        %1896 = vset.pattern.permute.xlu0 2
        %1897 = vperm.xlu0 %1896, %v981
        %v1898 = vpop.permute.xlu0 %1897
        %1899 = vset.pattern.permute.xlu0 2
        %1900 = vperm.xlu0 %1899, %v982
        %v1901 = vpop.permute.xlu0 %1900
        %1902 = vset.pattern.permute.xlu0 2
        %1903 = vperm.xlu0 %1902, %v983
        %v1904 = vpop.permute.xlu0 %1903
        %1905 = vset.pattern.permute.xlu0 2
        %1906 = vperm.xlu0 %1905, %v984
        %v1907 = vpop.permute.xlu0 %1906
        %1908 = vset.pattern.permute.xlu0 2
        %1909 = vperm.xlu0 %1908, %v985
        %v1910 = vpop.permute.xlu0 %1909
        %1911 = vset.pattern.permute.xlu0 2
        %1912 = vperm.xlu0 %1911, %v986
        %v1913 = vpop.permute.xlu0 %1912
        %1914 = vset.pattern.permute.xlu0 2
        %1915 = vperm.xlu0 %1914, %v987
        %v1916 = vpop.permute.xlu0 %1915
        %1917 = vset.pattern.permute.xlu0 2
        %1918 = vperm.xlu0 %1917, %v988
        %v1919 = vpop.permute.xlu0 %1918
        %1920 = vset.pattern.permute.xlu0 2
        %1921 = vperm.xlu0 %1920, %v989
        %v1922 = vpop.permute.xlu0 %1921
        %1923 = vset.pattern.permute.xlu0 2
        %1924 = vperm.xlu0 %1923, %v990
        %v1925 = vpop.permute.xlu0 %1924
        %1926 = vset.pattern.permute.xlu0 2
        %1927 = vperm.xlu0 %1926, %v991
        %v1928 = vpop.permute.xlu0 %1927
        %1929 = vset.pattern.permute.xlu0 2
        %1930 = vperm.xlu0 %1929, %v992
        %v1931 = vpop.permute.xlu0 %1930
        %1932 = vset.pattern.permute.xlu0 2
        %1933 = vperm.xlu0 %1932, %v993
        %v1934 = vpop.permute.xlu0 %1933
        %1935 = vset.pattern.permute.xlu0 2
        %1936 = vperm.xlu0 %1935, %v994
        %v1937 = vpop.permute.xlu0 %1936
        %1938 = vset.pattern.permute.xlu0 2
        %1939 = vperm.xlu0 %1938, %v995
        %v1940 = vpop.permute.xlu0 %1939
        %1941 = vset.pattern.permute.xlu0 2
        %1942 = vperm.xlu0 %1941, %v996
        %v1943 = vpop.permute.xlu0 %1942
        %1944 = vset.pattern.permute.xlu0 2
        %1945 = vperm.xlu0 %1944, %v997
        %v1946 = vpop.permute.xlu0 %1945
        %vm1947 = vcmp.eq.s32.totalorder %v1853, %v999
        %vm1948 = vcmp.eq.s32.totalorder %v1853, %v1000
        %vm1949 = vcmp.eq.s32.totalorder %v1853, %v1001
        %vm1950 = vcmp.eq.s32.totalorder %v1856, %v999
        %vm1951 = vcmp.eq.s32.totalorder %v1856, %v1000
        %vm1952 = vcmp.eq.s32.totalorder %v1856, %v1001
        %vm1953 = vcmp.eq.s32.totalorder %v1859, %v999
        %vm1954 = vcmp.eq.s32.totalorder %v1859, %v1000
        %vm1955 = vcmp.eq.s32.totalorder %v1859, %v1001
        %vm1956 = vcmp.eq.s32.totalorder %v1862, %v999
        %vm1957 = vcmp.eq.s32.totalorder %v1862, %v1000
        %vm1958 = vcmp.eq.s32.totalorder %v1862, %v1001
        %vm1959 = vcmp.eq.s32.totalorder %v1865, %v999
        %vm1960 = vcmp.eq.s32.totalorder %v1865, %v1000
        %vm1961 = vcmp.eq.s32.totalorder %v1865, %v1001
        %vm1962 = vcmp.eq.s32.totalorder %v1868, %v999
        %vm1963 = vcmp.eq.s32.totalorder %v1868, %v1000
        %vm1964 = vcmp.eq.s32.totalorder %v1868, %v1001
        %vm1965 = vcmp.eq.s32.totalorder %v1871, %v999
        %vm1966 = vcmp.eq.s32.totalorder %v1871, %v1000
        %vm1967 = vcmp.eq.s32.totalorder %v1871, %v1001
        %vm1968 = vcmp.eq.s32.totalorder %v1874, %v999
        %vm1969 = vcmp.eq.s32.totalorder %v1874, %v1000
        %vm1970 = vcmp.eq.s32.totalorder %v1874, %v1001
        %vm1971 = vcmp.eq.s32.totalorder %v1877, %v999
        %vm1972 = vcmp.eq.s32.totalorder %v1877, %v1000
        %vm1973 = vcmp.eq.s32.totalorder %v1877, %v1001
        %vm1974 = vcmp.eq.s32.totalorder %v1880, %v999
        %vm1975 = vcmp.eq.s32.totalorder %v1880, %v1000
        %vm1976 = vcmp.eq.s32.totalorder %v1880, %v1001
        %vm1977 = vcmp.eq.s32.totalorder %v1883, %v999
        %vm1978 = vcmp.eq.s32.totalorder %v1883, %v1000
        %vm1979 = vcmp.eq.s32.totalorder %v1883, %v1001
        %vm1980 = vcmp.eq.s32.totalorder %v1886, %v999
        %vm1981 = vcmp.eq.s32.totalorder %v1886, %v1000
        %vm1982 = vcmp.eq.s32.totalorder %v1886, %v1001
        %vm1983 = vcmp.eq.s32.totalorder %v1889, %v999
        %vm1984 = vcmp.eq.s32.totalorder %v1889, %v1000
        %vm1985 = vcmp.eq.s32.totalorder %v1889, %v1001
        %vm1986 = vcmp.eq.s32.totalorder %v1892, %v999
        %vm1987 = vcmp.eq.s32.totalorder %v1892, %v1000
        %vm1988 = vcmp.eq.s32.totalorder %v1892, %v1001
        %vm1989 = vcmp.eq.s32.totalorder %v1895, %v999
        %vm1990 = vcmp.eq.s32.totalorder %v1895, %v1000
        %vm1991 = vcmp.eq.s32.totalorder %v1895, %v1001
        %vm1992 = vcmp.eq.s32.totalorder %v1898, %v999
        %vm1993 = vcmp.eq.s32.totalorder %v1898, %v1000
        %vm1994 = vcmp.eq.s32.totalorder %v1898, %v1001
        %vm1995 = vcmp.eq.s32.totalorder %v1901, %v999
        %vm1996 = vcmp.eq.s32.totalorder %v1901, %v1000
        %vm1997 = vcmp.eq.s32.totalorder %v1901, %v1001
        %vm1998 = vcmp.eq.s32.totalorder %v1904, %v999
        %vm1999 = vcmp.eq.s32.totalorder %v1904, %v1000
        %vm2000 = vcmp.eq.s32.totalorder %v1904, %v1001
        %vm2001 = vcmp.eq.s32.totalorder %v1907, %v999
        %vm2002 = vcmp.eq.s32.totalorder %v1907, %v1000
        %vm2003 = vcmp.eq.s32.totalorder %v1907, %v1001
        %vm2004 = vcmp.eq.s32.totalorder %v1910, %v999
        %vm2005 = vcmp.eq.s32.totalorder %v1910, %v1000
        %vm2006 = vcmp.eq.s32.totalorder %v1910, %v1001
        %vm2007 = vcmp.eq.s32.totalorder %v1913, %v999
        %vm2008 = vcmp.eq.s32.totalorder %v1913, %v1000
        %vm2009 = vcmp.eq.s32.totalorder %v1913, %v1001
        %vm2010 = vcmp.eq.s32.totalorder %v1916, %v999
        %vm2011 = vcmp.eq.s32.totalorder %v1916, %v1000
        %vm2012 = vcmp.eq.s32.totalorder %v1916, %v1001
        %vm2013 = vcmp.eq.s32.totalorder %v1919, %v999
        %vm2014 = vcmp.eq.s32.totalorder %v1919, %v1000
        %vm2015 = vcmp.eq.s32.totalorder %v1919, %v1001
        %vm2016 = vcmp.eq.s32.totalorder %v1922, %v999
        %vm2017 = vcmp.eq.s32.totalorder %v1922, %v1000
        %vm2018 = vcmp.eq.s32.totalorder %v1922, %v1001
        %vm2019 = vcmp.eq.s32.totalorder %v1925, %v999
        %vm2020 = vcmp.eq.s32.totalorder %v1925, %v1000
        %vm2021 = vcmp.eq.s32.totalorder %v1925, %v1001
        %vm2022 = vcmp.eq.s32.totalorder %v1928, %v999
        %vm2023 = vcmp.eq.s32.totalorder %v1928, %v1000
        %vm2024 = vcmp.eq.s32.totalorder %v1928, %v1001
        %vm2025 = vcmp.eq.s32.totalorder %v1931, %v999
        %vm2026 = vcmp.eq.s32.totalorder %v1931, %v1000
        %vm2027 = vcmp.eq.s32.totalorder %v1931, %v1001
        %vm2028 = vcmp.eq.s32.totalorder %v1934, %v999
        %vm2029 = vcmp.eq.s32.totalorder %v1934, %v1000
        %vm2030 = vcmp.eq.s32.totalorder %v1934, %v1001
        %vm2031 = vcmp.eq.s32.totalorder %v1937, %v999
        %vm2032 = vcmp.eq.s32.totalorder %v1937, %v1000
        %vm2033 = vcmp.eq.s32.totalorder %v1937, %v1001
        %vm2034 = vcmp.eq.s32.totalorder %v1940, %v999
        %vm2035 = vcmp.eq.s32.totalorder %v1940, %v1000
        %vm2036 = vcmp.eq.s32.totalorder %v1940, %v1001
        %vm2037 = vcmp.eq.s32.totalorder %v1943, %v999
        %vm2038 = vcmp.eq.s32.totalorder %v1943, %v1000
        %vm2039 = vcmp.eq.s32.totalorder %v1943, %v1001
        %vm2040 = vcmp.eq.s32.totalorder %v1946, %v999
        %vm2041 = vcmp.eq.s32.totalorder %v1946, %v1000
        %vm2042 = vcmp.eq.s32.totalorder %v1946, %v1001
        %v2043 = vsel %vm1947, %v1007, 0.0
        %v2044 = vsel %vm1948, %v1011, 0.0
        %v2045 = vsel %vm1949, %v1015, 0.0
        %v2046 = vsel %vm1950, %v1007, 0.0
        %v2047 = vsel %vm1951, %v1011, 0.0
        %v2048 = vsel %vm1952, %v1015, 0.0
        %v2049 = vsel %vm1953, %v1007, 0.0
        %v2050 = vsel %vm1954, %v1011, 0.0
        %v2051 = vsel %vm1955, %v1015, 0.0
        %v2052 = vsel %vm1956, %v1007, 0.0
        %v2053 = vsel %vm1957, %v1011, 0.0
        %v2054 = vsel %vm1958, %v1015, 0.0
        %v2055 = vsel %vm1959, %v1007, 0.0
        %v2056 = vsel %vm1960, %v1011, 0.0
        %v2057 = vsel %vm1961, %v1015, 0.0
        %v2058 = vsel %vm1962, %v1007, 0.0
        %v2059 = vsel %vm1963, %v1011, 0.0
        %v2060 = vsel %vm1964, %v1015, 0.0
        %v2061 = vsel %vm1965, %v1007, 0.0
        %v2062 = vsel %vm1966, %v1011, 0.0
        %v2063 = vsel %vm1967, %v1015, 0.0
        %v2064 = vsel %vm1968, %v1007, 0.0
        %v2065 = vsel %vm1969, %v1011, 0.0
        %v2066 = vsel %vm1970, %v1015, 0.0
        %v2067 = vsel %vm1971, %v1007, 0.0
        %v2068 = vsel %vm1972, %v1011, 0.0
        %v2069 = vsel %vm1973, %v1015, 0.0
        %v2070 = vsel %vm1974, %v1007, 0.0
        %v2071 = vsel %vm1975, %v1011, 0.0
        %v2072 = vsel %vm1976, %v1015, 0.0
        %v2073 = vsel %vm1977, %v1007, 0.0
        %v2074 = vsel %vm1978, %v1011, 0.0
        %v2075 = vsel %vm1979, %v1015, 0.0
        %v2076 = vsel %vm1980, %v1007, 0.0
        %v2077 = vsel %vm1981, %v1011, 0.0
        %v2078 = vsel %vm1982, %v1015, 0.0
        %v2079 = vsel %vm1983, %v1007, 0.0
        %v2080 = vsel %vm1984, %v1011, 0.0
        %v2081 = vsel %vm1985, %v1015, 0.0
        %v2082 = vsel %vm1986, %v1007, 0.0
        %v2083 = vsel %vm1987, %v1011, 0.0
        %v2084 = vsel %vm1988, %v1015, 0.0
        %v2085 = vsel %vm1989, %v1007, 0.0
        %v2086 = vsel %vm1990, %v1011, 0.0
        %v2087 = vsel %vm1991, %v1015, 0.0
        %v2088 = vsel %vm1992, %v1007, 0.0
        %v2089 = vsel %vm1993, %v1011, 0.0
        %v2090 = vsel %vm1994, %v1015, 0.0
        %v2091 = vsel %vm1995, %v1007, 0.0
        %v2092 = vsel %vm1996, %v1011, 0.0
        %v2093 = vsel %vm1997, %v1015, 0.0
        %v2094 = vsel %vm1998, %v1007, 0.0
        %v2095 = vsel %vm1999, %v1011, 0.0
        %v2096 = vsel %vm2000, %v1015, 0.0
        %v2097 = vsel %vm2001, %v1007, 0.0
        %v2098 = vsel %vm2002, %v1011, 0.0
        %v2099 = vsel %vm2003, %v1015, 0.0
        %v2100 = vsel %vm2004, %v1007, 0.0
        %v2101 = vsel %vm2005, %v1011, 0.0
        %v2102 = vsel %vm2006, %v1015, 0.0
        %v2103 = vsel %vm2007, %v1007, 0.0
        %v2104 = vsel %vm2008, %v1011, 0.0
        %v2105 = vsel %vm2009, %v1015, 0.0
        %v2106 = vsel %vm2010, %v1007, 0.0
        %v2107 = vsel %vm2011, %v1011, 0.0
        %v2108 = vsel %vm2012, %v1015, 0.0
        %v2109 = vsel %vm2013, %v1007, 0.0
        %v2110 = vsel %vm2014, %v1011, 0.0
        %v2111 = vsel %vm2015, %v1015, 0.0
        %v2112 = vsel %vm2016, %v1007, 0.0
        %v2113 = vsel %vm2017, %v1011, 0.0
        %v2114 = vsel %vm2018, %v1015, 0.0
        %v2115 = vsel %vm2019, %v1007, 0.0
        %v2116 = vsel %vm2020, %v1011, 0.0
        %v2117 = vsel %vm2021, %v1015, 0.0
        %v2118 = vsel %vm2022, %v1007, 0.0
        %v2119 = vsel %vm2023, %v1011, 0.0
        %v2120 = vsel %vm2024, %v1015, 0.0
        %v2121 = vsel %vm2025, %v1007, 0.0
        %v2122 = vsel %vm2026, %v1011, 0.0
        %v2123 = vsel %vm2027, %v1015, 0.0
        %v2124 = vsel %vm2028, %v1007, 0.0
        %v2125 = vsel %vm2029, %v1011, 0.0
        %v2126 = vsel %vm2030, %v1015, 0.0
        %v2127 = vsel %vm2031, %v1007, 0.0
        %v2128 = vsel %vm2032, %v1011, 0.0
        %v2129 = vsel %vm2033, %v1015, 0.0
        %v2130 = vsel %vm2034, %v1007, 0.0
        %v2131 = vsel %vm2035, %v1011, 0.0
        %v2132 = vsel %vm2036, %v1015, 0.0
        %v2133 = vsel %vm2037, %v1007, 0.0
        %v2134 = vsel %vm2038, %v1011, 0.0
        %v2135 = vsel %vm2039, %v1015, 0.0
        %v2136 = vsel %vm2040, %v1007, 0.0
        %v2137 = vsel %vm2041, %v1011, 0.0
        %v2138 = vsel %vm2042, %v1015, 0.0
        %v2139 = vadd.f32 %v2043, %v2044
        %v2140 = vadd.f32 %v2139, %v2045
        %2141 = vadd.xlane.f32.xlu0 %v2140
        %v2142 = vpop.xlane.xlu0 %2141
        %v2143 = vadd.f32 %v2046, %v2047
        %v2144 = vadd.f32 %v2143, %v2048
        %2145 = vadd.xlane.f32.xlu0 %v2144
        %v2146 = vpop.xlane.xlu0 %2145
        %v2147 = vadd.f32 %v2049, %v2050
        %v2148 = vadd.f32 %v2147, %v2051
        %2149 = vadd.xlane.f32.xlu0 %v2148
        %v2150 = vpop.xlane.xlu0 %2149
        %v2151 = vadd.f32 %v2052, %v2053
        %v2152 = vadd.f32 %v2151, %v2054
        %2153 = vadd.xlane.f32.xlu0 %v2152
        %v2154 = vpop.xlane.xlu0 %2153
        %v2155 = vadd.f32 %v2055, %v2056
        %v2156 = vadd.f32 %v2155, %v2057
        %2157 = vadd.xlane.f32.xlu0 %v2156
        %v2158 = vpop.xlane.xlu0 %2157
        %v2159 = vadd.f32 %v2058, %v2059
        %v2160 = vadd.f32 %v2159, %v2060
        %2161 = vadd.xlane.f32.xlu0 %v2160
        %v2162 = vpop.xlane.xlu0 %2161
        %v2163 = vadd.f32 %v2061, %v2062
        %v2164 = vadd.f32 %v2163, %v2063
        %2165 = vadd.xlane.f32.xlu0 %v2164
        %v2166 = vpop.xlane.xlu0 %2165
        %v2167 = vadd.f32 %v2064, %v2065
        %v2168 = vadd.f32 %v2167, %v2066
        %2169 = vadd.xlane.f32.xlu0 %v2168
        %v2170 = vpop.xlane.xlu0 %2169
        %v2171 = vadd.f32 %v2067, %v2068
        %v2172 = vadd.f32 %v2171, %v2069
        %2173 = vadd.xlane.f32.xlu0 %v2172
        %v2174 = vpop.xlane.xlu0 %2173
        %v2175 = vadd.f32 %v2070, %v2071
        %v2176 = vadd.f32 %v2175, %v2072
        %2177 = vadd.xlane.f32.xlu0 %v2176
        %v2178 = vpop.xlane.xlu0 %2177
        %v2179 = vadd.f32 %v2073, %v2074
        %v2180 = vadd.f32 %v2179, %v2075
        %2181 = vadd.xlane.f32.xlu0 %v2180
        %v2182 = vpop.xlane.xlu0 %2181
        %v2183 = vadd.f32 %v2076, %v2077
        %v2184 = vadd.f32 %v2183, %v2078
        %2185 = vadd.xlane.f32.xlu0 %v2184
        %v2186 = vpop.xlane.xlu0 %2185
        %v2187 = vadd.f32 %v2079, %v2080
        %v2188 = vadd.f32 %v2187, %v2081
        %2189 = vadd.xlane.f32.xlu0 %v2188
        %v2190 = vpop.xlane.xlu0 %2189
        %v2191 = vadd.f32 %v2082, %v2083
        %v2192 = vadd.f32 %v2191, %v2084
        %2193 = vadd.xlane.f32.xlu0 %v2192
        %v2194 = vpop.xlane.xlu0 %2193
        %v2195 = vadd.f32 %v2085, %v2086
        %v2196 = vadd.f32 %v2195, %v2087
        %2197 = vadd.xlane.f32.xlu0 %v2196
        %v2198 = vpop.xlane.xlu0 %2197
        %v2199 = vadd.f32 %v2088, %v2089
        %v2200 = vadd.f32 %v2199, %v2090
        %2201 = vadd.xlane.f32.xlu0 %v2200
        %v2202 = vpop.xlane.xlu0 %2201
        %v2203 = vadd.f32 %v2091, %v2092
        %v2204 = vadd.f32 %v2203, %v2093
        %2205 = vadd.xlane.f32.xlu0 %v2204
        %v2206 = vpop.xlane.xlu0 %2205
        %v2207 = vadd.f32 %v2094, %v2095
        %v2208 = vadd.f32 %v2207, %v2096
        %2209 = vadd.xlane.f32.xlu0 %v2208
        %v2210 = vpop.xlane.xlu0 %2209
        %v2211 = vadd.f32 %v2097, %v2098
        %v2212 = vadd.f32 %v2211, %v2099
        %2213 = vadd.xlane.f32.xlu0 %v2212
        %v2214 = vpop.xlane.xlu0 %2213
        %v2215 = vadd.f32 %v2100, %v2101
        %v2216 = vadd.f32 %v2215, %v2102
        %2217 = vadd.xlane.f32.xlu0 %v2216
        %v2218 = vpop.xlane.xlu0 %2217
        %v2219 = vadd.f32 %v2103, %v2104
        %v2220 = vadd.f32 %v2219, %v2105
        %2221 = vadd.xlane.f32.xlu0 %v2220
        %v2222 = vpop.xlane.xlu0 %2221
        %v2223 = vadd.f32 %v2106, %v2107
        %v2224 = vadd.f32 %v2223, %v2108
        %2225 = vadd.xlane.f32.xlu0 %v2224
        %v2226 = vpop.xlane.xlu0 %2225
        %v2227 = vadd.f32 %v2109, %v2110
        %v2228 = vadd.f32 %v2227, %v2111
        %2229 = vadd.xlane.f32.xlu0 %v2228
        %v2230 = vpop.xlane.xlu0 %2229
        %v2231 = vadd.f32 %v2112, %v2113
        %v2232 = vadd.f32 %v2231, %v2114
        %2233 = vadd.xlane.f32.xlu0 %v2232
        %v2234 = vpop.xlane.xlu0 %2233
        %v2235 = vadd.f32 %v2115, %v2116
        %v2236 = vadd.f32 %v2235, %v2117
        %2237 = vadd.xlane.f32.xlu0 %v2236
        %v2238 = vpop.xlane.xlu0 %2237
        %v2239 = vadd.f32 %v2118, %v2119
        %v2240 = vadd.f32 %v2239, %v2120
        %2241 = vadd.xlane.f32.xlu0 %v2240
        %v2242 = vpop.xlane.xlu0 %2241
        %v2243 = vadd.f32 %v2121, %v2122
        %v2244 = vadd.f32 %v2243, %v2123
        %2245 = vadd.xlane.f32.xlu0 %v2244
        %v2246 = vpop.xlane.xlu0 %2245
        %v2247 = vadd.f32 %v2124, %v2125
        %v2248 = vadd.f32 %v2247, %v2126
        %2249 = vadd.xlane.f32.xlu0 %v2248
        %v2250 = vpop.xlane.xlu0 %2249
        %v2251 = vadd.f32 %v2127, %v2128
        %v2252 = vadd.f32 %v2251, %v2129
        %2253 = vadd.xlane.f32.xlu0 %v2252
        %v2254 = vpop.xlane.xlu0 %2253
        %v2255 = vadd.f32 %v2130, %v2131
        %v2256 = vadd.f32 %v2255, %v2132
        %2257 = vadd.xlane.f32.xlu0 %v2256
        %v2258 = vpop.xlane.xlu0 %2257
        %v2259 = vadd.f32 %v2133, %v2134
        %v2260 = vadd.f32 %v2259, %v2135
        %2261 = vadd.xlane.f32.xlu0 %v2260
        %v2262 = vpop.xlane.xlu0 %2261
        %v2263 = vadd.f32 %v2136, %v2137
        %v2264 = vadd.f32 %v2263, %v2138
        %2265 = vadd.xlane.f32.xlu0 %v2264
        %v2266 = vpop.xlane.xlu0 %2265
        %2267 = vset.pattern.permute.xlu0 3
        %2268 = vperm.xlu0 %2267, %v966
        %v2269 = vpop.permute.xlu0 %2268
        %2270 = vset.pattern.permute.xlu0 3
        %2271 = vperm.xlu0 %2270, %v967
        %v2272 = vpop.permute.xlu0 %2271
        %2273 = vset.pattern.permute.xlu0 3
        %2274 = vperm.xlu0 %2273, %v968
        %v2275 = vpop.permute.xlu0 %2274
        %2276 = vset.pattern.permute.xlu0 3
        %2277 = vperm.xlu0 %2276, %v969
        %v2278 = vpop.permute.xlu0 %2277
        %2279 = vset.pattern.permute.xlu0 3
        %2280 = vperm.xlu0 %2279, %v970
        %v2281 = vpop.permute.xlu0 %2280
        %2282 = vset.pattern.permute.xlu0 3
        %2283 = vperm.xlu0 %2282, %v971
        %v2284 = vpop.permute.xlu0 %2283
        %2285 = vset.pattern.permute.xlu0 3
        %2286 = vperm.xlu0 %2285, %v972
        %v2287 = vpop.permute.xlu0 %2286
        %2288 = vset.pattern.permute.xlu0 3
        %2289 = vperm.xlu0 %2288, %v973
        %v2290 = vpop.permute.xlu0 %2289
        %2291 = vset.pattern.permute.xlu0 3
        %2292 = vperm.xlu0 %2291, %v974
        %v2293 = vpop.permute.xlu0 %2292
        %2294 = vset.pattern.permute.xlu0 3
        %2295 = vperm.xlu0 %2294, %v975
        %v2296 = vpop.permute.xlu0 %2295
        %2297 = vset.pattern.permute.xlu0 3
        %2298 = vperm.xlu0 %2297, %v976
        %v2299 = vpop.permute.xlu0 %2298
        %2300 = vset.pattern.permute.xlu0 3
        %2301 = vperm.xlu0 %2300, %v977
        %v2302 = vpop.permute.xlu0 %2301
        %2303 = vset.pattern.permute.xlu0 3
        %2304 = vperm.xlu0 %2303, %v978
        %v2305 = vpop.permute.xlu0 %2304
        %2306 = vset.pattern.permute.xlu0 3
        %2307 = vperm.xlu0 %2306, %v979
        %v2308 = vpop.permute.xlu0 %2307
        %2309 = vset.pattern.permute.xlu0 3
        %2310 = vperm.xlu0 %2309, %v980
        %v2311 = vpop.permute.xlu0 %2310
        %2312 = vset.pattern.permute.xlu0 3
        %2313 = vperm.xlu0 %2312, %v981
        %v2314 = vpop.permute.xlu0 %2313
        %2315 = vset.pattern.permute.xlu0 3
        %2316 = vperm.xlu0 %2315, %v982
        %v2317 = vpop.permute.xlu0 %2316
        %2318 = vset.pattern.permute.xlu0 3
        %2319 = vperm.xlu0 %2318, %v983
        %v2320 = vpop.permute.xlu0 %2319
        %2321 = vset.pattern.permute.xlu0 3
        %2322 = vperm.xlu0 %2321, %v984
        %v2323 = vpop.permute.xlu0 %2322
        %2324 = vset.pattern.permute.xlu0 3
        %2325 = vperm.xlu0 %2324, %v985
        %v2326 = vpop.permute.xlu0 %2325
        %2327 = vset.pattern.permute.xlu0 3
        %2328 = vperm.xlu0 %2327, %v986
        %v2329 = vpop.permute.xlu0 %2328
        %2330 = vset.pattern.permute.xlu0 3
        %2331 = vperm.xlu0 %2330, %v987
        %v2332 = vpop.permute.xlu0 %2331
        %2333 = vset.pattern.permute.xlu0 3
        %2334 = vperm.xlu0 %2333, %v988
        %v2335 = vpop.permute.xlu0 %2334
        %2336 = vset.pattern.permute.xlu0 3
        %2337 = vperm.xlu0 %2336, %v989
        %v2338 = vpop.permute.xlu0 %2337
        %2339 = vset.pattern.permute.xlu0 3
        %2340 = vperm.xlu0 %2339, %v990
        %v2341 = vpop.permute.xlu0 %2340
        %2342 = vset.pattern.permute.xlu0 3
        %2343 = vperm.xlu0 %2342, %v991
        %v2344 = vpop.permute.xlu0 %2343
        %2345 = vset.pattern.permute.xlu0 3
        %2346 = vperm.xlu0 %2345, %v992
        %v2347 = vpop.permute.xlu0 %2346
        %2348 = vset.pattern.permute.xlu0 3
        %2349 = vperm.xlu0 %2348, %v993
        %v2350 = vpop.permute.xlu0 %2349
        %2351 = vset.pattern.permute.xlu0 3
        %2352 = vperm.xlu0 %2351, %v994
        %v2353 = vpop.permute.xlu0 %2352
        %2354 = vset.pattern.permute.xlu0 3
        %2355 = vperm.xlu0 %2354, %v995
        %v2356 = vpop.permute.xlu0 %2355
        %2357 = vset.pattern.permute.xlu0 3
        %2358 = vperm.xlu0 %2357, %v996
        %v2359 = vpop.permute.xlu0 %2358
        %2360 = vset.pattern.permute.xlu0 3
        %2361 = vperm.xlu0 %2360, %v997
        %v2362 = vpop.permute.xlu0 %2361
        %vm2363 = vcmp.eq.s32.totalorder %v2269, %v999
        %vm2364 = vcmp.eq.s32.totalorder %v2269, %v1000
        %vm2365 = vcmp.eq.s32.totalorder %v2269, %v1001
        %vm2366 = vcmp.eq.s32.totalorder %v2272, %v999
        %vm2367 = vcmp.eq.s32.totalorder %v2272, %v1000
        %vm2368 = vcmp.eq.s32.totalorder %v2272, %v1001
        %vm2369 = vcmp.eq.s32.totalorder %v2275, %v999
        %vm2370 = vcmp.eq.s32.totalorder %v2275, %v1000
        %vm2371 = vcmp.eq.s32.totalorder %v2275, %v1001
        %vm2372 = vcmp.eq.s32.totalorder %v2278, %v999
        %vm2373 = vcmp.eq.s32.totalorder %v2278, %v1000
        %vm2374 = vcmp.eq.s32.totalorder %v2278, %v1001
        %vm2375 = vcmp.eq.s32.totalorder %v2281, %v999
        %vm2376 = vcmp.eq.s32.totalorder %v2281, %v1000
        %vm2377 = vcmp.eq.s32.totalorder %v2281, %v1001
        %vm2378 = vcmp.eq.s32.totalorder %v2284, %v999
        %vm2379 = vcmp.eq.s32.totalorder %v2284, %v1000
        %vm2380 = vcmp.eq.s32.totalorder %v2284, %v1001
        %vm2381 = vcmp.eq.s32.totalorder %v2287, %v999
        %vm2382 = vcmp.eq.s32.totalorder %v2287, %v1000
        %vm2383 = vcmp.eq.s32.totalorder %v2287, %v1001
        %vm2384 = vcmp.eq.s32.totalorder %v2290, %v999
        %vm2385 = vcmp.eq.s32.totalorder %v2290, %v1000
        %vm2386 = vcmp.eq.s32.totalorder %v2290, %v1001
        %vm2387 = vcmp.eq.s32.totalorder %v2293, %v999
        %vm2388 = vcmp.eq.s32.totalorder %v2293, %v1000
        %vm2389 = vcmp.eq.s32.totalorder %v2293, %v1001
        %vm2390 = vcmp.eq.s32.totalorder %v2296, %v999
        %vm2391 = vcmp.eq.s32.totalorder %v2296, %v1000
        %vm2392 = vcmp.eq.s32.totalorder %v2296, %v1001
        %vm2393 = vcmp.eq.s32.totalorder %v2299, %v999
        %vm2394 = vcmp.eq.s32.totalorder %v2299, %v1000
        %vm2395 = vcmp.eq.s32.totalorder %v2299, %v1001
        %vm2396 = vcmp.eq.s32.totalorder %v2302, %v999
        %vm2397 = vcmp.eq.s32.totalorder %v2302, %v1000
        %vm2398 = vcmp.eq.s32.totalorder %v2302, %v1001
        %vm2399 = vcmp.eq.s32.totalorder %v2305, %v999
        %vm2400 = vcmp.eq.s32.totalorder %v2305, %v1000
        %vm2401 = vcmp.eq.s32.totalorder %v2305, %v1001
        %vm2402 = vcmp.eq.s32.totalorder %v2308, %v999
        %vm2403 = vcmp.eq.s32.totalorder %v2308, %v1000
        %vm2404 = vcmp.eq.s32.totalorder %v2308, %v1001
        %vm2405 = vcmp.eq.s32.totalorder %v2311, %v999
        %vm2406 = vcmp.eq.s32.totalorder %v2311, %v1000
        %vm2407 = vcmp.eq.s32.totalorder %v2311, %v1001
        %vm2408 = vcmp.eq.s32.totalorder %v2314, %v999
        %vm2409 = vcmp.eq.s32.totalorder %v2314, %v1000
        %vm2410 = vcmp.eq.s32.totalorder %v2314, %v1001
        %vm2411 = vcmp.eq.s32.totalorder %v2317, %v999
        %vm2412 = vcmp.eq.s32.totalorder %v2317, %v1000
        %vm2413 = vcmp.eq.s32.totalorder %v2317, %v1001
        %vm2414 = vcmp.eq.s32.totalorder %v2320, %v999
        %vm2415 = vcmp.eq.s32.totalorder %v2320, %v1000
        %vm2416 = vcmp.eq.s32.totalorder %v2320, %v1001
        %vm2417 = vcmp.eq.s32.totalorder %v2323, %v999
        %vm2418 = vcmp.eq.s32.totalorder %v2323, %v1000
        %vm2419 = vcmp.eq.s32.totalorder %v2323, %v1001
        %vm2420 = vcmp.eq.s32.totalorder %v2326, %v999
        %vm2421 = vcmp.eq.s32.totalorder %v2326, %v1000
        %vm2422 = vcmp.eq.s32.totalorder %v2326, %v1001
        %vm2423 = vcmp.eq.s32.totalorder %v2329, %v999
        %vm2424 = vcmp.eq.s32.totalorder %v2329, %v1000
        %vm2425 = vcmp.eq.s32.totalorder %v2329, %v1001
        %vm2426 = vcmp.eq.s32.totalorder %v2332, %v999
        %vm2427 = vcmp.eq.s32.totalorder %v2332, %v1000
        %vm2428 = vcmp.eq.s32.totalorder %v2332, %v1001
        %vm2429 = vcmp.eq.s32.totalorder %v2335, %v999
        %vm2430 = vcmp.eq.s32.totalorder %v2335, %v1000
        %vm2431 = vcmp.eq.s32.totalorder %v2335, %v1001
        %vm2432 = vcmp.eq.s32.totalorder %v2338, %v999
        %vm2433 = vcmp.eq.s32.totalorder %v2338, %v1000
        %vm2434 = vcmp.eq.s32.totalorder %v2338, %v1001
        %vm2435 = vcmp.eq.s32.totalorder %v2341, %v999
        %vm2436 = vcmp.eq.s32.totalorder %v2341, %v1000
        %vm2437 = vcmp.eq.s32.totalorder %v2341, %v1001
        %vm2438 = vcmp.eq.s32.totalorder %v2344, %v999
        %vm2439 = vcmp.eq.s32.totalorder %v2344, %v1000
        %vm2440 = vcmp.eq.s32.totalorder %v2344, %v1001
        %vm2441 = vcmp.eq.s32.totalorder %v2347, %v999
        %vm2442 = vcmp.eq.s32.totalorder %v2347, %v1000
        %vm2443 = vcmp.eq.s32.totalorder %v2347, %v1001
        %vm2444 = vcmp.eq.s32.totalorder %v2350, %v999
        %vm2445 = vcmp.eq.s32.totalorder %v2350, %v1000
        %vm2446 = vcmp.eq.s32.totalorder %v2350, %v1001
        %vm2447 = vcmp.eq.s32.totalorder %v2353, %v999
        %vm2448 = vcmp.eq.s32.totalorder %v2353, %v1000
        %vm2449 = vcmp.eq.s32.totalorder %v2353, %v1001
        %vm2450 = vcmp.eq.s32.totalorder %v2356, %v999
        %vm2451 = vcmp.eq.s32.totalorder %v2356, %v1000
        %vm2452 = vcmp.eq.s32.totalorder %v2356, %v1001
        %vm2453 = vcmp.eq.s32.totalorder %v2359, %v999
        %vm2454 = vcmp.eq.s32.totalorder %v2359, %v1000
        %vm2455 = vcmp.eq.s32.totalorder %v2359, %v1001
        %vm2456 = vcmp.eq.s32.totalorder %v2362, %v999
        %vm2457 = vcmp.eq.s32.totalorder %v2362, %v1000
        %vm2458 = vcmp.eq.s32.totalorder %v2362, %v1001
        %v2459 = vsel %vm2363, %v1007, 0.0
        %v2460 = vsel %vm2364, %v1011, 0.0
        %v2461 = vsel %vm2365, %v1015, 0.0
        %v2462 = vsel %vm2366, %v1007, 0.0
        %v2463 = vsel %vm2367, %v1011, 0.0
        %v2464 = vsel %vm2368, %v1015, 0.0
        %v2465 = vsel %vm2369, %v1007, 0.0
        %v2466 = vsel %vm2370, %v1011, 0.0
        %v2467 = vsel %vm2371, %v1015, 0.0
        %v2468 = vsel %vm2372, %v1007, 0.0
        %v2469 = vsel %vm2373, %v1011, 0.0
        %v2470 = vsel %vm2374, %v1015, 0.0
        %v2471 = vsel %vm2375, %v1007, 0.0
        %v2472 = vsel %vm2376, %v1011, 0.0
        %v2473 = vsel %vm2377, %v1015, 0.0
        %v2474 = vsel %vm2378, %v1007, 0.0
        %v2475 = vsel %vm2379, %v1011, 0.0
        %v2476 = vsel %vm2380, %v1015, 0.0
        %v2477 = vsel %vm2381, %v1007, 0.0
        %v2478 = vsel %vm2382, %v1011, 0.0
        %v2479 = vsel %vm2383, %v1015, 0.0
        %v2480 = vsel %vm2384, %v1007, 0.0
        %v2481 = vsel %vm2385, %v1011, 0.0
        %v2482 = vsel %vm2386, %v1015, 0.0
        %v2483 = vsel %vm2387, %v1007, 0.0
        %v2484 = vsel %vm2388, %v1011, 0.0
        %v2485 = vsel %vm2389, %v1015, 0.0
        %v2486 = vsel %vm2390, %v1007, 0.0
        %v2487 = vsel %vm2391, %v1011, 0.0
        %v2488 = vsel %vm2392, %v1015, 0.0
        %v2489 = vsel %vm2393, %v1007, 0.0
        %v2490 = vsel %vm2394, %v1011, 0.0
        %v2491 = vsel %vm2395, %v1015, 0.0
        %v2492 = vsel %vm2396, %v1007, 0.0
        %v2493 = vsel %vm2397, %v1011, 0.0
        %v2494 = vsel %vm2398, %v1015, 0.0
        %v2495 = vsel %vm2399, %v1007, 0.0
        %v2496 = vsel %vm2400, %v1011, 0.0
        %v2497 = vsel %vm2401, %v1015, 0.0
        %v2498 = vsel %vm2402, %v1007, 0.0
        %v2499 = vsel %vm2403, %v1011, 0.0
        %v2500 = vsel %vm2404, %v1015, 0.0
        %v2501 = vsel %vm2405, %v1007, 0.0
        %v2502 = vsel %vm2406, %v1011, 0.0
        %v2503 = vsel %vm2407, %v1015, 0.0
        %v2504 = vsel %vm2408, %v1007, 0.0
        %v2505 = vsel %vm2409, %v1011, 0.0
        %v2506 = vsel %vm2410, %v1015, 0.0
        %v2507 = vsel %vm2411, %v1007, 0.0
        %v2508 = vsel %vm2412, %v1011, 0.0
        %v2509 = vsel %vm2413, %v1015, 0.0
        %v2510 = vsel %vm2414, %v1007, 0.0
        %v2511 = vsel %vm2415, %v1011, 0.0
        %v2512 = vsel %vm2416, %v1015, 0.0
        %v2513 = vsel %vm2417, %v1007, 0.0
        %v2514 = vsel %vm2418, %v1011, 0.0
        %v2515 = vsel %vm2419, %v1015, 0.0
        %v2516 = vsel %vm2420, %v1007, 0.0
        %v2517 = vsel %vm2421, %v1011, 0.0
        %v2518 = vsel %vm2422, %v1015, 0.0
        %v2519 = vsel %vm2423, %v1007, 0.0
        %v2520 = vsel %vm2424, %v1011, 0.0
        %v2521 = vsel %vm2425, %v1015, 0.0
        %v2522 = vsel %vm2426, %v1007, 0.0
        %v2523 = vsel %vm2427, %v1011, 0.0
        %v2524 = vsel %vm2428, %v1015, 0.0
        %v2525 = vsel %vm2429, %v1007, 0.0
        %v2526 = vsel %vm2430, %v1011, 0.0
        %v2527 = vsel %vm2431, %v1015, 0.0
        %v2528 = vsel %vm2432, %v1007, 0.0
        %v2529 = vsel %vm2433, %v1011, 0.0
        %v2530 = vsel %vm2434, %v1015, 0.0
        %v2531 = vsel %vm2435, %v1007, 0.0
        %v2532 = vsel %vm2436, %v1011, 0.0
        %v2533 = vsel %vm2437, %v1015, 0.0
        %v2534 = vsel %vm2438, %v1007, 0.0
        %v2535 = vsel %vm2439, %v1011, 0.0
        %v2536 = vsel %vm2440, %v1015, 0.0
        %v2537 = vsel %vm2441, %v1007, 0.0
        %v2538 = vsel %vm2442, %v1011, 0.0
        %v2539 = vsel %vm2443, %v1015, 0.0
        %v2540 = vsel %vm2444, %v1007, 0.0
        %v2541 = vsel %vm2445, %v1011, 0.0
        %v2542 = vsel %vm2446, %v1015, 0.0
        %v2543 = vsel %vm2447, %v1007, 0.0
        %v2544 = vsel %vm2448, %v1011, 0.0
        %v2545 = vsel %vm2449, %v1015, 0.0
        %v2546 = vsel %vm2450, %v1007, 0.0
        %v2547 = vsel %vm2451, %v1011, 0.0
        %v2548 = vsel %vm2452, %v1015, 0.0
        %v2549 = vsel %vm2453, %v1007, 0.0
        %v2550 = vsel %vm2454, %v1011, 0.0
        %v2551 = vsel %vm2455, %v1015, 0.0
        %v2552 = vsel %vm2456, %v1007, 0.0
        %v2553 = vsel %vm2457, %v1011, 0.0
        %v2554 = vsel %vm2458, %v1015, 0.0
        %v2555 = vadd.f32 %v2459, %v2460
        %v2556 = vadd.f32 %v2555, %v2461
        %2557 = vadd.xlane.f32.xlu0 %v2556
        %v2558 = vpop.xlane.xlu0 %2557
        %v2559 = vadd.f32 %v2462, %v2463
        %v2560 = vadd.f32 %v2559, %v2464
        %2561 = vadd.xlane.f32.xlu0 %v2560
        %v2562 = vpop.xlane.xlu0 %2561
        %v2563 = vadd.f32 %v2465, %v2466
        %v2564 = vadd.f32 %v2563, %v2467
        %2565 = vadd.xlane.f32.xlu0 %v2564
        %v2566 = vpop.xlane.xlu0 %2565
        %v2567 = vadd.f32 %v2468, %v2469
        %v2568 = vadd.f32 %v2567, %v2470
        %2569 = vadd.xlane.f32.xlu0 %v2568
        %v2570 = vpop.xlane.xlu0 %2569
        %v2571 = vadd.f32 %v2471, %v2472
        %v2572 = vadd.f32 %v2571, %v2473
        %2573 = vadd.xlane.f32.xlu0 %v2572
        %v2574 = vpop.xlane.xlu0 %2573
        %v2575 = vadd.f32 %v2474, %v2475
        %v2576 = vadd.f32 %v2575, %v2476
        %2577 = vadd.xlane.f32.xlu0 %v2576
        %v2578 = vpop.xlane.xlu0 %2577
        %v2579 = vadd.f32 %v2477, %v2478
        %v2580 = vadd.f32 %v2579, %v2479
        %2581 = vadd.xlane.f32.xlu0 %v2580
        %v2582 = vpop.xlane.xlu0 %2581
        %v2583 = vadd.f32 %v2480, %v2481
        %v2584 = vadd.f32 %v2583, %v2482
        %2585 = vadd.xlane.f32.xlu0 %v2584
        %v2586 = vpop.xlane.xlu0 %2585
        %v2587 = vadd.f32 %v2483, %v2484
        %v2588 = vadd.f32 %v2587, %v2485
        %2589 = vadd.xlane.f32.xlu0 %v2588
        %v2590 = vpop.xlane.xlu0 %2589
        %v2591 = vadd.f32 %v2486, %v2487
        %v2592 = vadd.f32 %v2591, %v2488
        %2593 = vadd.xlane.f32.xlu0 %v2592
        %v2594 = vpop.xlane.xlu0 %2593
        %v2595 = vadd.f32 %v2489, %v2490
        %v2596 = vadd.f32 %v2595, %v2491
        %2597 = vadd.xlane.f32.xlu0 %v2596
        %v2598 = vpop.xlane.xlu0 %2597
        %v2599 = vadd.f32 %v2492, %v2493
        %v2600 = vadd.f32 %v2599, %v2494
        %2601 = vadd.xlane.f32.xlu0 %v2600
        %v2602 = vpop.xlane.xlu0 %2601
        %v2603 = vadd.f32 %v2495, %v2496
        %v2604 = vadd.f32 %v2603, %v2497
        %2605 = vadd.xlane.f32.xlu0 %v2604
        %v2606 = vpop.xlane.xlu0 %2605
        %v2607 = vadd.f32 %v2498, %v2499
        %v2608 = vadd.f32 %v2607, %v2500
        %2609 = vadd.xlane.f32.xlu0 %v2608
        %v2610 = vpop.xlane.xlu0 %2609
        %v2611 = vadd.f32 %v2501, %v2502
        %v2612 = vadd.f32 %v2611, %v2503
        %2613 = vadd.xlane.f32.xlu0 %v2612
        %v2614 = vpop.xlane.xlu0 %2613
        %v2615 = vadd.f32 %v2504, %v2505
        %v2616 = vadd.f32 %v2615, %v2506
        %2617 = vadd.xlane.f32.xlu0 %v2616
        %v2618 = vpop.xlane.xlu0 %2617
        %v2619 = vadd.f32 %v2507, %v2508
        %v2620 = vadd.f32 %v2619, %v2509
        %2621 = vadd.xlane.f32.xlu0 %v2620
        %v2622 = vpop.xlane.xlu0 %2621
        %v2623 = vadd.f32 %v2510, %v2511
        %v2624 = vadd.f32 %v2623, %v2512
        %2625 = vadd.xlane.f32.xlu0 %v2624
        %v2626 = vpop.xlane.xlu0 %2625
        %v2627 = vadd.f32 %v2513, %v2514
        %v2628 = vadd.f32 %v2627, %v2515
        %2629 = vadd.xlane.f32.xlu0 %v2628
        %v2630 = vpop.xlane.xlu0 %2629
        %v2631 = vadd.f32 %v2516, %v2517
        %v2632 = vadd.f32 %v2631, %v2518
        %2633 = vadd.xlane.f32.xlu0 %v2632
        %v2634 = vpop.xlane.xlu0 %2633
        %v2635 = vadd.f32 %v2519, %v2520
        %v2636 = vadd.f32 %v2635, %v2521
        %2637 = vadd.xlane.f32.xlu0 %v2636
        %v2638 = vpop.xlane.xlu0 %2637
        %v2639 = vadd.f32 %v2522, %v2523
        %v2640 = vadd.f32 %v2639, %v2524
        %2641 = vadd.xlane.f32.xlu0 %v2640
        %v2642 = vpop.xlane.xlu0 %2641
        %v2643 = vadd.f32 %v2525, %v2526
        %v2644 = vadd.f32 %v2643, %v2527
        %2645 = vadd.xlane.f32.xlu0 %v2644
        %v2646 = vpop.xlane.xlu0 %2645
        %v2647 = vadd.f32 %v2528, %v2529
        %v2648 = vadd.f32 %v2647, %v2530
        %2649 = vadd.xlane.f32.xlu0 %v2648
        %v2650 = vpop.xlane.xlu0 %2649
        %v2651 = vadd.f32 %v2531, %v2532
        %v2652 = vadd.f32 %v2651, %v2533
        %2653 = vadd.xlane.f32.xlu0 %v2652
        %v2654 = vpop.xlane.xlu0 %2653
        %v2655 = vadd.f32 %v2534, %v2535
        %v2656 = vadd.f32 %v2655, %v2536
        %2657 = vadd.xlane.f32.xlu0 %v2656
        %v2658 = vpop.xlane.xlu0 %2657
        %v2659 = vadd.f32 %v2537, %v2538
        %v2660 = vadd.f32 %v2659, %v2539
        %2661 = vadd.xlane.f32.xlu0 %v2660
        %v2662 = vpop.xlane.xlu0 %2661
        %v2663 = vadd.f32 %v2540, %v2541
        %v2664 = vadd.f32 %v2663, %v2542
        %2665 = vadd.xlane.f32.xlu0 %v2664
        %v2666 = vpop.xlane.xlu0 %2665
        %v2667 = vadd.f32 %v2543, %v2544
        %v2668 = vadd.f32 %v2667, %v2545
        %2669 = vadd.xlane.f32.xlu0 %v2668
        %v2670 = vpop.xlane.xlu0 %2669
        %v2671 = vadd.f32 %v2546, %v2547
        %v2672 = vadd.f32 %v2671, %v2548
        %2673 = vadd.xlane.f32.xlu0 %v2672
        %v2674 = vpop.xlane.xlu0 %2673
        %v2675 = vadd.f32 %v2549, %v2550
        %v2676 = vadd.f32 %v2675, %v2551
        %2677 = vadd.xlane.f32.xlu0 %v2676
        %v2678 = vpop.xlane.xlu0 %2677
        %v2679 = vadd.f32 %v2552, %v2553
        %v2680 = vadd.f32 %v2679, %v2554
        %2681 = vadd.xlane.f32.xlu0 %v2680
        %v2682 = vpop.xlane.xlu0 %2681
        %2683 = vset.pattern.permute.xlu0 4
        %2684 = vperm.xlu0 %2683, %v966
        %v2685 = vpop.permute.xlu0 %2684
        %2686 = vset.pattern.permute.xlu0 4
        %2687 = vperm.xlu0 %2686, %v967
        %v2688 = vpop.permute.xlu0 %2687
        %2689 = vset.pattern.permute.xlu0 4
        %2690 = vperm.xlu0 %2689, %v968
        %v2691 = vpop.permute.xlu0 %2690
        %2692 = vset.pattern.permute.xlu0 4
        %2693 = vperm.xlu0 %2692, %v969
        %v2694 = vpop.permute.xlu0 %2693
        %2695 = vset.pattern.permute.xlu0 4
        %2696 = vperm.xlu0 %2695, %v970
        %v2697 = vpop.permute.xlu0 %2696
        %2698 = vset.pattern.permute.xlu0 4
        %2699 = vperm.xlu0 %2698, %v971
        %v2700 = vpop.permute.xlu0 %2699
        %2701 = vset.pattern.permute.xlu0 4
        %2702 = vperm.xlu0 %2701, %v972
        %v2703 = vpop.permute.xlu0 %2702
        %2704 = vset.pattern.permute.xlu0 4
        %2705 = vperm.xlu0 %2704, %v973
        %v2706 = vpop.permute.xlu0 %2705
        %2707 = vset.pattern.permute.xlu0 4
        %2708 = vperm.xlu0 %2707, %v974
        %v2709 = vpop.permute.xlu0 %2708
        %2710 = vset.pattern.permute.xlu0 4
        %2711 = vperm.xlu0 %2710, %v975
        %v2712 = vpop.permute.xlu0 %2711
        %2713 = vset.pattern.permute.xlu0 4
        %2714 = vperm.xlu0 %2713, %v976
        %v2715 = vpop.permute.xlu0 %2714
        %2716 = vset.pattern.permute.xlu0 4
        %2717 = vperm.xlu0 %2716, %v977
        %v2718 = vpop.permute.xlu0 %2717
        %2719 = vset.pattern.permute.xlu0 4
        %2720 = vperm.xlu0 %2719, %v978
        %v2721 = vpop.permute.xlu0 %2720
        %2722 = vset.pattern.permute.xlu0 4
        %2723 = vperm.xlu0 %2722, %v979
        %v2724 = vpop.permute.xlu0 %2723
        %2725 = vset.pattern.permute.xlu0 4
        %2726 = vperm.xlu0 %2725, %v980
        %v2727 = vpop.permute.xlu0 %2726
        %2728 = vset.pattern.permute.xlu0 4
        %2729 = vperm.xlu0 %2728, %v981
        %v2730 = vpop.permute.xlu0 %2729
        %2731 = vset.pattern.permute.xlu0 4
        %2732 = vperm.xlu0 %2731, %v982
        %v2733 = vpop.permute.xlu0 %2732
        %2734 = vset.pattern.permute.xlu0 4
        %2735 = vperm.xlu0 %2734, %v983
        %v2736 = vpop.permute.xlu0 %2735
        %2737 = vset.pattern.permute.xlu0 4
        %2738 = vperm.xlu0 %2737, %v984
        %v2739 = vpop.permute.xlu0 %2738
        %2740 = vset.pattern.permute.xlu0 4
        %2741 = vperm.xlu0 %2740, %v985
        %v2742 = vpop.permute.xlu0 %2741
        %2743 = vset.pattern.permute.xlu0 4
        %2744 = vperm.xlu0 %2743, %v986
        %v2745 = vpop.permute.xlu0 %2744
        %2746 = vset.pattern.permute.xlu0 4
        %2747 = vperm.xlu0 %2746, %v987
        %v2748 = vpop.permute.xlu0 %2747
        %2749 = vset.pattern.permute.xlu0 4
        %2750 = vperm.xlu0 %2749, %v988
        %v2751 = vpop.permute.xlu0 %2750
        %2752 = vset.pattern.permute.xlu0 4
        %2753 = vperm.xlu0 %2752, %v989
        %v2754 = vpop.permute.xlu0 %2753
        %2755 = vset.pattern.permute.xlu0 4
        %2756 = vperm.xlu0 %2755, %v990
        %v2757 = vpop.permute.xlu0 %2756
        %2758 = vset.pattern.permute.xlu0 4
        %2759 = vperm.xlu0 %2758, %v991
        %v2760 = vpop.permute.xlu0 %2759
        %2761 = vset.pattern.permute.xlu0 4
        %2762 = vperm.xlu0 %2761, %v992
        %v2763 = vpop.permute.xlu0 %2762
        %2764 = vset.pattern.permute.xlu0 4
        %2765 = vperm.xlu0 %2764, %v993
        %v2766 = vpop.permute.xlu0 %2765
        %2767 = vset.pattern.permute.xlu0 4
        %2768 = vperm.xlu0 %2767, %v994
        %v2769 = vpop.permute.xlu0 %2768
        %2770 = vset.pattern.permute.xlu0 4
        %2771 = vperm.xlu0 %2770, %v995
        %v2772 = vpop.permute.xlu0 %2771
        %2773 = vset.pattern.permute.xlu0 4
        %2774 = vperm.xlu0 %2773, %v996
        %v2775 = vpop.permute.xlu0 %2774
        %2776 = vset.pattern.permute.xlu0 4
        %2777 = vperm.xlu0 %2776, %v997
        %v2778 = vpop.permute.xlu0 %2777
        %vm2779 = vcmp.eq.s32.totalorder %v2685, %v999
        %vm2780 = vcmp.eq.s32.totalorder %v2685, %v1000
        %vm2781 = vcmp.eq.s32.totalorder %v2685, %v1001
        %vm2782 = vcmp.eq.s32.totalorder %v2688, %v999
        %vm2783 = vcmp.eq.s32.totalorder %v2688, %v1000
        %vm2784 = vcmp.eq.s32.totalorder %v2688, %v1001
        %vm2785 = vcmp.eq.s32.totalorder %v2691, %v999
        %vm2786 = vcmp.eq.s32.totalorder %v2691, %v1000
        %vm2787 = vcmp.eq.s32.totalorder %v2691, %v1001
        %vm2788 = vcmp.eq.s32.totalorder %v2694, %v999
        %vm2789 = vcmp.eq.s32.totalorder %v2694, %v1000
        %vm2790 = vcmp.eq.s32.totalorder %v2694, %v1001
        %vm2791 = vcmp.eq.s32.totalorder %v2697, %v999
        %vm2792 = vcmp.eq.s32.totalorder %v2697, %v1000
        %vm2793 = vcmp.eq.s32.totalorder %v2697, %v1001
        %vm2794 = vcmp.eq.s32.totalorder %v2700, %v999
        %vm2795 = vcmp.eq.s32.totalorder %v2700, %v1000
        %vm2796 = vcmp.eq.s32.totalorder %v2700, %v1001
        %vm2797 = vcmp.eq.s32.totalorder %v2703, %v999
        %vm2798 = vcmp.eq.s32.totalorder %v2703, %v1000
        %vm2799 = vcmp.eq.s32.totalorder %v2703, %v1001
        %vm2800 = vcmp.eq.s32.totalorder %v2706, %v999
        %vm2801 = vcmp.eq.s32.totalorder %v2706, %v1000
        %vm2802 = vcmp.eq.s32.totalorder %v2706, %v1001
        %vm2803 = vcmp.eq.s32.totalorder %v2709, %v999
        %vm2804 = vcmp.eq.s32.totalorder %v2709, %v1000
        %vm2805 = vcmp.eq.s32.totalorder %v2709, %v1001
        %vm2806 = vcmp.eq.s32.totalorder %v2712, %v999
        %vm2807 = vcmp.eq.s32.totalorder %v2712, %v1000
        %vm2808 = vcmp.eq.s32.totalorder %v2712, %v1001
        %vm2809 = vcmp.eq.s32.totalorder %v2715, %v999
        %vm2810 = vcmp.eq.s32.totalorder %v2715, %v1000
        %vm2811 = vcmp.eq.s32.totalorder %v2715, %v1001
        %vm2812 = vcmp.eq.s32.totalorder %v2718, %v999
        %vm2813 = vcmp.eq.s32.totalorder %v2718, %v1000
        %vm2814 = vcmp.eq.s32.totalorder %v2718, %v1001
        %vm2815 = vcmp.eq.s32.totalorder %v2721, %v999
        %vm2816 = vcmp.eq.s32.totalorder %v2721, %v1000
        %vm2817 = vcmp.eq.s32.totalorder %v2721, %v1001
        %vm2818 = vcmp.eq.s32.totalorder %v2724, %v999
        %vm2819 = vcmp.eq.s32.totalorder %v2724, %v1000
        %vm2820 = vcmp.eq.s32.totalorder %v2724, %v1001
        %vm2821 = vcmp.eq.s32.totalorder %v2727, %v999
        %vm2822 = vcmp.eq.s32.totalorder %v2727, %v1000
        %vm2823 = vcmp.eq.s32.totalorder %v2727, %v1001
        %vm2824 = vcmp.eq.s32.totalorder %v2730, %v999
        %vm2825 = vcmp.eq.s32.totalorder %v2730, %v1000
        %vm2826 = vcmp.eq.s32.totalorder %v2730, %v1001
        %vm2827 = vcmp.eq.s32.totalorder %v2733, %v999
        %vm2828 = vcmp.eq.s32.totalorder %v2733, %v1000
        %vm2829 = vcmp.eq.s32.totalorder %v2733, %v1001
        %vm2830 = vcmp.eq.s32.totalorder %v2736, %v999
        %vm2831 = vcmp.eq.s32.totalorder %v2736, %v1000
        %vm2832 = vcmp.eq.s32.totalorder %v2736, %v1001
        %vm2833 = vcmp.eq.s32.totalorder %v2739, %v999
        %vm2834 = vcmp.eq.s32.totalorder %v2739, %v1000
        %vm2835 = vcmp.eq.s32.totalorder %v2739, %v1001
        %vm2836 = vcmp.eq.s32.totalorder %v2742, %v999
        %vm2837 = vcmp.eq.s32.totalorder %v2742, %v1000
        %vm2838 = vcmp.eq.s32.totalorder %v2742, %v1001
        %vm2839 = vcmp.eq.s32.totalorder %v2745, %v999
        %vm2840 = vcmp.eq.s32.totalorder %v2745, %v1000
        %vm2841 = vcmp.eq.s32.totalorder %v2745, %v1001
        %vm2842 = vcmp.eq.s32.totalorder %v2748, %v999
        %vm2843 = vcmp.eq.s32.totalorder %v2748, %v1000
        %vm2844 = vcmp.eq.s32.totalorder %v2748, %v1001
        %vm2845 = vcmp.eq.s32.totalorder %v2751, %v999
        %vm2846 = vcmp.eq.s32.totalorder %v2751, %v1000
        %vm2847 = vcmp.eq.s32.totalorder %v2751, %v1001
        %vm2848 = vcmp.eq.s32.totalorder %v2754, %v999
        %vm2849 = vcmp.eq.s32.totalorder %v2754, %v1000
        %vm2850 = vcmp.eq.s32.totalorder %v2754, %v1001
        %vm2851 = vcmp.eq.s32.totalorder %v2757, %v999
        %vm2852 = vcmp.eq.s32.totalorder %v2757, %v1000
        %vm2853 = vcmp.eq.s32.totalorder %v2757, %v1001
        %vm2854 = vcmp.eq.s32.totalorder %v2760, %v999
        %vm2855 = vcmp.eq.s32.totalorder %v2760, %v1000
        %vm2856 = vcmp.eq.s32.totalorder %v2760, %v1001
        %vm2857 = vcmp.eq.s32.totalorder %v2763, %v999
        %vm2858 = vcmp.eq.s32.totalorder %v2763, %v1000
        %vm2859 = vcmp.eq.s32.totalorder %v2763, %v1001
        %vm2860 = vcmp.eq.s32.totalorder %v2766, %v999
        %vm2861 = vcmp.eq.s32.totalorder %v2766, %v1000
        %vm2862 = vcmp.eq.s32.totalorder %v2766, %v1001
        %vm2863 = vcmp.eq.s32.totalorder %v2769, %v999
        %vm2864 = vcmp.eq.s32.totalorder %v2769, %v1000
        %vm2865 = vcmp.eq.s32.totalorder %v2769, %v1001
        %vm2866 = vcmp.eq.s32.totalorder %v2772, %v999
        %vm2867 = vcmp.eq.s32.totalorder %v2772, %v1000
        %vm2868 = vcmp.eq.s32.totalorder %v2772, %v1001
        %vm2869 = vcmp.eq.s32.totalorder %v2775, %v999
        %vm2870 = vcmp.eq.s32.totalorder %v2775, %v1000
        %vm2871 = vcmp.eq.s32.totalorder %v2775, %v1001
        %vm2872 = vcmp.eq.s32.totalorder %v2778, %v999
        %vm2873 = vcmp.eq.s32.totalorder %v2778, %v1000
        %vm2874 = vcmp.eq.s32.totalorder %v2778, %v1001
        %v2875 = vsel %vm2779, %v1007, 0.0
        %v2876 = vsel %vm2780, %v1011, 0.0
        %v2877 = vsel %vm2781, %v1015, 0.0
        %v2878 = vsel %vm2782, %v1007, 0.0
        %v2879 = vsel %vm2783, %v1011, 0.0
        %v2880 = vsel %vm2784, %v1015, 0.0
        %v2881 = vsel %vm2785, %v1007, 0.0
        %v2882 = vsel %vm2786, %v1011, 0.0
        %v2883 = vsel %vm2787, %v1015, 0.0
        %v2884 = vsel %vm2788, %v1007, 0.0
        %v2885 = vsel %vm2789, %v1011, 0.0
        %v2886 = vsel %vm2790, %v1015, 0.0
        %v2887 = vsel %vm2791, %v1007, 0.0
        %v2888 = vsel %vm2792, %v1011, 0.0
        %v2889 = vsel %vm2793, %v1015, 0.0
        %v2890 = vsel %vm2794, %v1007, 0.0
        %v2891 = vsel %vm2795, %v1011, 0.0
        %v2892 = vsel %vm2796, %v1015, 0.0
        %v2893 = vsel %vm2797, %v1007, 0.0
        %v2894 = vsel %vm2798, %v1011, 0.0
        %v2895 = vsel %vm2799, %v1015, 0.0
        %v2896 = vsel %vm2800, %v1007, 0.0
        %v2897 = vsel %vm2801, %v1011, 0.0
        %v2898 = vsel %vm2802, %v1015, 0.0
        %v2899 = vsel %vm2803, %v1007, 0.0
        %v2900 = vsel %vm2804, %v1011, 0.0
        %v2901 = vsel %vm2805, %v1015, 0.0
        %v2902 = vsel %vm2806, %v1007, 0.0
        %v2903 = vsel %vm2807, %v1011, 0.0
        %v2904 = vsel %vm2808, %v1015, 0.0
        %v2905 = vsel %vm2809, %v1007, 0.0
        %v2906 = vsel %vm2810, %v1011, 0.0
        %v2907 = vsel %vm2811, %v1015, 0.0
        %v2908 = vsel %vm2812, %v1007, 0.0
        %v2909 = vsel %vm2813, %v1011, 0.0
        %v2910 = vsel %vm2814, %v1015, 0.0
        %v2911 = vsel %vm2815, %v1007, 0.0
        %v2912 = vsel %vm2816, %v1011, 0.0
        %v2913 = vsel %vm2817, %v1015, 0.0
        %v2914 = vsel %vm2818, %v1007, 0.0
        %v2915 = vsel %vm2819, %v1011, 0.0
        %v2916 = vsel %vm2820, %v1015, 0.0
        %v2917 = vsel %vm2821, %v1007, 0.0
        %v2918 = vsel %vm2822, %v1011, 0.0
        %v2919 = vsel %vm2823, %v1015, 0.0
        %v2920 = vsel %vm2824, %v1007, 0.0
        %v2921 = vsel %vm2825, %v1011, 0.0
        %v2922 = vsel %vm2826, %v1015, 0.0
        %v2923 = vsel %vm2827, %v1007, 0.0
        %v2924 = vsel %vm2828, %v1011, 0.0
        %v2925 = vsel %vm2829, %v1015, 0.0
        %v2926 = vsel %vm2830, %v1007, 0.0
        %v2927 = vsel %vm2831, %v1011, 0.0
        %v2928 = vsel %vm2832, %v1015, 0.0
        %v2929 = vsel %vm2833, %v1007, 0.0
        %v2930 = vsel %vm2834, %v1011, 0.0
        %v2931 = vsel %vm2835, %v1015, 0.0
        %v2932 = vsel %vm2836, %v1007, 0.0
        %v2933 = vsel %vm2837, %v1011, 0.0
        %v2934 = vsel %vm2838, %v1015, 0.0
        %v2935 = vsel %vm2839, %v1007, 0.0
        %v2936 = vsel %vm2840, %v1011, 0.0
        %v2937 = vsel %vm2841, %v1015, 0.0
        %v2938 = vsel %vm2842, %v1007, 0.0
        %v2939 = vsel %vm2843, %v1011, 0.0
        %v2940 = vsel %vm2844, %v1015, 0.0
        %v2941 = vsel %vm2845, %v1007, 0.0
        %v2942 = vsel %vm2846, %v1011, 0.0
        %v2943 = vsel %vm2847, %v1015, 0.0
        %v2944 = vsel %vm2848, %v1007, 0.0
        %v2945 = vsel %vm2849, %v1011, 0.0
        %v2946 = vsel %vm2850, %v1015, 0.0
        %v2947 = vsel %vm2851, %v1007, 0.0
        %v2948 = vsel %vm2852, %v1011, 0.0
        %v2949 = vsel %vm2853, %v1015, 0.0
        %v2950 = vsel %vm2854, %v1007, 0.0
        %v2951 = vsel %vm2855, %v1011, 0.0
        %v2952 = vsel %vm2856, %v1015, 0.0
        %v2953 = vsel %vm2857, %v1007, 0.0
        %v2954 = vsel %vm2858, %v1011, 0.0
        %v2955 = vsel %vm2859, %v1015, 0.0
        %v2956 = vsel %vm2860, %v1007, 0.0
        %v2957 = vsel %vm2861, %v1011, 0.0
        %v2958 = vsel %vm2862, %v1015, 0.0
        %v2959 = vsel %vm2863, %v1007, 0.0
        %v2960 = vsel %vm2864, %v1011, 0.0
        %v2961 = vsel %vm2865, %v1015, 0.0
        %v2962 = vsel %vm2866, %v1007, 0.0
        %v2963 = vsel %vm2867, %v1011, 0.0
        %v2964 = vsel %vm2868, %v1015, 0.0
        %v2965 = vsel %vm2869, %v1007, 0.0
        %v2966 = vsel %vm2870, %v1011, 0.0
        %v2967 = vsel %vm2871, %v1015, 0.0
        %v2968 = vsel %vm2872, %v1007, 0.0
        %v2969 = vsel %vm2873, %v1011, 0.0
        %v2970 = vsel %vm2874, %v1015, 0.0
        %v2971 = vadd.f32 %v2875, %v2876
        %v2972 = vadd.f32 %v2971, %v2877
        %2973 = vadd.xlane.f32.xlu0 %v2972
        %v2974 = vpop.xlane.xlu0 %2973
        %v2975 = vadd.f32 %v2878, %v2879
        %v2976 = vadd.f32 %v2975, %v2880
        %2977 = vadd.xlane.f32.xlu0 %v2976
        %v2978 = vpop.xlane.xlu0 %2977
        %v2979 = vadd.f32 %v2881, %v2882
        %v2980 = vadd.f32 %v2979, %v2883
        %2981 = vadd.xlane.f32.xlu0 %v2980
        %v2982 = vpop.xlane.xlu0 %2981
        %v2983 = vadd.f32 %v2884, %v2885
        %v2984 = vadd.f32 %v2983, %v2886
        %2985 = vadd.xlane.f32.xlu0 %v2984
        %v2986 = vpop.xlane.xlu0 %2985
        %v2987 = vadd.f32 %v2887, %v2888
        %v2988 = vadd.f32 %v2987, %v2889
        %2989 = vadd.xlane.f32.xlu0 %v2988
        %v2990 = vpop.xlane.xlu0 %2989
        %v2991 = vadd.f32 %v2890, %v2891
        %v2992 = vadd.f32 %v2991, %v2892
        %2993 = vadd.xlane.f32.xlu0 %v2992
        %v2994 = vpop.xlane.xlu0 %2993
        %v2995 = vadd.f32 %v2893, %v2894
        %v2996 = vadd.f32 %v2995, %v2895
        %2997 = vadd.xlane.f32.xlu0 %v2996
        %v2998 = vpop.xlane.xlu0 %2997
        %v2999 = vadd.f32 %v2896, %v2897
        %v3000 = vadd.f32 %v2999, %v2898
        %3001 = vadd.xlane.f32.xlu0 %v3000
        %v3002 = vpop.xlane.xlu0 %3001
        %v3003 = vadd.f32 %v2899, %v2900
        %v3004 = vadd.f32 %v3003, %v2901
        %3005 = vadd.xlane.f32.xlu0 %v3004
        %v3006 = vpop.xlane.xlu0 %3005
        %v3007 = vadd.f32 %v2902, %v2903
        %v3008 = vadd.f32 %v3007, %v2904
        %3009 = vadd.xlane.f32.xlu0 %v3008
        %v3010 = vpop.xlane.xlu0 %3009
        %v3011 = vadd.f32 %v2905, %v2906
        %v3012 = vadd.f32 %v3011, %v2907
        %3013 = vadd.xlane.f32.xlu0 %v3012
        %v3014 = vpop.xlane.xlu0 %3013
        %v3015 = vadd.f32 %v2908, %v2909
        %v3016 = vadd.f32 %v3015, %v2910
        %3017 = vadd.xlane.f32.xlu0 %v3016
        %v3018 = vpop.xlane.xlu0 %3017
        %v3019 = vadd.f32 %v2911, %v2912
        %v3020 = vadd.f32 %v3019, %v2913
        %3021 = vadd.xlane.f32.xlu0 %v3020
        %v3022 = vpop.xlane.xlu0 %3021
        %v3023 = vadd.f32 %v2914, %v2915
        %v3024 = vadd.f32 %v3023, %v2916
        %3025 = vadd.xlane.f32.xlu0 %v3024
        %v3026 = vpop.xlane.xlu0 %3025
        %v3027 = vadd.f32 %v2917, %v2918
        %v3028 = vadd.f32 %v3027, %v2919
        %3029 = vadd.xlane.f32.xlu0 %v3028
        %v3030 = vpop.xlane.xlu0 %3029
        %v3031 = vadd.f32 %v2920, %v2921
        %v3032 = vadd.f32 %v3031, %v2922
        %3033 = vadd.xlane.f32.xlu0 %v3032
        %v3034 = vpop.xlane.xlu0 %3033
        %v3035 = vadd.f32 %v2923, %v2924
        %v3036 = vadd.f32 %v3035, %v2925
        %3037 = vadd.xlane.f32.xlu0 %v3036
        %v3038 = vpop.xlane.xlu0 %3037
        %v3039 = vadd.f32 %v2926, %v2927
        %v3040 = vadd.f32 %v3039, %v2928
        %3041 = vadd.xlane.f32.xlu0 %v3040
        %v3042 = vpop.xlane.xlu0 %3041
        %v3043 = vadd.f32 %v2929, %v2930
        %v3044 = vadd.f32 %v3043, %v2931
        %3045 = vadd.xlane.f32.xlu0 %v3044
        %v3046 = vpop.xlane.xlu0 %3045
        %v3047 = vadd.f32 %v2932, %v2933
        %v3048 = vadd.f32 %v3047, %v2934
        %3049 = vadd.xlane.f32.xlu0 %v3048
        %v3050 = vpop.xlane.xlu0 %3049
        %v3051 = vadd.f32 %v2935, %v2936
        %v3052 = vadd.f32 %v3051, %v2937
        %3053 = vadd.xlane.f32.xlu0 %v3052
        %v3054 = vpop.xlane.xlu0 %3053
        %v3055 = vadd.f32 %v2938, %v2939
        %v3056 = vadd.f32 %v3055, %v2940
        %3057 = vadd.xlane.f32.xlu0 %v3056
        %v3058 = vpop.xlane.xlu0 %3057
        %v3059 = vadd.f32 %v2941, %v2942
        %v3060 = vadd.f32 %v3059, %v2943
        %3061 = vadd.xlane.f32.xlu0 %v3060
        %v3062 = vpop.xlane.xlu0 %3061
        %v3063 = vadd.f32 %v2944, %v2945
        %v3064 = vadd.f32 %v3063, %v2946
        %3065 = vadd.xlane.f32.xlu0 %v3064
        %v3066 = vpop.xlane.xlu0 %3065
        %v3067 = vadd.f32 %v2947, %v2948
        %v3068 = vadd.f32 %v3067, %v2949
        %3069 = vadd.xlane.f32.xlu0 %v3068
        %v3070 = vpop.xlane.xlu0 %3069
        %v3071 = vadd.f32 %v2950, %v2951
        %v3072 = vadd.f32 %v3071, %v2952
        %3073 = vadd.xlane.f32.xlu0 %v3072
        %v3074 = vpop.xlane.xlu0 %3073
        %v3075 = vadd.f32 %v2953, %v2954
        %v3076 = vadd.f32 %v3075, %v2955
        %3077 = vadd.xlane.f32.xlu0 %v3076
        %v3078 = vpop.xlane.xlu0 %3077
        %v3079 = vadd.f32 %v2956, %v2957
        %v3080 = vadd.f32 %v3079, %v2958
        %3081 = vadd.xlane.f32.xlu0 %v3080
        %v3082 = vpop.xlane.xlu0 %3081
        %v3083 = vadd.f32 %v2959, %v2960
        %v3084 = vadd.f32 %v3083, %v2961
        %3085 = vadd.xlane.f32.xlu0 %v3084
        %v3086 = vpop.xlane.xlu0 %3085
        %v3087 = vadd.f32 %v2962, %v2963
        %v3088 = vadd.f32 %v3087, %v2964
        %3089 = vadd.xlane.f32.xlu0 %v3088
        %v3090 = vpop.xlane.xlu0 %3089
        %v3091 = vadd.f32 %v2965, %v2966
        %v3092 = vadd.f32 %v3091, %v2967
        %3093 = vadd.xlane.f32.xlu0 %v3092
        %v3094 = vpop.xlane.xlu0 %3093
        %v3095 = vadd.f32 %v2968, %v2969
        %v3096 = vadd.f32 %v3095, %v2970
        %3097 = vadd.xlane.f32.xlu0 %v3096
        %v3098 = vpop.xlane.xlu0 %3097
        %3099 = vset.pattern.permute.xlu0 5
        %3100 = vperm.xlu0 %3099, %v966
        %v3101 = vpop.permute.xlu0 %3100
        %3102 = vset.pattern.permute.xlu0 5
        %3103 = vperm.xlu0 %3102, %v967
        %v3104 = vpop.permute.xlu0 %3103
        %3105 = vset.pattern.permute.xlu0 5
        %3106 = vperm.xlu0 %3105, %v968
        %v3107 = vpop.permute.xlu0 %3106
        %3108 = vset.pattern.permute.xlu0 5
        %3109 = vperm.xlu0 %3108, %v969
        %v3110 = vpop.permute.xlu0 %3109
        %3111 = vset.pattern.permute.xlu0 5
        %3112 = vperm.xlu0 %3111, %v970
        %v3113 = vpop.permute.xlu0 %3112
        %3114 = vset.pattern.permute.xlu0 5
        %3115 = vperm.xlu0 %3114, %v971
        %v3116 = vpop.permute.xlu0 %3115
        %3117 = vset.pattern.permute.xlu0 5
        %3118 = vperm.xlu0 %3117, %v972
        %v3119 = vpop.permute.xlu0 %3118
        %3120 = vset.pattern.permute.xlu0 5
        %3121 = vperm.xlu0 %3120, %v973
        %v3122 = vpop.permute.xlu0 %3121
        %3123 = vset.pattern.permute.xlu0 5
        %3124 = vperm.xlu0 %3123, %v974
        %v3125 = vpop.permute.xlu0 %3124
        %3126 = vset.pattern.permute.xlu0 5
        %3127 = vperm.xlu0 %3126, %v975
        %v3128 = vpop.permute.xlu0 %3127
        %3129 = vset.pattern.permute.xlu0 5
        %3130 = vperm.xlu0 %3129, %v976
        %v3131 = vpop.permute.xlu0 %3130
        %3132 = vset.pattern.permute.xlu0 5
        %3133 = vperm.xlu0 %3132, %v977
        %v3134 = vpop.permute.xlu0 %3133
        %3135 = vset.pattern.permute.xlu0 5
        %3136 = vperm.xlu0 %3135, %v978
        %v3137 = vpop.permute.xlu0 %3136
        %3138 = vset.pattern.permute.xlu0 5
        %3139 = vperm.xlu0 %3138, %v979
        %v3140 = vpop.permute.xlu0 %3139
        %3141 = vset.pattern.permute.xlu0 5
        %3142 = vperm.xlu0 %3141, %v980
        %v3143 = vpop.permute.xlu0 %3142
        %3144 = vset.pattern.permute.xlu0 5
        %3145 = vperm.xlu0 %3144, %v981
        %v3146 = vpop.permute.xlu0 %3145
        %3147 = vset.pattern.permute.xlu0 5
        %3148 = vperm.xlu0 %3147, %v982
        %v3149 = vpop.permute.xlu0 %3148
        %3150 = vset.pattern.permute.xlu0 5
        %3151 = vperm.xlu0 %3150, %v983
        %v3152 = vpop.permute.xlu0 %3151
        %3153 = vset.pattern.permute.xlu0 5
        %3154 = vperm.xlu0 %3153, %v984
        %v3155 = vpop.permute.xlu0 %3154
        %3156 = vset.pattern.permute.xlu0 5
        %3157 = vperm.xlu0 %3156, %v985
        %v3158 = vpop.permute.xlu0 %3157
        %3159 = vset.pattern.permute.xlu0 5
        %3160 = vperm.xlu0 %3159, %v986
        %v3161 = vpop.permute.xlu0 %3160
        %3162 = vset.pattern.permute.xlu0 5
        %3163 = vperm.xlu0 %3162, %v987
        %v3164 = vpop.permute.xlu0 %3163
        %3165 = vset.pattern.permute.xlu0 5
        %3166 = vperm.xlu0 %3165, %v988
        %v3167 = vpop.permute.xlu0 %3166
        %3168 = vset.pattern.permute.xlu0 5
        %3169 = vperm.xlu0 %3168, %v989
        %v3170 = vpop.permute.xlu0 %3169
        %3171 = vset.pattern.permute.xlu0 5
        %3172 = vperm.xlu0 %3171, %v990
        %v3173 = vpop.permute.xlu0 %3172
        %3174 = vset.pattern.permute.xlu0 5
        %3175 = vperm.xlu0 %3174, %v991
        %v3176 = vpop.permute.xlu0 %3175
        %3177 = vset.pattern.permute.xlu0 5
        %3178 = vperm.xlu0 %3177, %v992
        %v3179 = vpop.permute.xlu0 %3178
        %3180 = vset.pattern.permute.xlu0 5
        %3181 = vperm.xlu0 %3180, %v993
        %v3182 = vpop.permute.xlu0 %3181
        %3183 = vset.pattern.permute.xlu0 5
        %3184 = vperm.xlu0 %3183, %v994
        %v3185 = vpop.permute.xlu0 %3184
        %3186 = vset.pattern.permute.xlu0 5
        %3187 = vperm.xlu0 %3186, %v995
        %v3188 = vpop.permute.xlu0 %3187
        %3189 = vset.pattern.permute.xlu0 5
        %3190 = vperm.xlu0 %3189, %v996
        %v3191 = vpop.permute.xlu0 %3190
        %3192 = vset.pattern.permute.xlu0 5
        %3193 = vperm.xlu0 %3192, %v997
        %v3194 = vpop.permute.xlu0 %3193
        %vm3195 = vcmp.eq.s32.totalorder %v3101, %v999
        %vm3196 = vcmp.eq.s32.totalorder %v3101, %v1000
        %vm3197 = vcmp.eq.s32.totalorder %v3101, %v1001
        %vm3198 = vcmp.eq.s32.totalorder %v3104, %v999
        %vm3199 = vcmp.eq.s32.totalorder %v3104, %v1000
        %vm3200 = vcmp.eq.s32.totalorder %v3104, %v1001
        %vm3201 = vcmp.eq.s32.totalorder %v3107, %v999
        %vm3202 = vcmp.eq.s32.totalorder %v3107, %v1000
        %vm3203 = vcmp.eq.s32.totalorder %v3107, %v1001
        %vm3204 = vcmp.eq.s32.totalorder %v3110, %v999
        %vm3205 = vcmp.eq.s32.totalorder %v3110, %v1000
        %vm3206 = vcmp.eq.s32.totalorder %v3110, %v1001
        %vm3207 = vcmp.eq.s32.totalorder %v3113, %v999
        %vm3208 = vcmp.eq.s32.totalorder %v3113, %v1000
        %vm3209 = vcmp.eq.s32.totalorder %v3113, %v1001
        %vm3210 = vcmp.eq.s32.totalorder %v3116, %v999
        %vm3211 = vcmp.eq.s32.totalorder %v3116, %v1000
        %vm3212 = vcmp.eq.s32.totalorder %v3116, %v1001
        %vm3213 = vcmp.eq.s32.totalorder %v3119, %v999
        %vm3214 = vcmp.eq.s32.totalorder %v3119, %v1000
        %vm3215 = vcmp.eq.s32.totalorder %v3119, %v1001
        %vm3216 = vcmp.eq.s32.totalorder %v3122, %v999
        %vm3217 = vcmp.eq.s32.totalorder %v3122, %v1000
        %vm3218 = vcmp.eq.s32.totalorder %v3122, %v1001
        %vm3219 = vcmp.eq.s32.totalorder %v3125, %v999
        %vm3220 = vcmp.eq.s32.totalorder %v3125, %v1000
        %vm3221 = vcmp.eq.s32.totalorder %v3125, %v1001
        %vm3222 = vcmp.eq.s32.totalorder %v3128, %v999
        %vm3223 = vcmp.eq.s32.totalorder %v3128, %v1000
        %vm3224 = vcmp.eq.s32.totalorder %v3128, %v1001
        %vm3225 = vcmp.eq.s32.totalorder %v3131, %v999
        %vm3226 = vcmp.eq.s32.totalorder %v3131, %v1000
        %vm3227 = vcmp.eq.s32.totalorder %v3131, %v1001
        %vm3228 = vcmp.eq.s32.totalorder %v3134, %v999
        %vm3229 = vcmp.eq.s32.totalorder %v3134, %v1000
        %vm3230 = vcmp.eq.s32.totalorder %v3134, %v1001
        %vm3231 = vcmp.eq.s32.totalorder %v3137, %v999
        %vm3232 = vcmp.eq.s32.totalorder %v3137, %v1000
        %vm3233 = vcmp.eq.s32.totalorder %v3137, %v1001
        %vm3234 = vcmp.eq.s32.totalorder %v3140, %v999
        %vm3235 = vcmp.eq.s32.totalorder %v3140, %v1000
        %vm3236 = vcmp.eq.s32.totalorder %v3140, %v1001
        %vm3237 = vcmp.eq.s32.totalorder %v3143, %v999
        %vm3238 = vcmp.eq.s32.totalorder %v3143, %v1000
        %vm3239 = vcmp.eq.s32.totalorder %v3143, %v1001
        %vm3240 = vcmp.eq.s32.totalorder %v3146, %v999
        %vm3241 = vcmp.eq.s32.totalorder %v3146, %v1000
        %vm3242 = vcmp.eq.s32.totalorder %v3146, %v1001
        %vm3243 = vcmp.eq.s32.totalorder %v3149, %v999
        %vm3244 = vcmp.eq.s32.totalorder %v3149, %v1000
        %vm3245 = vcmp.eq.s32.totalorder %v3149, %v1001
        %vm3246 = vcmp.eq.s32.totalorder %v3152, %v999
        %vm3247 = vcmp.eq.s32.totalorder %v3152, %v1000
        %vm3248 = vcmp.eq.s32.totalorder %v3152, %v1001
        %vm3249 = vcmp.eq.s32.totalorder %v3155, %v999
        %vm3250 = vcmp.eq.s32.totalorder %v3155, %v1000
        %vm3251 = vcmp.eq.s32.totalorder %v3155, %v1001
        %vm3252 = vcmp.eq.s32.totalorder %v3158, %v999
        %vm3253 = vcmp.eq.s32.totalorder %v3158, %v1000
        %vm3254 = vcmp.eq.s32.totalorder %v3158, %v1001
        %vm3255 = vcmp.eq.s32.totalorder %v3161, %v999
        %vm3256 = vcmp.eq.s32.totalorder %v3161, %v1000
        %vm3257 = vcmp.eq.s32.totalorder %v3161, %v1001
        %vm3258 = vcmp.eq.s32.totalorder %v3164, %v999
        %vm3259 = vcmp.eq.s32.totalorder %v3164, %v1000
        %vm3260 = vcmp.eq.s32.totalorder %v3164, %v1001
        %vm3261 = vcmp.eq.s32.totalorder %v3167, %v999
        %vm3262 = vcmp.eq.s32.totalorder %v3167, %v1000
        %vm3263 = vcmp.eq.s32.totalorder %v3167, %v1001
        %vm3264 = vcmp.eq.s32.totalorder %v3170, %v999
        %vm3265 = vcmp.eq.s32.totalorder %v3170, %v1000
        %vm3266 = vcmp.eq.s32.totalorder %v3170, %v1001
        %vm3267 = vcmp.eq.s32.totalorder %v3173, %v999
        %vm3268 = vcmp.eq.s32.totalorder %v3173, %v1000
        %vm3269 = vcmp.eq.s32.totalorder %v3173, %v1001
        %vm3270 = vcmp.eq.s32.totalorder %v3176, %v999
        %vm3271 = vcmp.eq.s32.totalorder %v3176, %v1000
        %vm3272 = vcmp.eq.s32.totalorder %v3176, %v1001
        %vm3273 = vcmp.eq.s32.totalorder %v3179, %v999
        %vm3274 = vcmp.eq.s32.totalorder %v3179, %v1000
        %vm3275 = vcmp.eq.s32.totalorder %v3179, %v1001
        %vm3276 = vcmp.eq.s32.totalorder %v3182, %v999
        %vm3277 = vcmp.eq.s32.totalorder %v3182, %v1000
        %vm3278 = vcmp.eq.s32.totalorder %v3182, %v1001
        %vm3279 = vcmp.eq.s32.totalorder %v3185, %v999
        %vm3280 = vcmp.eq.s32.totalorder %v3185, %v1000
        %vm3281 = vcmp.eq.s32.totalorder %v3185, %v1001
        %vm3282 = vcmp.eq.s32.totalorder %v3188, %v999
        %vm3283 = vcmp.eq.s32.totalorder %v3188, %v1000
        %vm3284 = vcmp.eq.s32.totalorder %v3188, %v1001
        %vm3285 = vcmp.eq.s32.totalorder %v3191, %v999
        %vm3286 = vcmp.eq.s32.totalorder %v3191, %v1000
        %vm3287 = vcmp.eq.s32.totalorder %v3191, %v1001
        %vm3288 = vcmp.eq.s32.totalorder %v3194, %v999
        %vm3289 = vcmp.eq.s32.totalorder %v3194, %v1000
        %vm3290 = vcmp.eq.s32.totalorder %v3194, %v1001
        %v3291 = vsel %vm3195, %v1007, 0.0
        %v3292 = vsel %vm3196, %v1011, 0.0
        %v3293 = vsel %vm3197, %v1015, 0.0
        %v3294 = vsel %vm3198, %v1007, 0.0
        %v3295 = vsel %vm3199, %v1011, 0.0
        %v3296 = vsel %vm3200, %v1015, 0.0
        %v3297 = vsel %vm3201, %v1007, 0.0
        %v3298 = vsel %vm3202, %v1011, 0.0
        %v3299 = vsel %vm3203, %v1015, 0.0
        %v3300 = vsel %vm3204, %v1007, 0.0
        %v3301 = vsel %vm3205, %v1011, 0.0
        %v3302 = vsel %vm3206, %v1015, 0.0
        %v3303 = vsel %vm3207, %v1007, 0.0
        %v3304 = vsel %vm3208, %v1011, 0.0
        %v3305 = vsel %vm3209, %v1015, 0.0
        %v3306 = vsel %vm3210, %v1007, 0.0
        %v3307 = vsel %vm3211, %v1011, 0.0
        %v3308 = vsel %vm3212, %v1015, 0.0
        %v3309 = vsel %vm3213, %v1007, 0.0
        %v3310 = vsel %vm3214, %v1011, 0.0
        %v3311 = vsel %vm3215, %v1015, 0.0
        %v3312 = vsel %vm3216, %v1007, 0.0
        %v3313 = vsel %vm3217, %v1011, 0.0
        %v3314 = vsel %vm3218, %v1015, 0.0
        %v3315 = vsel %vm3219, %v1007, 0.0
        %v3316 = vsel %vm3220, %v1011, 0.0
        %v3317 = vsel %vm3221, %v1015, 0.0
        %v3318 = vsel %vm3222, %v1007, 0.0
        %v3319 = vsel %vm3223, %v1011, 0.0
        %v3320 = vsel %vm3224, %v1015, 0.0
        %v3321 = vsel %vm3225, %v1007, 0.0
        %v3322 = vsel %vm3226, %v1011, 0.0
        %v3323 = vsel %vm3227, %v1015, 0.0
        %v3324 = vsel %vm3228, %v1007, 0.0
        %v3325 = vsel %vm3229, %v1011, 0.0
        %v3326 = vsel %vm3230, %v1015, 0.0
        %v3327 = vsel %vm3231, %v1007, 0.0
        %v3328 = vsel %vm3232, %v1011, 0.0
        %v3329 = vsel %vm3233, %v1015, 0.0
        %v3330 = vsel %vm3234, %v1007, 0.0
        %v3331 = vsel %vm3235, %v1011, 0.0
        %v3332 = vsel %vm3236, %v1015, 0.0
        %v3333 = vsel %vm3237, %v1007, 0.0
        %v3334 = vsel %vm3238, %v1011, 0.0
        %v3335 = vsel %vm3239, %v1015, 0.0
        %v3336 = vsel %vm3240, %v1007, 0.0
        %v3337 = vsel %vm3241, %v1011, 0.0
        %v3338 = vsel %vm3242, %v1015, 0.0
        %v3339 = vsel %vm3243, %v1007, 0.0
        %v3340 = vsel %vm3244, %v1011, 0.0
        %v3341 = vsel %vm3245, %v1015, 0.0
        %v3342 = vsel %vm3246, %v1007, 0.0
        %v3343 = vsel %vm3247, %v1011, 0.0
        %v3344 = vsel %vm3248, %v1015, 0.0
        %v3345 = vsel %vm3249, %v1007, 0.0
        %v3346 = vsel %vm3250, %v1011, 0.0
        %v3347 = vsel %vm3251, %v1015, 0.0
        %v3348 = vsel %vm3252, %v1007, 0.0
        %v3349 = vsel %vm3253, %v1011, 0.0
        %v3350 = vsel %vm3254, %v1015, 0.0
        %v3351 = vsel %vm3255, %v1007, 0.0
        %v3352 = vsel %vm3256, %v1011, 0.0
        %v3353 = vsel %vm3257, %v1015, 0.0
        %v3354 = vsel %vm3258, %v1007, 0.0
        %v3355 = vsel %vm3259, %v1011, 0.0
        %v3356 = vsel %vm3260, %v1015, 0.0
        %v3357 = vsel %vm3261, %v1007, 0.0
        %v3358 = vsel %vm3262, %v1011, 0.0
        %v3359 = vsel %vm3263, %v1015, 0.0
        %v3360 = vsel %vm3264, %v1007, 0.0
        %v3361 = vsel %vm3265, %v1011, 0.0
        %v3362 = vsel %vm3266, %v1015, 0.0
        %v3363 = vsel %vm3267, %v1007, 0.0
        %v3364 = vsel %vm3268, %v1011, 0.0
        %v3365 = vsel %vm3269, %v1015, 0.0
        %v3366 = vsel %vm3270, %v1007, 0.0
        %v3367 = vsel %vm3271, %v1011, 0.0
        %v3368 = vsel %vm3272, %v1015, 0.0
        %v3369 = vsel %vm3273, %v1007, 0.0
        %v3370 = vsel %vm3274, %v1011, 0.0
        %v3371 = vsel %vm3275, %v1015, 0.0
        %v3372 = vsel %vm3276, %v1007, 0.0
        %v3373 = vsel %vm3277, %v1011, 0.0
        %v3374 = vsel %vm3278, %v1015, 0.0
        %v3375 = vsel %vm3279, %v1007, 0.0
        %v3376 = vsel %vm3280, %v1011, 0.0
        %v3377 = vsel %vm3281, %v1015, 0.0
        %v3378 = vsel %vm3282, %v1007, 0.0
        %v3379 = vsel %vm3283, %v1011, 0.0
        %v3380 = vsel %vm3284, %v1015, 0.0
        %v3381 = vsel %vm3285, %v1007, 0.0
        %v3382 = vsel %vm3286, %v1011, 0.0
        %v3383 = vsel %vm3287, %v1015, 0.0
        %v3384 = vsel %vm3288, %v1007, 0.0
        %v3385 = vsel %vm3289, %v1011, 0.0
        %v3386 = vsel %vm3290, %v1015, 0.0
        %v3387 = vadd.f32 %v3291, %v3292
        %v3388 = vadd.f32 %v3387, %v3293
        %3389 = vadd.xlane.f32.xlu0 %v3388
        %v3390 = vpop.xlane.xlu0 %3389
        %v3391 = vadd.f32 %v3294, %v3295
        %v3392 = vadd.f32 %v3391, %v3296
        %3393 = vadd.xlane.f32.xlu0 %v3392
        %v3394 = vpop.xlane.xlu0 %3393
        %v3395 = vadd.f32 %v3297, %v3298
        %v3396 = vadd.f32 %v3395, %v3299
        %3397 = vadd.xlane.f32.xlu0 %v3396
        %v3398 = vpop.xlane.xlu0 %3397
        %v3399 = vadd.f32 %v3300, %v3301
        %v3400 = vadd.f32 %v3399, %v3302
        %3401 = vadd.xlane.f32.xlu0 %v3400
        %v3402 = vpop.xlane.xlu0 %3401
        %v3403 = vadd.f32 %v3303, %v3304
        %v3404 = vadd.f32 %v3403, %v3305
        %3405 = vadd.xlane.f32.xlu0 %v3404
        %v3406 = vpop.xlane.xlu0 %3405
        %v3407 = vadd.f32 %v3306, %v3307
        %v3408 = vadd.f32 %v3407, %v3308
        %3409 = vadd.xlane.f32.xlu0 %v3408
        %v3410 = vpop.xlane.xlu0 %3409
        %v3411 = vadd.f32 %v3309, %v3310
        %v3412 = vadd.f32 %v3411, %v3311
        %3413 = vadd.xlane.f32.xlu0 %v3412
        %v3414 = vpop.xlane.xlu0 %3413
        %v3415 = vadd.f32 %v3312, %v3313
        %v3416 = vadd.f32 %v3415, %v3314
        %3417 = vadd.xlane.f32.xlu0 %v3416
        %v3418 = vpop.xlane.xlu0 %3417
        %v3419 = vadd.f32 %v3315, %v3316
        %v3420 = vadd.f32 %v3419, %v3317
        %3421 = vadd.xlane.f32.xlu0 %v3420
        %v3422 = vpop.xlane.xlu0 %3421
        %v3423 = vadd.f32 %v3318, %v3319
        %v3424 = vadd.f32 %v3423, %v3320
        %3425 = vadd.xlane.f32.xlu0 %v3424
        %v3426 = vpop.xlane.xlu0 %3425
        %v3427 = vadd.f32 %v3321, %v3322
        %v3428 = vadd.f32 %v3427, %v3323
        %3429 = vadd.xlane.f32.xlu0 %v3428
        %v3430 = vpop.xlane.xlu0 %3429
        %v3431 = vadd.f32 %v3324, %v3325
        %v3432 = vadd.f32 %v3431, %v3326
        %3433 = vadd.xlane.f32.xlu0 %v3432
        %v3434 = vpop.xlane.xlu0 %3433
        %v3435 = vadd.f32 %v3327, %v3328
        %v3436 = vadd.f32 %v3435, %v3329
        %3437 = vadd.xlane.f32.xlu0 %v3436
        %v3438 = vpop.xlane.xlu0 %3437
        %v3439 = vadd.f32 %v3330, %v3331
        %v3440 = vadd.f32 %v3439, %v3332
        %3441 = vadd.xlane.f32.xlu0 %v3440
        %v3442 = vpop.xlane.xlu0 %3441
        %v3443 = vadd.f32 %v3333, %v3334
        %v3444 = vadd.f32 %v3443, %v3335
        %3445 = vadd.xlane.f32.xlu0 %v3444
        %v3446 = vpop.xlane.xlu0 %3445
        %v3447 = vadd.f32 %v3336, %v3337
        %v3448 = vadd.f32 %v3447, %v3338
        %3449 = vadd.xlane.f32.xlu0 %v3448
        %v3450 = vpop.xlane.xlu0 %3449
        %v3451 = vadd.f32 %v3339, %v3340
        %v3452 = vadd.f32 %v3451, %v3341
        %3453 = vadd.xlane.f32.xlu0 %v3452
        %v3454 = vpop.xlane.xlu0 %3453
        %v3455 = vadd.f32 %v3342, %v3343
        %v3456 = vadd.f32 %v3455, %v3344
        %3457 = vadd.xlane.f32.xlu0 %v3456
        %v3458 = vpop.xlane.xlu0 %3457
        %v3459 = vadd.f32 %v3345, %v3346
        %v3460 = vadd.f32 %v3459, %v3347
        %3461 = vadd.xlane.f32.xlu0 %v3460
        %v3462 = vpop.xlane.xlu0 %3461
        %v3463 = vadd.f32 %v3348, %v3349
        %v3464 = vadd.f32 %v3463, %v3350
        %3465 = vadd.xlane.f32.xlu0 %v3464
        %v3466 = vpop.xlane.xlu0 %3465
        %v3467 = vadd.f32 %v3351, %v3352
        %v3468 = vadd.f32 %v3467, %v3353
        %3469 = vadd.xlane.f32.xlu0 %v3468
        %v3470 = vpop.xlane.xlu0 %3469
        %v3471 = vadd.f32 %v3354, %v3355
        %v3472 = vadd.f32 %v3471, %v3356
        %3473 = vadd.xlane.f32.xlu0 %v3472
        %v3474 = vpop.xlane.xlu0 %3473
        %v3475 = vadd.f32 %v3357, %v3358
        %v3476 = vadd.f32 %v3475, %v3359
        %3477 = vadd.xlane.f32.xlu0 %v3476
        %v3478 = vpop.xlane.xlu0 %3477
        %v3479 = vadd.f32 %v3360, %v3361
        %v3480 = vadd.f32 %v3479, %v3362
        %3481 = vadd.xlane.f32.xlu0 %v3480
        %v3482 = vpop.xlane.xlu0 %3481
        %v3483 = vadd.f32 %v3363, %v3364
        %v3484 = vadd.f32 %v3483, %v3365
        %3485 = vadd.xlane.f32.xlu0 %v3484
        %v3486 = vpop.xlane.xlu0 %3485
        %v3487 = vadd.f32 %v3366, %v3367
        %v3488 = vadd.f32 %v3487, %v3368
        %3489 = vadd.xlane.f32.xlu0 %v3488
        %v3490 = vpop.xlane.xlu0 %3489
        %v3491 = vadd.f32 %v3369, %v3370
        %v3492 = vadd.f32 %v3491, %v3371
        %3493 = vadd.xlane.f32.xlu0 %v3492
        %v3494 = vpop.xlane.xlu0 %3493
        %v3495 = vadd.f32 %v3372, %v3373
        %v3496 = vadd.f32 %v3495, %v3374
        %3497 = vadd.xlane.f32.xlu0 %v3496
        %v3498 = vpop.xlane.xlu0 %3497
        %v3499 = vadd.f32 %v3375, %v3376
        %v3500 = vadd.f32 %v3499, %v3377
        %3501 = vadd.xlane.f32.xlu0 %v3500
        %v3502 = vpop.xlane.xlu0 %3501
        %v3503 = vadd.f32 %v3378, %v3379
        %v3504 = vadd.f32 %v3503, %v3380
        %3505 = vadd.xlane.f32.xlu0 %v3504
        %v3506 = vpop.xlane.xlu0 %3505
        %v3507 = vadd.f32 %v3381, %v3382
        %v3508 = vadd.f32 %v3507, %v3383
        %3509 = vadd.xlane.f32.xlu0 %v3508
        %v3510 = vpop.xlane.xlu0 %3509
        %v3511 = vadd.f32 %v3384, %v3385
        %v3512 = vadd.f32 %v3511, %v3386
        %3513 = vadd.xlane.f32.xlu0 %v3512
        %v3514 = vpop.xlane.xlu0 %3513
        %3515 = vset.pattern.permute.xlu0 6
        %3516 = vperm.xlu0 %3515, %v966
        %v3517 = vpop.permute.xlu0 %3516
        %3518 = vset.pattern.permute.xlu0 6
        %3519 = vperm.xlu0 %3518, %v967
        %v3520 = vpop.permute.xlu0 %3519
        %3521 = vset.pattern.permute.xlu0 6
        %3522 = vperm.xlu0 %3521, %v968
        %v3523 = vpop.permute.xlu0 %3522
        %3524 = vset.pattern.permute.xlu0 6
        %3525 = vperm.xlu0 %3524, %v969
        %v3526 = vpop.permute.xlu0 %3525
        %3527 = vset.pattern.permute.xlu0 6
        %3528 = vperm.xlu0 %3527, %v970
        %v3529 = vpop.permute.xlu0 %3528
        %3530 = vset.pattern.permute.xlu0 6
        %3531 = vperm.xlu0 %3530, %v971
        %v3532 = vpop.permute.xlu0 %3531
        %3533 = vset.pattern.permute.xlu0 6
        %3534 = vperm.xlu0 %3533, %v972
        %v3535 = vpop.permute.xlu0 %3534
        %3536 = vset.pattern.permute.xlu0 6
        %3537 = vperm.xlu0 %3536, %v973
        %v3538 = vpop.permute.xlu0 %3537
        %3539 = vset.pattern.permute.xlu0 6
        %3540 = vperm.xlu0 %3539, %v974
        %v3541 = vpop.permute.xlu0 %3540
        %3542 = vset.pattern.permute.xlu0 6
        %3543 = vperm.xlu0 %3542, %v975
        %v3544 = vpop.permute.xlu0 %3543
        %3545 = vset.pattern.permute.xlu0 6
        %3546 = vperm.xlu0 %3545, %v976
        %v3547 = vpop.permute.xlu0 %3546
        %3548 = vset.pattern.permute.xlu0 6
        %3549 = vperm.xlu0 %3548, %v977
        %v3550 = vpop.permute.xlu0 %3549
        %3551 = vset.pattern.permute.xlu0 6
        %3552 = vperm.xlu0 %3551, %v978
        %v3553 = vpop.permute.xlu0 %3552
        %3554 = vset.pattern.permute.xlu0 6
        %3555 = vperm.xlu0 %3554, %v979
        %v3556 = vpop.permute.xlu0 %3555
        %3557 = vset.pattern.permute.xlu0 6
        %3558 = vperm.xlu0 %3557, %v980
        %v3559 = vpop.permute.xlu0 %3558
        %3560 = vset.pattern.permute.xlu0 6
        %3561 = vperm.xlu0 %3560, %v981
        %v3562 = vpop.permute.xlu0 %3561
        %3563 = vset.pattern.permute.xlu0 6
        %3564 = vperm.xlu0 %3563, %v982
        %v3565 = vpop.permute.xlu0 %3564
        %3566 = vset.pattern.permute.xlu0 6
        %3567 = vperm.xlu0 %3566, %v983
        %v3568 = vpop.permute.xlu0 %3567
        %3569 = vset.pattern.permute.xlu0 6
        %3570 = vperm.xlu0 %3569, %v984
        %v3571 = vpop.permute.xlu0 %3570
        %3572 = vset.pattern.permute.xlu0 6
        %3573 = vperm.xlu0 %3572, %v985
        %v3574 = vpop.permute.xlu0 %3573
        %3575 = vset.pattern.permute.xlu0 6
        %3576 = vperm.xlu0 %3575, %v986
        %v3577 = vpop.permute.xlu0 %3576
        %3578 = vset.pattern.permute.xlu0 6
        %3579 = vperm.xlu0 %3578, %v987
        %v3580 = vpop.permute.xlu0 %3579
        %3581 = vset.pattern.permute.xlu0 6
        %3582 = vperm.xlu0 %3581, %v988
        %v3583 = vpop.permute.xlu0 %3582
        %3584 = vset.pattern.permute.xlu0 6
        %3585 = vperm.xlu0 %3584, %v989
        %v3586 = vpop.permute.xlu0 %3585
        %3587 = vset.pattern.permute.xlu0 6
        %3588 = vperm.xlu0 %3587, %v990
        %v3589 = vpop.permute.xlu0 %3588
        %3590 = vset.pattern.permute.xlu0 6
        %3591 = vperm.xlu0 %3590, %v991
        %v3592 = vpop.permute.xlu0 %3591
        %3593 = vset.pattern.permute.xlu0 6
        %3594 = vperm.xlu0 %3593, %v992
        %v3595 = vpop.permute.xlu0 %3594
        %3596 = vset.pattern.permute.xlu0 6
        %3597 = vperm.xlu0 %3596, %v993
        %v3598 = vpop.permute.xlu0 %3597
        %3599 = vset.pattern.permute.xlu0 6
        %3600 = vperm.xlu0 %3599, %v994
        %v3601 = vpop.permute.xlu0 %3600
        %3602 = vset.pattern.permute.xlu0 6
        %3603 = vperm.xlu0 %3602, %v995
        %v3604 = vpop.permute.xlu0 %3603
        %3605 = vset.pattern.permute.xlu0 6
        %3606 = vperm.xlu0 %3605, %v996
        %v3607 = vpop.permute.xlu0 %3606
        %3608 = vset.pattern.permute.xlu0 6
        %3609 = vperm.xlu0 %3608, %v997
        %v3610 = vpop.permute.xlu0 %3609
        %vm3611 = vcmp.eq.s32.totalorder %v3517, %v999
        %vm3612 = vcmp.eq.s32.totalorder %v3517, %v1000
        %vm3613 = vcmp.eq.s32.totalorder %v3517, %v1001
        %vm3614 = vcmp.eq.s32.totalorder %v3520, %v999
        %vm3615 = vcmp.eq.s32.totalorder %v3520, %v1000
        %vm3616 = vcmp.eq.s32.totalorder %v3520, %v1001
        %vm3617 = vcmp.eq.s32.totalorder %v3523, %v999
        %vm3618 = vcmp.eq.s32.totalorder %v3523, %v1000
        %vm3619 = vcmp.eq.s32.totalorder %v3523, %v1001
        %vm3620 = vcmp.eq.s32.totalorder %v3526, %v999
        %vm3621 = vcmp.eq.s32.totalorder %v3526, %v1000
        %vm3622 = vcmp.eq.s32.totalorder %v3526, %v1001
        %vm3623 = vcmp.eq.s32.totalorder %v3529, %v999
        %vm3624 = vcmp.eq.s32.totalorder %v3529, %v1000
        %vm3625 = vcmp.eq.s32.totalorder %v3529, %v1001
        %vm3626 = vcmp.eq.s32.totalorder %v3532, %v999
        %vm3627 = vcmp.eq.s32.totalorder %v3532, %v1000
        %vm3628 = vcmp.eq.s32.totalorder %v3532, %v1001
        %vm3629 = vcmp.eq.s32.totalorder %v3535, %v999
        %vm3630 = vcmp.eq.s32.totalorder %v3535, %v1000
        %vm3631 = vcmp.eq.s32.totalorder %v3535, %v1001
        %vm3632 = vcmp.eq.s32.totalorder %v3538, %v999
        %vm3633 = vcmp.eq.s32.totalorder %v3538, %v1000
        %vm3634 = vcmp.eq.s32.totalorder %v3538, %v1001
        %vm3635 = vcmp.eq.s32.totalorder %v3541, %v999
        %vm3636 = vcmp.eq.s32.totalorder %v3541, %v1000
        %vm3637 = vcmp.eq.s32.totalorder %v3541, %v1001
        %vm3638 = vcmp.eq.s32.totalorder %v3544, %v999
        %vm3639 = vcmp.eq.s32.totalorder %v3544, %v1000
        %vm3640 = vcmp.eq.s32.totalorder %v3544, %v1001
        %vm3641 = vcmp.eq.s32.totalorder %v3547, %v999
        %vm3642 = vcmp.eq.s32.totalorder %v3547, %v1000
        %vm3643 = vcmp.eq.s32.totalorder %v3547, %v1001
        %vm3644 = vcmp.eq.s32.totalorder %v3550, %v999
        %vm3645 = vcmp.eq.s32.totalorder %v3550, %v1000
        %vm3646 = vcmp.eq.s32.totalorder %v3550, %v1001
        %vm3647 = vcmp.eq.s32.totalorder %v3553, %v999
        %vm3648 = vcmp.eq.s32.totalorder %v3553, %v1000
        %vm3649 = vcmp.eq.s32.totalorder %v3553, %v1001
        %vm3650 = vcmp.eq.s32.totalorder %v3556, %v999
        %vm3651 = vcmp.eq.s32.totalorder %v3556, %v1000
        %vm3652 = vcmp.eq.s32.totalorder %v3556, %v1001
        %vm3653 = vcmp.eq.s32.totalorder %v3559, %v999
        %vm3654 = vcmp.eq.s32.totalorder %v3559, %v1000
        %vm3655 = vcmp.eq.s32.totalorder %v3559, %v1001
        %vm3656 = vcmp.eq.s32.totalorder %v3562, %v999
        %vm3657 = vcmp.eq.s32.totalorder %v3562, %v1000
        %vm3658 = vcmp.eq.s32.totalorder %v3562, %v1001
        %vm3659 = vcmp.eq.s32.totalorder %v3565, %v999
        %vm3660 = vcmp.eq.s32.totalorder %v3565, %v1000
        %vm3661 = vcmp.eq.s32.totalorder %v3565, %v1001
        %vm3662 = vcmp.eq.s32.totalorder %v3568, %v999
        %vm3663 = vcmp.eq.s32.totalorder %v3568, %v1000
        %vm3664 = vcmp.eq.s32.totalorder %v3568, %v1001
        %vm3665 = vcmp.eq.s32.totalorder %v3571, %v999
        %vm3666 = vcmp.eq.s32.totalorder %v3571, %v1000
        %vm3667 = vcmp.eq.s32.totalorder %v3571, %v1001
        %vm3668 = vcmp.eq.s32.totalorder %v3574, %v999
        %vm3669 = vcmp.eq.s32.totalorder %v3574, %v1000
        %vm3670 = vcmp.eq.s32.totalorder %v3574, %v1001
        %vm3671 = vcmp.eq.s32.totalorder %v3577, %v999
        %vm3672 = vcmp.eq.s32.totalorder %v3577, %v1000
        %vm3673 = vcmp.eq.s32.totalorder %v3577, %v1001
        %vm3674 = vcmp.eq.s32.totalorder %v3580, %v999
        %vm3675 = vcmp.eq.s32.totalorder %v3580, %v1000
        %vm3676 = vcmp.eq.s32.totalorder %v3580, %v1001
        %vm3677 = vcmp.eq.s32.totalorder %v3583, %v999
        %vm3678 = vcmp.eq.s32.totalorder %v3583, %v1000
        %vm3679 = vcmp.eq.s32.totalorder %v3583, %v1001
        %vm3680 = vcmp.eq.s32.totalorder %v3586, %v999
        %vm3681 = vcmp.eq.s32.totalorder %v3586, %v1000
        %vm3682 = vcmp.eq.s32.totalorder %v3586, %v1001
        %vm3683 = vcmp.eq.s32.totalorder %v3589, %v999
        %vm3684 = vcmp.eq.s32.totalorder %v3589, %v1000
        %vm3685 = vcmp.eq.s32.totalorder %v3589, %v1001
        %vm3686 = vcmp.eq.s32.totalorder %v3592, %v999
        %vm3687 = vcmp.eq.s32.totalorder %v3592, %v1000
        %vm3688 = vcmp.eq.s32.totalorder %v3592, %v1001
        %vm3689 = vcmp.eq.s32.totalorder %v3595, %v999
        %vm3690 = vcmp.eq.s32.totalorder %v3595, %v1000
        %vm3691 = vcmp.eq.s32.totalorder %v3595, %v1001
        %vm3692 = vcmp.eq.s32.totalorder %v3598, %v999
        %vm3693 = vcmp.eq.s32.totalorder %v3598, %v1000
        %vm3694 = vcmp.eq.s32.totalorder %v3598, %v1001
        %vm3695 = vcmp.eq.s32.totalorder %v3601, %v999
        %vm3696 = vcmp.eq.s32.totalorder %v3601, %v1000
        %vm3697 = vcmp.eq.s32.totalorder %v3601, %v1001
        %vm3698 = vcmp.eq.s32.totalorder %v3604, %v999
        %vm3699 = vcmp.eq.s32.totalorder %v3604, %v1000
        %vm3700 = vcmp.eq.s32.totalorder %v3604, %v1001
        %vm3701 = vcmp.eq.s32.totalorder %v3607, %v999
        %vm3702 = vcmp.eq.s32.totalorder %v3607, %v1000
        %vm3703 = vcmp.eq.s32.totalorder %v3607, %v1001
        %vm3704 = vcmp.eq.s32.totalorder %v3610, %v999
        %vm3705 = vcmp.eq.s32.totalorder %v3610, %v1000
        %vm3706 = vcmp.eq.s32.totalorder %v3610, %v1001
        %v3707 = vsel %vm3611, %v1007, 0.0
        %v3708 = vsel %vm3612, %v1011, 0.0
        %v3709 = vsel %vm3613, %v1015, 0.0
        %v3710 = vsel %vm3614, %v1007, 0.0
        %v3711 = vsel %vm3615, %v1011, 0.0
        %v3712 = vsel %vm3616, %v1015, 0.0
        %v3713 = vsel %vm3617, %v1007, 0.0
        %v3714 = vsel %vm3618, %v1011, 0.0
        %v3715 = vsel %vm3619, %v1015, 0.0
        %v3716 = vsel %vm3620, %v1007, 0.0
        %v3717 = vsel %vm3621, %v1011, 0.0
        %v3718 = vsel %vm3622, %v1015, 0.0
        %v3719 = vsel %vm3623, %v1007, 0.0
        %v3720 = vsel %vm3624, %v1011, 0.0
        %v3721 = vsel %vm3625, %v1015, 0.0
        %v3722 = vsel %vm3626, %v1007, 0.0
        %v3723 = vsel %vm3627, %v1011, 0.0
        %v3724 = vsel %vm3628, %v1015, 0.0
        %v3725 = vsel %vm3629, %v1007, 0.0
        %v3726 = vsel %vm3630, %v1011, 0.0
        %v3727 = vsel %vm3631, %v1015, 0.0
        %v3728 = vsel %vm3632, %v1007, 0.0
        %v3729 = vsel %vm3633, %v1011, 0.0
        %v3730 = vsel %vm3634, %v1015, 0.0
        %v3731 = vsel %vm3635, %v1007, 0.0
        %v3732 = vsel %vm3636, %v1011, 0.0
        %v3733 = vsel %vm3637, %v1015, 0.0
        %v3734 = vsel %vm3638, %v1007, 0.0
        %v3735 = vsel %vm3639, %v1011, 0.0
        %v3736 = vsel %vm3640, %v1015, 0.0
        %v3737 = vsel %vm3641, %v1007, 0.0
        %v3738 = vsel %vm3642, %v1011, 0.0
        %v3739 = vsel %vm3643, %v1015, 0.0
        %v3740 = vsel %vm3644, %v1007, 0.0
        %v3741 = vsel %vm3645, %v1011, 0.0
        %v3742 = vsel %vm3646, %v1015, 0.0
        %v3743 = vsel %vm3647, %v1007, 0.0
        %v3744 = vsel %vm3648, %v1011, 0.0
        %v3745 = vsel %vm3649, %v1015, 0.0
        %v3746 = vsel %vm3650, %v1007, 0.0
        %v3747 = vsel %vm3651, %v1011, 0.0
        %v3748 = vsel %vm3652, %v1015, 0.0
        %v3749 = vsel %vm3653, %v1007, 0.0
        %v3750 = vsel %vm3654, %v1011, 0.0
        %v3751 = vsel %vm3655, %v1015, 0.0
        %v3752 = vsel %vm3656, %v1007, 0.0
        %v3753 = vsel %vm3657, %v1011, 0.0
        %v3754 = vsel %vm3658, %v1015, 0.0
        %v3755 = vsel %vm3659, %v1007, 0.0
        %v3756 = vsel %vm3660, %v1011, 0.0
        %v3757 = vsel %vm3661, %v1015, 0.0
        %v3758 = vsel %vm3662, %v1007, 0.0
        %v3759 = vsel %vm3663, %v1011, 0.0
        %v3760 = vsel %vm3664, %v1015, 0.0
        %v3761 = vsel %vm3665, %v1007, 0.0
        %v3762 = vsel %vm3666, %v1011, 0.0
        %v3763 = vsel %vm3667, %v1015, 0.0
        %v3764 = vsel %vm3668, %v1007, 0.0
        %v3765 = vsel %vm3669, %v1011, 0.0
        %v3766 = vsel %vm3670, %v1015, 0.0
        %v3767 = vsel %vm3671, %v1007, 0.0
        %v3768 = vsel %vm3672, %v1011, 0.0
        %v3769 = vsel %vm3673, %v1015, 0.0
        %v3770 = vsel %vm3674, %v1007, 0.0
        %v3771 = vsel %vm3675, %v1011, 0.0
        %v3772 = vsel %vm3676, %v1015, 0.0
        %v3773 = vsel %vm3677, %v1007, 0.0
        %v3774 = vsel %vm3678, %v1011, 0.0
        %v3775 = vsel %vm3679, %v1015, 0.0
        %v3776 = vsel %vm3680, %v1007, 0.0
        %v3777 = vsel %vm3681, %v1011, 0.0
        %v3778 = vsel %vm3682, %v1015, 0.0
        %v3779 = vsel %vm3683, %v1007, 0.0
        %v3780 = vsel %vm3684, %v1011, 0.0
        %v3781 = vsel %vm3685, %v1015, 0.0
        %v3782 = vsel %vm3686, %v1007, 0.0
        %v3783 = vsel %vm3687, %v1011, 0.0
        %v3784 = vsel %vm3688, %v1015, 0.0
        %v3785 = vsel %vm3689, %v1007, 0.0
        %v3786 = vsel %vm3690, %v1011, 0.0
        %v3787 = vsel %vm3691, %v1015, 0.0
        %v3788 = vsel %vm3692, %v1007, 0.0
        %v3789 = vsel %vm3693, %v1011, 0.0
        %v3790 = vsel %vm3694, %v1015, 0.0
        %v3791 = vsel %vm3695, %v1007, 0.0
        %v3792 = vsel %vm3696, %v1011, 0.0
        %v3793 = vsel %vm3697, %v1015, 0.0
        %v3794 = vsel %vm3698, %v1007, 0.0
        %v3795 = vsel %vm3699, %v1011, 0.0
        %v3796 = vsel %vm3700, %v1015, 0.0
        %v3797 = vsel %vm3701, %v1007, 0.0
        %v3798 = vsel %vm3702, %v1011, 0.0
        %v3799 = vsel %vm3703, %v1015, 0.0
        %v3800 = vsel %vm3704, %v1007, 0.0
        %v3801 = vsel %vm3705, %v1011, 0.0
        %v3802 = vsel %vm3706, %v1015, 0.0
        %v3803 = vadd.f32 %v3707, %v3708
        %v3804 = vadd.f32 %v3803, %v3709
        %3805 = vadd.xlane.f32.xlu0 %v3804
        %v3806 = vpop.xlane.xlu0 %3805
        %v3807 = vadd.f32 %v3710, %v3711
        %v3808 = vadd.f32 %v3807, %v3712
        %3809 = vadd.xlane.f32.xlu0 %v3808
        %v3810 = vpop.xlane.xlu0 %3809
        %v3811 = vadd.f32 %v3713, %v3714
        %v3812 = vadd.f32 %v3811, %v3715
        %3813 = vadd.xlane.f32.xlu0 %v3812
        %v3814 = vpop.xlane.xlu0 %3813
        %v3815 = vadd.f32 %v3716, %v3717
        %v3816 = vadd.f32 %v3815, %v3718
        %3817 = vadd.xlane.f32.xlu0 %v3816
        %v3818 = vpop.xlane.xlu0 %3817
        %v3819 = vadd.f32 %v3719, %v3720
        %v3820 = vadd.f32 %v3819, %v3721
        %3821 = vadd.xlane.f32.xlu0 %v3820
        %v3822 = vpop.xlane.xlu0 %3821
        %v3823 = vadd.f32 %v3722, %v3723
        %v3824 = vadd.f32 %v3823, %v3724
        %3825 = vadd.xlane.f32.xlu0 %v3824
        %v3826 = vpop.xlane.xlu0 %3825
        %v3827 = vadd.f32 %v3725, %v3726
        %v3828 = vadd.f32 %v3827, %v3727
        %3829 = vadd.xlane.f32.xlu0 %v3828
        %v3830 = vpop.xlane.xlu0 %3829
        %v3831 = vadd.f32 %v3728, %v3729
        %v3832 = vadd.f32 %v3831, %v3730
        %3833 = vadd.xlane.f32.xlu0 %v3832
        %v3834 = vpop.xlane.xlu0 %3833
        %v3835 = vadd.f32 %v3731, %v3732
        %v3836 = vadd.f32 %v3835, %v3733
        %3837 = vadd.xlane.f32.xlu0 %v3836
        %v3838 = vpop.xlane.xlu0 %3837
        %v3839 = vadd.f32 %v3734, %v3735
        %v3840 = vadd.f32 %v3839, %v3736
        %3841 = vadd.xlane.f32.xlu0 %v3840
        %v3842 = vpop.xlane.xlu0 %3841
        %v3843 = vadd.f32 %v3737, %v3738
        %v3844 = vadd.f32 %v3843, %v3739
        %3845 = vadd.xlane.f32.xlu0 %v3844
        %v3846 = vpop.xlane.xlu0 %3845
        %v3847 = vadd.f32 %v3740, %v3741
        %v3848 = vadd.f32 %v3847, %v3742
        %3849 = vadd.xlane.f32.xlu0 %v3848
        %v3850 = vpop.xlane.xlu0 %3849
        %v3851 = vadd.f32 %v3743, %v3744
        %v3852 = vadd.f32 %v3851, %v3745
        %3853 = vadd.xlane.f32.xlu0 %v3852
        %v3854 = vpop.xlane.xlu0 %3853
        %v3855 = vadd.f32 %v3746, %v3747
        %v3856 = vadd.f32 %v3855, %v3748
        %3857 = vadd.xlane.f32.xlu0 %v3856
        %v3858 = vpop.xlane.xlu0 %3857
        %v3859 = vadd.f32 %v3749, %v3750
        %v3860 = vadd.f32 %v3859, %v3751
        %3861 = vadd.xlane.f32.xlu0 %v3860
        %v3862 = vpop.xlane.xlu0 %3861
        %v3863 = vadd.f32 %v3752, %v3753
        %v3864 = vadd.f32 %v3863, %v3754
        %3865 = vadd.xlane.f32.xlu0 %v3864
        %v3866 = vpop.xlane.xlu0 %3865
        %v3867 = vadd.f32 %v3755, %v3756
        %v3868 = vadd.f32 %v3867, %v3757
        %3869 = vadd.xlane.f32.xlu0 %v3868
        %v3870 = vpop.xlane.xlu0 %3869
        %v3871 = vadd.f32 %v3758, %v3759
        %v3872 = vadd.f32 %v3871, %v3760
        %3873 = vadd.xlane.f32.xlu0 %v3872
        %v3874 = vpop.xlane.xlu0 %3873
        %v3875 = vadd.f32 %v3761, %v3762
        %v3876 = vadd.f32 %v3875, %v3763
        %3877 = vadd.xlane.f32.xlu0 %v3876
        %v3878 = vpop.xlane.xlu0 %3877
        %v3879 = vadd.f32 %v3764, %v3765
        %v3880 = vadd.f32 %v3879, %v3766
        %3881 = vadd.xlane.f32.xlu0 %v3880
        %v3882 = vpop.xlane.xlu0 %3881
        %v3883 = vadd.f32 %v3767, %v3768
        %v3884 = vadd.f32 %v3883, %v3769
        %3885 = vadd.xlane.f32.xlu0 %v3884
        %v3886 = vpop.xlane.xlu0 %3885
        %v3887 = vadd.f32 %v3770, %v3771
        %v3888 = vadd.f32 %v3887, %v3772
        %3889 = vadd.xlane.f32.xlu0 %v3888
        %v3890 = vpop.xlane.xlu0 %3889
        %v3891 = vadd.f32 %v3773, %v3774
        %v3892 = vadd.f32 %v3891, %v3775
        %3893 = vadd.xlane.f32.xlu0 %v3892
        %v3894 = vpop.xlane.xlu0 %3893
        %v3895 = vadd.f32 %v3776, %v3777
        %v3896 = vadd.f32 %v3895, %v3778
        %3897 = vadd.xlane.f32.xlu0 %v3896
        %v3898 = vpop.xlane.xlu0 %3897
        %v3899 = vadd.f32 %v3779, %v3780
        %v3900 = vadd.f32 %v3899, %v3781
        %3901 = vadd.xlane.f32.xlu0 %v3900
        %v3902 = vpop.xlane.xlu0 %3901
        %v3903 = vadd.f32 %v3782, %v3783
        %v3904 = vadd.f32 %v3903, %v3784
        %3905 = vadd.xlane.f32.xlu0 %v3904
        %v3906 = vpop.xlane.xlu0 %3905
        %v3907 = vadd.f32 %v3785, %v3786
        %v3908 = vadd.f32 %v3907, %v3787
        %3909 = vadd.xlane.f32.xlu0 %v3908
        %v3910 = vpop.xlane.xlu0 %3909
        %v3911 = vadd.f32 %v3788, %v3789
        %v3912 = vadd.f32 %v3911, %v3790
        %3913 = vadd.xlane.f32.xlu0 %v3912
        %v3914 = vpop.xlane.xlu0 %3913
        %v3915 = vadd.f32 %v3791, %v3792
        %v3916 = vadd.f32 %v3915, %v3793
        %3917 = vadd.xlane.f32.xlu0 %v3916
        %v3918 = vpop.xlane.xlu0 %3917
        %v3919 = vadd.f32 %v3794, %v3795
        %v3920 = vadd.f32 %v3919, %v3796
        %3921 = vadd.xlane.f32.xlu0 %v3920
        %v3922 = vpop.xlane.xlu0 %3921
        %v3923 = vadd.f32 %v3797, %v3798
        %v3924 = vadd.f32 %v3923, %v3799
        %3925 = vadd.xlane.f32.xlu0 %v3924
        %v3926 = vpop.xlane.xlu0 %3925
        %v3927 = vadd.f32 %v3800, %v3801
        %v3928 = vadd.f32 %v3927, %v3802
        %3929 = vadd.xlane.f32.xlu0 %v3928
        %v3930 = vpop.xlane.xlu0 %3929
        %3931 = vset.pattern.permute.xlu0 7
        %3932 = vperm.xlu0 %3931, %v966
        %v3933 = vpop.permute.xlu0 %3932
        %3934 = vset.pattern.permute.xlu0 7
        %3935 = vperm.xlu0 %3934, %v967
        %v3936 = vpop.permute.xlu0 %3935
        %3937 = vset.pattern.permute.xlu0 7
        %3938 = vperm.xlu0 %3937, %v968
        %v3939 = vpop.permute.xlu0 %3938
        %3940 = vset.pattern.permute.xlu0 7
        %3941 = vperm.xlu0 %3940, %v969
        %v3942 = vpop.permute.xlu0 %3941
        %3943 = vset.pattern.permute.xlu0 7
        %3944 = vperm.xlu0 %3943, %v970
        %v3945 = vpop.permute.xlu0 %3944
        %3946 = vset.pattern.permute.xlu0 7
        %3947 = vperm.xlu0 %3946, %v971
        %v3948 = vpop.permute.xlu0 %3947
        %3949 = vset.pattern.permute.xlu0 7
        %3950 = vperm.xlu0 %3949, %v972
        %v3951 = vpop.permute.xlu0 %3950
        %3952 = vset.pattern.permute.xlu0 7
        %3953 = vperm.xlu0 %3952, %v973
        %v3954 = vpop.permute.xlu0 %3953
        %3955 = vset.pattern.permute.xlu0 7
        %3956 = vperm.xlu0 %3955, %v974
        %v3957 = vpop.permute.xlu0 %3956
        %3958 = vset.pattern.permute.xlu0 7
        %3959 = vperm.xlu0 %3958, %v975
        %v3960 = vpop.permute.xlu0 %3959
        %3961 = vset.pattern.permute.xlu0 7
        %3962 = vperm.xlu0 %3961, %v976
        %v3963 = vpop.permute.xlu0 %3962
        %3964 = vset.pattern.permute.xlu0 7
        %3965 = vperm.xlu0 %3964, %v977
        %v3966 = vpop.permute.xlu0 %3965
        %3967 = vset.pattern.permute.xlu0 7
        %3968 = vperm.xlu0 %3967, %v978
        %v3969 = vpop.permute.xlu0 %3968
        %3970 = vset.pattern.permute.xlu0 7
        %3971 = vperm.xlu0 %3970, %v979
        %v3972 = vpop.permute.xlu0 %3971
        %3973 = vset.pattern.permute.xlu0 7
        %3974 = vperm.xlu0 %3973, %v980
        %v3975 = vpop.permute.xlu0 %3974
        %3976 = vset.pattern.permute.xlu0 7
        %3977 = vperm.xlu0 %3976, %v981
        %v3978 = vpop.permute.xlu0 %3977
        %3979 = vset.pattern.permute.xlu0 7
        %3980 = vperm.xlu0 %3979, %v982
        %v3981 = vpop.permute.xlu0 %3980
        %3982 = vset.pattern.permute.xlu0 7
        %3983 = vperm.xlu0 %3982, %v983
        %v3984 = vpop.permute.xlu0 %3983
        %3985 = vset.pattern.permute.xlu0 7
        %3986 = vperm.xlu0 %3985, %v984
        %v3987 = vpop.permute.xlu0 %3986
        %3988 = vset.pattern.permute.xlu0 7
        %3989 = vperm.xlu0 %3988, %v985
        %v3990 = vpop.permute.xlu0 %3989
        %3991 = vset.pattern.permute.xlu0 7
        %3992 = vperm.xlu0 %3991, %v986
        %v3993 = vpop.permute.xlu0 %3992
        %3994 = vset.pattern.permute.xlu0 7
        %3995 = vperm.xlu0 %3994, %v987
        %v3996 = vpop.permute.xlu0 %3995
        %3997 = vset.pattern.permute.xlu0 7
        %3998 = vperm.xlu0 %3997, %v988
        %v3999 = vpop.permute.xlu0 %3998
        %4000 = vset.pattern.permute.xlu0 7
        %4001 = vperm.xlu0 %4000, %v989
        %v4002 = vpop.permute.xlu0 %4001
        %4003 = vset.pattern.permute.xlu0 7
        %4004 = vperm.xlu0 %4003, %v990
        %v4005 = vpop.permute.xlu0 %4004
        %4006 = vset.pattern.permute.xlu0 7
        %4007 = vperm.xlu0 %4006, %v991
        %v4008 = vpop.permute.xlu0 %4007
        %4009 = vset.pattern.permute.xlu0 7
        %4010 = vperm.xlu0 %4009, %v992
        %v4011 = vpop.permute.xlu0 %4010
        %4012 = vset.pattern.permute.xlu0 7
        %4013 = vperm.xlu0 %4012, %v993
        %v4014 = vpop.permute.xlu0 %4013
        %4015 = vset.pattern.permute.xlu0 7
        %4016 = vperm.xlu0 %4015, %v994
        %v4017 = vpop.permute.xlu0 %4016
        %4018 = vset.pattern.permute.xlu0 7
        %4019 = vperm.xlu0 %4018, %v995
        %v4020 = vpop.permute.xlu0 %4019
        %4021 = vset.pattern.permute.xlu0 7
        %4022 = vperm.xlu0 %4021, %v996
        %v4023 = vpop.permute.xlu0 %4022
        %4024 = vset.pattern.permute.xlu0 7
        %4025 = vperm.xlu0 %4024, %v997
        %v4026 = vpop.permute.xlu0 %4025
        %vm4027 = vcmp.eq.s32.totalorder %v3933, %v999
        %vm4028 = vcmp.eq.s32.totalorder %v3933, %v1000
        %vm4029 = vcmp.eq.s32.totalorder %v3933, %v1001
        %vm4030 = vcmp.eq.s32.totalorder %v3936, %v999
        %vm4031 = vcmp.eq.s32.totalorder %v3936, %v1000
        %vm4032 = vcmp.eq.s32.totalorder %v3936, %v1001
        %vm4033 = vcmp.eq.s32.totalorder %v3939, %v999
        %vm4034 = vcmp.eq.s32.totalorder %v3939, %v1000
        %vm4035 = vcmp.eq.s32.totalorder %v3939, %v1001
        %vm4036 = vcmp.eq.s32.totalorder %v3942, %v999
        %vm4037 = vcmp.eq.s32.totalorder %v3942, %v1000
        %vm4038 = vcmp.eq.s32.totalorder %v3942, %v1001
        %vm4039 = vcmp.eq.s32.totalorder %v3945, %v999
        %vm4040 = vcmp.eq.s32.totalorder %v3945, %v1000
        %vm4041 = vcmp.eq.s32.totalorder %v3945, %v1001
        %vm4042 = vcmp.eq.s32.totalorder %v3948, %v999
        %vm4043 = vcmp.eq.s32.totalorder %v3948, %v1000
        %vm4044 = vcmp.eq.s32.totalorder %v3948, %v1001
        %vm4045 = vcmp.eq.s32.totalorder %v3951, %v999
        %vm4046 = vcmp.eq.s32.totalorder %v3951, %v1000
        %vm4047 = vcmp.eq.s32.totalorder %v3951, %v1001
        %vm4048 = vcmp.eq.s32.totalorder %v3954, %v999
        %vm4049 = vcmp.eq.s32.totalorder %v3954, %v1000
        %vm4050 = vcmp.eq.s32.totalorder %v3954, %v1001
        %vm4051 = vcmp.eq.s32.totalorder %v3957, %v999
        %vm4052 = vcmp.eq.s32.totalorder %v3957, %v1000
        %vm4053 = vcmp.eq.s32.totalorder %v3957, %v1001
        %vm4054 = vcmp.eq.s32.totalorder %v3960, %v999
        %vm4055 = vcmp.eq.s32.totalorder %v3960, %v1000
        %vm4056 = vcmp.eq.s32.totalorder %v3960, %v1001
        %vm4057 = vcmp.eq.s32.totalorder %v3963, %v999
        %vm4058 = vcmp.eq.s32.totalorder %v3963, %v1000
        %vm4059 = vcmp.eq.s32.totalorder %v3963, %v1001
        %vm4060 = vcmp.eq.s32.totalorder %v3966, %v999
        %vm4061 = vcmp.eq.s32.totalorder %v3966, %v1000
        %vm4062 = vcmp.eq.s32.totalorder %v3966, %v1001
        %vm4063 = vcmp.eq.s32.totalorder %v3969, %v999
        %vm4064 = vcmp.eq.s32.totalorder %v3969, %v1000
        %vm4065 = vcmp.eq.s32.totalorder %v3969, %v1001
        %vm4066 = vcmp.eq.s32.totalorder %v3972, %v999
        %vm4067 = vcmp.eq.s32.totalorder %v3972, %v1000
        %vm4068 = vcmp.eq.s32.totalorder %v3972, %v1001
        %vm4069 = vcmp.eq.s32.totalorder %v3975, %v999
        %vm4070 = vcmp.eq.s32.totalorder %v3975, %v1000
        %vm4071 = vcmp.eq.s32.totalorder %v3975, %v1001
        %vm4072 = vcmp.eq.s32.totalorder %v3978, %v999
        %vm4073 = vcmp.eq.s32.totalorder %v3978, %v1000
        %vm4074 = vcmp.eq.s32.totalorder %v3978, %v1001
        %vm4075 = vcmp.eq.s32.totalorder %v3981, %v999
        %vm4076 = vcmp.eq.s32.totalorder %v3981, %v1000
        %vm4077 = vcmp.eq.s32.totalorder %v3981, %v1001
        %vm4078 = vcmp.eq.s32.totalorder %v3984, %v999
        %vm4079 = vcmp.eq.s32.totalorder %v3984, %v1000
        %vm4080 = vcmp.eq.s32.totalorder %v3984, %v1001
        %vm4081 = vcmp.eq.s32.totalorder %v3987, %v999
        %vm4082 = vcmp.eq.s32.totalorder %v3987, %v1000
        %vm4083 = vcmp.eq.s32.totalorder %v3987, %v1001
        %vm4084 = vcmp.eq.s32.totalorder %v3990, %v999
        %vm4085 = vcmp.eq.s32.totalorder %v3990, %v1000
        %vm4086 = vcmp.eq.s32.totalorder %v3990, %v1001
        %vm4087 = vcmp.eq.s32.totalorder %v3993, %v999
        %vm4088 = vcmp.eq.s32.totalorder %v3993, %v1000
        %vm4089 = vcmp.eq.s32.totalorder %v3993, %v1001
        %vm4090 = vcmp.eq.s32.totalorder %v3996, %v999
        %vm4091 = vcmp.eq.s32.totalorder %v3996, %v1000
        %vm4092 = vcmp.eq.s32.totalorder %v3996, %v1001
        %vm4093 = vcmp.eq.s32.totalorder %v3999, %v999
        %vm4094 = vcmp.eq.s32.totalorder %v3999, %v1000
        %vm4095 = vcmp.eq.s32.totalorder %v3999, %v1001
        %vm4096 = vcmp.eq.s32.totalorder %v4002, %v999
        %vm4097 = vcmp.eq.s32.totalorder %v4002, %v1000
        %vm4098 = vcmp.eq.s32.totalorder %v4002, %v1001
        %vm4099 = vcmp.eq.s32.totalorder %v4005, %v999
        %vm4100 = vcmp.eq.s32.totalorder %v4005, %v1000
        %vm4101 = vcmp.eq.s32.totalorder %v4005, %v1001
        %vm4102 = vcmp.eq.s32.totalorder %v4008, %v999
        %vm4103 = vcmp.eq.s32.totalorder %v4008, %v1000
        %vm4104 = vcmp.eq.s32.totalorder %v4008, %v1001
        %vm4105 = vcmp.eq.s32.totalorder %v4011, %v999
        %vm4106 = vcmp.eq.s32.totalorder %v4011, %v1000
        %vm4107 = vcmp.eq.s32.totalorder %v4011, %v1001
        %vm4108 = vcmp.eq.s32.totalorder %v4014, %v999
        %vm4109 = vcmp.eq.s32.totalorder %v4014, %v1000
        %vm4110 = vcmp.eq.s32.totalorder %v4014, %v1001
        %vm4111 = vcmp.eq.s32.totalorder %v4017, %v999
        %vm4112 = vcmp.eq.s32.totalorder %v4017, %v1000
        %vm4113 = vcmp.eq.s32.totalorder %v4017, %v1001
        %vm4114 = vcmp.eq.s32.totalorder %v4020, %v999
        %vm4115 = vcmp.eq.s32.totalorder %v4020, %v1000
        %vm4116 = vcmp.eq.s32.totalorder %v4020, %v1001
        %vm4117 = vcmp.eq.s32.totalorder %v4023, %v999
        %vm4118 = vcmp.eq.s32.totalorder %v4023, %v1000
        %vm4119 = vcmp.eq.s32.totalorder %v4023, %v1001
        %vm4120 = vcmp.eq.s32.totalorder %v4026, %v999
        %vm4121 = vcmp.eq.s32.totalorder %v4026, %v1000
        %vm4122 = vcmp.eq.s32.totalorder %v4026, %v1001
        %v4123 = vsel %vm4027, %v1007, 0.0
        %v4124 = vsel %vm4028, %v1011, 0.0
        %v4125 = vsel %vm4029, %v1015, 0.0
        %v4126 = vsel %vm4030, %v1007, 0.0
        %v4127 = vsel %vm4031, %v1011, 0.0
        %v4128 = vsel %vm4032, %v1015, 0.0
        %v4129 = vsel %vm4033, %v1007, 0.0
        %v4130 = vsel %vm4034, %v1011, 0.0
        %v4131 = vsel %vm4035, %v1015, 0.0
        %v4132 = vsel %vm4036, %v1007, 0.0
        %v4133 = vsel %vm4037, %v1011, 0.0
        %v4134 = vsel %vm4038, %v1015, 0.0
        %v4135 = vsel %vm4039, %v1007, 0.0
        %v4136 = vsel %vm4040, %v1011, 0.0
        %v4137 = vsel %vm4041, %v1015, 0.0
        %v4138 = vsel %vm4042, %v1007, 0.0
        %v4139 = vsel %vm4043, %v1011, 0.0
        %v4140 = vsel %vm4044, %v1015, 0.0
        %v4141 = vsel %vm4045, %v1007, 0.0
        %v4142 = vsel %vm4046, %v1011, 0.0
        %v4143 = vsel %vm4047, %v1015, 0.0
        %v4144 = vsel %vm4048, %v1007, 0.0
        %v4145 = vsel %vm4049, %v1011, 0.0
        %v4146 = vsel %vm4050, %v1015, 0.0
        %v4147 = vsel %vm4051, %v1007, 0.0
        %v4148 = vsel %vm4052, %v1011, 0.0
        %v4149 = vsel %vm4053, %v1015, 0.0
        %v4150 = vsel %vm4054, %v1007, 0.0
        %v4151 = vsel %vm4055, %v1011, 0.0
        %v4152 = vsel %vm4056, %v1015, 0.0
        %v4153 = vsel %vm4057, %v1007, 0.0
        %v4154 = vsel %vm4058, %v1011, 0.0
        %v4155 = vsel %vm4059, %v1015, 0.0
        %v4156 = vsel %vm4060, %v1007, 0.0
        %v4157 = vsel %vm4061, %v1011, 0.0
        %v4158 = vsel %vm4062, %v1015, 0.0
        %v4159 = vsel %vm4063, %v1007, 0.0
        %v4160 = vsel %vm4064, %v1011, 0.0
        %v4161 = vsel %vm4065, %v1015, 0.0
        %v4162 = vsel %vm4066, %v1007, 0.0
        %v4163 = vsel %vm4067, %v1011, 0.0
        %v4164 = vsel %vm4068, %v1015, 0.0
        %v4165 = vsel %vm4069, %v1007, 0.0
        %v4166 = vsel %vm4070, %v1011, 0.0
        %v4167 = vsel %vm4071, %v1015, 0.0
        %v4168 = vsel %vm4072, %v1007, 0.0
        %v4169 = vsel %vm4073, %v1011, 0.0
        %v4170 = vsel %vm4074, %v1015, 0.0
        %v4171 = vsel %vm4075, %v1007, 0.0
        %v4172 = vsel %vm4076, %v1011, 0.0
        %v4173 = vsel %vm4077, %v1015, 0.0
        %v4174 = vsel %vm4078, %v1007, 0.0
        %v4175 = vsel %vm4079, %v1011, 0.0
        %v4176 = vsel %vm4080, %v1015, 0.0
        %v4177 = vsel %vm4081, %v1007, 0.0
        %v4178 = vsel %vm4082, %v1011, 0.0
        %v4179 = vsel %vm4083, %v1015, 0.0
        %v4180 = vsel %vm4084, %v1007, 0.0
        %v4181 = vsel %vm4085, %v1011, 0.0
        %v4182 = vsel %vm4086, %v1015, 0.0
        %v4183 = vsel %vm4087, %v1007, 0.0
        %v4184 = vsel %vm4088, %v1011, 0.0
        %v4185 = vsel %vm4089, %v1015, 0.0
        %v4186 = vsel %vm4090, %v1007, 0.0
        %v4187 = vsel %vm4091, %v1011, 0.0
        %v4188 = vsel %vm4092, %v1015, 0.0
        %v4189 = vsel %vm4093, %v1007, 0.0
        %v4190 = vsel %vm4094, %v1011, 0.0
        %v4191 = vsel %vm4095, %v1015, 0.0
        %v4192 = vsel %vm4096, %v1007, 0.0
        %v4193 = vsel %vm4097, %v1011, 0.0
        %v4194 = vsel %vm4098, %v1015, 0.0
        %v4195 = vsel %vm4099, %v1007, 0.0
        %v4196 = vsel %vm4100, %v1011, 0.0
        %v4197 = vsel %vm4101, %v1015, 0.0
        %v4198 = vsel %vm4102, %v1007, 0.0
        %v4199 = vsel %vm4103, %v1011, 0.0
        %v4200 = vsel %vm4104, %v1015, 0.0
        %v4201 = vsel %vm4105, %v1007, 0.0
        %v4202 = vsel %vm4106, %v1011, 0.0
        %v4203 = vsel %vm4107, %v1015, 0.0
        %v4204 = vsel %vm4108, %v1007, 0.0
        %v4205 = vsel %vm4109, %v1011, 0.0
        %v4206 = vsel %vm4110, %v1015, 0.0
        %v4207 = vsel %vm4111, %v1007, 0.0
        %v4208 = vsel %vm4112, %v1011, 0.0
        %v4209 = vsel %vm4113, %v1015, 0.0
        %v4210 = vsel %vm4114, %v1007, 0.0
        %v4211 = vsel %vm4115, %v1011, 0.0
        %v4212 = vsel %vm4116, %v1015, 0.0
        %v4213 = vsel %vm4117, %v1007, 0.0
        %v4214 = vsel %vm4118, %v1011, 0.0
        %v4215 = vsel %vm4119, %v1015, 0.0
        %v4216 = vsel %vm4120, %v1007, 0.0
        %v4217 = vsel %vm4121, %v1011, 0.0
        %v4218 = vsel %vm4122, %v1015, 0.0
        %v4219 = vadd.f32 %v4123, %v4124
        %v4220 = vadd.f32 %v4219, %v4125
        %4221 = vadd.xlane.f32.xlu0 %v4220
        %v4222 = vpop.xlane.xlu0 %4221
        %v4223 = vadd.f32 %v4126, %v4127
        %v4224 = vadd.f32 %v4223, %v4128
        %4225 = vadd.xlane.f32.xlu0 %v4224
        %v4226 = vpop.xlane.xlu0 %4225
        %v4227 = vadd.f32 %v4129, %v4130
        %v4228 = vadd.f32 %v4227, %v4131
        %4229 = vadd.xlane.f32.xlu0 %v4228
        %v4230 = vpop.xlane.xlu0 %4229
        %v4231 = vadd.f32 %v4132, %v4133
        %v4232 = vadd.f32 %v4231, %v4134
        %4233 = vadd.xlane.f32.xlu0 %v4232
        %v4234 = vpop.xlane.xlu0 %4233
        %v4235 = vadd.f32 %v4135, %v4136
        %v4236 = vadd.f32 %v4235, %v4137
        %4237 = vadd.xlane.f32.xlu0 %v4236
        %v4238 = vpop.xlane.xlu0 %4237
        %v4239 = vadd.f32 %v4138, %v4139
        %v4240 = vadd.f32 %v4239, %v4140
        %4241 = vadd.xlane.f32.xlu0 %v4240
        %v4242 = vpop.xlane.xlu0 %4241
        %v4243 = vadd.f32 %v4141, %v4142
        %v4244 = vadd.f32 %v4243, %v4143
        %4245 = vadd.xlane.f32.xlu0 %v4244
        %v4246 = vpop.xlane.xlu0 %4245
        %v4247 = vadd.f32 %v4144, %v4145
        %v4248 = vadd.f32 %v4247, %v4146
        %4249 = vadd.xlane.f32.xlu0 %v4248
        %v4250 = vpop.xlane.xlu0 %4249
        %v4251 = vadd.f32 %v4147, %v4148
        %v4252 = vadd.f32 %v4251, %v4149
        %4253 = vadd.xlane.f32.xlu0 %v4252
        %v4254 = vpop.xlane.xlu0 %4253
        %v4255 = vadd.f32 %v4150, %v4151
        %v4256 = vadd.f32 %v4255, %v4152
        %4257 = vadd.xlane.f32.xlu0 %v4256
        %v4258 = vpop.xlane.xlu0 %4257
        %v4259 = vadd.f32 %v4153, %v4154
        %v4260 = vadd.f32 %v4259, %v4155
        %4261 = vadd.xlane.f32.xlu0 %v4260
        %v4262 = vpop.xlane.xlu0 %4261
        %v4263 = vadd.f32 %v4156, %v4157
        %v4264 = vadd.f32 %v4263, %v4158
        %4265 = vadd.xlane.f32.xlu0 %v4264
        %v4266 = vpop.xlane.xlu0 %4265
        %v4267 = vadd.f32 %v4159, %v4160
        %v4268 = vadd.f32 %v4267, %v4161
        %4269 = vadd.xlane.f32.xlu0 %v4268
        %v4270 = vpop.xlane.xlu0 %4269
        %v4271 = vadd.f32 %v4162, %v4163
        %v4272 = vadd.f32 %v4271, %v4164
        %4273 = vadd.xlane.f32.xlu0 %v4272
        %v4274 = vpop.xlane.xlu0 %4273
        %v4275 = vadd.f32 %v4165, %v4166
        %v4276 = vadd.f32 %v4275, %v4167
        %4277 = vadd.xlane.f32.xlu0 %v4276
        %v4278 = vpop.xlane.xlu0 %4277
        %v4279 = vadd.f32 %v4168, %v4169
        %v4280 = vadd.f32 %v4279, %v4170
        %4281 = vadd.xlane.f32.xlu0 %v4280
        %v4282 = vpop.xlane.xlu0 %4281
        %v4283 = vadd.f32 %v4171, %v4172
        %v4284 = vadd.f32 %v4283, %v4173
        %4285 = vadd.xlane.f32.xlu0 %v4284
        %v4286 = vpop.xlane.xlu0 %4285
        %v4287 = vadd.f32 %v4174, %v4175
        %v4288 = vadd.f32 %v4287, %v4176
        %4289 = vadd.xlane.f32.xlu0 %v4288
        %v4290 = vpop.xlane.xlu0 %4289
        %v4291 = vadd.f32 %v4177, %v4178
        %v4292 = vadd.f32 %v4291, %v4179
        %4293 = vadd.xlane.f32.xlu0 %v4292
        %v4294 = vpop.xlane.xlu0 %4293
        %v4295 = vadd.f32 %v4180, %v4181
        %v4296 = vadd.f32 %v4295, %v4182
        %4297 = vadd.xlane.f32.xlu0 %v4296
        %v4298 = vpop.xlane.xlu0 %4297
        %v4299 = vadd.f32 %v4183, %v4184
        %v4300 = vadd.f32 %v4299, %v4185
        %4301 = vadd.xlane.f32.xlu0 %v4300
        %v4302 = vpop.xlane.xlu0 %4301
        %v4303 = vadd.f32 %v4186, %v4187
        %v4304 = vadd.f32 %v4303, %v4188
        %4305 = vadd.xlane.f32.xlu0 %v4304
        %v4306 = vpop.xlane.xlu0 %4305
        %v4307 = vadd.f32 %v4189, %v4190
        %v4308 = vadd.f32 %v4307, %v4191
        %4309 = vadd.xlane.f32.xlu0 %v4308
        %v4310 = vpop.xlane.xlu0 %4309
        %v4311 = vadd.f32 %v4192, %v4193
        %v4312 = vadd.f32 %v4311, %v4194
        %4313 = vadd.xlane.f32.xlu0 %v4312
        %v4314 = vpop.xlane.xlu0 %4313
        %v4315 = vadd.f32 %v4195, %v4196
        %v4316 = vadd.f32 %v4315, %v4197
        %4317 = vadd.xlane.f32.xlu0 %v4316
        %v4318 = vpop.xlane.xlu0 %4317
        %v4319 = vadd.f32 %v4198, %v4199
        %v4320 = vadd.f32 %v4319, %v4200
        %4321 = vadd.xlane.f32.xlu0 %v4320
        %v4322 = vpop.xlane.xlu0 %4321
        %v4323 = vadd.f32 %v4201, %v4202
        %v4324 = vadd.f32 %v4323, %v4203
        %4325 = vadd.xlane.f32.xlu0 %v4324
        %v4326 = vpop.xlane.xlu0 %4325
        %v4327 = vadd.f32 %v4204, %v4205
        %v4328 = vadd.f32 %v4327, %v4206
        %4329 = vadd.xlane.f32.xlu0 %v4328
        %v4330 = vpop.xlane.xlu0 %4329
        %v4331 = vadd.f32 %v4207, %v4208
        %v4332 = vadd.f32 %v4331, %v4209
        %4333 = vadd.xlane.f32.xlu0 %v4332
        %v4334 = vpop.xlane.xlu0 %4333
        %v4335 = vadd.f32 %v4210, %v4211
        %v4336 = vadd.f32 %v4335, %v4212
        %4337 = vadd.xlane.f32.xlu0 %v4336
        %v4338 = vpop.xlane.xlu0 %4337
        %v4339 = vadd.f32 %v4213, %v4214
        %v4340 = vadd.f32 %v4339, %v4215
        %4341 = vadd.xlane.f32.xlu0 %v4340
        %v4342 = vpop.xlane.xlu0 %4341
        %v4343 = vadd.f32 %v4216, %v4217
        %v4344 = vadd.f32 %v4343, %v4218
        %4345 = vadd.xlane.f32.xlu0 %v4344
        %v4346 = vpop.xlane.xlu0 %4345
        %v4347 = vmax.f32 %v1310, %v1726
        %v4348 = vmax.f32 %v1314, %v1730
        %v4349 = vmax.f32 %v1318, %v1734
        %v4350 = vmax.f32 %v1322, %v1738
        %v4351 = vmax.f32 %v1326, %v1742
        %v4352 = vmax.f32 %v1330, %v1746
        %v4353 = vmax.f32 %v1334, %v1750
        %v4354 = vmax.f32 %v1338, %v1754
        %v4355 = vmax.f32 %v1342, %v1758
        %v4356 = vmax.f32 %v1346, %v1762
        %v4357 = vmax.f32 %v1350, %v1766
        %v4358 = vmax.f32 %v1354, %v1770
        %v4359 = vmax.f32 %v1358, %v1774
        %v4360 = vmax.f32 %v1362, %v1778
        %v4361 = vmax.f32 %v1366, %v1782
        %v4362 = vmax.f32 %v1370, %v1786
        %v4363 = vmax.f32 %v1374, %v1790
        %v4364 = vmax.f32 %v1378, %v1794
        %v4365 = vmax.f32 %v1382, %v1798
        %v4366 = vmax.f32 %v1386, %v1802
        %v4367 = vmax.f32 %v1390, %v1806
        %v4368 = vmax.f32 %v1394, %v1810
        %v4369 = vmax.f32 %v1398, %v1814
        %v4370 = vmax.f32 %v1402, %v1818
        %v4371 = vmax.f32 %v1406, %v1822
        %v4372 = vmax.f32 %v1410, %v1826
        %v4373 = vmax.f32 %v1414, %v1830
        %v4374 = vmax.f32 %v1418, %v1834
        %v4375 = vmax.f32 %v1422, %v1838
        %v4376 = vmax.f32 %v1426, %v1842
        %v4377 = vmax.f32 %v1430, %v1846
        %v4378 = vmax.f32 %v1434, %v1850
        %v4379 = vmax.f32 %v4347, %v2142
        %v4380 = vmax.f32 %v4348, %v2146
        %v4381 = vmax.f32 %v4349, %v2150
        %v4382 = vmax.f32 %v4350, %v2154
        %v4383 = vmax.f32 %v4351, %v2158
        %v4384 = vmax.f32 %v4352, %v2162
        %v4385 = vmax.f32 %v4353, %v2166
        %v4386 = vmax.f32 %v4354, %v2170
        %v4387 = vmax.f32 %v4355, %v2174
        %v4388 = vmax.f32 %v4356, %v2178
        %v4389 = vmax.f32 %v4357, %v2182
        %v4390 = vmax.f32 %v4358, %v2186
        %v4391 = vmax.f32 %v4359, %v2190
        %v4392 = vmax.f32 %v4360, %v2194
        %v4393 = vmax.f32 %v4361, %v2198
        %v4394 = vmax.f32 %v4362, %v2202
        %v4395 = vmax.f32 %v4363, %v2206
        %v4396 = vmax.f32 %v4364, %v2210
        %v4397 = vmax.f32 %v4365, %v2214
        %v4398 = vmax.f32 %v4366, %v2218
        %v4399 = vmax.f32 %v4367, %v2222
        %v4400 = vmax.f32 %v4368, %v2226
        %v4401 = vmax.f32 %v4369, %v2230
        %v4402 = vmax.f32 %v4370, %v2234
        %v4403 = vmax.f32 %v4371, %v2238
        %v4404 = vmax.f32 %v4372, %v2242
        %v4405 = vmax.f32 %v4373, %v2246
        %v4406 = vmax.f32 %v4374, %v2250
        %v4407 = vmax.f32 %v4375, %v2254
        %v4408 = vmax.f32 %v4376, %v2258
        %v4409 = vmax.f32 %v4377, %v2262
        %v4410 = vmax.f32 %v4378, %v2266
        %v4411 = vmax.f32 %v4379, %v2558
        %v4412 = vmax.f32 %v4380, %v2562
        %v4413 = vmax.f32 %v4381, %v2566
        %v4414 = vmax.f32 %v4382, %v2570
        %v4415 = vmax.f32 %v4383, %v2574
        %v4416 = vmax.f32 %v4384, %v2578
        %v4417 = vmax.f32 %v4385, %v2582
        %v4418 = vmax.f32 %v4386, %v2586
        %v4419 = vmax.f32 %v4387, %v2590
        %v4420 = vmax.f32 %v4388, %v2594
        %v4421 = vmax.f32 %v4389, %v2598
        %v4422 = vmax.f32 %v4390, %v2602
        %v4423 = vmax.f32 %v4391, %v2606
        %v4424 = vmax.f32 %v4392, %v2610
        %v4425 = vmax.f32 %v4393, %v2614
        %v4426 = vmax.f32 %v4394, %v2618
        %v4427 = vmax.f32 %v4395, %v2622
        %v4428 = vmax.f32 %v4396, %v2626
        %v4429 = vmax.f32 %v4397, %v2630
        %v4430 = vmax.f32 %v4398, %v2634
        %v4431 = vmax.f32 %v4399, %v2638
        %v4432 = vmax.f32 %v4400, %v2642
        %v4433 = vmax.f32 %v4401, %v2646
        %v4434 = vmax.f32 %v4402, %v2650
        %v4435 = vmax.f32 %v4403, %v2654
        %v4436 = vmax.f32 %v4404, %v2658
        %v4437 = vmax.f32 %v4405, %v2662
        %v4438 = vmax.f32 %v4406, %v2666
        %v4439 = vmax.f32 %v4407, %v2670
        %v4440 = vmax.f32 %v4408, %v2674
        %v4441 = vmax.f32 %v4409, %v2678
        %v4442 = vmax.f32 %v4410, %v2682
        %v4443 = vmax.f32 %v4411, %v2974
        %v4444 = vmax.f32 %v4412, %v2978
        %v4445 = vmax.f32 %v4413, %v2982
        %v4446 = vmax.f32 %v4414, %v2986
        %v4447 = vmax.f32 %v4415, %v2990
        %v4448 = vmax.f32 %v4416, %v2994
        %v4449 = vmax.f32 %v4417, %v2998
        %v4450 = vmax.f32 %v4418, %v3002
        %v4451 = vmax.f32 %v4419, %v3006
        %v4452 = vmax.f32 %v4420, %v3010
        %v4453 = vmax.f32 %v4421, %v3014
        %v4454 = vmax.f32 %v4422, %v3018
        %v4455 = vmax.f32 %v4423, %v3022
        %v4456 = vmax.f32 %v4424, %v3026
        %v4457 = vmax.f32 %v4425, %v3030
        %v4458 = vmax.f32 %v4426, %v3034
        %v4459 = vmax.f32 %v4427, %v3038
        %v4460 = vmax.f32 %v4428, %v3042
        %v4461 = vmax.f32 %v4429, %v3046
        %v4462 = vmax.f32 %v4430, %v3050
        %v4463 = vmax.f32 %v4431, %v3054
        %v4464 = vmax.f32 %v4432, %v3058
        %v4465 = vmax.f32 %v4433, %v3062
        %v4466 = vmax.f32 %v4434, %v3066
        %v4467 = vmax.f32 %v4435, %v3070
        %v4468 = vmax.f32 %v4436, %v3074
        %v4469 = vmax.f32 %v4437, %v3078
        %v4470 = vmax.f32 %v4438, %v3082
        %v4471 = vmax.f32 %v4439, %v3086
        %v4472 = vmax.f32 %v4440, %v3090
        %v4473 = vmax.f32 %v4441, %v3094
        %v4474 = vmax.f32 %v4442, %v3098
        %v4475 = vmax.f32 %v4443, %v3390
        %v4476 = vmax.f32 %v4444, %v3394
        %v4477 = vmax.f32 %v4445, %v3398
        %v4478 = vmax.f32 %v4446, %v3402
        %v4479 = vmax.f32 %v4447, %v3406
        %v4480 = vmax.f32 %v4448, %v3410
        %v4481 = vmax.f32 %v4449, %v3414
        %v4482 = vmax.f32 %v4450, %v3418
        %v4483 = vmax.f32 %v4451, %v3422
        %v4484 = vmax.f32 %v4452, %v3426
        %v4485 = vmax.f32 %v4453, %v3430
        %v4486 = vmax.f32 %v4454, %v3434
        %v4487 = vmax.f32 %v4455, %v3438
        %v4488 = vmax.f32 %v4456, %v3442
        %v4489 = vmax.f32 %v4457, %v3446
        %v4490 = vmax.f32 %v4458, %v3450
        %v4491 = vmax.f32 %v4459, %v3454
        %v4492 = vmax.f32 %v4460, %v3458
        %v4493 = vmax.f32 %v4461, %v3462
        %v4494 = vmax.f32 %v4462, %v3466
        %v4495 = vmax.f32 %v4463, %v3470
        %v4496 = vmax.f32 %v4464, %v3474
        %v4497 = vmax.f32 %v4465, %v3478
        %v4498 = vmax.f32 %v4466, %v3482
        %v4499 = vmax.f32 %v4467, %v3486
        %v4500 = vmax.f32 %v4468, %v3490
        %v4501 = vmax.f32 %v4469, %v3494
        %v4502 = vmax.f32 %v4470, %v3498
        %v4503 = vmax.f32 %v4471, %v3502
        %v4504 = vmax.f32 %v4472, %v3506
        %v4505 = vmax.f32 %v4473, %v3510
        %v4506 = vmax.f32 %v4474, %v3514
        %v4507 = vmax.f32 %v4475, %v3806
        %v4508 = vmax.f32 %v4476, %v3810
        %v4509 = vmax.f32 %v4477, %v3814
        %v4510 = vmax.f32 %v4478, %v3818
        %v4511 = vmax.f32 %v4479, %v3822
        %v4512 = vmax.f32 %v4480, %v3826
        %v4513 = vmax.f32 %v4481, %v3830
        %v4514 = vmax.f32 %v4482, %v3834
        %v4515 = vmax.f32 %v4483, %v3838
        %v4516 = vmax.f32 %v4484, %v3842
        %v4517 = vmax.f32 %v4485, %v3846
        %v4518 = vmax.f32 %v4486, %v3850
        %v4519 = vmax.f32 %v4487, %v3854
        %v4520 = vmax.f32 %v4488, %v3858
        %v4521 = vmax.f32 %v4489, %v3862
        %v4522 = vmax.f32 %v4490, %v3866
        %v4523 = vmax.f32 %v4491, %v3870
        %v4524 = vmax.f32 %v4492, %v3874
        %v4525 = vmax.f32 %v4493, %v3878
        %v4526 = vmax.f32 %v4494, %v3882
        %v4527 = vmax.f32 %v4495, %v3886
        %v4528 = vmax.f32 %v4496, %v3890
        %v4529 = vmax.f32 %v4497, %v3894
        %v4530 = vmax.f32 %v4498, %v3898
        %v4531 = vmax.f32 %v4499, %v3902
        %v4532 = vmax.f32 %v4500, %v3906
        %v4533 = vmax.f32 %v4501, %v3910
        %v4534 = vmax.f32 %v4502, %v3914
        %v4535 = vmax.f32 %v4503, %v3918
        %v4536 = vmax.f32 %v4504, %v3922
        %v4537 = vmax.f32 %v4505, %v3926
        %v4538 = vmax.f32 %v4506, %v3930
        %v4539 = vmax.f32 %v4507, %v4222
        %v4540 = vmax.f32 %v4508, %v4226
        %v4541 = vmax.f32 %v4509, %v4230
        %v4542 = vmax.f32 %v4510, %v4234
        %v4543 = vmax.f32 %v4511, %v4238
        %v4544 = vmax.f32 %v4512, %v4242
        %v4545 = vmax.f32 %v4513, %v4246
        %v4546 = vmax.f32 %v4514, %v4250
        %v4547 = vmax.f32 %v4515, %v4254
        %v4548 = vmax.f32 %v4516, %v4258
        %v4549 = vmax.f32 %v4517, %v4262
        %v4550 = vmax.f32 %v4518, %v4266
        %v4551 = vmax.f32 %v4519, %v4270
        %v4552 = vmax.f32 %v4520, %v4274
        %v4553 = vmax.f32 %v4521, %v4278
        %v4554 = vmax.f32 %v4522, %v4282
        %v4555 = vmax.f32 %v4523, %v4286
        %v4556 = vmax.f32 %v4524, %v4290
        %v4557 = vmax.f32 %v4525, %v4294
        %v4558 = vmax.f32 %v4526, %v4298
        %v4559 = vmax.f32 %v4527, %v4302
        %v4560 = vmax.f32 %v4528, %v4306
        %v4561 = vmax.f32 %v4529, %v4310
        %v4562 = vmax.f32 %v4530, %v4314
        %v4563 = vmax.f32 %v4531, %v4318
        %v4564 = vmax.f32 %v4532, %v4322
        %v4565 = vmax.f32 %v4533, %v4326
        %v4566 = vmax.f32 %v4534, %v4330
        %v4567 = vmax.f32 %v4535, %v4334
        %v4568 = vmax.f32 %v4536, %v4338
        %v4569 = vmax.f32 %v4537, %v4342
        %v4570 = vmax.f32 %v4538, %v4346
        %v4571 = vsub.f32 %v1310, %v4539
        %v4572 = vsub.f32 %v1314, %v4540
        %v4573 = vsub.f32 %v1318, %v4541
        %v4574 = vsub.f32 %v1322, %v4542
        %v4575 = vsub.f32 %v1326, %v4543
        %v4576 = vsub.f32 %v1330, %v4544
        %v4577 = vsub.f32 %v1334, %v4545
        %v4578 = vsub.f32 %v1338, %v4546
        %v4579 = vsub.f32 %v1342, %v4547
        %v4580 = vsub.f32 %v1346, %v4548
        %v4581 = vsub.f32 %v1350, %v4549
        %v4582 = vsub.f32 %v1354, %v4550
        %v4583 = vsub.f32 %v1358, %v4551
        %v4584 = vsub.f32 %v1362, %v4552
        %v4585 = vsub.f32 %v1366, %v4553
        %v4586 = vsub.f32 %v1370, %v4554
        %v4587 = vsub.f32 %v1374, %v4555
        %v4588 = vsub.f32 %v1378, %v4556
        %v4589 = vsub.f32 %v1382, %v4557
        %v4590 = vsub.f32 %v1386, %v4558
        %v4591 = vsub.f32 %v1390, %v4559
        %v4592 = vsub.f32 %v1394, %v4560
        %v4593 = vsub.f32 %v1398, %v4561
        %v4594 = vsub.f32 %v1402, %v4562
        %v4595 = vsub.f32 %v1406, %v4563
        %v4596 = vsub.f32 %v1410, %v4564
        %v4597 = vsub.f32 %v1414, %v4565
        %v4598 = vsub.f32 %v1418, %v4566
        %v4599 = vsub.f32 %v1422, %v4567
        %v4600 = vsub.f32 %v1426, %v4568
        %v4601 = vsub.f32 %v1430, %v4569
        %v4602 = vsub.f32 %v1434, %v4570
        %v4603 = vmul.f32 %v4571, 1.442695
        %v4604 = vpow.pop %v4603
        %v4605 = vmul.f32 %v4572, 1.442695
        %v4606 = vpow.pop %v4605
        %v4607 = vmul.f32 %v4573, 1.442695
        %v4608 = vpow.pop %v4607
        %v4609 = vmul.f32 %v4574, 1.442695
        %v4610 = vpow.pop %v4609
        %v4611 = vmul.f32 %v4575, 1.442695
        %v4612 = vpow.pop %v4611
        %v4613 = vmul.f32 %v4576, 1.442695
        %v4614 = vpow.pop %v4613
        %v4615 = vmul.f32 %v4577, 1.442695
        %v4616 = vpow.pop %v4615
        %v4617 = vmul.f32 %v4578, 1.442695
        %v4618 = vpow.pop %v4617
        %v4619 = vmul.f32 %v4579, 1.442695
        %v4620 = vpow.pop %v4619
        %v4621 = vmul.f32 %v4580, 1.442695
        %v4622 = vpow.pop %v4621
        %v4623 = vmul.f32 %v4581, 1.442695
        %v4624 = vpow.pop %v4623
        %v4625 = vmul.f32 %v4582, 1.442695
        %v4626 = vpow.pop %v4625
        %v4627 = vmul.f32 %v4583, 1.442695
        %v4628 = vpow.pop %v4627
        %v4629 = vmul.f32 %v4584, 1.442695
        %v4630 = vpow.pop %v4629
        %v4631 = vmul.f32 %v4585, 1.442695
        %v4632 = vpow.pop %v4631
        %v4633 = vmul.f32 %v4586, 1.442695
        %v4634 = vpow.pop %v4633
        %v4635 = vmul.f32 %v4587, 1.442695
        %v4636 = vpow.pop %v4635
        %v4637 = vmul.f32 %v4588, 1.442695
        %v4638 = vpow.pop %v4637
        %v4639 = vmul.f32 %v4589, 1.442695
        %v4640 = vpow.pop %v4639
        %v4641 = vmul.f32 %v4590, 1.442695
        %v4642 = vpow.pop %v4641
        %v4643 = vmul.f32 %v4591, 1.442695
        %v4644 = vpow.pop %v4643
        %v4645 = vmul.f32 %v4592, 1.442695
        %v4646 = vpow.pop %v4645
        %v4647 = vmul.f32 %v4593, 1.442695
        %v4648 = vpow.pop %v4647
        %v4649 = vmul.f32 %v4594, 1.442695
        %v4650 = vpow.pop %v4649
        %v4651 = vmul.f32 %v4595, 1.442695
        %v4652 = vpow.pop %v4651
        %v4653 = vmul.f32 %v4596, 1.442695
        %v4654 = vpow.pop %v4653
        %v4655 = vmul.f32 %v4597, 1.442695
        %v4656 = vpow.pop %v4655
        %v4657 = vmul.f32 %v4598, 1.442695
        %v4658 = vpow.pop %v4657
        %v4659 = vmul.f32 %v4599, 1.442695
        %v4660 = vpow.pop %v4659
        %v4661 = vmul.f32 %v4600, 1.442695
        %v4662 = vpow.pop %v4661
        %v4663 = vmul.f32 %v4601, 1.442695
        %v4664 = vpow.pop %v4663
        %v4665 = vmul.f32 %v4602, 1.442695
        %v4666 = vpow.pop %v4665
        %v4667 = vsub.f32 %v1726, %v4539
        %v4668 = vsub.f32 %v1730, %v4540
        %v4669 = vsub.f32 %v1734, %v4541
        %v4670 = vsub.f32 %v1738, %v4542
        %v4671 = vsub.f32 %v1742, %v4543
        %v4672 = vsub.f32 %v1746, %v4544
        %v4673 = vsub.f32 %v1750, %v4545
        %v4674 = vsub.f32 %v1754, %v4546
        %v4675 = vsub.f32 %v1758, %v4547
        %v4676 = vsub.f32 %v1762, %v4548
        %v4677 = vsub.f32 %v1766, %v4549
        %v4678 = vsub.f32 %v1770, %v4550
        %v4679 = vsub.f32 %v1774, %v4551
        %v4680 = vsub.f32 %v1778, %v4552
        %v4681 = vsub.f32 %v1782, %v4553
        %v4682 = vsub.f32 %v1786, %v4554
        %v4683 = vsub.f32 %v1790, %v4555
        %v4684 = vsub.f32 %v1794, %v4556
        %v4685 = vsub.f32 %v1798, %v4557
        %v4686 = vsub.f32 %v1802, %v4558
        %v4687 = vsub.f32 %v1806, %v4559
        %v4688 = vsub.f32 %v1810, %v4560
        %v4689 = vsub.f32 %v1814, %v4561
        %v4690 = vsub.f32 %v1818, %v4562
        %v4691 = vsub.f32 %v1822, %v4563
        %v4692 = vsub.f32 %v1826, %v4564
        %v4693 = vsub.f32 %v1830, %v4565
        %v4694 = vsub.f32 %v1834, %v4566
        %v4695 = vsub.f32 %v1838, %v4567
        %v4696 = vsub.f32 %v1842, %v4568
        %v4697 = vsub.f32 %v1846, %v4569
        %v4698 = vsub.f32 %v1850, %v4570
        %v4699 = vmul.f32 %v4667, 1.442695
        %v4700 = vpow.pop %v4699
        %v4701 = vmul.f32 %v4668, 1.442695
        %v4702 = vpow.pop %v4701
        %v4703 = vmul.f32 %v4669, 1.442695
        %v4704 = vpow.pop %v4703
        %v4705 = vmul.f32 %v4670, 1.442695
        %v4706 = vpow.pop %v4705
        %v4707 = vmul.f32 %v4671, 1.442695
        %v4708 = vpow.pop %v4707
        %v4709 = vmul.f32 %v4672, 1.442695
        %v4710 = vpow.pop %v4709
        %v4711 = vmul.f32 %v4673, 1.442695
        %v4712 = vpow.pop %v4711
        %v4713 = vmul.f32 %v4674, 1.442695
        %v4714 = vpow.pop %v4713
        %v4715 = vmul.f32 %v4675, 1.442695
        %v4716 = vpow.pop %v4715
        %v4717 = vmul.f32 %v4676, 1.442695
        %v4718 = vpow.pop %v4717
        %v4719 = vmul.f32 %v4677, 1.442695
        %v4720 = vpow.pop %v4719
        %v4721 = vmul.f32 %v4678, 1.442695
        %v4722 = vpow.pop %v4721
        %v4723 = vmul.f32 %v4679, 1.442695
        %v4724 = vpow.pop %v4723
        %v4725 = vmul.f32 %v4680, 1.442695
        %v4726 = vpow.pop %v4725
        %v4727 = vmul.f32 %v4681, 1.442695
        %v4728 = vpow.pop %v4727
        %v4729 = vmul.f32 %v4682, 1.442695
        %v4730 = vpow.pop %v4729
        %v4731 = vmul.f32 %v4683, 1.442695
        %v4732 = vpow.pop %v4731
        %v4733 = vmul.f32 %v4684, 1.442695
        %v4734 = vpow.pop %v4733
        %v4735 = vmul.f32 %v4685, 1.442695
        %v4736 = vpow.pop %v4735
        %v4737 = vmul.f32 %v4686, 1.442695
        %v4738 = vpow.pop %v4737
        %v4739 = vmul.f32 %v4687, 1.442695
        %v4740 = vpow.pop %v4739
        %v4741 = vmul.f32 %v4688, 1.442695
        %v4742 = vpow.pop %v4741
        %v4743 = vmul.f32 %v4689, 1.442695
        %v4744 = vpow.pop %v4743
        %v4745 = vmul.f32 %v4690, 1.442695
        %v4746 = vpow.pop %v4745
        %v4747 = vmul.f32 %v4691, 1.442695
        %v4748 = vpow.pop %v4747
        %v4749 = vmul.f32 %v4692, 1.442695
        %v4750 = vpow.pop %v4749
        %v4751 = vmul.f32 %v4693, 1.442695
        %v4752 = vpow.pop %v4751
        %v4753 = vmul.f32 %v4694, 1.442695
        %v4754 = vpow.pop %v4753
        %v4755 = vmul.f32 %v4695, 1.442695
        %v4756 = vpow.pop %v4755
        %v4757 = vmul.f32 %v4696, 1.442695
        %v4758 = vpow.pop %v4757
        %v4759 = vmul.f32 %v4697, 1.442695
        %v4760 = vpow.pop %v4759
        %v4761 = vmul.f32 %v4698, 1.442695
        %v4762 = vpow.pop %v4761
        %v4763 = vsub.f32 %v2142, %v4539
        %v4764 = vsub.f32 %v2146, %v4540
        %v4765 = vsub.f32 %v2150, %v4541
        %v4766 = vsub.f32 %v2154, %v4542
        %v4767 = vsub.f32 %v2158, %v4543
        %v4768 = vsub.f32 %v2162, %v4544
        %v4769 = vsub.f32 %v2166, %v4545
        %v4770 = vsub.f32 %v2170, %v4546
        %v4771 = vsub.f32 %v2174, %v4547
        %v4772 = vsub.f32 %v2178, %v4548
        %v4773 = vsub.f32 %v2182, %v4549
        %v4774 = vsub.f32 %v2186, %v4550
        %v4775 = vsub.f32 %v2190, %v4551
        %v4776 = vsub.f32 %v2194, %v4552
        %v4777 = vsub.f32 %v2198, %v4553
        %v4778 = vsub.f32 %v2202, %v4554
        %v4779 = vsub.f32 %v2206, %v4555
        %v4780 = vsub.f32 %v2210, %v4556
        %v4781 = vsub.f32 %v2214, %v4557
        %v4782 = vsub.f32 %v2218, %v4558
        %v4783 = vsub.f32 %v2222, %v4559
        %v4784 = vsub.f32 %v2226, %v4560
        %v4785 = vsub.f32 %v2230, %v4561
        %v4786 = vsub.f32 %v2234, %v4562
        %v4787 = vsub.f32 %v2238, %v4563
        %v4788 = vsub.f32 %v2242, %v4564
        %v4789 = vsub.f32 %v2246, %v4565
        %v4790 = vsub.f32 %v2250, %v4566
        %v4791 = vsub.f32 %v2254, %v4567
        %v4792 = vsub.f32 %v2258, %v4568
        %v4793 = vsub.f32 %v2262, %v4569
        %v4794 = vsub.f32 %v2266, %v4570
        %v4795 = vmul.f32 %v4763, 1.442695
        %v4796 = vpow.pop %v4795
        %v4797 = vmul.f32 %v4764, 1.442695
        %v4798 = vpow.pop %v4797
        %v4799 = vmul.f32 %v4765, 1.442695
        %v4800 = vpow.pop %v4799
        %v4801 = vmul.f32 %v4766, 1.442695
        %v4802 = vpow.pop %v4801
        %v4803 = vmul.f32 %v4767, 1.442695
        %v4804 = vpow.pop %v4803
        %v4805 = vmul.f32 %v4768, 1.442695
        %v4806 = vpow.pop %v4805
        %v4807 = vmul.f32 %v4769, 1.442695
        %v4808 = vpow.pop %v4807
        %v4809 = vmul.f32 %v4770, 1.442695
        %v4810 = vpow.pop %v4809
        %v4811 = vmul.f32 %v4771, 1.442695
        %v4812 = vpow.pop %v4811
        %v4813 = vmul.f32 %v4772, 1.442695
        %v4814 = vpow.pop %v4813
        %v4815 = vmul.f32 %v4773, 1.442695
        %v4816 = vpow.pop %v4815
        %v4817 = vmul.f32 %v4774, 1.442695
        %v4818 = vpow.pop %v4817
        %v4819 = vmul.f32 %v4775, 1.442695
        %v4820 = vpow.pop %v4819
        %v4821 = vmul.f32 %v4776, 1.442695
        %v4822 = vpow.pop %v4821
        %v4823 = vmul.f32 %v4777, 1.442695
        %v4824 = vpow.pop %v4823
        %v4825 = vmul.f32 %v4778, 1.442695
        %v4826 = vpow.pop %v4825
        %v4827 = vmul.f32 %v4779, 1.442695
        %v4828 = vpow.pop %v4827
        %v4829 = vmul.f32 %v4780, 1.442695
        %v4830 = vpow.pop %v4829
        %v4831 = vmul.f32 %v4781, 1.442695
        %v4832 = vpow.pop %v4831
        %v4833 = vmul.f32 %v4782, 1.442695
        %v4834 = vpow.pop %v4833
        %v4835 = vmul.f32 %v4783, 1.442695
        %v4836 = vpow.pop %v4835
        %v4837 = vmul.f32 %v4784, 1.442695
        %v4838 = vpow.pop %v4837
        %v4839 = vmul.f32 %v4785, 1.442695
        %v4840 = vpow.pop %v4839
        %v4841 = vmul.f32 %v4786, 1.442695
        %v4842 = vpow.pop %v4841
        %v4843 = vmul.f32 %v4787, 1.442695
        %v4844 = vpow.pop %v4843
        %v4845 = vmul.f32 %v4788, 1.442695
        %v4846 = vpow.pop %v4845
        %v4847 = vmul.f32 %v4789, 1.442695
        %v4848 = vpow.pop %v4847
        %v4849 = vmul.f32 %v4790, 1.442695
        %v4850 = vpow.pop %v4849
        %v4851 = vmul.f32 %v4791, 1.442695
        %v4852 = vpow.pop %v4851
        %v4853 = vmul.f32 %v4792, 1.442695
        %v4854 = vpow.pop %v4853
        %v4855 = vmul.f32 %v4793, 1.442695
        %v4856 = vpow.pop %v4855
        %v4857 = vmul.f32 %v4794, 1.442695
        %v4858 = vpow.pop %v4857
        %v4859 = vsub.f32 %v2558, %v4539
        %v4860 = vsub.f32 %v2562, %v4540
        %v4861 = vsub.f32 %v2566, %v4541
        %v4862 = vsub.f32 %v2570, %v4542
        %v4863 = vsub.f32 %v2574, %v4543
        %v4864 = vsub.f32 %v2578, %v4544
        %v4865 = vsub.f32 %v2582, %v4545
        %v4866 = vsub.f32 %v2586, %v4546
        %v4867 = vsub.f32 %v2590, %v4547
        %v4868 = vsub.f32 %v2594, %v4548
        %v4869 = vsub.f32 %v2598, %v4549
        %v4870 = vsub.f32 %v2602, %v4550
        %v4871 = vsub.f32 %v2606, %v4551
        %v4872 = vsub.f32 %v2610, %v4552
        %v4873 = vsub.f32 %v2614, %v4553
        %v4874 = vsub.f32 %v2618, %v4554
        %v4875 = vsub.f32 %v2622, %v4555
        %v4876 = vsub.f32 %v2626, %v4556
        %v4877 = vsub.f32 %v2630, %v4557
        %v4878 = vsub.f32 %v2634, %v4558
        %v4879 = vsub.f32 %v2638, %v4559
        %v4880 = vsub.f32 %v2642, %v4560
        %v4881 = vsub.f32 %v2646, %v4561
        %v4882 = vsub.f32 %v2650, %v4562
        %v4883 = vsub.f32 %v2654, %v4563
        %v4884 = vsub.f32 %v2658, %v4564
        %v4885 = vsub.f32 %v2662, %v4565
        %v4886 = vsub.f32 %v2666, %v4566
        %v4887 = vsub.f32 %v2670, %v4567
        %v4888 = vsub.f32 %v2674, %v4568
        %v4889 = vsub.f32 %v2678, %v4569
        %v4890 = vsub.f32 %v2682, %v4570
        %v4891 = vmul.f32 %v4859, 1.442695
        %v4892 = vpow.pop %v4891
        %v4893 = vmul.f32 %v4860, 1.442695
        %v4894 = vpow.pop %v4893
        %v4895 = vmul.f32 %v4861, 1.442695
        %v4896 = vpow.pop %v4895
        %v4897 = vmul.f32 %v4862, 1.442695
        %v4898 = vpow.pop %v4897
        %v4899 = vmul.f32 %v4863, 1.442695
        %v4900 = vpow.pop %v4899
        %v4901 = vmul.f32 %v4864, 1.442695
        %v4902 = vpow.pop %v4901
        %v4903 = vmul.f32 %v4865, 1.442695
        %v4904 = vpow.pop %v4903
        %v4905 = vmul.f32 %v4866, 1.442695
        %v4906 = vpow.pop %v4905
        %v4907 = vmul.f32 %v4867, 1.442695
        %v4908 = vpow.pop %v4907
        %v4909 = vmul.f32 %v4868, 1.442695
        %v4910 = vpow.pop %v4909
        %v4911 = vmul.f32 %v4869, 1.442695
        %v4912 = vpow.pop %v4911
        %v4913 = vmul.f32 %v4870, 1.442695
        %v4914 = vpow.pop %v4913
        %v4915 = vmul.f32 %v4871, 1.442695
        %v4916 = vpow.pop %v4915
        %v4917 = vmul.f32 %v4872, 1.442695
        %v4918 = vpow.pop %v4917
        %v4919 = vmul.f32 %v4873, 1.442695
        %v4920 = vpow.pop %v4919
        %v4921 = vmul.f32 %v4874, 1.442695
        %v4922 = vpow.pop %v4921
        %v4923 = vmul.f32 %v4875, 1.442695
        %v4924 = vpow.pop %v4923
        %v4925 = vmul.f32 %v4876, 1.442695
        %v4926 = vpow.pop %v4925
        %v4927 = vmul.f32 %v4877, 1.442695
        %v4928 = vpow.pop %v4927
        %v4929 = vmul.f32 %v4878, 1.442695
        %v4930 = vpow.pop %v4929
        %v4931 = vmul.f32 %v4879, 1.442695
        %v4932 = vpow.pop %v4931
        %v4933 = vmul.f32 %v4880, 1.442695
        %v4934 = vpow.pop %v4933
        %v4935 = vmul.f32 %v4881, 1.442695
        %v4936 = vpow.pop %v4935
        %v4937 = vmul.f32 %v4882, 1.442695
        %v4938 = vpow.pop %v4937
        %v4939 = vmul.f32 %v4883, 1.442695
        %v4940 = vpow.pop %v4939
        %v4941 = vmul.f32 %v4884, 1.442695
        %v4942 = vpow.pop %v4941
        %v4943 = vmul.f32 %v4885, 1.442695
        %v4944 = vpow.pop %v4943
        %v4945 = vmul.f32 %v4886, 1.442695
        %v4946 = vpow.pop %v4945
        %v4947 = vmul.f32 %v4887, 1.442695
        %v4948 = vpow.pop %v4947
        %v4949 = vmul.f32 %v4888, 1.442695
        %v4950 = vpow.pop %v4949
        %v4951 = vmul.f32 %v4889, 1.442695
        %v4952 = vpow.pop %v4951
        %v4953 = vmul.f32 %v4890, 1.442695
        %v4954 = vpow.pop %v4953
        %v4955 = vsub.f32 %v2974, %v4539
        %v4956 = vsub.f32 %v2978, %v4540
        %v4957 = vsub.f32 %v2982, %v4541
        %v4958 = vsub.f32 %v2986, %v4542
        %v4959 = vsub.f32 %v2990, %v4543
        %v4960 = vsub.f32 %v2994, %v4544
        %v4961 = vsub.f32 %v2998, %v4545
        %v4962 = vsub.f32 %v3002, %v4546
        %v4963 = vsub.f32 %v3006, %v4547
        %v4964 = vsub.f32 %v3010, %v4548
        %v4965 = vsub.f32 %v3014, %v4549
        %v4966 = vsub.f32 %v3018, %v4550
        %v4967 = vsub.f32 %v3022, %v4551
        %v4968 = vsub.f32 %v3026, %v4552
        %v4969 = vsub.f32 %v3030, %v4553
        %v4970 = vsub.f32 %v3034, %v4554
        %v4971 = vsub.f32 %v3038, %v4555
        %v4972 = vsub.f32 %v3042, %v4556
        %v4973 = vsub.f32 %v3046, %v4557
        %v4974 = vsub.f32 %v3050, %v4558
        %v4975 = vsub.f32 %v3054, %v4559
        %v4976 = vsub.f32 %v3058, %v4560
        %v4977 = vsub.f32 %v3062, %v4561
        %v4978 = vsub.f32 %v3066, %v4562
        %v4979 = vsub.f32 %v3070, %v4563
        %v4980 = vsub.f32 %v3074, %v4564
        %v4981 = vsub.f32 %v3078, %v4565
        %v4982 = vsub.f32 %v3082, %v4566
        %v4983 = vsub.f32 %v3086, %v4567
        %v4984 = vsub.f32 %v3090, %v4568
        %v4985 = vsub.f32 %v3094, %v4569
        %v4986 = vsub.f32 %v3098, %v4570
        %v4987 = vmul.f32 %v4955, 1.442695
        %v4988 = vpow.pop %v4987
        %v4989 = vmul.f32 %v4956, 1.442695
        %v4990 = vpow.pop %v4989
        %v4991 = vmul.f32 %v4957, 1.442695
        %v4992 = vpow.pop %v4991
        %v4993 = vmul.f32 %v4958, 1.442695
        %v4994 = vpow.pop %v4993
        %v4995 = vmul.f32 %v4959, 1.442695
        %v4996 = vpow.pop %v4995
        %v4997 = vmul.f32 %v4960, 1.442695
        %v4998 = vpow.pop %v4997
        %v4999 = vmul.f32 %v4961, 1.442695
        %v5000 = vpow.pop %v4999
        %v5001 = vmul.f32 %v4962, 1.442695
        %v5002 = vpow.pop %v5001
        %v5003 = vmul.f32 %v4963, 1.442695
        %v5004 = vpow.pop %v5003
        %v5005 = vmul.f32 %v4964, 1.442695
        %v5006 = vpow.pop %v5005
        %v5007 = vmul.f32 %v4965, 1.442695
        %v5008 = vpow.pop %v5007
        %v5009 = vmul.f32 %v4966, 1.442695
        %v5010 = vpow.pop %v5009
        %v5011 = vmul.f32 %v4967, 1.442695
        %v5012 = vpow.pop %v5011
        %v5013 = vmul.f32 %v4968, 1.442695
        %v5014 = vpow.pop %v5013
        %v5015 = vmul.f32 %v4969, 1.442695
        %v5016 = vpow.pop %v5015
        %v5017 = vmul.f32 %v4970, 1.442695
        %v5018 = vpow.pop %v5017
        %v5019 = vmul.f32 %v4971, 1.442695
        %v5020 = vpow.pop %v5019
        %v5021 = vmul.f32 %v4972, 1.442695
        %v5022 = vpow.pop %v5021
        %v5023 = vmul.f32 %v4973, 1.442695
        %v5024 = vpow.pop %v5023
        %v5025 = vmul.f32 %v4974, 1.442695
        %v5026 = vpow.pop %v5025
        %v5027 = vmul.f32 %v4975, 1.442695
        %v5028 = vpow.pop %v5027
        %v5029 = vmul.f32 %v4976, 1.442695
        %v5030 = vpow.pop %v5029
        %v5031 = vmul.f32 %v4977, 1.442695
        %v5032 = vpow.pop %v5031
        %v5033 = vmul.f32 %v4978, 1.442695
        %v5034 = vpow.pop %v5033
        %v5035 = vmul.f32 %v4979, 1.442695
        %v5036 = vpow.pop %v5035
        %v5037 = vmul.f32 %v4980, 1.442695
        %v5038 = vpow.pop %v5037
        %v5039 = vmul.f32 %v4981, 1.442695
        %v5040 = vpow.pop %v5039
        %v5041 = vmul.f32 %v4982, 1.442695
        %v5042 = vpow.pop %v5041
        %v5043 = vmul.f32 %v4983, 1.442695
        %v5044 = vpow.pop %v5043
        %v5045 = vmul.f32 %v4984, 1.442695
        %v5046 = vpow.pop %v5045
        %v5047 = vmul.f32 %v4985, 1.442695
        %v5048 = vpow.pop %v5047
        %v5049 = vmul.f32 %v4986, 1.442695
        %v5050 = vpow.pop %v5049
        %v5051 = vsub.f32 %v3390, %v4539
        %v5052 = vsub.f32 %v3394, %v4540
        %v5053 = vsub.f32 %v3398, %v4541
        %v5054 = vsub.f32 %v3402, %v4542
        %v5055 = vsub.f32 %v3406, %v4543
        %v5056 = vsub.f32 %v3410, %v4544
        %v5057 = vsub.f32 %v3414, %v4545
        %v5058 = vsub.f32 %v3418, %v4546
        %v5059 = vsub.f32 %v3422, %v4547
        %v5060 = vsub.f32 %v3426, %v4548
        %v5061 = vsub.f32 %v3430, %v4549
        %v5062 = vsub.f32 %v3434, %v4550
        %v5063 = vsub.f32 %v3438, %v4551
        %v5064 = vsub.f32 %v3442, %v4552
        %v5065 = vsub.f32 %v3446, %v4553
        %v5066 = vsub.f32 %v3450, %v4554
        %v5067 = vsub.f32 %v3454, %v4555
        %v5068 = vsub.f32 %v3458, %v4556
        %v5069 = vsub.f32 %v3462, %v4557
        %v5070 = vsub.f32 %v3466, %v4558
        %v5071 = vsub.f32 %v3470, %v4559
        %v5072 = vsub.f32 %v3474, %v4560
        %v5073 = vsub.f32 %v3478, %v4561
        %v5074 = vsub.f32 %v3482, %v4562
        %v5075 = vsub.f32 %v3486, %v4563
        %v5076 = vsub.f32 %v3490, %v4564
        %v5077 = vsub.f32 %v3494, %v4565
        %v5078 = vsub.f32 %v3498, %v4566
        %v5079 = vsub.f32 %v3502, %v4567
        %v5080 = vsub.f32 %v3506, %v4568
        %v5081 = vsub.f32 %v3510, %v4569
        %v5082 = vsub.f32 %v3514, %v4570
        %v5083 = vmul.f32 %v5051, 1.442695
        %v5084 = vpow.pop %v5083
        %v5085 = vmul.f32 %v5052, 1.442695
        %v5086 = vpow.pop %v5085
        %v5087 = vmul.f32 %v5053, 1.442695
        %v5088 = vpow.pop %v5087
        %v5089 = vmul.f32 %v5054, 1.442695
        %v5090 = vpow.pop %v5089
        %v5091 = vmul.f32 %v5055, 1.442695
        %v5092 = vpow.pop %v5091
        %v5093 = vmul.f32 %v5056, 1.442695
        %v5094 = vpow.pop %v5093
        %v5095 = vmul.f32 %v5057, 1.442695
        %v5096 = vpow.pop %v5095
        %v5097 = vmul.f32 %v5058, 1.442695
        %v5098 = vpow.pop %v5097
        %v5099 = vmul.f32 %v5059, 1.442695
        %v5100 = vpow.pop %v5099
        %v5101 = vmul.f32 %v5060, 1.442695
        %v5102 = vpow.pop %v5101
        %v5103 = vmul.f32 %v5061, 1.442695
        %v5104 = vpow.pop %v5103
        %v5105 = vmul.f32 %v5062, 1.442695
        %v5106 = vpow.pop %v5105
        %v5107 = vmul.f32 %v5063, 1.442695
        %v5108 = vpow.pop %v5107
        %v5109 = vmul.f32 %v5064, 1.442695
        %v5110 = vpow.pop %v5109
        %v5111 = vmul.f32 %v5065, 1.442695
        %v5112 = vpow.pop %v5111
        %v5113 = vmul.f32 %v5066, 1.442695
        %v5114 = vpow.pop %v5113
        %v5115 = vmul.f32 %v5067, 1.442695
        %v5116 = vpow.pop %v5115
        %v5117 = vmul.f32 %v5068, 1.442695
        %v5118 = vpow.pop %v5117
        %v5119 = vmul.f32 %v5069, 1.442695
        %v5120 = vpow.pop %v5119
        %v5121 = vmul.f32 %v5070, 1.442695
        %v5122 = vpow.pop %v5121
        %v5123 = vmul.f32 %v5071, 1.442695
        %v5124 = vpow.pop %v5123
        %v5125 = vmul.f32 %v5072, 1.442695
        %v5126 = vpow.pop %v5125
        %v5127 = vmul.f32 %v5073, 1.442695
        %v5128 = vpow.pop %v5127
        %v5129 = vmul.f32 %v5074, 1.442695
        %v5130 = vpow.pop %v5129
        %v5131 = vmul.f32 %v5075, 1.442695
        %v5132 = vpow.pop %v5131
        %v5133 = vmul.f32 %v5076, 1.442695
        %v5134 = vpow.pop %v5133
        %v5135 = vmul.f32 %v5077, 1.442695
        %v5136 = vpow.pop %v5135
        %v5137 = vmul.f32 %v5078, 1.442695
        %v5138 = vpow.pop %v5137
        %v5139 = vmul.f32 %v5079, 1.442695
        %v5140 = vpow.pop %v5139
        %v5141 = vmul.f32 %v5080, 1.442695
        %v5142 = vpow.pop %v5141
        %v5143 = vmul.f32 %v5081, 1.442695
        %v5144 = vpow.pop %v5143
        %v5145 = vmul.f32 %v5082, 1.442695
        %v5146 = vpow.pop %v5145
        %v5147 = vsub.f32 %v3806, %v4539
        %v5148 = vsub.f32 %v3810, %v4540
        %v5149 = vsub.f32 %v3814, %v4541
        %v5150 = vsub.f32 %v3818, %v4542
        %v5151 = vsub.f32 %v3822, %v4543
        %v5152 = vsub.f32 %v3826, %v4544
        %v5153 = vsub.f32 %v3830, %v4545
        %v5154 = vsub.f32 %v3834, %v4546
        %v5155 = vsub.f32 %v3838, %v4547
        %v5156 = vsub.f32 %v3842, %v4548
        %v5157 = vsub.f32 %v3846, %v4549
        %v5158 = vsub.f32 %v3850, %v4550
        %v5159 = vsub.f32 %v3854, %v4551
        %v5160 = vsub.f32 %v3858, %v4552
        %v5161 = vsub.f32 %v3862, %v4553
        %v5162 = vsub.f32 %v3866, %v4554
        %v5163 = vsub.f32 %v3870, %v4555
        %v5164 = vsub.f32 %v3874, %v4556
        %v5165 = vsub.f32 %v3878, %v4557
        %v5166 = vsub.f32 %v3882, %v4558
        %v5167 = vsub.f32 %v3886, %v4559
        %v5168 = vsub.f32 %v3890, %v4560
        %v5169 = vsub.f32 %v3894, %v4561
        %v5170 = vsub.f32 %v3898, %v4562
        %v5171 = vsub.f32 %v3902, %v4563
        %v5172 = vsub.f32 %v3906, %v4564
        %v5173 = vsub.f32 %v3910, %v4565
        %v5174 = vsub.f32 %v3914, %v4566
        %v5175 = vsub.f32 %v3918, %v4567
        %v5176 = vsub.f32 %v3922, %v4568
        %v5177 = vsub.f32 %v3926, %v4569
        %v5178 = vsub.f32 %v3930, %v4570
        %v5179 = vmul.f32 %v5147, 1.442695
        %v5180 = vpow.pop %v5179
        %v5181 = vmul.f32 %v5148, 1.442695
        %v5182 = vpow.pop %v5181
        %v5183 = vmul.f32 %v5149, 1.442695
        %v5184 = vpow.pop %v5183
        %v5185 = vmul.f32 %v5150, 1.442695
        %v5186 = vpow.pop %v5185
        %v5187 = vmul.f32 %v5151, 1.442695
        %v5188 = vpow.pop %v5187
        %v5189 = vmul.f32 %v5152, 1.442695
        %v5190 = vpow.pop %v5189
        %v5191 = vmul.f32 %v5153, 1.442695
        %v5192 = vpow.pop %v5191
        %v5193 = vmul.f32 %v5154, 1.442695
        %v5194 = vpow.pop %v5193
        %v5195 = vmul.f32 %v5155, 1.442695
        %v5196 = vpow.pop %v5195
        %v5197 = vmul.f32 %v5156, 1.442695
        %v5198 = vpow.pop %v5197
        %v5199 = vmul.f32 %v5157, 1.442695
        %v5200 = vpow.pop %v5199
        %v5201 = vmul.f32 %v5158, 1.442695
        %v5202 = vpow.pop %v5201
        %v5203 = vmul.f32 %v5159, 1.442695
        %v5204 = vpow.pop %v5203
        %v5205 = vmul.f32 %v5160, 1.442695
        %v5206 = vpow.pop %v5205
        %v5207 = vmul.f32 %v5161, 1.442695
        %v5208 = vpow.pop %v5207
        %v5209 = vmul.f32 %v5162, 1.442695
        %v5210 = vpow.pop %v5209
        %v5211 = vmul.f32 %v5163, 1.442695
        %v5212 = vpow.pop %v5211
        %v5213 = vmul.f32 %v5164, 1.442695
        %v5214 = vpow.pop %v5213
        %v5215 = vmul.f32 %v5165, 1.442695
        %v5216 = vpow.pop %v5215
        %v5217 = vmul.f32 %v5166, 1.442695
        %v5218 = vpow.pop %v5217
        %v5219 = vmul.f32 %v5167, 1.442695
        %v5220 = vpow.pop %v5219
        %v5221 = vmul.f32 %v5168, 1.442695
        %v5222 = vpow.pop %v5221
        %v5223 = vmul.f32 %v5169, 1.442695
        %v5224 = vpow.pop %v5223
        %v5225 = vmul.f32 %v5170, 1.442695
        %v5226 = vpow.pop %v5225
        %v5227 = vmul.f32 %v5171, 1.442695
        %v5228 = vpow.pop %v5227
        %v5229 = vmul.f32 %v5172, 1.442695
        %v5230 = vpow.pop %v5229
        %v5231 = vmul.f32 %v5173, 1.442695
        %v5232 = vpow.pop %v5231
        %v5233 = vmul.f32 %v5174, 1.442695
        %v5234 = vpow.pop %v5233
        %v5235 = vmul.f32 %v5175, 1.442695
        %v5236 = vpow.pop %v5235
        %v5237 = vmul.f32 %v5176, 1.442695
        %v5238 = vpow.pop %v5237
        %v5239 = vmul.f32 %v5177, 1.442695
        %v5240 = vpow.pop %v5239
        %v5241 = vmul.f32 %v5178, 1.442695
        %v5242 = vpow.pop %v5241
        %v5243 = vsub.f32 %v4222, %v4539
        %v5244 = vsub.f32 %v4226, %v4540
        %v5245 = vsub.f32 %v4230, %v4541
        %v5246 = vsub.f32 %v4234, %v4542
        %v5247 = vsub.f32 %v4238, %v4543
        %v5248 = vsub.f32 %v4242, %v4544
        %v5249 = vsub.f32 %v4246, %v4545
        %v5250 = vsub.f32 %v4250, %v4546
        %v5251 = vsub.f32 %v4254, %v4547
        %v5252 = vsub.f32 %v4258, %v4548
        %v5253 = vsub.f32 %v4262, %v4549
        %v5254 = vsub.f32 %v4266, %v4550
        %v5255 = vsub.f32 %v4270, %v4551
        %v5256 = vsub.f32 %v4274, %v4552
        %v5257 = vsub.f32 %v4278, %v4553
        %v5258 = vsub.f32 %v4282, %v4554
        %v5259 = vsub.f32 %v4286, %v4555
        %v5260 = vsub.f32 %v4290, %v4556
        %v5261 = vsub.f32 %v4294, %v4557
        %v5262 = vsub.f32 %v4298, %v4558
        %v5263 = vsub.f32 %v4302, %v4559
        %v5264 = vsub.f32 %v4306, %v4560
        %v5265 = vsub.f32 %v4310, %v4561
        %v5266 = vsub.f32 %v4314, %v4562
        %v5267 = vsub.f32 %v4318, %v4563
        %v5268 = vsub.f32 %v4322, %v4564
        %v5269 = vsub.f32 %v4326, %v4565
        %v5270 = vsub.f32 %v4330, %v4566
        %v5271 = vsub.f32 %v4334, %v4567
        %v5272 = vsub.f32 %v4338, %v4568
        %v5273 = vsub.f32 %v4342, %v4569
        %v5274 = vsub.f32 %v4346, %v4570
        %v5275 = vmul.f32 %v5243, 1.442695
        %v5276 = vpow.pop %v5275
        %v5277 = vmul.f32 %v5244, 1.442695
        %v5278 = vpow.pop %v5277
        %v5279 = vmul.f32 %v5245, 1.442695
        %v5280 = vpow.pop %v5279
        %v5281 = vmul.f32 %v5246, 1.442695
        %v5282 = vpow.pop %v5281
        %v5283 = vmul.f32 %v5247, 1.442695
        %v5284 = vpow.pop %v5283
        %v5285 = vmul.f32 %v5248, 1.442695
        %v5286 = vpow.pop %v5285
        %v5287 = vmul.f32 %v5249, 1.442695
        %v5288 = vpow.pop %v5287
        %v5289 = vmul.f32 %v5250, 1.442695
        %v5290 = vpow.pop %v5289
        %v5291 = vmul.f32 %v5251, 1.442695
        %v5292 = vpow.pop %v5291
        %v5293 = vmul.f32 %v5252, 1.442695
        %v5294 = vpow.pop %v5293
        %v5295 = vmul.f32 %v5253, 1.442695
        %v5296 = vpow.pop %v5295
        %v5297 = vmul.f32 %v5254, 1.442695
        %v5298 = vpow.pop %v5297
        %v5299 = vmul.f32 %v5255, 1.442695
        %v5300 = vpow.pop %v5299
        %v5301 = vmul.f32 %v5256, 1.442695
        %v5302 = vpow.pop %v5301
        %v5303 = vmul.f32 %v5257, 1.442695
        %v5304 = vpow.pop %v5303
        %v5305 = vmul.f32 %v5258, 1.442695
        %v5306 = vpow.pop %v5305
        %v5307 = vmul.f32 %v5259, 1.442695
        %v5308 = vpow.pop %v5307
        %v5309 = vmul.f32 %v5260, 1.442695
        %v5310 = vpow.pop %v5309
        %v5311 = vmul.f32 %v5261, 1.442695
        %v5312 = vpow.pop %v5311
        %v5313 = vmul.f32 %v5262, 1.442695
        %v5314 = vpow.pop %v5313
        %v5315 = vmul.f32 %v5263, 1.442695
        %v5316 = vpow.pop %v5315
        %v5317 = vmul.f32 %v5264, 1.442695
        %v5318 = vpow.pop %v5317
        %v5319 = vmul.f32 %v5265, 1.442695
        %v5320 = vpow.pop %v5319
        %v5321 = vmul.f32 %v5266, 1.442695
        %v5322 = vpow.pop %v5321
        %v5323 = vmul.f32 %v5267, 1.442695
        %v5324 = vpow.pop %v5323
        %v5325 = vmul.f32 %v5268, 1.442695
        %v5326 = vpow.pop %v5325
        %v5327 = vmul.f32 %v5269, 1.442695
        %v5328 = vpow.pop %v5327
        %v5329 = vmul.f32 %v5270, 1.442695
        %v5330 = vpow.pop %v5329
        %v5331 = vmul.f32 %v5271, 1.442695
        %v5332 = vpow.pop %v5331
        %v5333 = vmul.f32 %v5272, 1.442695
        %v5334 = vpow.pop %v5333
        %v5335 = vmul.f32 %v5273, 1.442695
        %v5336 = vpow.pop %v5335
        %v5337 = vmul.f32 %v5274, 1.442695
        %v5338 = vpow.pop %v5337
        %v5339 = vadd.f32 %v4604, %v4700
        %v5340 = vadd.f32 %v4606, %v4702
        %v5341 = vadd.f32 %v4608, %v4704
        %v5342 = vadd.f32 %v4610, %v4706
        %v5343 = vadd.f32 %v4612, %v4708
        %v5344 = vadd.f32 %v4614, %v4710
        %v5345 = vadd.f32 %v4616, %v4712
        %v5346 = vadd.f32 %v4618, %v4714
        %v5347 = vadd.f32 %v4620, %v4716
        %v5348 = vadd.f32 %v4622, %v4718
        %v5349 = vadd.f32 %v4624, %v4720
        %v5350 = vadd.f32 %v4626, %v4722
        %v5351 = vadd.f32 %v4628, %v4724
        %v5352 = vadd.f32 %v4630, %v4726
        %v5353 = vadd.f32 %v4632, %v4728
        %v5354 = vadd.f32 %v4634, %v4730
        %v5355 = vadd.f32 %v4636, %v4732
        %v5356 = vadd.f32 %v4638, %v4734
        %v5357 = vadd.f32 %v4640, %v4736
        %v5358 = vadd.f32 %v4642, %v4738
        %v5359 = vadd.f32 %v4644, %v4740
        %v5360 = vadd.f32 %v4646, %v4742
        %v5361 = vadd.f32 %v4648, %v4744
        %v5362 = vadd.f32 %v4650, %v4746
        %v5363 = vadd.f32 %v4652, %v4748
        %v5364 = vadd.f32 %v4654, %v4750
        %v5365 = vadd.f32 %v4656, %v4752
        %v5366 = vadd.f32 %v4658, %v4754
        %v5367 = vadd.f32 %v4660, %v4756
        %v5368 = vadd.f32 %v4662, %v4758
        %v5369 = vadd.f32 %v4664, %v4760
        %v5370 = vadd.f32 %v4666, %v4762
        %v5371 = vadd.f32 %v5339, %v4796
        %v5372 = vadd.f32 %v5340, %v4798
        %v5373 = vadd.f32 %v5341, %v4800
        %v5374 = vadd.f32 %v5342, %v4802
        %v5375 = vadd.f32 %v5343, %v4804
        %v5376 = vadd.f32 %v5344, %v4806
        %v5377 = vadd.f32 %v5345, %v4808
        %v5378 = vadd.f32 %v5346, %v4810
        %v5379 = vadd.f32 %v5347, %v4812
        %v5380 = vadd.f32 %v5348, %v4814
        %v5381 = vadd.f32 %v5349, %v4816
        %v5382 = vadd.f32 %v5350, %v4818
        %v5383 = vadd.f32 %v5351, %v4820
        %v5384 = vadd.f32 %v5352, %v4822
        %v5385 = vadd.f32 %v5353, %v4824
        %v5386 = vadd.f32 %v5354, %v4826
        %v5387 = vadd.f32 %v5355, %v4828
        %v5388 = vadd.f32 %v5356, %v4830
        %v5389 = vadd.f32 %v5357, %v4832
        %v5390 = vadd.f32 %v5358, %v4834
        %v5391 = vadd.f32 %v5359, %v4836
        %v5392 = vadd.f32 %v5360, %v4838
        %v5393 = vadd.f32 %v5361, %v4840
        %v5394 = vadd.f32 %v5362, %v4842
        %v5395 = vadd.f32 %v5363, %v4844
        %v5396 = vadd.f32 %v5364, %v4846
        %v5397 = vadd.f32 %v5365, %v4848
        %v5398 = vadd.f32 %v5366, %v4850
        %v5399 = vadd.f32 %v5367, %v4852
        %v5400 = vadd.f32 %v5368, %v4854
        %v5401 = vadd.f32 %v5369, %v4856
        %v5402 = vadd.f32 %v5370, %v4858
        %v5403 = vadd.f32 %v5371, %v4892
        %v5404 = vadd.f32 %v5372, %v4894
        %v5405 = vadd.f32 %v5373, %v4896
        %v5406 = vadd.f32 %v5374, %v4898
        %v5407 = vadd.f32 %v5375, %v4900
        %v5408 = vadd.f32 %v5376, %v4902
        %v5409 = vadd.f32 %v5377, %v4904
        %v5410 = vadd.f32 %v5378, %v4906
        %v5411 = vadd.f32 %v5379, %v4908
        %v5412 = vadd.f32 %v5380, %v4910
        %v5413 = vadd.f32 %v5381, %v4912
        %v5414 = vadd.f32 %v5382, %v4914
        %v5415 = vadd.f32 %v5383, %v4916
        %v5416 = vadd.f32 %v5384, %v4918
        %v5417 = vadd.f32 %v5385, %v4920
        %v5418 = vadd.f32 %v5386, %v4922
        %v5419 = vadd.f32 %v5387, %v4924
        %v5420 = vadd.f32 %v5388, %v4926
        %v5421 = vadd.f32 %v5389, %v4928
        %v5422 = vadd.f32 %v5390, %v4930
        %v5423 = vadd.f32 %v5391, %v4932
        %v5424 = vadd.f32 %v5392, %v4934
        %v5425 = vadd.f32 %v5393, %v4936
        %v5426 = vadd.f32 %v5394, %v4938
        %v5427 = vadd.f32 %v5395, %v4940
        %v5428 = vadd.f32 %v5396, %v4942
        %v5429 = vadd.f32 %v5397, %v4944
        %v5430 = vadd.f32 %v5398, %v4946
        %v5431 = vadd.f32 %v5399, %v4948
        %v5432 = vadd.f32 %v5400, %v4950
        %v5433 = vadd.f32 %v5401, %v4952
        %v5434 = vadd.f32 %v5402, %v4954
        %v5435 = vadd.f32 %v5403, %v4988
        %v5436 = vadd.f32 %v5404, %v4990
        %v5437 = vadd.f32 %v5405, %v4992
        %v5438 = vadd.f32 %v5406, %v4994
        %v5439 = vadd.f32 %v5407, %v4996
        %v5440 = vadd.f32 %v5408, %v4998
        %v5441 = vadd.f32 %v5409, %v5000
        %v5442 = vadd.f32 %v5410, %v5002
        %v5443 = vadd.f32 %v5411, %v5004
        %v5444 = vadd.f32 %v5412, %v5006
        %v5445 = vadd.f32 %v5413, %v5008
        %v5446 = vadd.f32 %v5414, %v5010
        %v5447 = vadd.f32 %v5415, %v5012
        %v5448 = vadd.f32 %v5416, %v5014
        %v5449 = vadd.f32 %v5417, %v5016
        %v5450 = vadd.f32 %v5418, %v5018
        %v5451 = vadd.f32 %v5419, %v5020
        %v5452 = vadd.f32 %v5420, %v5022
        %v5453 = vadd.f32 %v5421, %v5024
        %v5454 = vadd.f32 %v5422, %v5026
        %v5455 = vadd.f32 %v5423, %v5028
        %v5456 = vadd.f32 %v5424, %v5030
        %v5457 = vadd.f32 %v5425, %v5032
        %v5458 = vadd.f32 %v5426, %v5034
        %v5459 = vadd.f32 %v5427, %v5036
        %v5460 = vadd.f32 %v5428, %v5038
        %v5461 = vadd.f32 %v5429, %v5040
        %v5462 = vadd.f32 %v5430, %v5042
        %v5463 = vadd.f32 %v5431, %v5044
        %v5464 = vadd.f32 %v5432, %v5046
        %v5465 = vadd.f32 %v5433, %v5048
        %v5466 = vadd.f32 %v5434, %v5050
        %v5467 = vadd.f32 %v5435, %v5084
        %v5468 = vadd.f32 %v5436, %v5086
        %v5469 = vadd.f32 %v5437, %v5088
        %v5470 = vadd.f32 %v5438, %v5090
        %v5471 = vadd.f32 %v5439, %v5092
        %v5472 = vadd.f32 %v5440, %v5094
        %v5473 = vadd.f32 %v5441, %v5096
        %v5474 = vadd.f32 %v5442, %v5098
        %v5475 = vadd.f32 %v5443, %v5100
        %v5476 = vadd.f32 %v5444, %v5102
        %v5477 = vadd.f32 %v5445, %v5104
        %v5478 = vadd.f32 %v5446, %v5106
        %v5479 = vadd.f32 %v5447, %v5108
        %v5480 = vadd.f32 %v5448, %v5110
        %v5481 = vadd.f32 %v5449, %v5112
        %v5482 = vadd.f32 %v5450, %v5114
        %v5483 = vadd.f32 %v5451, %v5116
        %v5484 = vadd.f32 %v5452, %v5118
        %v5485 = vadd.f32 %v5453, %v5120
        %v5486 = vadd.f32 %v5454, %v5122
        %v5487 = vadd.f32 %v5455, %v5124
        %v5488 = vadd.f32 %v5456, %v5126
        %v5489 = vadd.f32 %v5457, %v5128
        %v5490 = vadd.f32 %v5458, %v5130
        %v5491 = vadd.f32 %v5459, %v5132
        %v5492 = vadd.f32 %v5460, %v5134
        %v5493 = vadd.f32 %v5461, %v5136
        %v5494 = vadd.f32 %v5462, %v5138
        %v5495 = vadd.f32 %v5463, %v5140
        %v5496 = vadd.f32 %v5464, %v5142
        %v5497 = vadd.f32 %v5465, %v5144
        %v5498 = vadd.f32 %v5466, %v5146
        %v5499 = vadd.f32 %v5467, %v5180
        %v5500 = vadd.f32 %v5468, %v5182
        %v5501 = vadd.f32 %v5469, %v5184
        %v5502 = vadd.f32 %v5470, %v5186
        %v5503 = vadd.f32 %v5471, %v5188
        %v5504 = vadd.f32 %v5472, %v5190
        %v5505 = vadd.f32 %v5473, %v5192
        %v5506 = vadd.f32 %v5474, %v5194
        %v5507 = vadd.f32 %v5475, %v5196
        %v5508 = vadd.f32 %v5476, %v5198
        %v5509 = vadd.f32 %v5477, %v5200
        %v5510 = vadd.f32 %v5478, %v5202
        %v5511 = vadd.f32 %v5479, %v5204
        %v5512 = vadd.f32 %v5480, %v5206
        %v5513 = vadd.f32 %v5481, %v5208
        %v5514 = vadd.f32 %v5482, %v5210
        %v5515 = vadd.f32 %v5483, %v5212
        %v5516 = vadd.f32 %v5484, %v5214
        %v5517 = vadd.f32 %v5485, %v5216
        %v5518 = vadd.f32 %v5486, %v5218
        %v5519 = vadd.f32 %v5487, %v5220
        %v5520 = vadd.f32 %v5488, %v5222
        %v5521 = vadd.f32 %v5489, %v5224
        %v5522 = vadd.f32 %v5490, %v5226
        %v5523 = vadd.f32 %v5491, %v5228
        %v5524 = vadd.f32 %v5492, %v5230
        %v5525 = vadd.f32 %v5493, %v5232
        %v5526 = vadd.f32 %v5494, %v5234
        %v5527 = vadd.f32 %v5495, %v5236
        %v5528 = vadd.f32 %v5496, %v5238
        %v5529 = vadd.f32 %v5497, %v5240
        %v5530 = vadd.f32 %v5498, %v5242
        %v5531 = vadd.f32 %v5499, %v5276
        %v5532 = vadd.f32 %v5500, %v5278
        %v5533 = vadd.f32 %v5501, %v5280
        %v5534 = vadd.f32 %v5502, %v5282
        %v5535 = vadd.f32 %v5503, %v5284
        %v5536 = vadd.f32 %v5504, %v5286
        %v5537 = vadd.f32 %v5505, %v5288
        %v5538 = vadd.f32 %v5506, %v5290
        %v5539 = vadd.f32 %v5507, %v5292
        %v5540 = vadd.f32 %v5508, %v5294
        %v5541 = vadd.f32 %v5509, %v5296
        %v5542 = vadd.f32 %v5510, %v5298
        %v5543 = vadd.f32 %v5511, %v5300
        %v5544 = vadd.f32 %v5512, %v5302
        %v5545 = vadd.f32 %v5513, %v5304
        %v5546 = vadd.f32 %v5514, %v5306
        %v5547 = vadd.f32 %v5515, %v5308
        %v5548 = vadd.f32 %v5516, %v5310
        %v5549 = vadd.f32 %v5517, %v5312
        %v5550 = vadd.f32 %v5518, %v5314
        %v5551 = vadd.f32 %v5519, %v5316
        %v5552 = vadd.f32 %v5520, %v5318
        %v5553 = vadd.f32 %v5521, %v5320
        %v5554 = vadd.f32 %v5522, %v5322
        %v5555 = vadd.f32 %v5523, %v5324
        %v5556 = vadd.f32 %v5524, %v5326
        %v5557 = vadd.f32 %v5525, %v5328
        %v5558 = vadd.f32 %v5526, %v5330
        %v5559 = vadd.f32 %v5527, %v5332
        %v5560 = vadd.f32 %v5528, %v5334
        %v5561 = vadd.f32 %v5529, %v5336
        %v5562 = vadd.f32 %v5530, %v5338
        %v5563 = vrcp.pop %v5531
        %v5564 = vrcp.pop %v5532
        %v5565 = vrcp.pop %v5533
        %v5566 = vrcp.pop %v5534
        %v5567 = vrcp.pop %v5535
        %v5568 = vrcp.pop %v5536
        %v5569 = vrcp.pop %v5537
        %v5570 = vrcp.pop %v5538
        %v5571 = vrcp.pop %v5539
        %v5572 = vrcp.pop %v5540
        %v5573 = vrcp.pop %v5541
        %v5574 = vrcp.pop %v5542
        %v5575 = vrcp.pop %v5543
        %v5576 = vrcp.pop %v5544
        %v5577 = vrcp.pop %v5545
        %v5578 = vrcp.pop %v5546
        %v5579 = vrcp.pop %v5547
        %v5580 = vrcp.pop %v5548
        %v5581 = vrcp.pop %v5549
        %v5582 = vrcp.pop %v5550
        %v5583 = vrcp.pop %v5551
        %v5584 = vrcp.pop %v5552
        %v5585 = vrcp.pop %v5553
        %v5586 = vrcp.pop %v5554
        %v5587 = vrcp.pop %v5555
        %v5588 = vrcp.pop %v5556
        %v5589 = vrcp.pop %v5557
        %v5590 = vrcp.pop %v5558
        %v5591 = vrcp.pop %v5559
        %v5592 = vrcp.pop %v5560
        %v5593 = vrcp.pop %v5561
        %v5594 = vrcp.pop %v5562
        %v5595 = vmul.f32 %v4604, %v5563
        %v5596 = vmul.f32 %v4606, %v5564
        %v5597 = vmul.f32 %v4608, %v5565
        %v5598 = vmul.f32 %v4610, %v5566
        %v5599 = vmul.f32 %v4612, %v5567
        %v5600 = vmul.f32 %v4614, %v5568
        %v5601 = vmul.f32 %v4616, %v5569
        %v5602 = vmul.f32 %v4618, %v5570
        %v5603 = vmul.f32 %v4620, %v5571
        %v5604 = vmul.f32 %v4622, %v5572
        %v5605 = vmul.f32 %v4624, %v5573
        %v5606 = vmul.f32 %v4626, %v5574
        %v5607 = vmul.f32 %v4628, %v5575
        %v5608 = vmul.f32 %v4630, %v5576
        %v5609 = vmul.f32 %v4632, %v5577
        %v5610 = vmul.f32 %v4634, %v5578
        %v5611 = vmul.f32 %v4636, %v5579
        %v5612 = vmul.f32 %v4638, %v5580
        %v5613 = vmul.f32 %v4640, %v5581
        %v5614 = vmul.f32 %v4642, %v5582
        %v5615 = vmul.f32 %v4644, %v5583
        %v5616 = vmul.f32 %v4646, %v5584
        %v5617 = vmul.f32 %v4648, %v5585
        %v5618 = vmul.f32 %v4650, %v5586
        %v5619 = vmul.f32 %v4652, %v5587
        %v5620 = vmul.f32 %v4654, %v5588
        %v5621 = vmul.f32 %v4656, %v5589
        %v5622 = vmul.f32 %v4658, %v5590
        %v5623 = vmul.f32 %v4660, %v5591
        %v5624 = vmul.f32 %v4662, %v5592
        %v5625 = vmul.f32 %v4664, %v5593
        %v5626 = vmul.f32 %v4666, %v5594
        %v5627 = vsel %vm1115, %v5595, 0.0
        %v5628 = vsel %vm1116, %v5595, 0.0
        %v5629 = vsel %vm1117, %v5595, 0.0
        %v5630 = vsel %vm1118, %v5596, 0.0
        %v5631 = vsel %vm1119, %v5596, 0.0
        %v5632 = vsel %vm1120, %v5596, 0.0
        %v5633 = vsel %vm1121, %v5597, 0.0
        %v5634 = vsel %vm1122, %v5597, 0.0
        %v5635 = vsel %vm1123, %v5597, 0.0
        %v5636 = vsel %vm1124, %v5598, 0.0
        %v5637 = vsel %vm1125, %v5598, 0.0
        %v5638 = vsel %vm1126, %v5598, 0.0
        %v5639 = vsel %vm1127, %v5599, 0.0
        %v5640 = vsel %vm1128, %v5599, 0.0
        %v5641 = vsel %vm1129, %v5599, 0.0
        %v5642 = vsel %vm1130, %v5600, 0.0
        %v5643 = vsel %vm1131, %v5600, 0.0
        %v5644 = vsel %vm1132, %v5600, 0.0
        %v5645 = vsel %vm1133, %v5601, 0.0
        %v5646 = vsel %vm1134, %v5601, 0.0
        %v5647 = vsel %vm1135, %v5601, 0.0
        %v5648 = vsel %vm1136, %v5602, 0.0
        %v5649 = vsel %vm1137, %v5602, 0.0
        %v5650 = vsel %vm1138, %v5602, 0.0
        %v5651 = vsel %vm1139, %v5603, 0.0
        %v5652 = vsel %vm1140, %v5603, 0.0
        %v5653 = vsel %vm1141, %v5603, 0.0
        %v5654 = vsel %vm1142, %v5604, 0.0
        %v5655 = vsel %vm1143, %v5604, 0.0
        %v5656 = vsel %vm1144, %v5604, 0.0
        %v5657 = vsel %vm1145, %v5605, 0.0
        %v5658 = vsel %vm1146, %v5605, 0.0
        %v5659 = vsel %vm1147, %v5605, 0.0
        %v5660 = vsel %vm1148, %v5606, 0.0
        %v5661 = vsel %vm1149, %v5606, 0.0
        %v5662 = vsel %vm1150, %v5606, 0.0
        %v5663 = vsel %vm1151, %v5607, 0.0
        %v5664 = vsel %vm1152, %v5607, 0.0
        %v5665 = vsel %vm1153, %v5607, 0.0
        %v5666 = vsel %vm1154, %v5608, 0.0
        %v5667 = vsel %vm1155, %v5608, 0.0
        %v5668 = vsel %vm1156, %v5608, 0.0
        %v5669 = vsel %vm1157, %v5609, 0.0
        %v5670 = vsel %vm1158, %v5609, 0.0
        %v5671 = vsel %vm1159, %v5609, 0.0
        %v5672 = vsel %vm1160, %v5610, 0.0
        %v5673 = vsel %vm1161, %v5610, 0.0
        %v5674 = vsel %vm1162, %v5610, 0.0
        %v5675 = vsel %vm1163, %v5611, 0.0
        %v5676 = vsel %vm1164, %v5611, 0.0
        %v5677 = vsel %vm1165, %v5611, 0.0
        %v5678 = vsel %vm1166, %v5612, 0.0
        %v5679 = vsel %vm1167, %v5612, 0.0
        %v5680 = vsel %vm1168, %v5612, 0.0
        %v5681 = vsel %vm1169, %v5613, 0.0
        %v5682 = vsel %vm1170, %v5613, 0.0
        %v5683 = vsel %vm1171, %v5613, 0.0
        %v5684 = vsel %vm1172, %v5614, 0.0
        %v5685 = vsel %vm1173, %v5614, 0.0
        %v5686 = vsel %vm1174, %v5614, 0.0
        %v5687 = vsel %vm1175, %v5615, 0.0
        %v5688 = vsel %vm1176, %v5615, 0.0
        %v5689 = vsel %vm1177, %v5615, 0.0
        %v5690 = vsel %vm1178, %v5616, 0.0
        %v5691 = vsel %vm1179, %v5616, 0.0
        %v5692 = vsel %vm1180, %v5616, 0.0
        %v5693 = vsel %vm1181, %v5617, 0.0
        %v5694 = vsel %vm1182, %v5617, 0.0
        %v5695 = vsel %vm1183, %v5617, 0.0
        %v5696 = vsel %vm1184, %v5618, 0.0
        %v5697 = vsel %vm1185, %v5618, 0.0
        %v5698 = vsel %vm1186, %v5618, 0.0
        %v5699 = vsel %vm1187, %v5619, 0.0
        %v5700 = vsel %vm1188, %v5619, 0.0
        %v5701 = vsel %vm1189, %v5619, 0.0
        %v5702 = vsel %vm1190, %v5620, 0.0
        %v5703 = vsel %vm1191, %v5620, 0.0
        %v5704 = vsel %vm1192, %v5620, 0.0
        %v5705 = vsel %vm1193, %v5621, 0.0
        %v5706 = vsel %vm1194, %v5621, 0.0
        %v5707 = vsel %vm1195, %v5621, 0.0
        %v5708 = vsel %vm1196, %v5622, 0.0
        %v5709 = vsel %vm1197, %v5622, 0.0
        %v5710 = vsel %vm1198, %v5622, 0.0
        %v5711 = vsel %vm1199, %v5623, 0.0
        %v5712 = vsel %vm1200, %v5623, 0.0
        %v5713 = vsel %vm1201, %v5623, 0.0
        %v5714 = vsel %vm1202, %v5624, 0.0
        %v5715 = vsel %vm1203, %v5624, 0.0
        %v5716 = vsel %vm1204, %v5624, 0.0
        %v5717 = vsel %vm1205, %v5625, 0.0
        %v5718 = vsel %vm1206, %v5625, 0.0
        %v5719 = vsel %vm1207, %v5625, 0.0
        %v5720 = vsel %vm1208, %v5626, 0.0
        %v5721 = vsel %vm1209, %v5626, 0.0
        %v5722 = vsel %vm1210, %v5626, 0.0
        %v5723 = vadd.f32 %v5627, 0.0
        %v5724 = vadd.f32 %v5628, 0.0
        %v5725 = vadd.f32 %v5629, 0.0
        %v5726 = vadd.f32 %v5630, 0.0
        %v5727 = vadd.f32 %v5631, 0.0
        %v5728 = vadd.f32 %v5632, 0.0
        %v5729 = vadd.f32 %v5633, 0.0
        %v5730 = vadd.f32 %v5634, 0.0
        %v5731 = vadd.f32 %v5635, 0.0
        %v5732 = vadd.f32 %v5636, 0.0
        %v5733 = vadd.f32 %v5637, 0.0
        %v5734 = vadd.f32 %v5638, 0.0
        %v5735 = vadd.f32 %v5639, 0.0
        %v5736 = vadd.f32 %v5640, 0.0
        %v5737 = vadd.f32 %v5641, 0.0
        %v5738 = vadd.f32 %v5642, 0.0
        %v5739 = vadd.f32 %v5643, 0.0
        %v5740 = vadd.f32 %v5644, 0.0
        %v5741 = vadd.f32 %v5645, 0.0
        %v5742 = vadd.f32 %v5646, 0.0
        %v5743 = vadd.f32 %v5647, 0.0
        %v5744 = vadd.f32 %v5648, 0.0
        %v5745 = vadd.f32 %v5649, 0.0
        %v5746 = vadd.f32 %v5650, 0.0
        %v5747 = vadd.f32 %v5651, 0.0
        %v5748 = vadd.f32 %v5652, 0.0
        %v5749 = vadd.f32 %v5653, 0.0
        %v5750 = vadd.f32 %v5654, 0.0
        %v5751 = vadd.f32 %v5655, 0.0
        %v5752 = vadd.f32 %v5656, 0.0
        %v5753 = vadd.f32 %v5657, 0.0
        %v5754 = vadd.f32 %v5658, 0.0
        %v5755 = vadd.f32 %v5659, 0.0
        %v5756 = vadd.f32 %v5660, 0.0
        %v5757 = vadd.f32 %v5661, 0.0
        %v5758 = vadd.f32 %v5662, 0.0
        %v5759 = vadd.f32 %v5663, 0.0
        %v5760 = vadd.f32 %v5664, 0.0
        %v5761 = vadd.f32 %v5665, 0.0
        %v5762 = vadd.f32 %v5666, 0.0
        %v5763 = vadd.f32 %v5667, 0.0
        %v5764 = vadd.f32 %v5668, 0.0
        %v5765 = vadd.f32 %v5669, 0.0
        %v5766 = vadd.f32 %v5670, 0.0
        %v5767 = vadd.f32 %v5671, 0.0
        %v5768 = vadd.f32 %v5672, 0.0
        %v5769 = vadd.f32 %v5673, 0.0
        %v5770 = vadd.f32 %v5674, 0.0
        %v5771 = vadd.f32 %v5675, 0.0
        %v5772 = vadd.f32 %v5676, 0.0
        %v5773 = vadd.f32 %v5677, 0.0
        %v5774 = vadd.f32 %v5678, 0.0
        %v5775 = vadd.f32 %v5679, 0.0
        %v5776 = vadd.f32 %v5680, 0.0
        %v5777 = vadd.f32 %v5681, 0.0
        %v5778 = vadd.f32 %v5682, 0.0
        %v5779 = vadd.f32 %v5683, 0.0
        %v5780 = vadd.f32 %v5684, 0.0
        %v5781 = vadd.f32 %v5685, 0.0
        %v5782 = vadd.f32 %v5686, 0.0
        %v5783 = vadd.f32 %v5687, 0.0
        %v5784 = vadd.f32 %v5688, 0.0
        %v5785 = vadd.f32 %v5689, 0.0
        %v5786 = vadd.f32 %v5690, 0.0
        %v5787 = vadd.f32 %v5691, 0.0
        %v5788 = vadd.f32 %v5692, 0.0
        %v5789 = vadd.f32 %v5693, 0.0
        %v5790 = vadd.f32 %v5694, 0.0
        %v5791 = vadd.f32 %v5695, 0.0
        %v5792 = vadd.f32 %v5696, 0.0
        %v5793 = vadd.f32 %v5697, 0.0
        %v5794 = vadd.f32 %v5698, 0.0
        %v5795 = vadd.f32 %v5699, 0.0
        %v5796 = vadd.f32 %v5700, 0.0
        %v5797 = vadd.f32 %v5701, 0.0
        %v5798 = vadd.f32 %v5702, 0.0
        %v5799 = vadd.f32 %v5703, 0.0
        %v5800 = vadd.f32 %v5704, 0.0
        %v5801 = vadd.f32 %v5705, 0.0
        %v5802 = vadd.f32 %v5706, 0.0
        %v5803 = vadd.f32 %v5707, 0.0
        %v5804 = vadd.f32 %v5708, 0.0
        %v5805 = vadd.f32 %v5709, 0.0
        %v5806 = vadd.f32 %v5710, 0.0
        %v5807 = vadd.f32 %v5711, 0.0
        %v5808 = vadd.f32 %v5712, 0.0
        %v5809 = vadd.f32 %v5713, 0.0
        %v5810 = vadd.f32 %v5714, 0.0
        %v5811 = vadd.f32 %v5715, 0.0
        %v5812 = vadd.f32 %v5716, 0.0
        %v5813 = vadd.f32 %v5717, 0.0
        %v5814 = vadd.f32 %v5718, 0.0
        %v5815 = vadd.f32 %v5719, 0.0
        %v5816 = vadd.f32 %v5720, 0.0
        %v5817 = vadd.f32 %v5721, 0.0
        %v5818 = vadd.f32 %v5722, 0.0
        %v5819 = vmul.f32 %v4700, %v5563
        %v5820 = vmul.f32 %v4702, %v5564
        %v5821 = vmul.f32 %v4704, %v5565
        %v5822 = vmul.f32 %v4706, %v5566
        %v5823 = vmul.f32 %v4708, %v5567
        %v5824 = vmul.f32 %v4710, %v5568
        %v5825 = vmul.f32 %v4712, %v5569
        %v5826 = vmul.f32 %v4714, %v5570
        %v5827 = vmul.f32 %v4716, %v5571
        %v5828 = vmul.f32 %v4718, %v5572
        %v5829 = vmul.f32 %v4720, %v5573
        %v5830 = vmul.f32 %v4722, %v5574
        %v5831 = vmul.f32 %v4724, %v5575
        %v5832 = vmul.f32 %v4726, %v5576
        %v5833 = vmul.f32 %v4728, %v5577
        %v5834 = vmul.f32 %v4730, %v5578
        %v5835 = vmul.f32 %v4732, %v5579
        %v5836 = vmul.f32 %v4734, %v5580
        %v5837 = vmul.f32 %v4736, %v5581
        %v5838 = vmul.f32 %v4738, %v5582
        %v5839 = vmul.f32 %v4740, %v5583
        %v5840 = vmul.f32 %v4742, %v5584
        %v5841 = vmul.f32 %v4744, %v5585
        %v5842 = vmul.f32 %v4746, %v5586
        %v5843 = vmul.f32 %v4748, %v5587
        %v5844 = vmul.f32 %v4750, %v5588
        %v5845 = vmul.f32 %v4752, %v5589
        %v5846 = vmul.f32 %v4754, %v5590
        %v5847 = vmul.f32 %v4756, %v5591
        %v5848 = vmul.f32 %v4758, %v5592
        %v5849 = vmul.f32 %v4760, %v5593
        %v5850 = vmul.f32 %v4762, %v5594
        %v5851 = vsel %vm1531, %v5819, 0.0
        %v5852 = vsel %vm1532, %v5819, 0.0
        %v5853 = vsel %vm1533, %v5819, 0.0
        %v5854 = vsel %vm1534, %v5820, 0.0
        %v5855 = vsel %vm1535, %v5820, 0.0
        %v5856 = vsel %vm1536, %v5820, 0.0
        %v5857 = vsel %vm1537, %v5821, 0.0
        %v5858 = vsel %vm1538, %v5821, 0.0
        %v5859 = vsel %vm1539, %v5821, 0.0
        %v5860 = vsel %vm1540, %v5822, 0.0
        %v5861 = vsel %vm1541, %v5822, 0.0
        %v5862 = vsel %vm1542, %v5822, 0.0
        %v5863 = vsel %vm1543, %v5823, 0.0
        %v5864 = vsel %vm1544, %v5823, 0.0
        %v5865 = vsel %vm1545, %v5823, 0.0
        %v5866 = vsel %vm1546, %v5824, 0.0
        %v5867 = vsel %vm1547, %v5824, 0.0
        %v5868 = vsel %vm1548, %v5824, 0.0
        %v5869 = vsel %vm1549, %v5825, 0.0
        %v5870 = vsel %vm1550, %v5825, 0.0
        %v5871 = vsel %vm1551, %v5825, 0.0
        %v5872 = vsel %vm1552, %v5826, 0.0
        %v5873 = vsel %vm1553, %v5826, 0.0
        %v5874 = vsel %vm1554, %v5826, 0.0
        %v5875 = vsel %vm1555, %v5827, 0.0
        %v5876 = vsel %vm1556, %v5827, 0.0
        %v5877 = vsel %vm1557, %v5827, 0.0
        %v5878 = vsel %vm1558, %v5828, 0.0
        %v5879 = vsel %vm1559, %v5828, 0.0
        %v5880 = vsel %vm1560, %v5828, 0.0
        %v5881 = vsel %vm1561, %v5829, 0.0
        %v5882 = vsel %vm1562, %v5829, 0.0
        %v5883 = vsel %vm1563, %v5829, 0.0
        %v5884 = vsel %vm1564, %v5830, 0.0
        %v5885 = vsel %vm1565, %v5830, 0.0
        %v5886 = vsel %vm1566, %v5830, 0.0
        %v5887 = vsel %vm1567, %v5831, 0.0
        %v5888 = vsel %vm1568, %v5831, 0.0
        %v5889 = vsel %vm1569, %v5831, 0.0
        %v5890 = vsel %vm1570, %v5832, 0.0
        %v5891 = vsel %vm1571, %v5832, 0.0
        %v5892 = vsel %vm1572, %v5832, 0.0
        %v5893 = vsel %vm1573, %v5833, 0.0
        %v5894 = vsel %vm1574, %v5833, 0.0
        %v5895 = vsel %vm1575, %v5833, 0.0
        %v5896 = vsel %vm1576, %v5834, 0.0
        %v5897 = vsel %vm1577, %v5834, 0.0
        %v5898 = vsel %vm1578, %v5834, 0.0
        %v5899 = vsel %vm1579, %v5835, 0.0
        %v5900 = vsel %vm1580, %v5835, 0.0
        %v5901 = vsel %vm1581, %v5835, 0.0
        %v5902 = vsel %vm1582, %v5836, 0.0
        %v5903 = vsel %vm1583, %v5836, 0.0
        %v5904 = vsel %vm1584, %v5836, 0.0
        %v5905 = vsel %vm1585, %v5837, 0.0
        %v5906 = vsel %vm1586, %v5837, 0.0
        %v5907 = vsel %vm1587, %v5837, 0.0
        %v5908 = vsel %vm1588, %v5838, 0.0
        %v5909 = vsel %vm1589, %v5838, 0.0
        %v5910 = vsel %vm1590, %v5838, 0.0
        %v5911 = vsel %vm1591, %v5839, 0.0
        %v5912 = vsel %vm1592, %v5839, 0.0
        %v5913 = vsel %vm1593, %v5839, 0.0
        %v5914 = vsel %vm1594, %v5840, 0.0
        %v5915 = vsel %vm1595, %v5840, 0.0
        %v5916 = vsel %vm1596, %v5840, 0.0
        %v5917 = vsel %vm1597, %v5841, 0.0
        %v5918 = vsel %vm1598, %v5841, 0.0
        %v5919 = vsel %vm1599, %v5841, 0.0
        %v5920 = vsel %vm1600, %v5842, 0.0
        %v5921 = vsel %vm1601, %v5842, 0.0
        %v5922 = vsel %vm1602, %v5842, 0.0
        %v5923 = vsel %vm1603, %v5843, 0.0
        %v5924 = vsel %vm1604, %v5843, 0.0
        %v5925 = vsel %vm1605, %v5843, 0.0
        %v5926 = vsel %vm1606, %v5844, 0.0
        %v5927 = vsel %vm1607, %v5844, 0.0
        %v5928 = vsel %vm1608, %v5844, 0.0
        %v5929 = vsel %vm1609, %v5845, 0.0
        %v5930 = vsel %vm1610, %v5845, 0.0
        %v5931 = vsel %vm1611, %v5845, 0.0
        %v5932 = vsel %vm1612, %v5846, 0.0
        %v5933 = vsel %vm1613, %v5846, 0.0
        %v5934 = vsel %vm1614, %v5846, 0.0
        %v5935 = vsel %vm1615, %v5847, 0.0
        %v5936 = vsel %vm1616, %v5847, 0.0
        %v5937 = vsel %vm1617, %v5847, 0.0
        %v5938 = vsel %vm1618, %v5848, 0.0
        %v5939 = vsel %vm1619, %v5848, 0.0
        %v5940 = vsel %vm1620, %v5848, 0.0
        %v5941 = vsel %vm1621, %v5849, 0.0
        %v5942 = vsel %vm1622, %v5849, 0.0
        %v5943 = vsel %vm1623, %v5849, 0.0
        %v5944 = vsel %vm1624, %v5850, 0.0
        %v5945 = vsel %vm1625, %v5850, 0.0
        %v5946 = vsel %vm1626, %v5850, 0.0
        %v5947 = vadd.f32 %v5723, %v5851
        %v5948 = vadd.f32 %v5724, %v5852
        %v5949 = vadd.f32 %v5725, %v5853
        %v5950 = vadd.f32 %v5726, %v5854
        %v5951 = vadd.f32 %v5727, %v5855
        %v5952 = vadd.f32 %v5728, %v5856
        %v5953 = vadd.f32 %v5729, %v5857
        %v5954 = vadd.f32 %v5730, %v5858
        %v5955 = vadd.f32 %v5731, %v5859
        %v5956 = vadd.f32 %v5732, %v5860
        %v5957 = vadd.f32 %v5733, %v5861
        %v5958 = vadd.f32 %v5734, %v5862
        %v5959 = vadd.f32 %v5735, %v5863
        %v5960 = vadd.f32 %v5736, %v5864
        %v5961 = vadd.f32 %v5737, %v5865
        %v5962 = vadd.f32 %v5738, %v5866
        %v5963 = vadd.f32 %v5739, %v5867
        %v5964 = vadd.f32 %v5740, %v5868
        %v5965 = vadd.f32 %v5741, %v5869
        %v5966 = vadd.f32 %v5742, %v5870
        %v5967 = vadd.f32 %v5743, %v5871
        %v5968 = vadd.f32 %v5744, %v5872
        %v5969 = vadd.f32 %v5745, %v5873
        %v5970 = vadd.f32 %v5746, %v5874
        %v5971 = vadd.f32 %v5747, %v5875
        %v5972 = vadd.f32 %v5748, %v5876
        %v5973 = vadd.f32 %v5749, %v5877
        %v5974 = vadd.f32 %v5750, %v5878
        %v5975 = vadd.f32 %v5751, %v5879
        %v5976 = vadd.f32 %v5752, %v5880
        %v5977 = vadd.f32 %v5753, %v5881
        %v5978 = vadd.f32 %v5754, %v5882
        %v5979 = vadd.f32 %v5755, %v5883
        %v5980 = vadd.f32 %v5756, %v5884
        %v5981 = vadd.f32 %v5757, %v5885
        %v5982 = vadd.f32 %v5758, %v5886
        %v5983 = vadd.f32 %v5759, %v5887
        %v5984 = vadd.f32 %v5760, %v5888
        %v5985 = vadd.f32 %v5761, %v5889
        %v5986 = vadd.f32 %v5762, %v5890
        %v5987 = vadd.f32 %v5763, %v5891
        %v5988 = vadd.f32 %v5764, %v5892
        %v5989 = vadd.f32 %v5765, %v5893
        %v5990 = vadd.f32 %v5766, %v5894
        %v5991 = vadd.f32 %v5767, %v5895
        %v5992 = vadd.f32 %v5768, %v5896
        %v5993 = vadd.f32 %v5769, %v5897
        %v5994 = vadd.f32 %v5770, %v5898
        %v5995 = vadd.f32 %v5771, %v5899
        %v5996 = vadd.f32 %v5772, %v5900
        %v5997 = vadd.f32 %v5773, %v5901
        %v5998 = vadd.f32 %v5774, %v5902
        %v5999 = vadd.f32 %v5775, %v5903
        %v6000 = vadd.f32 %v5776, %v5904
        %v6001 = vadd.f32 %v5777, %v5905
        %v6002 = vadd.f32 %v5778, %v5906
        %v6003 = vadd.f32 %v5779, %v5907
        %v6004 = vadd.f32 %v5780, %v5908
        %v6005 = vadd.f32 %v5781, %v5909
        %v6006 = vadd.f32 %v5782, %v5910
        %v6007 = vadd.f32 %v5783, %v5911
        %v6008 = vadd.f32 %v5784, %v5912
        %v6009 = vadd.f32 %v5785, %v5913
        %v6010 = vadd.f32 %v5786, %v5914
        %v6011 = vadd.f32 %v5787, %v5915
        %v6012 = vadd.f32 %v5788, %v5916
        %v6013 = vadd.f32 %v5789, %v5917
        %v6014 = vadd.f32 %v5790, %v5918
        %v6015 = vadd.f32 %v5791, %v5919
        %v6016 = vadd.f32 %v5792, %v5920
        %v6017 = vadd.f32 %v5793, %v5921
        %v6018 = vadd.f32 %v5794, %v5922
        %v6019 = vadd.f32 %v5795, %v5923
        %v6020 = vadd.f32 %v5796, %v5924
        %v6021 = vadd.f32 %v5797, %v5925
        %v6022 = vadd.f32 %v5798, %v5926
        %v6023 = vadd.f32 %v5799, %v5927
        %v6024 = vadd.f32 %v5800, %v5928
        %v6025 = vadd.f32 %v5801, %v5929
        %v6026 = vadd.f32 %v5802, %v5930
        %v6027 = vadd.f32 %v5803, %v5931
        %v6028 = vadd.f32 %v5804, %v5932
        %v6029 = vadd.f32 %v5805, %v5933
        %v6030 = vadd.f32 %v5806, %v5934
        %v6031 = vadd.f32 %v5807, %v5935
        %v6032 = vadd.f32 %v5808, %v5936
        %v6033 = vadd.f32 %v5809, %v5937
        %v6034 = vadd.f32 %v5810, %v5938
        %v6035 = vadd.f32 %v5811, %v5939
        %v6036 = vadd.f32 %v5812, %v5940
        %v6037 = vadd.f32 %v5813, %v5941
        %v6038 = vadd.f32 %v5814, %v5942
        %v6039 = vadd.f32 %v5815, %v5943
        %v6040 = vadd.f32 %v5816, %v5944
        %v6041 = vadd.f32 %v5817, %v5945
        %v6042 = vadd.f32 %v5818, %v5946
        %v6043 = vmul.f32 %v4796, %v5563
        %v6044 = vmul.f32 %v4798, %v5564
        %v6045 = vmul.f32 %v4800, %v5565
        %v6046 = vmul.f32 %v4802, %v5566
        %v6047 = vmul.f32 %v4804, %v5567
        %v6048 = vmul.f32 %v4806, %v5568
        %v6049 = vmul.f32 %v4808, %v5569
        %v6050 = vmul.f32 %v4810, %v5570
        %v6051 = vmul.f32 %v4812, %v5571
        %v6052 = vmul.f32 %v4814, %v5572
        %v6053 = vmul.f32 %v4816, %v5573
        %v6054 = vmul.f32 %v4818, %v5574
        %v6055 = vmul.f32 %v4820, %v5575
        %v6056 = vmul.f32 %v4822, %v5576
        %v6057 = vmul.f32 %v4824, %v5577
        %v6058 = vmul.f32 %v4826, %v5578
        %v6059 = vmul.f32 %v4828, %v5579
        %v6060 = vmul.f32 %v4830, %v5580
        %v6061 = vmul.f32 %v4832, %v5581
        %v6062 = vmul.f32 %v4834, %v5582
        %v6063 = vmul.f32 %v4836, %v5583
        %v6064 = vmul.f32 %v4838, %v5584
        %v6065 = vmul.f32 %v4840, %v5585
        %v6066 = vmul.f32 %v4842, %v5586
        %v6067 = vmul.f32 %v4844, %v5587
        %v6068 = vmul.f32 %v4846, %v5588
        %v6069 = vmul.f32 %v4848, %v5589
        %v6070 = vmul.f32 %v4850, %v5590
        %v6071 = vmul.f32 %v4852, %v5591
        %v6072 = vmul.f32 %v4854, %v5592
        %v6073 = vmul.f32 %v4856, %v5593
        %v6074 = vmul.f32 %v4858, %v5594
        %v6075 = vsel %vm1947, %v6043, 0.0
        %v6076 = vsel %vm1948, %v6043, 0.0
        %v6077 = vsel %vm1949, %v6043, 0.0
        %v6078 = vsel %vm1950, %v6044, 0.0
        %v6079 = vsel %vm1951, %v6044, 0.0
        %v6080 = vsel %vm1952, %v6044, 0.0
        %v6081 = vsel %vm1953, %v6045, 0.0
        %v6082 = vsel %vm1954, %v6045, 0.0
        %v6083 = vsel %vm1955, %v6045, 0.0
        %v6084 = vsel %vm1956, %v6046, 0.0
        %v6085 = vsel %vm1957, %v6046, 0.0
        %v6086 = vsel %vm1958, %v6046, 0.0
        %v6087 = vsel %vm1959, %v6047, 0.0
        %v6088 = vsel %vm1960, %v6047, 0.0
        %v6089 = vsel %vm1961, %v6047, 0.0
        %v6090 = vsel %vm1962, %v6048, 0.0
        %v6091 = vsel %vm1963, %v6048, 0.0
        %v6092 = vsel %vm1964, %v6048, 0.0
        %v6093 = vsel %vm1965, %v6049, 0.0
        %v6094 = vsel %vm1966, %v6049, 0.0
        %v6095 = vsel %vm1967, %v6049, 0.0
        %v6096 = vsel %vm1968, %v6050, 0.0
        %v6097 = vsel %vm1969, %v6050, 0.0
        %v6098 = vsel %vm1970, %v6050, 0.0
        %v6099 = vsel %vm1971, %v6051, 0.0
        %v6100 = vsel %vm1972, %v6051, 0.0
        %v6101 = vsel %vm1973, %v6051, 0.0
        %v6102 = vsel %vm1974, %v6052, 0.0
        %v6103 = vsel %vm1975, %v6052, 0.0
        %v6104 = vsel %vm1976, %v6052, 0.0
        %v6105 = vsel %vm1977, %v6053, 0.0
        %v6106 = vsel %vm1978, %v6053, 0.0
        %v6107 = vsel %vm1979, %v6053, 0.0
        %v6108 = vsel %vm1980, %v6054, 0.0
        %v6109 = vsel %vm1981, %v6054, 0.0
        %v6110 = vsel %vm1982, %v6054, 0.0
        %v6111 = vsel %vm1983, %v6055, 0.0
        %v6112 = vsel %vm1984, %v6055, 0.0
        %v6113 = vsel %vm1985, %v6055, 0.0
        %v6114 = vsel %vm1986, %v6056, 0.0
        %v6115 = vsel %vm1987, %v6056, 0.0
        %v6116 = vsel %vm1988, %v6056, 0.0
        %v6117 = vsel %vm1989, %v6057, 0.0
        %v6118 = vsel %vm1990, %v6057, 0.0
        %v6119 = vsel %vm1991, %v6057, 0.0
        %v6120 = vsel %vm1992, %v6058, 0.0
        %v6121 = vsel %vm1993, %v6058, 0.0
        %v6122 = vsel %vm1994, %v6058, 0.0
        %v6123 = vsel %vm1995, %v6059, 0.0
        %v6124 = vsel %vm1996, %v6059, 0.0
        %v6125 = vsel %vm1997, %v6059, 0.0
        %v6126 = vsel %vm1998, %v6060, 0.0
        %v6127 = vsel %vm1999, %v6060, 0.0
        %v6128 = vsel %vm2000, %v6060, 0.0
        %v6129 = vsel %vm2001, %v6061, 0.0
        %v6130 = vsel %vm2002, %v6061, 0.0
        %v6131 = vsel %vm2003, %v6061, 0.0
        %v6132 = vsel %vm2004, %v6062, 0.0
        %v6133 = vsel %vm2005, %v6062, 0.0
        %v6134 = vsel %vm2006, %v6062, 0.0
        %v6135 = vsel %vm2007, %v6063, 0.0
        %v6136 = vsel %vm2008, %v6063, 0.0
        %v6137 = vsel %vm2009, %v6063, 0.0
        %v6138 = vsel %vm2010, %v6064, 0.0
        %v6139 = vsel %vm2011, %v6064, 0.0
        %v6140 = vsel %vm2012, %v6064, 0.0
        %v6141 = vsel %vm2013, %v6065, 0.0
        %v6142 = vsel %vm2014, %v6065, 0.0
        %v6143 = vsel %vm2015, %v6065, 0.0
        %v6144 = vsel %vm2016, %v6066, 0.0
        %v6145 = vsel %vm2017, %v6066, 0.0
        %v6146 = vsel %vm2018, %v6066, 0.0
        %v6147 = vsel %vm2019, %v6067, 0.0
        %v6148 = vsel %vm2020, %v6067, 0.0
        %v6149 = vsel %vm2021, %v6067, 0.0
        %v6150 = vsel %vm2022, %v6068, 0.0
        %v6151 = vsel %vm2023, %v6068, 0.0
        %v6152 = vsel %vm2024, %v6068, 0.0
        %v6153 = vsel %vm2025, %v6069, 0.0
        %v6154 = vsel %vm2026, %v6069, 0.0
        %v6155 = vsel %vm2027, %v6069, 0.0
        %v6156 = vsel %vm2028, %v6070, 0.0
        %v6157 = vsel %vm2029, %v6070, 0.0
        %v6158 = vsel %vm2030, %v6070, 0.0
        %v6159 = vsel %vm2031, %v6071, 0.0
        %v6160 = vsel %vm2032, %v6071, 0.0
        %v6161 = vsel %vm2033, %v6071, 0.0
        %v6162 = vsel %vm2034, %v6072, 0.0
        %v6163 = vsel %vm2035, %v6072, 0.0
        %v6164 = vsel %vm2036, %v6072, 0.0
        %v6165 = vsel %vm2037, %v6073, 0.0
        %v6166 = vsel %vm2038, %v6073, 0.0
        %v6167 = vsel %vm2039, %v6073, 0.0
        %v6168 = vsel %vm2040, %v6074, 0.0
        %v6169 = vsel %vm2041, %v6074, 0.0
        %v6170 = vsel %vm2042, %v6074, 0.0
        %v6171 = vadd.f32 %v5947, %v6075
        %v6172 = vadd.f32 %v5948, %v6076
        %v6173 = vadd.f32 %v5949, %v6077
        %v6174 = vadd.f32 %v5950, %v6078
        %v6175 = vadd.f32 %v5951, %v6079
        %v6176 = vadd.f32 %v5952, %v6080
        %v6177 = vadd.f32 %v5953, %v6081
        %v6178 = vadd.f32 %v5954, %v6082
        %v6179 = vadd.f32 %v5955, %v6083
        %v6180 = vadd.f32 %v5956, %v6084
        %v6181 = vadd.f32 %v5957, %v6085
        %v6182 = vadd.f32 %v5958, %v6086
        %v6183 = vadd.f32 %v5959, %v6087
        %v6184 = vadd.f32 %v5960, %v6088
        %v6185 = vadd.f32 %v5961, %v6089
        %v6186 = vadd.f32 %v5962, %v6090
        %v6187 = vadd.f32 %v5963, %v6091
        %v6188 = vadd.f32 %v5964, %v6092
        %v6189 = vadd.f32 %v5965, %v6093
        %v6190 = vadd.f32 %v5966, %v6094
        %v6191 = vadd.f32 %v5967, %v6095
        %v6192 = vadd.f32 %v5968, %v6096
        %v6193 = vadd.f32 %v5969, %v6097
        %v6194 = vadd.f32 %v5970, %v6098
        %v6195 = vadd.f32 %v5971, %v6099
        %v6196 = vadd.f32 %v5972, %v6100
        %v6197 = vadd.f32 %v5973, %v6101
        %v6198 = vadd.f32 %v5974, %v6102
        %v6199 = vadd.f32 %v5975, %v6103
        %v6200 = vadd.f32 %v5976, %v6104
        %v6201 = vadd.f32 %v5977, %v6105
        %v6202 = vadd.f32 %v5978, %v6106
        %v6203 = vadd.f32 %v5979, %v6107
        %v6204 = vadd.f32 %v5980, %v6108
        %v6205 = vadd.f32 %v5981, %v6109
        %v6206 = vadd.f32 %v5982, %v6110
        %v6207 = vadd.f32 %v5983, %v6111
        %v6208 = vadd.f32 %v5984, %v6112
        %v6209 = vadd.f32 %v5985, %v6113
        %v6210 = vadd.f32 %v5986, %v6114
        %v6211 = vadd.f32 %v5987, %v6115
        %v6212 = vadd.f32 %v5988, %v6116
        %v6213 = vadd.f32 %v5989, %v6117
        %v6214 = vadd.f32 %v5990, %v6118
        %v6215 = vadd.f32 %v5991, %v6119
        %v6216 = vadd.f32 %v5992, %v6120
        %v6217 = vadd.f32 %v5993, %v6121
        %v6218 = vadd.f32 %v5994, %v6122
        %v6219 = vadd.f32 %v5995, %v6123
        %v6220 = vadd.f32 %v5996, %v6124
        %v6221 = vadd.f32 %v5997, %v6125
        %v6222 = vadd.f32 %v5998, %v6126
        %v6223 = vadd.f32 %v5999, %v6127
        %v6224 = vadd.f32 %v6000, %v6128
        %v6225 = vadd.f32 %v6001, %v6129
        %v6226 = vadd.f32 %v6002, %v6130
        %v6227 = vadd.f32 %v6003, %v6131
        %v6228 = vadd.f32 %v6004, %v6132
        %v6229 = vadd.f32 %v6005, %v6133
        %v6230 = vadd.f32 %v6006, %v6134
        %v6231 = vadd.f32 %v6007, %v6135
        %v6232 = vadd.f32 %v6008, %v6136
        %v6233 = vadd.f32 %v6009, %v6137
        %v6234 = vadd.f32 %v6010, %v6138
        %v6235 = vadd.f32 %v6011, %v6139
        %v6236 = vadd.f32 %v6012, %v6140
        %v6237 = vadd.f32 %v6013, %v6141
        %v6238 = vadd.f32 %v6014, %v6142
        %v6239 = vadd.f32 %v6015, %v6143
        %v6240 = vadd.f32 %v6016, %v6144
        %v6241 = vadd.f32 %v6017, %v6145
        %v6242 = vadd.f32 %v6018, %v6146
        %v6243 = vadd.f32 %v6019, %v6147
        %v6244 = vadd.f32 %v6020, %v6148
        %v6245 = vadd.f32 %v6021, %v6149
        %v6246 = vadd.f32 %v6022, %v6150
        %v6247 = vadd.f32 %v6023, %v6151
        %v6248 = vadd.f32 %v6024, %v6152
        %v6249 = vadd.f32 %v6025, %v6153
        %v6250 = vadd.f32 %v6026, %v6154
        %v6251 = vadd.f32 %v6027, %v6155
        %v6252 = vadd.f32 %v6028, %v6156
        %v6253 = vadd.f32 %v6029, %v6157
        %v6254 = vadd.f32 %v6030, %v6158
        %v6255 = vadd.f32 %v6031, %v6159
        %v6256 = vadd.f32 %v6032, %v6160
        %v6257 = vadd.f32 %v6033, %v6161
        %v6258 = vadd.f32 %v6034, %v6162
        %v6259 = vadd.f32 %v6035, %v6163
        %v6260 = vadd.f32 %v6036, %v6164
        %v6261 = vadd.f32 %v6037, %v6165
        %v6262 = vadd.f32 %v6038, %v6166
        %v6263 = vadd.f32 %v6039, %v6167
        %v6264 = vadd.f32 %v6040, %v6168
        %v6265 = vadd.f32 %v6041, %v6169
        %v6266 = vadd.f32 %v6042, %v6170
        %v6267 = vmul.f32 %v4892, %v5563
        %v6268 = vmul.f32 %v4894, %v5564
        %v6269 = vmul.f32 %v4896, %v5565
        %v6270 = vmul.f32 %v4898, %v5566
        %v6271 = vmul.f32 %v4900, %v5567
        %v6272 = vmul.f32 %v4902, %v5568
        %v6273 = vmul.f32 %v4904, %v5569
        %v6274 = vmul.f32 %v4906, %v5570
        %v6275 = vmul.f32 %v4908, %v5571
        %v6276 = vmul.f32 %v4910, %v5572
        %v6277 = vmul.f32 %v4912, %v5573
        %v6278 = vmul.f32 %v4914, %v5574
        %v6279 = vmul.f32 %v4916, %v5575
        %v6280 = vmul.f32 %v4918, %v5576
        %v6281 = vmul.f32 %v4920, %v5577
        %v6282 = vmul.f32 %v4922, %v5578
        %v6283 = vmul.f32 %v4924, %v5579
        %v6284 = vmul.f32 %v4926, %v5580
        %v6285 = vmul.f32 %v4928, %v5581
        %v6286 = vmul.f32 %v4930, %v5582
        %v6287 = vmul.f32 %v4932, %v5583
        %v6288 = vmul.f32 %v4934, %v5584
        %v6289 = vmul.f32 %v4936, %v5585
        %v6290 = vmul.f32 %v4938, %v5586
        %v6291 = vmul.f32 %v4940, %v5587
        %v6292 = vmul.f32 %v4942, %v5588
        %v6293 = vmul.f32 %v4944, %v5589
        %v6294 = vmul.f32 %v4946, %v5590
        %v6295 = vmul.f32 %v4948, %v5591
        %v6296 = vmul.f32 %v4950, %v5592
        %v6297 = vmul.f32 %v4952, %v5593
        %v6298 = vmul.f32 %v4954, %v5594
        %v6299 = vsel %vm2363, %v6267, 0.0
        %v6300 = vsel %vm2364, %v6267, 0.0
        %v6301 = vsel %vm2365, %v6267, 0.0
        %v6302 = vsel %vm2366, %v6268, 0.0
        %v6303 = vsel %vm2367, %v6268, 0.0
        %v6304 = vsel %vm2368, %v6268, 0.0
        %v6305 = vsel %vm2369, %v6269, 0.0
        %v6306 = vsel %vm2370, %v6269, 0.0
        %v6307 = vsel %vm2371, %v6269, 0.0
        %v6308 = vsel %vm2372, %v6270, 0.0
        %v6309 = vsel %vm2373, %v6270, 0.0
        %v6310 = vsel %vm2374, %v6270, 0.0
        %v6311 = vsel %vm2375, %v6271, 0.0
        %v6312 = vsel %vm2376, %v6271, 0.0
        %v6313 = vsel %vm2377, %v6271, 0.0
        %v6314 = vsel %vm2378, %v6272, 0.0
        %v6315 = vsel %vm2379, %v6272, 0.0
        %v6316 = vsel %vm2380, %v6272, 0.0
        %v6317 = vsel %vm2381, %v6273, 0.0
        %v6318 = vsel %vm2382, %v6273, 0.0
        %v6319 = vsel %vm2383, %v6273, 0.0
        %v6320 = vsel %vm2384, %v6274, 0.0
        %v6321 = vsel %vm2385, %v6274, 0.0
        %v6322 = vsel %vm2386, %v6274, 0.0
        %v6323 = vsel %vm2387, %v6275, 0.0
        %v6324 = vsel %vm2388, %v6275, 0.0
        %v6325 = vsel %vm2389, %v6275, 0.0
        %v6326 = vsel %vm2390, %v6276, 0.0
        %v6327 = vsel %vm2391, %v6276, 0.0
        %v6328 = vsel %vm2392, %v6276, 0.0
        %v6329 = vsel %vm2393, %v6277, 0.0
        %v6330 = vsel %vm2394, %v6277, 0.0
        %v6331 = vsel %vm2395, %v6277, 0.0
        %v6332 = vsel %vm2396, %v6278, 0.0
        %v6333 = vsel %vm2397, %v6278, 0.0
        %v6334 = vsel %vm2398, %v6278, 0.0
        %v6335 = vsel %vm2399, %v6279, 0.0
        %v6336 = vsel %vm2400, %v6279, 0.0
        %v6337 = vsel %vm2401, %v6279, 0.0
        %v6338 = vsel %vm2402, %v6280, 0.0
        %v6339 = vsel %vm2403, %v6280, 0.0
        %v6340 = vsel %vm2404, %v6280, 0.0
        %v6341 = vsel %vm2405, %v6281, 0.0
        %v6342 = vsel %vm2406, %v6281, 0.0
        %v6343 = vsel %vm2407, %v6281, 0.0
        %v6344 = vsel %vm2408, %v6282, 0.0
        %v6345 = vsel %vm2409, %v6282, 0.0
        %v6346 = vsel %vm2410, %v6282, 0.0
        %v6347 = vsel %vm2411, %v6283, 0.0
        %v6348 = vsel %vm2412, %v6283, 0.0
        %v6349 = vsel %vm2413, %v6283, 0.0
        %v6350 = vsel %vm2414, %v6284, 0.0
        %v6351 = vsel %vm2415, %v6284, 0.0
        %v6352 = vsel %vm2416, %v6284, 0.0
        %v6353 = vsel %vm2417, %v6285, 0.0
        %v6354 = vsel %vm2418, %v6285, 0.0
        %v6355 = vsel %vm2419, %v6285, 0.0
        %v6356 = vsel %vm2420, %v6286, 0.0
        %v6357 = vsel %vm2421, %v6286, 0.0
        %v6358 = vsel %vm2422, %v6286, 0.0
        %v6359 = vsel %vm2423, %v6287, 0.0
        %v6360 = vsel %vm2424, %v6287, 0.0
        %v6361 = vsel %vm2425, %v6287, 0.0
        %v6362 = vsel %vm2426, %v6288, 0.0
        %v6363 = vsel %vm2427, %v6288, 0.0
        %v6364 = vsel %vm2428, %v6288, 0.0
        %v6365 = vsel %vm2429, %v6289, 0.0
        %v6366 = vsel %vm2430, %v6289, 0.0
        %v6367 = vsel %vm2431, %v6289, 0.0
        %v6368 = vsel %vm2432, %v6290, 0.0
        %v6369 = vsel %vm2433, %v6290, 0.0
        %v6370 = vsel %vm2434, %v6290, 0.0
        %v6371 = vsel %vm2435, %v6291, 0.0
        %v6372 = vsel %vm2436, %v6291, 0.0
        %v6373 = vsel %vm2437, %v6291, 0.0
        %v6374 = vsel %vm2438, %v6292, 0.0
        %v6375 = vsel %vm2439, %v6292, 0.0
        %v6376 = vsel %vm2440, %v6292, 0.0
        %v6377 = vsel %vm2441, %v6293, 0.0
        %v6378 = vsel %vm2442, %v6293, 0.0
        %v6379 = vsel %vm2443, %v6293, 0.0
        %v6380 = vsel %vm2444, %v6294, 0.0
        %v6381 = vsel %vm2445, %v6294, 0.0
        %v6382 = vsel %vm2446, %v6294, 0.0
        %v6383 = vsel %vm2447, %v6295, 0.0
        %v6384 = vsel %vm2448, %v6295, 0.0
        %v6385 = vsel %vm2449, %v6295, 0.0
        %v6386 = vsel %vm2450, %v6296, 0.0
        %v6387 = vsel %vm2451, %v6296, 0.0
        %v6388 = vsel %vm2452, %v6296, 0.0
        %v6389 = vsel %vm2453, %v6297, 0.0
        %v6390 = vsel %vm2454, %v6297, 0.0
        %v6391 = vsel %vm2455, %v6297, 0.0
        %v6392 = vsel %vm2456, %v6298, 0.0
        %v6393 = vsel %vm2457, %v6298, 0.0
        %v6394 = vsel %vm2458, %v6298, 0.0
        %v6395 = vadd.f32 %v6171, %v6299
        %v6396 = vadd.f32 %v6172, %v6300
        %v6397 = vadd.f32 %v6173, %v6301
        %v6398 = vadd.f32 %v6174, %v6302
        %v6399 = vadd.f32 %v6175, %v6303
        %v6400 = vadd.f32 %v6176, %v6304
        %v6401 = vadd.f32 %v6177, %v6305
        %v6402 = vadd.f32 %v6178, %v6306
        %v6403 = vadd.f32 %v6179, %v6307
        %v6404 = vadd.f32 %v6180, %v6308
        %v6405 = vadd.f32 %v6181, %v6309
        %v6406 = vadd.f32 %v6182, %v6310
        %v6407 = vadd.f32 %v6183, %v6311
        %v6408 = vadd.f32 %v6184, %v6312
        %v6409 = vadd.f32 %v6185, %v6313
        %v6410 = vadd.f32 %v6186, %v6314
        %v6411 = vadd.f32 %v6187, %v6315
        %v6412 = vadd.f32 %v6188, %v6316
        %v6413 = vadd.f32 %v6189, %v6317
        %v6414 = vadd.f32 %v6190, %v6318
        %v6415 = vadd.f32 %v6191, %v6319
        %v6416 = vadd.f32 %v6192, %v6320
        %v6417 = vadd.f32 %v6193, %v6321
        %v6418 = vadd.f32 %v6194, %v6322
        %v6419 = vadd.f32 %v6195, %v6323
        %v6420 = vadd.f32 %v6196, %v6324
        %v6421 = vadd.f32 %v6197, %v6325
        %v6422 = vadd.f32 %v6198, %v6326
        %v6423 = vadd.f32 %v6199, %v6327
        %v6424 = vadd.f32 %v6200, %v6328
        %v6425 = vadd.f32 %v6201, %v6329
        %v6426 = vadd.f32 %v6202, %v6330
        %v6427 = vadd.f32 %v6203, %v6331
        %v6428 = vadd.f32 %v6204, %v6332
        %v6429 = vadd.f32 %v6205, %v6333
        %v6430 = vadd.f32 %v6206, %v6334
        %v6431 = vadd.f32 %v6207, %v6335
        %v6432 = vadd.f32 %v6208, %v6336
        %v6433 = vadd.f32 %v6209, %v6337
        %v6434 = vadd.f32 %v6210, %v6338
        %v6435 = vadd.f32 %v6211, %v6339
        %v6436 = vadd.f32 %v6212, %v6340
        %v6437 = vadd.f32 %v6213, %v6341
        %v6438 = vadd.f32 %v6214, %v6342
        %v6439 = vadd.f32 %v6215, %v6343
        %v6440 = vadd.f32 %v6216, %v6344
        %v6441 = vadd.f32 %v6217, %v6345
        %v6442 = vadd.f32 %v6218, %v6346
        %v6443 = vadd.f32 %v6219, %v6347
        %v6444 = vadd.f32 %v6220, %v6348
        %v6445 = vadd.f32 %v6221, %v6349
        %v6446 = vadd.f32 %v6222, %v6350
        %v6447 = vadd.f32 %v6223, %v6351
        %v6448 = vadd.f32 %v6224, %v6352
        %v6449 = vadd.f32 %v6225, %v6353
        %v6450 = vadd.f32 %v6226, %v6354
        %v6451 = vadd.f32 %v6227, %v6355
        %v6452 = vadd.f32 %v6228, %v6356
        %v6453 = vadd.f32 %v6229, %v6357
        %v6454 = vadd.f32 %v6230, %v6358
        %v6455 = vadd.f32 %v6231, %v6359
        %v6456 = vadd.f32 %v6232, %v6360
        %v6457 = vadd.f32 %v6233, %v6361
        %v6458 = vadd.f32 %v6234, %v6362
        %v6459 = vadd.f32 %v6235, %v6363
        %v6460 = vadd.f32 %v6236, %v6364
        %v6461 = vadd.f32 %v6237, %v6365
        %v6462 = vadd.f32 %v6238, %v6366
        %v6463 = vadd.f32 %v6239, %v6367
        %v6464 = vadd.f32 %v6240, %v6368
        %v6465 = vadd.f32 %v6241, %v6369
        %v6466 = vadd.f32 %v6242, %v6370
        %v6467 = vadd.f32 %v6243, %v6371
        %v6468 = vadd.f32 %v6244, %v6372
        %v6469 = vadd.f32 %v6245, %v6373
        %v6470 = vadd.f32 %v6246, %v6374
        %v6471 = vadd.f32 %v6247, %v6375
        %v6472 = vadd.f32 %v6248, %v6376
        %v6473 = vadd.f32 %v6249, %v6377
        %v6474 = vadd.f32 %v6250, %v6378
        %v6475 = vadd.f32 %v6251, %v6379
        %v6476 = vadd.f32 %v6252, %v6380
        %v6477 = vadd.f32 %v6253, %v6381
        %v6478 = vadd.f32 %v6254, %v6382
        %v6479 = vadd.f32 %v6255, %v6383
        %v6480 = vadd.f32 %v6256, %v6384
        %v6481 = vadd.f32 %v6257, %v6385
        %v6482 = vadd.f32 %v6258, %v6386
        %v6483 = vadd.f32 %v6259, %v6387
        %v6484 = vadd.f32 %v6260, %v6388
        %v6485 = vadd.f32 %v6261, %v6389
        %v6486 = vadd.f32 %v6262, %v6390
        %v6487 = vadd.f32 %v6263, %v6391
        %v6488 = vadd.f32 %v6264, %v6392
        %v6489 = vadd.f32 %v6265, %v6393
        %v6490 = vadd.f32 %v6266, %v6394
        %v6491 = vmul.f32 %v4988, %v5563
        %v6492 = vmul.f32 %v4990, %v5564
        %v6493 = vmul.f32 %v4992, %v5565
        %v6494 = vmul.f32 %v4994, %v5566
        %v6495 = vmul.f32 %v4996, %v5567
        %v6496 = vmul.f32 %v4998, %v5568
        %v6497 = vmul.f32 %v5000, %v5569
        %v6498 = vmul.f32 %v5002, %v5570
        %v6499 = vmul.f32 %v5004, %v5571
        %v6500 = vmul.f32 %v5006, %v5572
        %v6501 = vmul.f32 %v5008, %v5573
        %v6502 = vmul.f32 %v5010, %v5574
        %v6503 = vmul.f32 %v5012, %v5575
        %v6504 = vmul.f32 %v5014, %v5576
        %v6505 = vmul.f32 %v5016, %v5577
        %v6506 = vmul.f32 %v5018, %v5578
        %v6507 = vmul.f32 %v5020, %v5579
        %v6508 = vmul.f32 %v5022, %v5580
        %v6509 = vmul.f32 %v5024, %v5581
        %v6510 = vmul.f32 %v5026, %v5582
        %v6511 = vmul.f32 %v5028, %v5583
        %v6512 = vmul.f32 %v5030, %v5584
        %v6513 = vmul.f32 %v5032, %v5585
        %v6514 = vmul.f32 %v5034, %v5586
        %v6515 = vmul.f32 %v5036, %v5587
        %v6516 = vmul.f32 %v5038, %v5588
        %v6517 = vmul.f32 %v5040, %v5589
        %v6518 = vmul.f32 %v5042, %v5590
        %v6519 = vmul.f32 %v5044, %v5591
        %v6520 = vmul.f32 %v5046, %v5592
        %v6521 = vmul.f32 %v5048, %v5593
        %v6522 = vmul.f32 %v5050, %v5594
        %v6523 = vsel %vm2779, %v6491, 0.0
        %v6524 = vsel %vm2780, %v6491, 0.0
        %v6525 = vsel %vm2781, %v6491, 0.0
        %v6526 = vsel %vm2782, %v6492, 0.0
        %v6527 = vsel %vm2783, %v6492, 0.0
        %v6528 = vsel %vm2784, %v6492, 0.0
        %v6529 = vsel %vm2785, %v6493, 0.0
        %v6530 = vsel %vm2786, %v6493, 0.0
        %v6531 = vsel %vm2787, %v6493, 0.0
        %v6532 = vsel %vm2788, %v6494, 0.0
        %v6533 = vsel %vm2789, %v6494, 0.0
        %v6534 = vsel %vm2790, %v6494, 0.0
        %v6535 = vsel %vm2791, %v6495, 0.0
        %v6536 = vsel %vm2792, %v6495, 0.0
        %v6537 = vsel %vm2793, %v6495, 0.0
        %v6538 = vsel %vm2794, %v6496, 0.0
        %v6539 = vsel %vm2795, %v6496, 0.0
        %v6540 = vsel %vm2796, %v6496, 0.0
        %v6541 = vsel %vm2797, %v6497, 0.0
        %v6542 = vsel %vm2798, %v6497, 0.0
        %v6543 = vsel %vm2799, %v6497, 0.0
        %v6544 = vsel %vm2800, %v6498, 0.0
        %v6545 = vsel %vm2801, %v6498, 0.0
        %v6546 = vsel %vm2802, %v6498, 0.0
        %v6547 = vsel %vm2803, %v6499, 0.0
        %v6548 = vsel %vm2804, %v6499, 0.0
        %v6549 = vsel %vm2805, %v6499, 0.0
        %v6550 = vsel %vm2806, %v6500, 0.0
        %v6551 = vsel %vm2807, %v6500, 0.0
        %v6552 = vsel %vm2808, %v6500, 0.0
        %v6553 = vsel %vm2809, %v6501, 0.0
        %v6554 = vsel %vm2810, %v6501, 0.0
        %v6555 = vsel %vm2811, %v6501, 0.0
        %v6556 = vsel %vm2812, %v6502, 0.0
        %v6557 = vsel %vm2813, %v6502, 0.0
        %v6558 = vsel %vm2814, %v6502, 0.0
        %v6559 = vsel %vm2815, %v6503, 0.0
        %v6560 = vsel %vm2816, %v6503, 0.0
        %v6561 = vsel %vm2817, %v6503, 0.0
        %v6562 = vsel %vm2818, %v6504, 0.0
        %v6563 = vsel %vm2819, %v6504, 0.0
        %v6564 = vsel %vm2820, %v6504, 0.0
        %v6565 = vsel %vm2821, %v6505, 0.0
        %v6566 = vsel %vm2822, %v6505, 0.0
        %v6567 = vsel %vm2823, %v6505, 0.0
        %v6568 = vsel %vm2824, %v6506, 0.0
        %v6569 = vsel %vm2825, %v6506, 0.0
        %v6570 = vsel %vm2826, %v6506, 0.0
        %v6571 = vsel %vm2827, %v6507, 0.0
        %v6572 = vsel %vm2828, %v6507, 0.0
        %v6573 = vsel %vm2829, %v6507, 0.0
        %v6574 = vsel %vm2830, %v6508, 0.0
        %v6575 = vsel %vm2831, %v6508, 0.0
        %v6576 = vsel %vm2832, %v6508, 0.0
        %v6577 = vsel %vm2833, %v6509, 0.0
        %v6578 = vsel %vm2834, %v6509, 0.0
        %v6579 = vsel %vm2835, %v6509, 0.0
        %v6580 = vsel %vm2836, %v6510, 0.0
        %v6581 = vsel %vm2837, %v6510, 0.0
        %v6582 = vsel %vm2838, %v6510, 0.0
        %v6583 = vsel %vm2839, %v6511, 0.0
        %v6584 = vsel %vm2840, %v6511, 0.0
        %v6585 = vsel %vm2841, %v6511, 0.0
        %v6586 = vsel %vm2842, %v6512, 0.0
        %v6587 = vsel %vm2843, %v6512, 0.0
        %v6588 = vsel %vm2844, %v6512, 0.0
        %v6589 = vsel %vm2845, %v6513, 0.0
        %v6590 = vsel %vm2846, %v6513, 0.0
        %v6591 = vsel %vm2847, %v6513, 0.0
        %v6592 = vsel %vm2848, %v6514, 0.0
        %v6593 = vsel %vm2849, %v6514, 0.0
        %v6594 = vsel %vm2850, %v6514, 0.0
        %v6595 = vsel %vm2851, %v6515, 0.0
        %v6596 = vsel %vm2852, %v6515, 0.0
        %v6597 = vsel %vm2853, %v6515, 0.0
        %v6598 = vsel %vm2854, %v6516, 0.0
        %v6599 = vsel %vm2855, %v6516, 0.0
        %v6600 = vsel %vm2856, %v6516, 0.0
        %v6601 = vsel %vm2857, %v6517, 0.0
        %v6602 = vsel %vm2858, %v6517, 0.0
        %v6603 = vsel %vm2859, %v6517, 0.0
        %v6604 = vsel %vm2860, %v6518, 0.0
        %v6605 = vsel %vm2861, %v6518, 0.0
        %v6606 = vsel %vm2862, %v6518, 0.0
        %v6607 = vsel %vm2863, %v6519, 0.0
        %v6608 = vsel %vm2864, %v6519, 0.0
        %v6609 = vsel %vm2865, %v6519, 0.0
        %v6610 = vsel %vm2866, %v6520, 0.0
        %v6611 = vsel %vm2867, %v6520, 0.0
        %v6612 = vsel %vm2868, %v6520, 0.0
        %v6613 = vsel %vm2869, %v6521, 0.0
        %v6614 = vsel %vm2870, %v6521, 0.0
        %v6615 = vsel %vm2871, %v6521, 0.0
        %v6616 = vsel %vm2872, %v6522, 0.0
        %v6617 = vsel %vm2873, %v6522, 0.0
        %v6618 = vsel %vm2874, %v6522, 0.0
        %v6619 = vadd.f32 %v6395, %v6523
        %v6620 = vadd.f32 %v6396, %v6524
        %v6621 = vadd.f32 %v6397, %v6525
        %v6622 = vadd.f32 %v6398, %v6526
        %v6623 = vadd.f32 %v6399, %v6527
        %v6624 = vadd.f32 %v6400, %v6528
        %v6625 = vadd.f32 %v6401, %v6529
        %v6626 = vadd.f32 %v6402, %v6530
        %v6627 = vadd.f32 %v6403, %v6531
        %v6628 = vadd.f32 %v6404, %v6532
        %v6629 = vadd.f32 %v6405, %v6533
        %v6630 = vadd.f32 %v6406, %v6534
        %v6631 = vadd.f32 %v6407, %v6535
        %v6632 = vadd.f32 %v6408, %v6536
        %v6633 = vadd.f32 %v6409, %v6537
        %v6634 = vadd.f32 %v6410, %v6538
        %v6635 = vadd.f32 %v6411, %v6539
        %v6636 = vadd.f32 %v6412, %v6540
        %v6637 = vadd.f32 %v6413, %v6541
        %v6638 = vadd.f32 %v6414, %v6542
        %v6639 = vadd.f32 %v6415, %v6543
        %v6640 = vadd.f32 %v6416, %v6544
        %v6641 = vadd.f32 %v6417, %v6545
        %v6642 = vadd.f32 %v6418, %v6546
        %v6643 = vadd.f32 %v6419, %v6547
        %v6644 = vadd.f32 %v6420, %v6548
        %v6645 = vadd.f32 %v6421, %v6549
        %v6646 = vadd.f32 %v6422, %v6550
        %v6647 = vadd.f32 %v6423, %v6551
        %v6648 = vadd.f32 %v6424, %v6552
        %v6649 = vadd.f32 %v6425, %v6553
        %v6650 = vadd.f32 %v6426, %v6554
        %v6651 = vadd.f32 %v6427, %v6555
        %v6652 = vadd.f32 %v6428, %v6556
        %v6653 = vadd.f32 %v6429, %v6557
        %v6654 = vadd.f32 %v6430, %v6558
        %v6655 = vadd.f32 %v6431, %v6559
        %v6656 = vadd.f32 %v6432, %v6560
        %v6657 = vadd.f32 %v6433, %v6561
        %v6658 = vadd.f32 %v6434, %v6562
        %v6659 = vadd.f32 %v6435, %v6563
        %v6660 = vadd.f32 %v6436, %v6564
        %v6661 = vadd.f32 %v6437, %v6565
        %v6662 = vadd.f32 %v6438, %v6566
        %v6663 = vadd.f32 %v6439, %v6567
        %v6664 = vadd.f32 %v6440, %v6568
        %v6665 = vadd.f32 %v6441, %v6569
        %v6666 = vadd.f32 %v6442, %v6570
        %v6667 = vadd.f32 %v6443, %v6571
        %v6668 = vadd.f32 %v6444, %v6572
        %v6669 = vadd.f32 %v6445, %v6573
        %v6670 = vadd.f32 %v6446, %v6574
        %v6671 = vadd.f32 %v6447, %v6575
        %v6672 = vadd.f32 %v6448, %v6576
        %v6673 = vadd.f32 %v6449, %v6577
        %v6674 = vadd.f32 %v6450, %v6578
        %v6675 = vadd.f32 %v6451, %v6579
        %v6676 = vadd.f32 %v6452, %v6580
        %v6677 = vadd.f32 %v6453, %v6581
        %v6678 = vadd.f32 %v6454, %v6582
        %v6679 = vadd.f32 %v6455, %v6583
        %v6680 = vadd.f32 %v6456, %v6584
        %v6681 = vadd.f32 %v6457, %v6585
        %v6682 = vadd.f32 %v6458, %v6586
        %v6683 = vadd.f32 %v6459, %v6587
        %v6684 = vadd.f32 %v6460, %v6588
        %v6685 = vadd.f32 %v6461, %v6589
        %v6686 = vadd.f32 %v6462, %v6590
        %v6687 = vadd.f32 %v6463, %v6591
        %v6688 = vadd.f32 %v6464, %v6592
        %v6689 = vadd.f32 %v6465, %v6593
        %v6690 = vadd.f32 %v6466, %v6594
        %v6691 = vadd.f32 %v6467, %v6595
        %v6692 = vadd.f32 %v6468, %v6596
        %v6693 = vadd.f32 %v6469, %v6597
        %v6694 = vadd.f32 %v6470, %v6598
        %v6695 = vadd.f32 %v6471, %v6599
        %v6696 = vadd.f32 %v6472, %v6600
        %v6697 = vadd.f32 %v6473, %v6601
        %v6698 = vadd.f32 %v6474, %v6602
        %v6699 = vadd.f32 %v6475, %v6603
        %v6700 = vadd.f32 %v6476, %v6604
        %v6701 = vadd.f32 %v6477, %v6605
        %v6702 = vadd.f32 %v6478, %v6606
        %v6703 = vadd.f32 %v6479, %v6607
        %v6704 = vadd.f32 %v6480, %v6608
        %v6705 = vadd.f32 %v6481, %v6609
        %v6706 = vadd.f32 %v6482, %v6610
        %v6707 = vadd.f32 %v6483, %v6611
        %v6708 = vadd.f32 %v6484, %v6612
        %v6709 = vadd.f32 %v6485, %v6613
        %v6710 = vadd.f32 %v6486, %v6614
        %v6711 = vadd.f32 %v6487, %v6615
        %v6712 = vadd.f32 %v6488, %v6616
        %v6713 = vadd.f32 %v6489, %v6617
        %v6714 = vadd.f32 %v6490, %v6618
        %v6715 = vmul.f32 %v5084, %v5563
        %v6716 = vmul.f32 %v5086, %v5564
        %v6717 = vmul.f32 %v5088, %v5565
        %v6718 = vmul.f32 %v5090, %v5566
        %v6719 = vmul.f32 %v5092, %v5567
        %v6720 = vmul.f32 %v5094, %v5568
        %v6721 = vmul.f32 %v5096, %v5569
        %v6722 = vmul.f32 %v5098, %v5570
        %v6723 = vmul.f32 %v5100, %v5571
        %v6724 = vmul.f32 %v5102, %v5572
        %v6725 = vmul.f32 %v5104, %v5573
        %v6726 = vmul.f32 %v5106, %v5574
        %v6727 = vmul.f32 %v5108, %v5575
        %v6728 = vmul.f32 %v5110, %v5576
        %v6729 = vmul.f32 %v5112, %v5577
        %v6730 = vmul.f32 %v5114, %v5578
        %v6731 = vmul.f32 %v5116, %v5579
        %v6732 = vmul.f32 %v5118, %v5580
        %v6733 = vmul.f32 %v5120, %v5581
        %v6734 = vmul.f32 %v5122, %v5582
        %v6735 = vmul.f32 %v5124, %v5583
        %v6736 = vmul.f32 %v5126, %v5584
        %v6737 = vmul.f32 %v5128, %v5585
        %v6738 = vmul.f32 %v5130, %v5586
        %v6739 = vmul.f32 %v5132, %v5587
        %v6740 = vmul.f32 %v5134, %v5588
        %v6741 = vmul.f32 %v5136, %v5589
        %v6742 = vmul.f32 %v5138, %v5590
        %v6743 = vmul.f32 %v5140, %v5591
        %v6744 = vmul.f32 %v5142, %v5592
        %v6745 = vmul.f32 %v5144, %v5593
        %v6746 = vmul.f32 %v5146, %v5594
        %v6747 = vsel %vm3195, %v6715, 0.0
        %v6748 = vsel %vm3196, %v6715, 0.0
        %v6749 = vsel %vm3197, %v6715, 0.0
        %v6750 = vsel %vm3198, %v6716, 0.0
        %v6751 = vsel %vm3199, %v6716, 0.0
        %v6752 = vsel %vm3200, %v6716, 0.0
        %v6753 = vsel %vm3201, %v6717, 0.0
        %v6754 = vsel %vm3202, %v6717, 0.0
        %v6755 = vsel %vm3203, %v6717, 0.0
        %v6756 = vsel %vm3204, %v6718, 0.0
        %v6757 = vsel %vm3205, %v6718, 0.0
        %v6758 = vsel %vm3206, %v6718, 0.0
        %v6759 = vsel %vm3207, %v6719, 0.0
        %v6760 = vsel %vm3208, %v6719, 0.0
        %v6761 = vsel %vm3209, %v6719, 0.0
        %v6762 = vsel %vm3210, %v6720, 0.0
        %v6763 = vsel %vm3211, %v6720, 0.0
        %v6764 = vsel %vm3212, %v6720, 0.0
        %v6765 = vsel %vm3213, %v6721, 0.0
        %v6766 = vsel %vm3214, %v6721, 0.0
        %v6767 = vsel %vm3215, %v6721, 0.0
        %v6768 = vsel %vm3216, %v6722, 0.0
        %v6769 = vsel %vm3217, %v6722, 0.0
        %v6770 = vsel %vm3218, %v6722, 0.0
        %v6771 = vsel %vm3219, %v6723, 0.0
        %v6772 = vsel %vm3220, %v6723, 0.0
        %v6773 = vsel %vm3221, %v6723, 0.0
        %v6774 = vsel %vm3222, %v6724, 0.0
        %v6775 = vsel %vm3223, %v6724, 0.0
        %v6776 = vsel %vm3224, %v6724, 0.0
        %v6777 = vsel %vm3225, %v6725, 0.0
        %v6778 = vsel %vm3226, %v6725, 0.0
        %v6779 = vsel %vm3227, %v6725, 0.0
        %v6780 = vsel %vm3228, %v6726, 0.0
        %v6781 = vsel %vm3229, %v6726, 0.0
        %v6782 = vsel %vm3230, %v6726, 0.0
        %v6783 = vsel %vm3231, %v6727, 0.0
        %v6784 = vsel %vm3232, %v6727, 0.0
        %v6785 = vsel %vm3233, %v6727, 0.0
        %v6786 = vsel %vm3234, %v6728, 0.0
        %v6787 = vsel %vm3235, %v6728, 0.0
        %v6788 = vsel %vm3236, %v6728, 0.0
        %v6789 = vsel %vm3237, %v6729, 0.0
        %v6790 = vsel %vm3238, %v6729, 0.0
        %v6791 = vsel %vm3239, %v6729, 0.0
        %v6792 = vsel %vm3240, %v6730, 0.0
        %v6793 = vsel %vm3241, %v6730, 0.0
        %v6794 = vsel %vm3242, %v6730, 0.0
        %v6795 = vsel %vm3243, %v6731, 0.0
        %v6796 = vsel %vm3244, %v6731, 0.0
        %v6797 = vsel %vm3245, %v6731, 0.0
        %v6798 = vsel %vm3246, %v6732, 0.0
        %v6799 = vsel %vm3247, %v6732, 0.0
        %v6800 = vsel %vm3248, %v6732, 0.0
        %v6801 = vsel %vm3249, %v6733, 0.0
        %v6802 = vsel %vm3250, %v6733, 0.0
        %v6803 = vsel %vm3251, %v6733, 0.0
        %v6804 = vsel %vm3252, %v6734, 0.0
        %v6805 = vsel %vm3253, %v6734, 0.0
        %v6806 = vsel %vm3254, %v6734, 0.0
        %v6807 = vsel %vm3255, %v6735, 0.0
        %v6808 = vsel %vm3256, %v6735, 0.0
        %v6809 = vsel %vm3257, %v6735, 0.0
        %v6810 = vsel %vm3258, %v6736, 0.0
        %v6811 = vsel %vm3259, %v6736, 0.0
        %v6812 = vsel %vm3260, %v6736, 0.0
        %v6813 = vsel %vm3261, %v6737, 0.0
        %v6814 = vsel %vm3262, %v6737, 0.0
        %v6815 = vsel %vm3263, %v6737, 0.0
        %v6816 = vsel %vm3264, %v6738, 0.0
        %v6817 = vsel %vm3265, %v6738, 0.0
        %v6818 = vsel %vm3266, %v6738, 0.0
        %v6819 = vsel %vm3267, %v6739, 0.0
        %v6820 = vsel %vm3268, %v6739, 0.0
        %v6821 = vsel %vm3269, %v6739, 0.0
        %v6822 = vsel %vm3270, %v6740, 0.0
        %v6823 = vsel %vm3271, %v6740, 0.0
        %v6824 = vsel %vm3272, %v6740, 0.0
        %v6825 = vsel %vm3273, %v6741, 0.0
        %v6826 = vsel %vm3274, %v6741, 0.0
        %v6827 = vsel %vm3275, %v6741, 0.0
        %v6828 = vsel %vm3276, %v6742, 0.0
        %v6829 = vsel %vm3277, %v6742, 0.0
        %v6830 = vsel %vm3278, %v6742, 0.0
        %v6831 = vsel %vm3279, %v6743, 0.0
        %v6832 = vsel %vm3280, %v6743, 0.0
        %v6833 = vsel %vm3281, %v6743, 0.0
        %v6834 = vsel %vm3282, %v6744, 0.0
        %v6835 = vsel %vm3283, %v6744, 0.0
        %v6836 = vsel %vm3284, %v6744, 0.0
        %v6837 = vsel %vm3285, %v6745, 0.0
        %v6838 = vsel %vm3286, %v6745, 0.0
        %v6839 = vsel %vm3287, %v6745, 0.0
        %v6840 = vsel %vm3288, %v6746, 0.0
        %v6841 = vsel %vm3289, %v6746, 0.0
        %v6842 = vsel %vm3290, %v6746, 0.0
        %v6843 = vadd.f32 %v6619, %v6747
        %v6844 = vadd.f32 %v6620, %v6748
        %v6845 = vadd.f32 %v6621, %v6749
        %v6846 = vadd.f32 %v6622, %v6750
        %v6847 = vadd.f32 %v6623, %v6751
        %v6848 = vadd.f32 %v6624, %v6752
        %v6849 = vadd.f32 %v6625, %v6753
        %v6850 = vadd.f32 %v6626, %v6754
        %v6851 = vadd.f32 %v6627, %v6755
        %v6852 = vadd.f32 %v6628, %v6756
        %v6853 = vadd.f32 %v6629, %v6757
        %v6854 = vadd.f32 %v6630, %v6758
        %v6855 = vadd.f32 %v6631, %v6759
        %v6856 = vadd.f32 %v6632, %v6760
        %v6857 = vadd.f32 %v6633, %v6761
        %v6858 = vadd.f32 %v6634, %v6762
        %v6859 = vadd.f32 %v6635, %v6763
        %v6860 = vadd.f32 %v6636, %v6764
        %v6861 = vadd.f32 %v6637, %v6765
        %v6862 = vadd.f32 %v6638, %v6766
        %v6863 = vadd.f32 %v6639, %v6767
        %v6864 = vadd.f32 %v6640, %v6768
        %v6865 = vadd.f32 %v6641, %v6769
        %v6866 = vadd.f32 %v6642, %v6770
        %v6867 = vadd.f32 %v6643, %v6771
        %v6868 = vadd.f32 %v6644, %v6772
        %v6869 = vadd.f32 %v6645, %v6773
        %v6870 = vadd.f32 %v6646, %v6774
        %v6871 = vadd.f32 %v6647, %v6775
        %v6872 = vadd.f32 %v6648, %v6776
        %v6873 = vadd.f32 %v6649, %v6777
        %v6874 = vadd.f32 %v6650, %v6778
        %v6875 = vadd.f32 %v6651, %v6779
        %v6876 = vadd.f32 %v6652, %v6780
        %v6877 = vadd.f32 %v6653, %v6781
        %v6878 = vadd.f32 %v6654, %v6782
        %v6879 = vadd.f32 %v6655, %v6783
        %v6880 = vadd.f32 %v6656, %v6784
        %v6881 = vadd.f32 %v6657, %v6785
        %v6882 = vadd.f32 %v6658, %v6786
        %v6883 = vadd.f32 %v6659, %v6787
        %v6884 = vadd.f32 %v6660, %v6788
        %v6885 = vadd.f32 %v6661, %v6789
        %v6886 = vadd.f32 %v6662, %v6790
        %v6887 = vadd.f32 %v6663, %v6791
        %v6888 = vadd.f32 %v6664, %v6792
        %v6889 = vadd.f32 %v6665, %v6793
        %v6890 = vadd.f32 %v6666, %v6794
        %v6891 = vadd.f32 %v6667, %v6795
        %v6892 = vadd.f32 %v6668, %v6796
        %v6893 = vadd.f32 %v6669, %v6797
        %v6894 = vadd.f32 %v6670, %v6798
        %v6895 = vadd.f32 %v6671, %v6799
        %v6896 = vadd.f32 %v6672, %v6800
        %v6897 = vadd.f32 %v6673, %v6801
        %v6898 = vadd.f32 %v6674, %v6802
        %v6899 = vadd.f32 %v6675, %v6803
        %v6900 = vadd.f32 %v6676, %v6804
        %v6901 = vadd.f32 %v6677, %v6805
        %v6902 = vadd.f32 %v6678, %v6806
        %v6903 = vadd.f32 %v6679, %v6807
        %v6904 = vadd.f32 %v6680, %v6808
        %v6905 = vadd.f32 %v6681, %v6809
        %v6906 = vadd.f32 %v6682, %v6810
        %v6907 = vadd.f32 %v6683, %v6811
        %v6908 = vadd.f32 %v6684, %v6812
        %v6909 = vadd.f32 %v6685, %v6813
        %v6910 = vadd.f32 %v6686, %v6814
        %v6911 = vadd.f32 %v6687, %v6815
        %v6912 = vadd.f32 %v6688, %v6816
        %v6913 = vadd.f32 %v6689, %v6817
        %v6914 = vadd.f32 %v6690, %v6818
        %v6915 = vadd.f32 %v6691, %v6819
        %v6916 = vadd.f32 %v6692, %v6820
        %v6917 = vadd.f32 %v6693, %v6821
        %v6918 = vadd.f32 %v6694, %v6822
        %v6919 = vadd.f32 %v6695, %v6823
        %v6920 = vadd.f32 %v6696, %v6824
        %v6921 = vadd.f32 %v6697, %v6825
        %v6922 = vadd.f32 %v6698, %v6826
        %v6923 = vadd.f32 %v6699, %v6827
        %v6924 = vadd.f32 %v6700, %v6828
        %v6925 = vadd.f32 %v6701, %v6829
        %v6926 = vadd.f32 %v6702, %v6830
        %v6927 = vadd.f32 %v6703, %v6831
        %v6928 = vadd.f32 %v6704, %v6832
        %v6929 = vadd.f32 %v6705, %v6833
        %v6930 = vadd.f32 %v6706, %v6834
        %v6931 = vadd.f32 %v6707, %v6835
        %v6932 = vadd.f32 %v6708, %v6836
        %v6933 = vadd.f32 %v6709, %v6837
        %v6934 = vadd.f32 %v6710, %v6838
        %v6935 = vadd.f32 %v6711, %v6839
        %v6936 = vadd.f32 %v6712, %v6840
        %v6937 = vadd.f32 %v6713, %v6841
        %v6938 = vadd.f32 %v6714, %v6842
        %v6939 = vmul.f32 %v5180, %v5563
        %v6940 = vmul.f32 %v5182, %v5564
        %v6941 = vmul.f32 %v5184, %v5565
        %v6942 = vmul.f32 %v5186, %v5566
        %v6943 = vmul.f32 %v5188, %v5567
        %v6944 = vmul.f32 %v5190, %v5568
        %v6945 = vmul.f32 %v5192, %v5569
        %v6946 = vmul.f32 %v5194, %v5570
        %v6947 = vmul.f32 %v5196, %v5571
        %v6948 = vmul.f32 %v5198, %v5572
        %v6949 = vmul.f32 %v5200, %v5573
        %v6950 = vmul.f32 %v5202, %v5574
        %v6951 = vmul.f32 %v5204, %v5575
        %v6952 = vmul.f32 %v5206, %v5576
        %v6953 = vmul.f32 %v5208, %v5577
        %v6954 = vmul.f32 %v5210, %v5578
        %v6955 = vmul.f32 %v5212, %v5579
        %v6956 = vmul.f32 %v5214, %v5580
        %v6957 = vmul.f32 %v5216, %v5581
        %v6958 = vmul.f32 %v5218, %v5582
        %v6959 = vmul.f32 %v5220, %v5583
        %v6960 = vmul.f32 %v5222, %v5584
        %v6961 = vmul.f32 %v5224, %v5585
        %v6962 = vmul.f32 %v5226, %v5586
        %v6963 = vmul.f32 %v5228, %v5587
        %v6964 = vmul.f32 %v5230, %v5588
        %v6965 = vmul.f32 %v5232, %v5589
        %v6966 = vmul.f32 %v5234, %v5590
        %v6967 = vmul.f32 %v5236, %v5591
        %v6968 = vmul.f32 %v5238, %v5592
        %v6969 = vmul.f32 %v5240, %v5593
        %v6970 = vmul.f32 %v5242, %v5594
        %v6971 = vsel %vm3611, %v6939, 0.0
        %v6972 = vsel %vm3612, %v6939, 0.0
        %v6973 = vsel %vm3613, %v6939, 0.0
        %v6974 = vsel %vm3614, %v6940, 0.0
        %v6975 = vsel %vm3615, %v6940, 0.0
        %v6976 = vsel %vm3616, %v6940, 0.0
        %v6977 = vsel %vm3617, %v6941, 0.0
        %v6978 = vsel %vm3618, %v6941, 0.0
        %v6979 = vsel %vm3619, %v6941, 0.0
        %v6980 = vsel %vm3620, %v6942, 0.0
        %v6981 = vsel %vm3621, %v6942, 0.0
        %v6982 = vsel %vm3622, %v6942, 0.0
        %v6983 = vsel %vm3623, %v6943, 0.0
        %v6984 = vsel %vm3624, %v6943, 0.0
        %v6985 = vsel %vm3625, %v6943, 0.0
        %v6986 = vsel %vm3626, %v6944, 0.0
        %v6987 = vsel %vm3627, %v6944, 0.0
        %v6988 = vsel %vm3628, %v6944, 0.0
        %v6989 = vsel %vm3629, %v6945, 0.0
        %v6990 = vsel %vm3630, %v6945, 0.0
        %v6991 = vsel %vm3631, %v6945, 0.0
        %v6992 = vsel %vm3632, %v6946, 0.0
        %v6993 = vsel %vm3633, %v6946, 0.0
        %v6994 = vsel %vm3634, %v6946, 0.0
        %v6995 = vsel %vm3635, %v6947, 0.0
        %v6996 = vsel %vm3636, %v6947, 0.0
        %v6997 = vsel %vm3637, %v6947, 0.0
        %v6998 = vsel %vm3638, %v6948, 0.0
        %v6999 = vsel %vm3639, %v6948, 0.0
        %v7000 = vsel %vm3640, %v6948, 0.0
        %v7001 = vsel %vm3641, %v6949, 0.0
        %v7002 = vsel %vm3642, %v6949, 0.0
        %v7003 = vsel %vm3643, %v6949, 0.0
        %v7004 = vsel %vm3644, %v6950, 0.0
        %v7005 = vsel %vm3645, %v6950, 0.0
        %v7006 = vsel %vm3646, %v6950, 0.0
        %v7007 = vsel %vm3647, %v6951, 0.0
        %v7008 = vsel %vm3648, %v6951, 0.0
        %v7009 = vsel %vm3649, %v6951, 0.0
        %v7010 = vsel %vm3650, %v6952, 0.0
        %v7011 = vsel %vm3651, %v6952, 0.0
        %v7012 = vsel %vm3652, %v6952, 0.0
        %v7013 = vsel %vm3653, %v6953, 0.0
        %v7014 = vsel %vm3654, %v6953, 0.0
        %v7015 = vsel %vm3655, %v6953, 0.0
        %v7016 = vsel %vm3656, %v6954, 0.0
        %v7017 = vsel %vm3657, %v6954, 0.0
        %v7018 = vsel %vm3658, %v6954, 0.0
        %v7019 = vsel %vm3659, %v6955, 0.0
        %v7020 = vsel %vm3660, %v6955, 0.0
        %v7021 = vsel %vm3661, %v6955, 0.0
        %v7022 = vsel %vm3662, %v6956, 0.0
        %v7023 = vsel %vm3663, %v6956, 0.0
        %v7024 = vsel %vm3664, %v6956, 0.0
        %v7025 = vsel %vm3665, %v6957, 0.0
        %v7026 = vsel %vm3666, %v6957, 0.0
        %v7027 = vsel %vm3667, %v6957, 0.0
        %v7028 = vsel %vm3668, %v6958, 0.0
        %v7029 = vsel %vm3669, %v6958, 0.0
        %v7030 = vsel %vm3670, %v6958, 0.0
        %v7031 = vsel %vm3671, %v6959, 0.0
        %v7032 = vsel %vm3672, %v6959, 0.0
        %v7033 = vsel %vm3673, %v6959, 0.0
        %v7034 = vsel %vm3674, %v6960, 0.0
        %v7035 = vsel %vm3675, %v6960, 0.0
        %v7036 = vsel %vm3676, %v6960, 0.0
        %v7037 = vsel %vm3677, %v6961, 0.0
        %v7038 = vsel %vm3678, %v6961, 0.0
        %v7039 = vsel %vm3679, %v6961, 0.0
        %v7040 = vsel %vm3680, %v6962, 0.0
        %v7041 = vsel %vm3681, %v6962, 0.0
        %v7042 = vsel %vm3682, %v6962, 0.0
        %v7043 = vsel %vm3683, %v6963, 0.0
        %v7044 = vsel %vm3684, %v6963, 0.0
        %v7045 = vsel %vm3685, %v6963, 0.0
        %v7046 = vsel %vm3686, %v6964, 0.0
        %v7047 = vsel %vm3687, %v6964, 0.0
        %v7048 = vsel %vm3688, %v6964, 0.0
        %v7049 = vsel %vm3689, %v6965, 0.0
        %v7050 = vsel %vm3690, %v6965, 0.0
        %v7051 = vsel %vm3691, %v6965, 0.0
        %v7052 = vsel %vm3692, %v6966, 0.0
        %v7053 = vsel %vm3693, %v6966, 0.0
        %v7054 = vsel %vm3694, %v6966, 0.0
        %v7055 = vsel %vm3695, %v6967, 0.0
        %v7056 = vsel %vm3696, %v6967, 0.0
        %v7057 = vsel %vm3697, %v6967, 0.0
        %v7058 = vsel %vm3698, %v6968, 0.0
        %v7059 = vsel %vm3699, %v6968, 0.0
        %v7060 = vsel %vm3700, %v6968, 0.0
        %v7061 = vsel %vm3701, %v6969, 0.0
        %v7062 = vsel %vm3702, %v6969, 0.0
        %v7063 = vsel %vm3703, %v6969, 0.0
        %v7064 = vsel %vm3704, %v6970, 0.0
        %v7065 = vsel %vm3705, %v6970, 0.0
        %v7066 = vsel %vm3706, %v6970, 0.0
        %v7067 = vadd.f32 %v6843, %v6971
        %v7068 = vadd.f32 %v6844, %v6972
        %v7069 = vadd.f32 %v6845, %v6973
        %v7070 = vadd.f32 %v6846, %v6974
        %v7071 = vadd.f32 %v6847, %v6975
        %v7072 = vadd.f32 %v6848, %v6976
        %v7073 = vadd.f32 %v6849, %v6977
        %v7074 = vadd.f32 %v6850, %v6978
        %v7075 = vadd.f32 %v6851, %v6979
        %v7076 = vadd.f32 %v6852, %v6980
        %v7077 = vadd.f32 %v6853, %v6981
        %v7078 = vadd.f32 %v6854, %v6982
        %v7079 = vadd.f32 %v6855, %v6983
        %v7080 = vadd.f32 %v6856, %v6984
        %v7081 = vadd.f32 %v6857, %v6985
        %v7082 = vadd.f32 %v6858, %v6986
        %v7083 = vadd.f32 %v6859, %v6987
        %v7084 = vadd.f32 %v6860, %v6988
        %v7085 = vadd.f32 %v6861, %v6989
        %v7086 = vadd.f32 %v6862, %v6990
        %v7087 = vadd.f32 %v6863, %v6991
        %v7088 = vadd.f32 %v6864, %v6992
        %v7089 = vadd.f32 %v6865, %v6993
        %v7090 = vadd.f32 %v6866, %v6994
        %v7091 = vadd.f32 %v6867, %v6995
        %v7092 = vadd.f32 %v6868, %v6996
        %v7093 = vadd.f32 %v6869, %v6997
        %v7094 = vadd.f32 %v6870, %v6998
        %v7095 = vadd.f32 %v6871, %v6999
        %v7096 = vadd.f32 %v6872, %v7000
        %v7097 = vadd.f32 %v6873, %v7001
        %v7098 = vadd.f32 %v6874, %v7002
        %v7099 = vadd.f32 %v6875, %v7003
        %v7100 = vadd.f32 %v6876, %v7004
        %v7101 = vadd.f32 %v6877, %v7005
        %v7102 = vadd.f32 %v6878, %v7006
        %v7103 = vadd.f32 %v6879, %v7007
        %v7104 = vadd.f32 %v6880, %v7008
        %v7105 = vadd.f32 %v6881, %v7009
        %v7106 = vadd.f32 %v6882, %v7010
        %v7107 = vadd.f32 %v6883, %v7011
        %v7108 = vadd.f32 %v6884, %v7012
        %v7109 = vadd.f32 %v6885, %v7013
        %v7110 = vadd.f32 %v6886, %v7014
        %v7111 = vadd.f32 %v6887, %v7015
        %v7112 = vadd.f32 %v6888, %v7016
        %v7113 = vadd.f32 %v6889, %v7017
        %v7114 = vadd.f32 %v6890, %v7018
        %v7115 = vadd.f32 %v6891, %v7019
        %v7116 = vadd.f32 %v6892, %v7020
        %v7117 = vadd.f32 %v6893, %v7021
        %v7118 = vadd.f32 %v6894, %v7022
        %v7119 = vadd.f32 %v6895, %v7023
        %v7120 = vadd.f32 %v6896, %v7024
        %v7121 = vadd.f32 %v6897, %v7025
        %v7122 = vadd.f32 %v6898, %v7026
        %v7123 = vadd.f32 %v6899, %v7027
        %v7124 = vadd.f32 %v6900, %v7028
        %v7125 = vadd.f32 %v6901, %v7029
        %v7126 = vadd.f32 %v6902, %v7030
        %v7127 = vadd.f32 %v6903, %v7031
        %v7128 = vadd.f32 %v6904, %v7032
        %v7129 = vadd.f32 %v6905, %v7033
        %v7130 = vadd.f32 %v6906, %v7034
        %v7131 = vadd.f32 %v6907, %v7035
        %v7132 = vadd.f32 %v6908, %v7036
        %v7133 = vadd.f32 %v6909, %v7037
        %v7134 = vadd.f32 %v6910, %v7038
        %v7135 = vadd.f32 %v6911, %v7039
        %v7136 = vadd.f32 %v6912, %v7040
        %v7137 = vadd.f32 %v6913, %v7041
        %v7138 = vadd.f32 %v6914, %v7042
        %v7139 = vadd.f32 %v6915, %v7043
        %v7140 = vadd.f32 %v6916, %v7044
        %v7141 = vadd.f32 %v6917, %v7045
        %v7142 = vadd.f32 %v6918, %v7046
        %v7143 = vadd.f32 %v6919, %v7047
        %v7144 = vadd.f32 %v6920, %v7048
        %v7145 = vadd.f32 %v6921, %v7049
        %v7146 = vadd.f32 %v6922, %v7050
        %v7147 = vadd.f32 %v6923, %v7051
        %v7148 = vadd.f32 %v6924, %v7052
        %v7149 = vadd.f32 %v6925, %v7053
        %v7150 = vadd.f32 %v6926, %v7054
        %v7151 = vadd.f32 %v6927, %v7055
        %v7152 = vadd.f32 %v6928, %v7056
        %v7153 = vadd.f32 %v6929, %v7057
        %v7154 = vadd.f32 %v6930, %v7058
        %v7155 = vadd.f32 %v6931, %v7059
        %v7156 = vadd.f32 %v6932, %v7060
        %v7157 = vadd.f32 %v6933, %v7061
        %v7158 = vadd.f32 %v6934, %v7062
        %v7159 = vadd.f32 %v6935, %v7063
        %v7160 = vadd.f32 %v6936, %v7064
        %v7161 = vadd.f32 %v6937, %v7065
        %v7162 = vadd.f32 %v6938, %v7066
        %v7163 = vmul.f32 %v5276, %v5563
        %v7164 = vmul.f32 %v5278, %v5564
        %v7165 = vmul.f32 %v5280, %v5565
        %v7166 = vmul.f32 %v5282, %v5566
        %v7167 = vmul.f32 %v5284, %v5567
        %v7168 = vmul.f32 %v5286, %v5568
        %v7169 = vmul.f32 %v5288, %v5569
        %v7170 = vmul.f32 %v5290, %v5570
        %v7171 = vmul.f32 %v5292, %v5571
        %v7172 = vmul.f32 %v5294, %v5572
        %v7173 = vmul.f32 %v5296, %v5573
        %v7174 = vmul.f32 %v5298, %v5574
        %v7175 = vmul.f32 %v5300, %v5575
        %v7176 = vmul.f32 %v5302, %v5576
        %v7177 = vmul.f32 %v5304, %v5577
        %v7178 = vmul.f32 %v5306, %v5578
        %v7179 = vmul.f32 %v5308, %v5579
        %v7180 = vmul.f32 %v5310, %v5580
        %v7181 = vmul.f32 %v5312, %v5581
        %v7182 = vmul.f32 %v5314, %v5582
        %v7183 = vmul.f32 %v5316, %v5583
        %v7184 = vmul.f32 %v5318, %v5584
        %v7185 = vmul.f32 %v5320, %v5585
        %v7186 = vmul.f32 %v5322, %v5586
        %v7187 = vmul.f32 %v5324, %v5587
        %v7188 = vmul.f32 %v5326, %v5588
        %v7189 = vmul.f32 %v5328, %v5589
        %v7190 = vmul.f32 %v5330, %v5590
        %v7191 = vmul.f32 %v5332, %v5591
        %v7192 = vmul.f32 %v5334, %v5592
        %v7193 = vmul.f32 %v5336, %v5593
        %v7194 = vmul.f32 %v5338, %v5594
        %v7195 = vsel %vm4027, %v7163, 0.0
        %v7196 = vsel %vm4028, %v7163, 0.0
        %v7197 = vsel %vm4029, %v7163, 0.0
        %v7198 = vsel %vm4030, %v7164, 0.0
        %v7199 = vsel %vm4031, %v7164, 0.0
        %v7200 = vsel %vm4032, %v7164, 0.0
        %v7201 = vsel %vm4033, %v7165, 0.0
        %v7202 = vsel %vm4034, %v7165, 0.0
        %v7203 = vsel %vm4035, %v7165, 0.0
        %v7204 = vsel %vm4036, %v7166, 0.0
        %v7205 = vsel %vm4037, %v7166, 0.0
        %v7206 = vsel %vm4038, %v7166, 0.0
        %v7207 = vsel %vm4039, %v7167, 0.0
        %v7208 = vsel %vm4040, %v7167, 0.0
        %v7209 = vsel %vm4041, %v7167, 0.0
        %v7210 = vsel %vm4042, %v7168, 0.0
        %v7211 = vsel %vm4043, %v7168, 0.0
        %v7212 = vsel %vm4044, %v7168, 0.0
        %v7213 = vsel %vm4045, %v7169, 0.0
        %v7214 = vsel %vm4046, %v7169, 0.0
        %v7215 = vsel %vm4047, %v7169, 0.0
        %v7216 = vsel %vm4048, %v7170, 0.0
        %v7217 = vsel %vm4049, %v7170, 0.0
        %v7218 = vsel %vm4050, %v7170, 0.0
        %v7219 = vsel %vm4051, %v7171, 0.0
        %v7220 = vsel %vm4052, %v7171, 0.0
        %v7221 = vsel %vm4053, %v7171, 0.0
        %v7222 = vsel %vm4054, %v7172, 0.0
        %v7223 = vsel %vm4055, %v7172, 0.0
        %v7224 = vsel %vm4056, %v7172, 0.0
        %v7225 = vsel %vm4057, %v7173, 0.0
        %v7226 = vsel %vm4058, %v7173, 0.0
        %v7227 = vsel %vm4059, %v7173, 0.0
        %v7228 = vsel %vm4060, %v7174, 0.0
        %v7229 = vsel %vm4061, %v7174, 0.0
        %v7230 = vsel %vm4062, %v7174, 0.0
        %v7231 = vsel %vm4063, %v7175, 0.0
        %v7232 = vsel %vm4064, %v7175, 0.0
        %v7233 = vsel %vm4065, %v7175, 0.0
        %v7234 = vsel %vm4066, %v7176, 0.0
        %v7235 = vsel %vm4067, %v7176, 0.0
        %v7236 = vsel %vm4068, %v7176, 0.0
        %v7237 = vsel %vm4069, %v7177, 0.0
        %v7238 = vsel %vm4070, %v7177, 0.0
        %v7239 = vsel %vm4071, %v7177, 0.0
        %v7240 = vsel %vm4072, %v7178, 0.0
        %v7241 = vsel %vm4073, %v7178, 0.0
        %v7242 = vsel %vm4074, %v7178, 0.0
        %v7243 = vsel %vm4075, %v7179, 0.0
        %v7244 = vsel %vm4076, %v7179, 0.0
        %v7245 = vsel %vm4077, %v7179, 0.0
        %v7246 = vsel %vm4078, %v7180, 0.0
        %v7247 = vsel %vm4079, %v7180, 0.0
        %v7248 = vsel %vm4080, %v7180, 0.0
        %v7249 = vsel %vm4081, %v7181, 0.0
        %v7250 = vsel %vm4082, %v7181, 0.0
        %v7251 = vsel %vm4083, %v7181, 0.0
        %v7252 = vsel %vm4084, %v7182, 0.0
        %v7253 = vsel %vm4085, %v7182, 0.0
        %v7254 = vsel %vm4086, %v7182, 0.0
        %v7255 = vsel %vm4087, %v7183, 0.0
        %v7256 = vsel %vm4088, %v7183, 0.0
        %v7257 = vsel %vm4089, %v7183, 0.0
        %v7258 = vsel %vm4090, %v7184, 0.0
        %v7259 = vsel %vm4091, %v7184, 0.0
        %v7260 = vsel %vm4092, %v7184, 0.0
        %v7261 = vsel %vm4093, %v7185, 0.0
        %v7262 = vsel %vm4094, %v7185, 0.0
        %v7263 = vsel %vm4095, %v7185, 0.0
        %v7264 = vsel %vm4096, %v7186, 0.0
        %v7265 = vsel %vm4097, %v7186, 0.0
        %v7266 = vsel %vm4098, %v7186, 0.0
        %v7267 = vsel %vm4099, %v7187, 0.0
        %v7268 = vsel %vm4100, %v7187, 0.0
        %v7269 = vsel %vm4101, %v7187, 0.0
        %v7270 = vsel %vm4102, %v7188, 0.0
        %v7271 = vsel %vm4103, %v7188, 0.0
        %v7272 = vsel %vm4104, %v7188, 0.0
        %v7273 = vsel %vm4105, %v7189, 0.0
        %v7274 = vsel %vm4106, %v7189, 0.0
        %v7275 = vsel %vm4107, %v7189, 0.0
        %v7276 = vsel %vm4108, %v7190, 0.0
        %v7277 = vsel %vm4109, %v7190, 0.0
        %v7278 = vsel %vm4110, %v7190, 0.0
        %v7279 = vsel %vm4111, %v7191, 0.0
        %v7280 = vsel %vm4112, %v7191, 0.0
        %v7281 = vsel %vm4113, %v7191, 0.0
        %v7282 = vsel %vm4114, %v7192, 0.0
        %v7283 = vsel %vm4115, %v7192, 0.0
        %v7284 = vsel %vm4116, %v7192, 0.0
        %v7285 = vsel %vm4117, %v7193, 0.0
        %v7286 = vsel %vm4118, %v7193, 0.0
        %v7287 = vsel %vm4119, %v7193, 0.0
        %v7288 = vsel %vm4120, %v7194, 0.0
        %v7289 = vsel %vm4121, %v7194, 0.0
        %v7290 = vsel %vm4122, %v7194, 0.0
        %v7291 = vadd.f32 %v7067, %v7195
        %v7292 = vadd.f32 %v7068, %v7196
        %v7293 = vadd.f32 %v7069, %v7197
        %v7294 = vadd.f32 %v7070, %v7198
        %v7295 = vadd.f32 %v7071, %v7199
        %v7296 = vadd.f32 %v7072, %v7200
        %v7297 = vadd.f32 %v7073, %v7201
        %v7298 = vadd.f32 %v7074, %v7202
        %v7299 = vadd.f32 %v7075, %v7203
        %v7300 = vadd.f32 %v7076, %v7204
        %v7301 = vadd.f32 %v7077, %v7205
        %v7302 = vadd.f32 %v7078, %v7206
        %v7303 = vadd.f32 %v7079, %v7207
        %v7304 = vadd.f32 %v7080, %v7208
        %v7305 = vadd.f32 %v7081, %v7209
        %v7306 = vadd.f32 %v7082, %v7210
        %v7307 = vadd.f32 %v7083, %v7211
        %v7308 = vadd.f32 %v7084, %v7212
        %v7309 = vadd.f32 %v7085, %v7213
        %v7310 = vadd.f32 %v7086, %v7214
        %v7311 = vadd.f32 %v7087, %v7215
        %v7312 = vadd.f32 %v7088, %v7216
        %v7313 = vadd.f32 %v7089, %v7217
        %v7314 = vadd.f32 %v7090, %v7218
        %v7315 = vadd.f32 %v7091, %v7219
        %v7316 = vadd.f32 %v7092, %v7220
        %v7317 = vadd.f32 %v7093, %v7221
        %v7318 = vadd.f32 %v7094, %v7222
        %v7319 = vadd.f32 %v7095, %v7223
        %v7320 = vadd.f32 %v7096, %v7224
        %v7321 = vadd.f32 %v7097, %v7225
        %v7322 = vadd.f32 %v7098, %v7226
        %v7323 = vadd.f32 %v7099, %v7227
        %v7324 = vadd.f32 %v7100, %v7228
        %v7325 = vadd.f32 %v7101, %v7229
        %v7326 = vadd.f32 %v7102, %v7230
        %v7327 = vadd.f32 %v7103, %v7231
        %v7328 = vadd.f32 %v7104, %v7232
        %v7329 = vadd.f32 %v7105, %v7233
        %v7330 = vadd.f32 %v7106, %v7234
        %v7331 = vadd.f32 %v7107, %v7235
        %v7332 = vadd.f32 %v7108, %v7236
        %v7333 = vadd.f32 %v7109, %v7237
        %v7334 = vadd.f32 %v7110, %v7238
        %v7335 = vadd.f32 %v7111, %v7239
        %v7336 = vadd.f32 %v7112, %v7240
        %v7337 = vadd.f32 %v7113, %v7241
        %v7338 = vadd.f32 %v7114, %v7242
        %v7339 = vadd.f32 %v7115, %v7243
        %v7340 = vadd.f32 %v7116, %v7244
        %v7341 = vadd.f32 %v7117, %v7245
        %v7342 = vadd.f32 %v7118, %v7246
        %v7343 = vadd.f32 %v7119, %v7247
        %v7344 = vadd.f32 %v7120, %v7248
        %v7345 = vadd.f32 %v7121, %v7249
        %v7346 = vadd.f32 %v7122, %v7250
        %v7347 = vadd.f32 %v7123, %v7251
        %v7348 = vadd.f32 %v7124, %v7252
        %v7349 = vadd.f32 %v7125, %v7253
        %v7350 = vadd.f32 %v7126, %v7254
        %v7351 = vadd.f32 %v7127, %v7255
        %v7352 = vadd.f32 %v7128, %v7256
        %v7353 = vadd.f32 %v7129, %v7257
        %v7354 = vadd.f32 %v7130, %v7258
        %v7355 = vadd.f32 %v7131, %v7259
        %v7356 = vadd.f32 %v7132, %v7260
        %v7357 = vadd.f32 %v7133, %v7261
        %v7358 = vadd.f32 %v7134, %v7262
        %v7359 = vadd.f32 %v7135, %v7263
        %v7360 = vadd.f32 %v7136, %v7264
        %v7361 = vadd.f32 %v7137, %v7265
        %v7362 = vadd.f32 %v7138, %v7266
        %v7363 = vadd.f32 %v7139, %v7267
        %v7364 = vadd.f32 %v7140, %v7268
        %v7365 = vadd.f32 %v7141, %v7269
        %v7366 = vadd.f32 %v7142, %v7270
        %v7367 = vadd.f32 %v7143, %v7271
        %v7368 = vadd.f32 %v7144, %v7272
        %v7369 = vadd.f32 %v7145, %v7273
        %v7370 = vadd.f32 %v7146, %v7274
        %v7371 = vadd.f32 %v7147, %v7275
        %v7372 = vadd.f32 %v7148, %v7276
        %v7373 = vadd.f32 %v7149, %v7277
        %v7374 = vadd.f32 %v7150, %v7278
        %v7375 = vadd.f32 %v7151, %v7279
        %v7376 = vadd.f32 %v7152, %v7280
        %v7377 = vadd.f32 %v7153, %v7281
        %v7378 = vadd.f32 %v7154, %v7282
        %v7379 = vadd.f32 %v7155, %v7283
        %v7380 = vadd.f32 %v7156, %v7284
        %v7381 = vadd.f32 %v7157, %v7285
        %v7382 = vadd.f32 %v7158, %v7286
        %v7383 = vadd.f32 %v7159, %v7287
        %v7384 = vadd.f32 %v7160, %v7288
        %v7385 = vadd.f32 %v7161, %v7289
        %v7386 = vadd.f32 %v7162, %v7290
        %v7387 = vpack.c.bf16 %v7294, %v7291
        %v7388 = vpack.c.bf16 %v7295, %v7292
        %v7389 = vpack.c.bf16 %v7296, %v7293
        %v7390 = vpack.c.bf16 %v7300, %v7297
        %v7391 = vpack.c.bf16 %v7301, %v7298
        %v7392 = vpack.c.bf16 %v7302, %v7299
        %v7393 = vpack.c.bf16 %v7306, %v7303
        %v7394 = vpack.c.bf16 %v7307, %v7304
        %v7395 = vpack.c.bf16 %v7308, %v7305
        %v7396 = vpack.c.bf16 %v7312, %v7309
        %v7397 = vpack.c.bf16 %v7313, %v7310
        %v7398 = vpack.c.bf16 %v7314, %v7311
        %v7399 = vpack.c.bf16 %v7318, %v7315
        %v7400 = vpack.c.bf16 %v7319, %v7316
        %v7401 = vpack.c.bf16 %v7320, %v7317
        %v7402 = vpack.c.bf16 %v7324, %v7321
        %v7403 = vpack.c.bf16 %v7325, %v7322
        %v7404 = vpack.c.bf16 %v7326, %v7323
        %v7405 = vpack.c.bf16 %v7330, %v7327
        %v7406 = vpack.c.bf16 %v7331, %v7328
        %v7407 = vpack.c.bf16 %v7332, %v7329
        %v7408 = vpack.c.bf16 %v7336, %v7333
        %v7409 = vpack.c.bf16 %v7337, %v7334
        %v7410 = vpack.c.bf16 %v7338, %v7335
        %v7411 = vpack.c.bf16 %v7342, %v7339
        %v7412 = vpack.c.bf16 %v7343, %v7340
        %v7413 = vpack.c.bf16 %v7344, %v7341
        %v7414 = vpack.c.bf16 %v7348, %v7345
        %v7415 = vpack.c.bf16 %v7349, %v7346
        %v7416 = vpack.c.bf16 %v7350, %v7347
        %v7417 = vpack.c.bf16 %v7354, %v7351
        %v7418 = vpack.c.bf16 %v7355, %v7352
        %v7419 = vpack.c.bf16 %v7356, %v7353
        %v7420 = vpack.c.bf16 %v7360, %v7357
        %v7421 = vpack.c.bf16 %v7361, %v7358
        %v7422 = vpack.c.bf16 %v7362, %v7359
        %v7423 = vpack.c.bf16 %v7366, %v7363
        %v7424 = vpack.c.bf16 %v7367, %v7364
        %v7425 = vpack.c.bf16 %v7368, %v7365
        %v7426 = vpack.c.bf16 %v7372, %v7369
        %v7427 = vpack.c.bf16 %v7373, %v7370
        %v7428 = vpack.c.bf16 %v7374, %v7371
        %v7429 = vpack.c.bf16 %v7378, %v7375
        %v7430 = vpack.c.bf16 %v7379, %v7376
        %v7431 = vpack.c.bf16 %v7380, %v7377
        %v7432 = vpack.c.bf16 %v7384, %v7381
        %v7433 = vpack.c.bf16 %v7385, %v7382
        %v7434 = vpack.c.bf16 %v7386, %v7383
        %v7435 = vld [vmem:[#allocation2] sm:$0xff]
        %v7436 = vld [vmem:[#allocation2 + $0x8] sm:$0xff]
        %v7437 = vld [vmem:[#allocation2 + $0x10] sm:$0xff]
        %v7438 = vld [vmem:[#allocation2 + $0x18] sm:$0xff]
        %v7439 = vld [vmem:[#allocation2 + $0x20] sm:$0xff]
        %v7440 = vld [vmem:[#allocation2 + $0x28] sm:$0xff]
        %v7441 = vld [vmem:[#allocation2 + $0x30] sm:$0xff]
        %v7442 = vld [vmem:[#allocation2 + $0x38] sm:$0xff]
        %v7443 = vld [vmem:[#allocation2 + $0x40] sm:$0xff]
        %v7444 = vld [vmem:[#allocation2 + $0x48] sm:$0xff]
        %v7445 = vld [vmem:[#allocation2 + $0x50] sm:$0xff]
        %v7446 = vld [vmem:[#allocation2 + $0x58] sm:$0xff]
        %v7447 = vld [vmem:[#allocation2 + $0x60] sm:$0xff]
        %v7448 = vld [vmem:[#allocation2 + $0x68] sm:$0xff]
        %v7449 = vld [vmem:[#allocation2 + $0x70] sm:$0xff]
        %v7450 = vld [vmem:[#allocation2 + $0x78] sm:$0xff]
        %v7451 = vld [vmem:[#allocation2 + $0x80] sm:$0xff]
        %v7452 = vld [vmem:[#allocation2 + $0x88] sm:$0xff]
        %v7453 = vld [vmem:[#allocation2 + $0x90] sm:$0xff]
        %v7454 = vld [vmem:[#allocation2 + $0x98] sm:$0xff]
        %v7455 = vld [vmem:[#allocation2 + $0xa0] sm:$0xff]
        %v7456 = vld [vmem:[#allocation2 + $0xa8] sm:$0xff]
        %v7457 = vld [vmem:[#allocation2 + $0xb0] sm:$0xff]
        %v7458 = vld [vmem:[#allocation2 + $0xb8] sm:$0xff]
        %7459 = vmatprep.subr.bf16.mxu0 0
        %7460 = vmatpush1.bf16.msra.mxu0 %v7435
        %7461 = vmatprep.subr.bf16.mxu0 0
        %7462 = vmatpush1.bf16.msra.mxu0 %v7436
        %7463 = vmatprep.subr.bf16.mxu0 0
        %7464 = vmatpush1.bf16.msra.mxu0 %v7437
        %7465 = vmatprep.subr.bf16.mxu0 0
        %7466 = vmatpush1.bf16.msra.mxu0 %v7438
        %7467 = vmatprep.subr.bf16.mxu0 0
        %7468 = vmatpush1.bf16.msra.mxu0 %v7439
        %7469 = vmatprep.subr.bf16.mxu0 0
        %7470 = vmatpush1.bf16.msra.mxu0 %v7440
        %7471 = vmatprep.subr.bf16.mxu0 0
        %7472 = vmatpush1.bf16.msra.mxu0 %v7441
        %7473 = vmatprep.subr.bf16.mxu0 0
        %7474 = vmatpush1.bf16.msra.mxu0 %v7442
        %7475 = vmatprep.subr.bf16.mxu0 0
        %7476 = vmatpush1.bf16.msra.mxu0 %v7443
        %7477 = vmatprep.subr.bf16.mxu0 0
        %7478 = vmatpush1.bf16.msra.mxu0 %v7444
        %7479 = vmatprep.subr.bf16.mxu0 0
        %7480 = vmatpush1.bf16.msra.mxu0 %v7445
        %7481 = vmatprep.subr.bf16.mxu0 0
        %7482 = vmatpush1.bf16.msra.mxu0 %v7446
        %7483 = vmatprep.subr.bf16.mxu0 0
        %7484 = vmatpush1.bf16.msra.mxu0 %v7447
        %7485 = vmatprep.subr.bf16.mxu0 0
        %7486 = vmatpush1.bf16.msra.mxu0 %v7448
        %7487 = vmatprep.subr.bf16.mxu0 0
        %7488 = vmatpush1.bf16.msra.mxu0 %v7449
        %7489 = vmatprep.subr.bf16.mxu0 0
        %7490 = vmatpush1.bf16.msra.mxu0 %v7450
        %7491 = vmatprep.mubr.bf16.mxu0 %v7388
        %7492 = vmatmul.mubr.bf16.gmra.mrb[0].mxu0 %v7387
        %v7493 = vpop.f32.mrb[0].mxu0
        %v7494 = vadd.f32 0.0, %v7493
        %v7495 = vpop.f32.mrb[0].mxu0
        %v7496 = vpop.f32.mrb[0].mxu0
        %v7497 = vadd.f32 0.0, %v7496
        %v7498 = vpop.f32.mrb[0].mxu0
        %7499 = vmatprep.mubr.bf16.mxu0 %v7391
        %7500 = vmatmul.mubr.bf16.gmra.mrb[0].mxu0 %v7390
        %v7501 = vpop.f32.mrb[0].mxu0
        %v7502 = vadd.f32 0.0, %v7501
        %v7503 = vpop.f32.mrb[0].mxu0
        %v7504 = vpop.f32.mrb[0].mxu0
        %v7505 = vadd.f32 0.0, %v7504
        %v7506 = vpop.f32.mrb[0].mxu0
        %7507 = vmatprep.mubr.bf16.mxu0 %v7394
        %7508 = vmatmul.mubr.bf16.gmra.mrb[0].mxu0 %v7393
        %v7509 = vpop.f32.mrb[0].mxu0
        %v7510 = vadd.f32 0.0, %v7509
        %v7511 = vpop.f32.mrb[0].mxu0
        %v7512 = vpop.f32.mrb[0].mxu0
        %v7513 = vadd.f32 0.0, %v7512
        %v7514 = vpop.f32.mrb[0].mxu0
        %7515 = vmatprep.mubr.bf16.mxu0 %v7397
        %7516 = vmatmul.mubr.bf16.gmra.mrb[0].mxu0 %v7396
        %v7517 = vpop.f32.mrb[0].mxu0
        %v7518 = vadd.f32 0.0, %v7517
        %v7519 = vpop.f32.mrb[0].mxu0
        %v7520 = vpop.f32.mrb[0].mxu0
        %v7521 = vadd.f32 0.0, %v7520
        %v7522 = vpop.f32.mrb[0].mxu0
        %7523 = vmatprep.mubr.bf16.mxu0 %v7400
        %7524 = vmatmul.mubr.bf16.gmra.mrb[0].mxu0 %v7399
        %v7525 = vpop.f32.mrb[0].mxu0
        %v7526 = vadd.f32 0.0, %v7525
        %v7527 = vpop.f32.mrb[0].mxu0
        %v7528 = vpop.f32.mrb[0].mxu0
        %v7529 = vadd.f32 0.0, %v7528
        %v7530 = vpop.f32.mrb[0].mxu0
        %7531 = vmatprep.mubr.bf16.mxu0 %v7403
        %7532 = vmatmul.mubr.bf16.gmra.mrb[0].mxu0 %v7402
        %v7533 = vpop.f32.mrb[0].mxu0
        %v7534 = vadd.f32 0.0, %v7533
        %v7535 = vpop.f32.mrb[0].mxu0
        %v7536 = vpop.f32.mrb[0].mxu0
        %v7537 = vadd.f32 0.0, %v7536
        %v7538 = vpop.f32.mrb[0].mxu0
        %7539 = vmatprep.mubr.bf16.mxu0 %v7406
        %7540 = vmatmul.mubr.bf16.gmra.mrb[0].mxu0 %v7405
        %v7541 = vpop.f32.mrb[0].mxu0
        %v7542 = vadd.f32 0.0, %v7541
        %v7543 = vpop.f32.mrb[0].mxu0
        %v7544 = vpop.f32.mrb[0].mxu0
        %v7545 = vadd.f32 0.0, %v7544
        %v7546 = vpop.f32.mrb[0].mxu0
        %7547 = vmatprep.mubr.bf16.mxu0 %v7409
        %7548 = vmatmul.mubr.bf16.gmra.mrb[0].mxu0 %v7408
        %v7549 = vpop.f32.mrb[0].mxu0
        %v7550 = vadd.f32 0.0, %v7549
        %v7551 = vpop.f32.mrb[0].mxu0
        %v7552 = vpop.f32.mrb[0].mxu0
        %v7553 = vadd.f32 0.0, %v7552
        %v7554 = vpop.f32.mrb[0].mxu0
        %7555 = vmatprep.mubr.bf16.mxu0 %v7412
        %7556 = vmatmul.mubr.bf16.gmra.mrb[0].mxu0 %v7411
        %v7557 = vpop.f32.mrb[0].mxu0
        %v7558 = vadd.f32 0.0, %v7557
        %v7559 = vpop.f32.mrb[0].mxu0
        %v7560 = vpop.f32.mrb[0].mxu0
        %v7561 = vadd.f32 0.0, %v7560
        %v7562 = vpop.f32.mrb[0].mxu0
        %7563 = vmatprep.mubr.bf16.mxu0 %v7415
        %7564 = vmatmul.mubr.bf16.gmra.mrb[0].mxu0 %v7414
        %v7565 = vpop.f32.mrb[0].mxu0
        %v7566 = vadd.f32 0.0, %v7565
        %v7567 = vpop.f32.mrb[0].mxu0
        %v7568 = vpop.f32.mrb[0].mxu0
        %v7569 = vadd.f32 0.0, %v7568
        %v7570 = vpop.f32.mrb[0].mxu0
        %7571 = vmatprep.mubr.bf16.mxu0 %v7418
        %7572 = vmatmul.mubr.bf16.gmra.mrb[0].mxu0 %v7417
        %v7573 = vpop.f32.mrb[0].mxu0
        %v7574 = vadd.f32 0.0, %v7573
        %v7575 = vpop.f32.mrb[0].mxu0
        %v7576 = vpop.f32.mrb[0].mxu0
        %v7577 = vadd.f32 0.0, %v7576
        %v7578 = vpop.f32.mrb[0].mxu0
        %7579 = vmatprep.mubr.bf16.mxu0 %v7421
        %7580 = vmatmul.mubr.bf16.gmra.mrb[0].mxu0 %v7420
        %v7581 = vpop.f32.mrb[0].mxu0
        %v7582 = vadd.f32 0.0, %v7581
        %v7583 = vpop.f32.mrb[0].mxu0
        %v7584 = vpop.f32.mrb[0].mxu0
        %v7585 = vadd.f32 0.0, %v7584
        %v7586 = vpop.f32.mrb[0].mxu0
        %7587 = vmatprep.mubr.bf16.mxu0 %v7424
        %7588 = vmatmul.mubr.bf16.gmra.mrb[0].mxu0 %v7423
        %v7589 = vpop.f32.mrb[0].mxu0
        %v7590 = vadd.f32 0.0, %v7589
        %v7591 = vpop.f32.mrb[0].mxu0
        %v7592 = vpop.f32.mrb[0].mxu0
        %v7593 = vadd.f32 0.0, %v7592
        %v7594 = vpop.f32.mrb[0].mxu0
        %7595 = vmatprep.mubr.bf16.mxu0 %v7427
        %7596 = vmatmul.mubr.bf16.gmra.mrb[0].mxu0 %v7426
        %v7597 = vpop.f32.mrb[0].mxu0
        %v7598 = vadd.f32 0.0, %v7597
        %v7599 = vpop.f32.mrb[0].mxu0
        %v7600 = vpop.f32.mrb[0].mxu0
        %v7601 = vadd.f32 0.0, %v7600
        %v7602 = vpop.f32.mrb[0].mxu0
        %7603 = vmatprep.mubr.bf16.mxu0 %v7430
        %7604 = vmatmul.mubr.bf16.gmra.mrb[0].mxu0 %v7429
        %v7605 = vpop.f32.mrb[0].mxu0
        %v7606 = vadd.f32 0.0, %v7605
        %v7607 = vpop.f32.mrb[0].mxu0
        %v7608 = vpop.f32.mrb[0].mxu0
        %v7609 = vadd.f32 0.0, %v7608
        %v7610 = vpop.f32.mrb[0].mxu0
        %7611 = vmatprep.mubr.bf16.mxu0 %v7433
        %7612 = vmatmul.mubr.bf16.gmra.mrb[0].mxu0 %v7432
        %v7613 = vpop.f32.mrb[0].mxu0
        %v7614 = vadd.f32 0.0, %v7613
        %v7615 = vpop.f32.mrb[0].mxu0
        %v7616 = vpop.f32.mrb[0].mxu0
        %v7617 = vadd.f32 0.0, %v7616
        %v7618 = vpop.f32.mrb[0].mxu0
        %7619 = vdwg.mxu0
        %7620 = vmatprep.subr.bf16.mxu0 0
        %7621 = vmatpush1.bf16.msra.mxu0 %v7451
        %7622 = vmatprep.subr.bf16.mxu0 0
        %7623 = vmatpush1.bf16.msra.mxu0 %v7452
        %7624 = vmatprep.subr.bf16.mxu0 0
        %7625 = vmatpush1.bf16.msra.mxu0 %v7453
        %7626 = vmatprep.subr.bf16.mxu0 0
        %7627 = vmatpush1.bf16.msra.mxu0 %v7454
        %7628 = vmatprep.subr.bf16.mxu0 0
        %7629 = vmatpush1.bf16.msra.mxu0 %v7455
        %7630 = vmatprep.subr.bf16.mxu0 0
        %7631 = vmatpush1.bf16.msra.mxu0 %v7456
        %7632 = vmatprep.subr.bf16.mxu0 0
        %7633 = vmatpush1.bf16.msra.mxu0 %v7457
        %7634 = vmatprep.subr.bf16.mxu0 0
        %7635 = vmatpush1.bf16.msra.mxu0 %v7458
        %7636 = vmatprep.subr.bf16.mxu0 0
        %7637 = vmatpush1.bf16.msra.mxu0 0
        %7638 = vmatprep.subr.bf16.mxu0 0
        %7639 = vmatpush1.bf16.msra.mxu0 0
        %7640 = vmatprep.subr.bf16.mxu0 0
        %7641 = vmatpush1.bf16.msra.mxu0 0
        %7642 = vmatprep.subr.bf16.mxu0 0
        %7643 = vmatpush1.bf16.msra.mxu0 0
        %7644 = vmatprep.subr.bf16.mxu0 0
        %7645 = vmatpush1.bf16.msra.mxu0 0
        %7646 = vmatprep.subr.bf16.mxu0 0
        %7647 = vmatpush1.bf16.msra.mxu0 0
        %7648 = vmatprep.subr.bf16.mxu0 0
        %7649 = vmatpush1.bf16.msra.mxu0 0
        %7650 = vmatprep.subr.bf16.mxu0 0
        %7651 = vmatpush1.bf16.msra.mxu0 0
        %7652 = vmatprep.mubr.bf16.mxu0 0
        %7653 = vmatmul.mubr.bf16.gmra.mrb[0].mxu0 %v7389
        %v7654 = vpop.f32.mrb[0].mxu0
        %v7655 = vadd.f32 %v7494, %v7654
        %v7656 = vpop.f32.mrb[0].mxu0
        %v7657 = vpop.f32.mrb[0].mxu0
        %v7658 = vadd.f32 %v7497, %v7657
        %v7659 = vpop.f32.mrb[0].mxu0
        %7660 = vmatprep.mubr.bf16.mxu0 0
        %7661 = vmatmul.mubr.bf16.gmra.mrb[0].mxu0 %v7392
        %v7662 = vpop.f32.mrb[0].mxu0
        %v7663 = vadd.f32 %v7502, %v7662
        %v7664 = vpop.f32.mrb[0].mxu0
        %v7665 = vpop.f32.mrb[0].mxu0
        %v7666 = vadd.f32 %v7505, %v7665
        %v7667 = vpop.f32.mrb[0].mxu0
        %7668 = vmatprep.mubr.bf16.mxu0 0
        %7669 = vmatmul.mubr.bf16.gmra.mrb[0].mxu0 %v7395
        %v7670 = vpop.f32.mrb[0].mxu0
        %v7671 = vadd.f32 %v7510, %v7670
        %v7672 = vpop.f32.mrb[0].mxu0
        %v7673 = vpop.f32.mrb[0].mxu0
        %v7674 = vadd.f32 %v7513, %v7673
        %v7675 = vpop.f32.mrb[0].mxu0
        %7676 = vmatprep.mubr.bf16.mxu0 0
        %7677 = vmatmul.mubr.bf16.gmra.mrb[0].mxu0 %v7398
        %v7678 = vpop.f32.mrb[0].mxu0
        %v7679 = vadd.f32 %v7518, %v7678
        %v7680 = vpop.f32.mrb[0].mxu0
        %v7681 = vpop.f32.mrb[0].mxu0
        %v7682 = vadd.f32 %v7521, %v7681
        %v7683 = vpop.f32.mrb[0].mxu0
        %7684 = vmatprep.mubr.bf16.mxu0 0
        %7685 = vmatmul.mubr.bf16.gmra.mrb[0].mxu0 %v7401
        %v7686 = vpop.f32.mrb[0].mxu0
        %v7687 = vadd.f32 %v7526, %v7686
        %v7688 = vpop.f32.mrb[0].mxu0
        %v7689 = vpop.f32.mrb[0].mxu0
        %v7690 = vadd.f32 %v7529, %v7689
        %v7691 = vpop.f32.mrb[0].mxu0
        %7692 = vmatprep.mubr.bf16.mxu0 0
        %7693 = vmatmul.mubr.bf16.gmra.mrb[0].mxu0 %v7404
        %v7694 = vpop.f32.mrb[0].mxu0
        %v7695 = vadd.f32 %v7534, %v7694
        %v7696 = vpop.f32.mrb[0].mxu0
        %v7697 = vpop.f32.mrb[0].mxu0
        %v7698 = vadd.f32 %v7537, %v7697
        %v7699 = vpop.f32.mrb[0].mxu0
        %7700 = vmatprep.mubr.bf16.mxu0 0
        %7701 = vmatmul.mubr.bf16.gmra.mrb[0].mxu0 %v7407
        %v7702 = vpop.f32.mrb[0].mxu0
        %v7703 = vadd.f32 %v7542, %v7702
        %v7704 = vpop.f32.mrb[0].mxu0
        %v7705 = vpop.f32.mrb[0].mxu0
        %v7706 = vadd.f32 %v7545, %v7705
        %v7707 = vpop.f32.mrb[0].mxu0
        %7708 = vmatprep.mubr.bf16.mxu0 0
        %7709 = vmatmul.mubr.bf16.gmra.mrb[0].mxu0 %v7410
        %v7710 = vpop.f32.mrb[0].mxu0
        %v7711 = vadd.f32 %v7550, %v7710
        %v7712 = vpop.f32.mrb[0].mxu0
        %v7713 = vpop.f32.mrb[0].mxu0
        %v7714 = vadd.f32 %v7553, %v7713
        %v7715 = vpop.f32.mrb[0].mxu0
        %7716 = vmatprep.mubr.bf16.mxu0 0
        %7717 = vmatmul.mubr.bf16.gmra.mrb[0].mxu0 %v7413
        %v7718 = vpop.f32.mrb[0].mxu0
        %v7719 = vadd.f32 %v7558, %v7718
        %v7720 = vpop.f32.mrb[0].mxu0
        %v7721 = vpop.f32.mrb[0].mxu0
        %v7722 = vadd.f32 %v7561, %v7721
        %v7723 = vpop.f32.mrb[0].mxu0
        %7724 = vmatprep.mubr.bf16.mxu0 0
        %7725 = vmatmul.mubr.bf16.gmra.mrb[0].mxu0 %v7416
        %v7726 = vpop.f32.mrb[0].mxu0
        %v7727 = vadd.f32 %v7566, %v7726
        %v7728 = vpop.f32.mrb[0].mxu0
        %v7729 = vpop.f32.mrb[0].mxu0
        %v7730 = vadd.f32 %v7569, %v7729
        %v7731 = vpop.f32.mrb[0].mxu0
        %7732 = vmatprep.mubr.bf16.mxu0 0
        %7733 = vmatmul.mubr.bf16.gmra.mrb[0].mxu0 %v7419
        %v7734 = vpop.f32.mrb[0].mxu0
        %v7735 = vadd.f32 %v7574, %v7734
        %v7736 = vpop.f32.mrb[0].mxu0
        %v7737 = vpop.f32.mrb[0].mxu0
        %v7738 = vadd.f32 %v7577, %v7737
        %v7739 = vpop.f32.mrb[0].mxu0
        %7740 = vmatprep.mubr.bf16.mxu0 0
        %7741 = vmatmul.mubr.bf16.gmra.mrb[0].mxu0 %v7422
        %v7742 = vpop.f32.mrb[0].mxu0
        %v7743 = vadd.f32 %v7582, %v7742
        %v7744 = vpop.f32.mrb[0].mxu0
        %v7745 = vpop.f32.mrb[0].mxu0
        %v7746 = vadd.f32 %v7585, %v7745
        %v7747 = vpop.f32.mrb[0].mxu0
        %7748 = vmatprep.mubr.bf16.mxu0 0
        %7749 = vmatmul.mubr.bf16.gmra.mrb[0].mxu0 %v7425
        %v7750 = vpop.f32.mrb[0].mxu0
        %v7751 = vadd.f32 %v7590, %v7750
        %v7752 = vpop.f32.mrb[0].mxu0
        %v7753 = vpop.f32.mrb[0].mxu0
        %v7754 = vadd.f32 %v7593, %v7753
        %v7755 = vpop.f32.mrb[0].mxu0
        %7756 = vmatprep.mubr.bf16.mxu0 0
        %7757 = vmatmul.mubr.bf16.gmra.mrb[0].mxu0 %v7428
        %v7758 = vpop.f32.mrb[0].mxu0
        %v7759 = vadd.f32 %v7598, %v7758
        %v7760 = vpop.f32.mrb[0].mxu0
        %v7761 = vpop.f32.mrb[0].mxu0
        %v7762 = vadd.f32 %v7601, %v7761
        %v7763 = vpop.f32.mrb[0].mxu0
        %7764 = vmatprep.mubr.bf16.mxu0 0
        %7765 = vmatmul.mubr.bf16.gmra.mrb[0].mxu0 %v7431
        %v7766 = vpop.f32.mrb[0].mxu0
        %v7767 = vadd.f32 %v7606, %v7766
        %v7768 = vpop.f32.mrb[0].mxu0
        %v7769 = vpop.f32.mrb[0].mxu0
        %v7770 = vadd.f32 %v7609, %v7769
        %v7771 = vpop.f32.mrb[0].mxu0
        %7772 = vmatprep.mubr.bf16.mxu0 0
        %7773 = vmatmul.mubr.bf16.gmra.mrb[0].mxu0 %v7434
        %v7774 = vpop.f32.mrb[0].mxu0
        %v7775 = vadd.f32 %v7614, %v7774
        %v7776 = vpop.f32.mrb[0].mxu0
        %v7777 = vpop.f32.mrb[0].mxu0
        %v7778 = vadd.f32 %v7617, %v7777
        %v7779 = vpop.f32.mrb[0].mxu0
        %7780 = vdwg.mxu0
        %7781 = vst [vmem:[%s218] sm:$0xff] %v7655
        %7782 = vst [vmem:[%s218 + $0x8] sm:$0xff] %v7658
        %7783 = vst [vmem:[%s218 + $0x10] sm:$0xff] %v7663
        %7784 = vst [vmem:[%s218 + $0x18] sm:$0xff] %v7666
        %7785 = vst [vmem:[%s218 + $0x20] sm:$0xff] %v7671
        %7786 = vst [vmem:[%s218 + $0x28] sm:$0xff] %v7674
        %7787 = vst [vmem:[%s218 + $0x30] sm:$0xff] %v7679
        %7788 = vst [vmem:[%s218 + $0x38] sm:$0xff] %v7682
        %7789 = vst [vmem:[%s218 + $0x40] sm:$0xff] %v7687
        %7790 = vst [vmem:[%s218 + $0x48] sm:$0xff] %v7690
        %7791 = vst [vmem:[%s218 + $0x50] sm:$0xff] %v7695
        %7792 = vst [vmem:[%s218 + $0x58] sm:$0xff] %v7698
        %7793 = vst [vmem:[%s218 + $0x60] sm:$0xff] %v7703
        %7794 = vst [vmem:[%s218 + $0x68] sm:$0xff] %v7706
        %7795 = vst [vmem:[%s218 + $0x70] sm:$0xff] %v7711
        %7796 = vst [vmem:[%s218 + $0x78] sm:$0xff] %v7714
        %7797 = vst [vmem:[%s218 + $0x80] sm:$0xff] %v7719
        %7798 = vst [vmem:[%s218 + $0x88] sm:$0xff] %v7722
        %7799 = vst [vmem:[%s218 + $0x90] sm:$0xff] %v7727
        %7800 = vst [vmem:[%s218 + $0x98] sm:$0xff] %v7730
        %7801 = vst [vmem:[%s218 + $0xa0] sm:$0xff] %v7735
        %7802 = vst [vmem:[%s218 + $0xa8] sm:$0xff] %v7738
        %7803 = vst [vmem:[%s218 + $0xb0] sm:$0xff] %v7743
        %7804 = vst [vmem:[%s218 + $0xb8] sm:$0xff] %v7746
        %7805 = vst [vmem:[%s218 + $0xc0] sm:$0xff] %v7751
        %7806 = vst [vmem:[%s218 + $0xc8] sm:$0xff] %v7754
        %7807 = vst [vmem:[%s218 + $0xd0] sm:$0xff] %v7759
        %7808 = vst [vmem:[%s218 + $0xd8] sm:$0xff] %v7762
        %7809 = vst [vmem:[%s218 + $0xe0] sm:$0xff] %v7767
        %7810 = vst [vmem:[%s218 + $0xe8] sm:$0xff] %v7770
        %7811 = vst [vmem:[%s218 + $0xf0] sm:$0xff] %v7775
        %7812 = vst [vmem:[%s218 + $0xf8] sm:$0xff] %v7778
        %s7813 = sand.u32 %s137, 1
        %s7814 = scalar_lea.sflag [#allocation5], %s7813
        %s7815 = sand.u32 %s137, 1
        %s7816 = smul.addr %s7815, 256
        %s7817 = scalar_lea.vmem [#allocation4], %s7816
        // Predicated region
        $region45: #{tpu_custom_call.1} parent=39 // pred_check
          %p7818 = pneg %p147
        $region46: #{tpu_custom_call.1} parent=39 // pred_check_branch
          %7820 = sbr.rel (%p7818) target = $region48
        $region47: #{tpu_custom_call.1} parent=39 // pred_region
          %s7821 = smul.u32 32, %s19
          %s7823 = ssub.s32 4096, 4096
          %7824 = vsyncadd %s7814, %s7823
          %s7825 = smul.addr %s7821, 128
          %s7826 = scalar_lea.hbm %s5, %s7825
          %s7827 = sshll.u32 %s7817, 4
          %s7828 = int_to_ptr.vmem [resolvable:$true] %s7827
          %7833 = dma.vmem_to_hbm [thread:$0]  %s7828, 4096, %s7826, %s7814, 128, 128, 8
        $region48: #{tpu_custom_call.1} parent=39 // pred_fallthru
          _
      $region40: #{tpu_custom_call.1} parent=5 // pred_fallthru
        _
      %p7834 = scmp.le.s32.totalorder 2, %s14
      // Predicated region
      $region49: #{tpu_custom_call.1} parent=5 // pred_check
        %p7835 = pneg %p7834
      $region50: #{tpu_custom_call.1} parent=5 // pred_check_branch
        %7837 = sbr.rel (%p7835) target = $region52
      $region51: #{tpu_custom_call.1} parent=5 // pred_region
        %s7838 = ssub.s32 %s14, 2
        // Predicated region
        $region53: #{tpu_custom_call.1} parent=51 // pred_check
          %p7839 = pneg %p153
        $region54: #{tpu_custom_call.1} parent=51 // pred_check_branch
          %7841 = sbr.rel (%p7839) target = $region56
        $region55: #{tpu_custom_call.1} parent=51 // pred_region
          %s7842 = sand.u32 %s138, 1
          %s7843 = scalar_lea.sflag [#allocation5], %s7842
          %s7844 = sand.u32 %s138, 1
          %s7845 = smul.addr %s7844, 256
          %s7846 = scalar_lea.vmem [#allocation4], %s7845
          %7847 = dma.done %s7843, 4096
        $region56: #{tpu_custom_call.1} parent=51 // pred_fallthru
          _
      $region52: #{tpu_custom_call.1} parent=5 // pred_fallthru
        _
    $region6: #{tpu_custom_call.1} parent=1 // loop_footer
      %s18 = sadd.s32 1, %s14
    $region7: #{tpu_custom_call.1} parent=1 // loop_footer_branch
      %13 = sbr.rel target = $region3
    $region8: #{tpu_custom_call.1} parent=1 // loop_exit
      _
    %7848 = vsyncpa [#allocation5], 1
    %s7849 = scalar_lea.sflag [#allocation5], 1
    %7850 = vsyncpa %s7849, 1

</llo_original>
